<compile_context>
chip_gen: v7x
topology: tpu7x:2x2x1
jax: 0.10.0
libtpu: 0.0.40
codegen_flags: <defaults>
</compile_context>

<pallas_src>
import functools
import numpy as np
import jax
import jax.numpy as jnp
from jax.experimental import pallas as pl
from jax.experimental.pallas import tpu as pltpu

# ----------------------------------------------------------------------------
# Embedded cfg (small YOLOv3-like network: conv/bn/leaky, shortcut, route,
# upsample, two yolo heads).  net height/width = 32, 3 input channels.
# ----------------------------------------------------------------------------
CFG_STRING = """
[net]
height=32
width=32
channels=3

[convolutional]
batch_normalize=1
filters=8
size=3
stride=1
pad=1
activation=leaky

[convolutional]
batch_normalize=1
filters=16
size=3
stride=2
pad=1
activation=leaky

[convolutional]
batch_normalize=1
filters=8
size=1
stride=1
pad=1
activation=leaky

[convolutional]
batch_normalize=1
filters=16
size=3
stride=1
pad=1
activation=leaky

[shortcut]
from=-3
activation=linear

[convolutional]
batch_normalize=1
filters=32
size=3
stride=2
pad=1
activation=leaky

[convolutional]
size=1
stride=1
pad=1
filters=21
activation=linear

[yolo]
mask=0,1,2
anchors=10,13, 16,30, 33,23, 30,61, 62,45, 59,119
classes=2
num=6

[route]
layers=-3

[convolutional]
batch_normalize=1
filters=16
size=1
stride=1
pad=1
activation=leaky

[upsample]
stride=2

[route]
layers=-1, 4

[convolutional]
batch_normalize=1
filters=16
size=3
stride=1
pad=1
activation=leaky

[convolutional]
size=1
stride=1
pad=1
filters=21
activation=linear

[yolo]
mask=3,4,5
anchors=10,13, 16,30, 33,23, 30,61, 62,45, 59,119
classes=2
num=6
"""


def parse_cfg_string(cfg_text):
    lines = cfg_text.split('\n')
    lines = [l for l in lines if len(l) > 0 and l[0] != '#']
    lines = [l.strip() for l in lines]
    lines = [l for l in lines if len(l) > 0]
    blocks = []
    cur = {}
    for line in lines:
        if line[0] == '[':
            if len(cur) != 0:
                blocks.append(cur)
                cur = {}
            cur['type'] = ''.join([c for c in line if c not in '[]'])
        else:
            k, v = line.split('=')
            cur[k.rstrip()] = v.lstrip()
    blocks.append(cur)
    return blocks


# ----------------------------------------------------------------------------
# Pallas kernels
# ----------------------------------------------------------------------------
def _conv_gemm_kernel(w_ref, scale_ref, shift_ref, p_ref, *rest, leaky, has_res):
    """(F, K) @ (K, tm) on the MXU; f32 epilogue: BN scale/shift, LeakyReLU,
    optional fused residual add.  Output is lane-dense (tm in the lane axis)."""
    if has_res:
        res_ref, o_ref = rest
    else:
        (o_ref,) = rest
    acc = jnp.dot(w_ref[...], p_ref[0], preferred_element_type=jnp.float32)  # (F, tm)
    y = acc * scale_ref[...] + shift_ref[...]
    if leaky:
        y = jnp.where(y > 0, y, 0.1 * y)
    if has_res:
        y = y + res_ref[0]
    o_ref[0] = y


def conv_gemm(patches, wmat, scale, shift, leaky, residual=None):
    """patches: (N, K, M) bf16, wmat: (F, K) bf16, scale/shift: (F, 1) f32.
    Returns (N, F, M) f32 with M (spatial) as the lane axis."""
    N, K, M = patches.shape
    F = wmat.shape[0]
    # largest lane tile that divides M (no divisibility footgun)
    if M % 512 == 0:
        tm = 512
    elif M % 256 == 0:
        tm = 256
    elif M % 128 == 0:
        tm = 128
    else:
        tm = M                                   # full-extent block is always legal
    grid = (N, M // tm)

    kernel = functools.partial(_conv_gemm_kernel, leaky=leaky,
                               has_res=residual is not None)
    in_specs = [
        pl.BlockSpec((F, K), lambda n, m: (0, 0)),        # weights, resident
        pl.BlockSpec((F, 1), lambda n, m: (0, 0)),        # scale
        pl.BlockSpec((F, 1), lambda n, m: (0, 0)),        # shift
        pl.BlockSpec((1, K, tm), lambda n, m: (n, 0, m)),  # patches tile
    ]
    args = [wmat, scale, shift, patches]
    if residual is not None:
        in_specs.append(pl.BlockSpec((1, F, tm), lambda n, m: (n, 0, m)))
        args.append(residual)

    return pl.pallas_call(
        kernel,
        out_shape=jax.ShapeDtypeStruct((N, F, M), jnp.float32),
        grid=grid,
        in_specs=in_specs,
        out_specs=pl.BlockSpec((1, F, tm), lambda n, m: (n, 0, m)),
        compiler_params=pltpu.CompilerParams(
            dimension_semantics=("parallel", "parallel"),
            vmem_limit_bytes=32 * 1024 * 1024),
    )(*args)


def _add_kernel(a_ref, b_ref, o_ref):
    o_ref[...] = a_ref[...] + b_ref[...]


def shortcut_add(a, b):
    """Standalone residual add (only used when the add cannot be fused into the
    producing conv).  Lane-dense view: (N, C, H*W)."""
    N, C, H, W = a.shape
    a2 = a.reshape(N, C, H * W)
    b2 = b.reshape(N, C, H * W)
    out = pl.pallas_call(
        _add_kernel,
        out_shape=jax.ShapeDtypeStruct(a2.shape, a2.dtype),
        grid=(N,),
        in_specs=[pl.BlockSpec((1, C, H * W), lambda n: (n, 0, 0)),
                  pl.BlockSpec((1, C, H * W), lambda n: (n, 0, 0))],
        out_specs=pl.BlockSpec((1, C, H * W), lambda n: (n, 0, 0)),
        compiler_params=pltpu.CompilerParams(dimension_semantics=("parallel",)),
    )(a2, b2)
    return out.reshape(a.shape)


def _upsample_kernel(bdh_ref, awt_ref, x_ref, o_ref):
    # x_ref: (1, C*H, W); awt: (W, 2W); bdh: blockdiag(A_h) (C*2H, C*H)
    # out = blockdiag(A_h) @ (x @ A_w^T)  == exact separable bilinear (x2,
    # align_corners=False) with edge clamping baked into the matrices.
    x1 = jnp.dot(x_ref[0], awt_ref[...], preferred_element_type=jnp.float32)   # (C*H, 2W)
    o_ref[0] = jnp.dot(bdh_ref[...], x1, preferred_element_type=jnp.float32)   # (C*2H, 2W)


def _bilinear_matrix(n):
    """(2n, n) row-interpolation matrix for scale_factor=2 bilinear,
    align_corners=False, edge-clamped (matches torch.nn.Upsample)."""
    A = np.zeros((2 * n, n), np.float32)
    for o in range(2 * n):
        s = (o + 0.5) / 2.0 - 0.5
        i0 = int(np.floor(s))
        f = s - i0
        lo = min(max(i0, 0), n - 1)
        hi = min(max(i0 + 1, 0), n - 1)
        A[o, lo] += 1.0 - f
        A[o, hi] += f
    return A


def upsample2x_bilinear(x):
    N, C, H, W = x.shape
    ah = _bilinear_matrix(H)                                   # (2H, H)
    awt = np.ascontiguousarray(_bilinear_matrix(W).T)          # (W, 2W)
    # block-diagonal H-interp operator (fine at these demo sizes; C*H = 128)
    bdh = np.kron(np.eye(C, dtype=np.float32), ah)             # (C*2H, C*H)
    bdh = jnp.asarray(bdh)
    awt = jnp.asarray(awt)

    xf = x.reshape(N, C * H, W)
    out = pl.pallas_call(
        _upsample_kernel,
        out_shape=jax.ShapeDtypeStruct((N, C * 2 * H, 2 * W), jnp.float32),
        grid=(N,),
        in_specs=[
            pl.BlockSpec((C * 2 * H, C * H), lambda n: (0, 0)),
            pl.BlockSpec((W, 2 * W), lambda n: (0, 0)),
            pl.BlockSpec((1, C * H, W), lambda n: (n, 0, 0)),
        ],
        out_specs=pl.BlockSpec((1, C * 2 * H, 2 * W), lambda n: (n, 0, 0)),
        compiler_params=pltpu.CompilerParams(dimension_semantics=("parallel",)),
    )(bdh, awt, xf)
    return out.reshape(N, C, 2 * H, 2 * W)


def _yolo_kernel(add_ref, mul_ref, iswh_ref, x_ref, o_ref):
    # Lane-dense layout: (C = A*bbox) x (M = G*G); lane axis = M.
    v = x_ref[0]                                        # (C, M) f32
    iswh = iswh_ref[...] > 0.5                          # (C, 1)
    sig = 1.0 / (1.0 + jnp.exp(-v))
    vexp = jnp.exp(jnp.minimum(v, 80.0))                # clamp -> no inf in unused branch
    o_ref[0] = jnp.where(iswh, vexp, sig + add_ref[...]) * mul_ref[...]


def yolo_layer(x, anchors, inp_dim, num_classes):
    N, Cch, G, _ = x.shape
    A = len(anchors)
    bbox = 5 + num_classes
    stride = inp_dim // G
    assert Cch == A * bbox
    M = G * G

    # Per-channel constants in the conv (channel-major) layout:
    #   channel c = a*bbox + attr
    mul = np.ones((Cch, 1), np.float32)
    iswh = np.zeros((Cch, 1), np.float32)
    add = np.zeros((Cch, M), np.float32)
    gx = np.tile(np.arange(G, dtype=np.float32), G)        # m % G  (x offset)
    gy = np.repeat(np.arange(G, dtype=np.float32), G)      # m // G (y offset)
    for a in range(A):
        mul[a * bbox + 0, 0] = float(stride)
        mul[a * bbox + 1, 0] = float(stride)
        mul[a * bbox + 2, 0] = float(anchors[a][0])        # exp*(anchor/stride)*stride
        mul[a * bbox + 3, 0] = float(anchors[a][1])
        iswh[a * bbox + 2, 0] = 1.0
        iswh[a * bbox + 3, 0] = 1.0
        add[a * bbox + 0, :] = gx
        add[a * bbox + 1, :] = gy

    xf = x.reshape(N, Cch, M)
    out = pl.pallas_call(
        _yolo_kernel,
        out_shape=jax.ShapeDtypeStruct((N, Cch, M), jnp.float32),
        grid=(N,),
        in_specs=[
            pl.BlockSpec((Cch, M), lambda n: (0, 0)),
            pl.BlockSpec((Cch, 1), lambda n: (0, 0)),
            pl.BlockSpec((Cch, 1), lambda n: (0, 0)),
            pl.BlockSpec((1, Cch, M), lambda n: (n, 0, 0)),
        ],
        out_specs=pl.BlockSpec((1, Cch, M), lambda n: (n, 0, 0)),
        compiler_params=pltpu.CompilerParams(dimension_semantics=("parallel",)),
    )(jnp.asarray(add), jnp.asarray(mul), jnp.asarray(iswh), xf)

    # channel-major (N, A*bbox, G*G) -> torch layout (N, G*G*A, bbox); tiny glue.
    out = out.reshape(N, A, bbox, M).transpose(0, 3, 1, 2).reshape(N, M * A, bbox)
    return out


# ----------------------------------------------------------------------------
# Convolution via transposed im2col + Pallas GEMM
# ----------------------------------------------------------------------------
def im2col_t(x, k, stride, pad):
    """Return patches in (N, C*k*k, OH*OW) layout (GEMM-ready, lane = spatial)."""
    N, C, H, W = x.shape
    OH = (H + 2 * pad - k) // stride + 1
    OW = (W + 2 * pad - k) // stride + 1
    xp = jnp.pad(x, ((0, 0), (0, 0), (pad, pad), (pad, pad)))
    cols = []
    for dy in range(k):
        for dx in range(k):
            cols.append(xp[:, :, dy:dy + stride * OH:stride, dx:dx + stride * OW:stride])
    p = jnp.stack(cols, axis=2)                 # (N, C, k*k, OH, OW)
    return p.reshape(N, C * k * k, OH * OW), OH, OW


def conv_layer(x, p, residual=None):
    N, C, H, W = x.shape
    k, stride = p['ksize'], p['stride']
    F_ = p['filters']
    xb = x.astype(jnp.bfloat16)                 # bf16 MXU inputs; epilogue stays f32
    if k == 1:
        xs = xb[:, :, ::stride, ::stride] if stride > 1 else xb
        OH, OW = xs.shape[2], xs.shape[3]
        patches = xs.reshape(N, C, OH * OW)     # 1x1: no im2col needed
    else:
        patches, OH, OW = im2col_t(xb, k, stride, p['pad'])
    res = None if residual is None else residual.reshape(N, F_, OH * OW)
    out = conv_gemm(patches, p['wmat'], p['scale'], p['shift'], p['leaky'], res)
    return out.reshape(N, F_, OH, OW)


# ----------------------------------------------------------------------------
# Model construction (deterministic synthetic parameters) and forward
# ----------------------------------------------------------------------------
def build_params(blocks, key):
    net_info = blocks[0]
    channels = int(net_info.get('channels', 3))
    params = []
    output_filters = []
    filters = channels
    for i, block in enumerate(blocks[1:]):
        p = {'type': block['type']}
        if block['type'] == 'convolutional':
            filters = int(block['filters'])
            k = int(block['size'])
            stride = int(block['stride'])
            pad = (k - 1) // 2
            bn = 'batch_normalize' in block
            key, k1, k2, k3, k4, k5, k6 = jax.random.split(key, 7)
            fan_in = channels * k * k
            w = jax.random.normal(k1, (filters, channels, k, k), jnp.float32)
            w = w * (0.5 / np.sqrt(fan_in))
            if bn:
                gamma = 1.0 + 0.1 * jax.random.normal(k2, (filters,), jnp.float32)
                beta = 0.05 * jax.random.normal(k3, (filters,), jnp.float32)
                mean = 0.05 * jax.random.normal(k4, (filters,), jnp.float32)
                var = 1.0 + 0.1 * jax.random.uniform(k5, (filters,), jnp.float32)
                scale = gamma / jnp.sqrt(var + 1e-5)
                shift = beta - mean * scale
            else:
                bias = 0.05 * jax.random.normal(k6, (filters,), jnp.float32)
                scale = jnp.ones((filters,), jnp.float32)
                shift = bias
            p.update(wmat=jnp.asarray(w.reshape(filters, channels * k * k), jnp.bfloat16),
                     scale=scale.reshape(filters, 1).astype(jnp.float32),
                     shift=shift.reshape(filters, 1).astype(jnp.float32),
                     ksize=k, stride=stride, pad=pad, filters=filters,
                     leaky=(block['activation'] == 'leaky'))
        elif block['type'] == 'route':
            layers = [int(a) for a in block['layers'].split(',')]
            if len(layers) > 1:
                layers[1] = layers[1] - i       # same transform as create_model
            p['layers'] = layers
            if len(layers) == 1:
                filters = output_filters[i + layers[0]]
            else:
                filters = output_filters[i + layers[0]] + output_filters[i + layers[1]]
        elif block['type'] == 'shortcut':
            p['from'] = int(block['from'])
        elif block['type'] == 'yolo':
            mask = [int(m) for m in block['mask'].split(',')]
            anchors = [int(a) for a in block['anchors'].split(',')]
            anchors = [(anchors[j], anchors[j + 1]) for j in range(0, len(anchors), 2)]
            anchors = [anchors[m] for m in mask]
            p['anchors'] = anchors
            p['classes'] = int(block['classes'])
        elif block['type'] == 'upsample':
            pass
        params.append(p)
        output_filters.append(filters)
        channels = filters
    return net_info, params


def analyze_shortcut_fusion(params):
    """Shortcut layers whose preceding conv output is ONLY consumed by that
    shortcut -> the residual add can be fused into the conv epilogue."""
    refs = {}

    def add_ref(idx, by):
        refs.setdefault(idx, []).append(by)

    for j, p in enumerate(params):
        t = p['type']
        if t == 'route':
            for off in p['layers']:
                add_ref(j + off, j)
        elif t == 'shortcut':
            add_ref(j - 1, j)
            add_ref(j + p['from'], j)
        elif t == 'yolo':
            add_ref(j - 1, j)               # outputs[j] aliases outputs[j-1]

    fused = set()
    for j, p in enumerate(params):
        if p['type'] == 'shortcut' and j >= 1:
            i = j - 1
            if params[i]['type'] == 'convolutional' and refs.get(i, []) == [j]:
                fused.add(j)
    return fused


def darknet_forward(net_info, params, x):
    inp_dim = int(net_info['height'])
    fused_shortcuts = analyze_shortcut_fusion(params)
    outputs = {}
    detections = []
    for i, p in enumerate(params):
        t = p['type']
        if t == 'convolutional':
            residual = None
            if (i + 1) in fused_shortcuts:
                residual = outputs[i + 1 + params[i + 1]['from']]
            x = conv_layer(x, p, residual=residual)
            outputs[i] = x
        elif t == 'upsample':
            x = upsample2x_bilinear(x)
            outputs[i] = x
        elif t == 'route':
            layers = p['layers']
            if len(layers) == 1:
                x = outputs[i + layers[0]]
            else:
                x = jnp.concatenate([outputs[i + layers[0]], outputs[i + layers[1]]], axis=1)
            outputs[i] = x
        elif t == 'shortcut':
            if i in fused_shortcuts:
                x = outputs[i - 1]          # add already fused into previous conv
            else:
                x = shortcut_add(outputs[i - 1], outputs[i + p['from']])
            outputs[i] = x
        elif t == 'yolo':
            det = yolo_layer(x, p['anchors'], inp_dim, p['classes'])
            detections.append(det)
            outputs[i] = outputs[i - 1]
    return jnp.concatenate(detections, axis=1)


if __name__ == "__main__":
    key = jax.random.PRNGKey(0)
    key, pkey, xkey = jax.random.split(key, 3)

    blocks = parse_cfg_string(CFG_STRING)
    net_info, params = build_params(blocks, pkey)

    inp_dim = int(net_info['height'])
    batch_size = 2
    x = jax.random.normal(xkey, (batch_size, 3, inp_dim, inp_dim), jnp.float32)

    forward_fn = jax.jit(lambda inp: darknet_forward(net_info, params, inp))
    detections = forward_fn(x)
    detections = jax.block_until_ready(detections)

    expected = (batch_size, 8 * 8 * 3 + 16 * 16 * 3, 7)   # two yolo heads, 3 anchors, 5+2 attrs
    assert detections.shape == expected, (detections.shape, expected)
    assert bool(jnp.all(jnp.isfinite(detections)))
    print("KERNEL_OK")
</pallas_src>

<mosaic_0001>
module attributes {stable_mosaic.version = 11 : i64} {
  func.func @_conv_gemm_kernel(%arg0: i32, %arg1: i32, %arg2: memref<8x27xbf16, #tpu.memory_space<vmem>>, %arg3: memref<8x1xf32, #tpu.memory_space<vmem>>, %arg4: memref<8x1xf32, #tpu.memory_space<vmem>>, %arg5: memref<1x27x512xbf16, #tpu.memory_space<vmem>>, %arg6: memref<1x8x512xf32, #tpu.memory_space<vmem>>) attributes {dimension_semantics = [#tpu.dimension_semantics<parallel>, #tpu.dimension_semantics<parallel>], iteration_bounds = array<i64: 2, 2>, scalar_prefetch = 0 : i64, scratch_operands = 0 : i64, tpu.core_type = #tpu.core_type<tc>, window_params = [{pipeline_mode = #tpu.pipeline_mode<synchronous>, transform_indices = @transform_0, window_bounds = array<i64: 8, 27>}, {pipeline_mode = #tpu.pipeline_mode<synchronous>, transform_indices = @transform_1, window_bounds = array<i64: 8, 1>}, {pipeline_mode = #tpu.pipeline_mode<synchronous>, transform_indices = @transform_2, window_bounds = array<i64: 8, 1>}, {transform_indices = @transform_3, window_bounds = array<i64: 1, 27, 512>}, {transform_indices = @transform_4, window_bounds = array<i64: 1, 8, 512>}]} {
    %c0 = arith.constant 0 : index
    %c0_0 = arith.constant 0 : index
    %0 = vector.load %arg2[%c0, %c0_0] : memref<8x27xbf16, #tpu.memory_space<vmem>>, vector<8x27xbf16>
    %c0_1 = arith.constant 0 : index
    %c0_2 = arith.constant 0 : index
    %c0_3 = arith.constant 0 : index
    %1 = vector.load %arg5[%c0_1, %c0_2, %c0_3] : memref<1x27x512xbf16, #tpu.memory_space<vmem>>, vector<1x27x512xbf16>
    %2 = vector.shape_cast %1 : vector<1x27x512xbf16> to vector<27x512xbf16>
    %cst = arith.constant dense<0.000000e+00> : vector<8x512xf32>
    %3 = tpu.matmul %0, %2, %cst {dimension_numbers = #tpu.dot_dimension_numbers<[1], [0], [0], [1], [0, 0, 1, 1], [], []>} : vector<8x27xbf16>, vector<27x512xbf16>, vector<8x512xf32> -> vector<8x512xf32>
    %c0_4 = arith.constant 0 : index
    %c0_5 = arith.constant 0 : index
    %4 = vector.load %arg3[%c0_4, %c0_5] : memref<8x1xf32, #tpu.memory_space<vmem>>, vector<8x1xf32>
    %5 = vector.broadcast %4 : vector<8x1xf32> to vector<8x512xf32>
    %6 = arith.mulf %3, %5 : vector<8x512xf32>
    %c0_6 = arith.constant 0 : index
    %c0_7 = arith.constant 0 : index
    %7 = vector.load %arg4[%c0_6, %c0_7] : memref<8x1xf32, #tpu.memory_space<vmem>>, vector<8x1xf32>
    %8 = vector.broadcast %7 : vector<8x1xf32> to vector<8x512xf32>
    %9 = arith.addf %6, %8 : vector<8x512xf32>
    %cst_8 = arith.constant 0.000000e+00 : f32
    %10 = vector.broadcast %cst_8 : f32 to vector<8x512xf32>
    %11 = arith.cmpf ogt, %9, %10 : vector<8x512xf32>
    %cst_9 = arith.constant 1.000000e-01 : f32
    %12 = vector.broadcast %cst_9 : f32 to vector<8x512xf32>
    %13 = arith.mulf %12, %9 : vector<8x512xf32>
    %14 = arith.select %11, %9, %13 : vector<8x512xi1>, vector<8x512xf32>
    %c0_10 = arith.constant 0 : index
    %c0_11 = arith.constant 0 : index
    %c0_12 = arith.constant 0 : index
    %15 = vector.load %arg6[%c0_10, %c0_11, %c0_12] : memref<1x8x512xf32, #tpu.memory_space<vmem>>, vector<1x8x512xf32>
    %16 = vector.shape_cast %15 : vector<1x8x512xf32> to vector<8x512xf32>
    %17 = vector.shape_cast %14 : vector<8x512xf32> to vector<1x8x512xf32>
    tpu.vector_store %arg6[%c0_10, %c0_11, %c0_12], %17 {strides = array<i32>} : memref<1x8x512xf32, #tpu.memory_space<vmem>>, vector<1x8x512xf32>,
    return
  }
  func.func @transform_0(%arg0: i32, %arg1: i32) -> (i32, i32) {
    %c0_i32 = arith.constant 0 : i32
    %c0_i32_0 = arith.constant 0 : i32
    %c0_i32_1 = arith.constant 0 : i32
    return %c0_i32, %c0_i32_0 : i32, i32
  }
  func.func @transform_1(%arg0: i32, %arg1: i32) -> (i32, i32) {
    %c0_i32 = arith.constant 0 : i32
    %c0_i32_0 = arith.constant 0 : i32
    %c0_i32_1 = arith.constant 0 : i32
    return %c0_i32, %c0_i32_0 : i32, i32
  }
  func.func @transform_2(%arg0: i32, %arg1: i32) -> (i32, i32) {
    %c0_i32 = arith.constant 0 : i32
    %c0_i32_0 = arith.constant 0 : i32
    %c0_i32_1 = arith.constant 0 : i32
    return %c0_i32, %c0_i32_0 : i32, i32
  }
  func.func @transform_3(%arg0: i32, %arg1: i32) -> (i32, i32, i32) {
    %c0_i32 = arith.constant 0 : i32
    %c0_i32_0 = arith.constant 0 : i32
    return %arg0, %c0_i32, %arg1 : i32, i32, i32
  }
  func.func @transform_4(%arg0: i32, %arg1: i32) -> (i32, i32, i32) {
    %c0_i32 = arith.constant 0 : i32
    %c0_i32_0 = arith.constant 0 : i32
    return %arg0, %c0_i32, %arg1 : i32, i32, i32
  }
}

module attributes {stable_mosaic.version = 11 : i64} {
  func.func @_conv_gemm_kernel(%arg0: i32, %arg1: i32, %arg2: memref<16x72xbf16, #tpu.memory_space<vmem>>, %arg3: memref<16x1xf32, #tpu.memory_space<vmem>>, %arg4: memref<16x1xf32, #tpu.memory_space<vmem>>, %arg5: memref<1x72x256xbf16, #tpu.memory_space<vmem>>, %arg6: memref<1x16x256xf32, #tpu.memory_space<vmem>>) attributes {dimension_semantics = [#tpu.dimension_semantics<parallel>, #tpu.dimension_semantics<parallel>], iteration_bounds = array<i64: 2, 1>, scalar_prefetch = 0 : i64, scratch_operands = 0 : i64, tpu.core_type = #tpu.core_type<tc>, window_params = [{pipeline_mode = #tpu.pipeline_mode<synchronous>, transform_indices = @transform_0, window_bounds = array<i64: 16, 72>}, {pipeline_mode = #tpu.pipeline_mode<synchronous>, transform_indices = @transform_1, window_bounds = array<i64: 16, 1>}, {pipeline_mode = #tpu.pipeline_mode<synchronous>, transform_indices = @transform_2, window_bounds = array<i64: 16, 1>}, {transform_indices = @transform_3, window_bounds = array<i64: 1, 72, 256>}, {transform_indices = @transform_4, window_bounds = array<i64: 1, 16, 256>}]} {
    %c0 = arith.constant 0 : index
    %c0_0 = arith.constant 0 : index
    %0 = vector.load %arg2[%c0, %c0_0] : memref<16x72xbf16, #tpu.memory_space<vmem>>, vector<16x72xbf16>
    %c0_1 = arith.constant 0 : index
    %c0_2 = arith.constant 0 : index
    %c0_3 = arith.constant 0 : index
    %1 = vector.load %arg5[%c0_1, %c0_2, %c0_3] : memref<1x72x256xbf16, #tpu.memory_space<vmem>>, vector<1x72x256xbf16>
    %2 = vector.shape_cast %1 : vector<1x72x256xbf16> to vector<72x256xbf16>
    %cst = arith.constant dense<0.000000e+00> : vector<16x256xf32>
    %3 = tpu.matmul %0, %2, %cst {dimension_numbers = #tpu.dot_dimension_numbers<[1], [0], [0], [1], [0, 0, 1, 1], [], []>} : vector<16x72xbf16>, vector<72x256xbf16>, vector<16x256xf32> -> vector<16x256xf32>
    %c0_4 = arith.constant 0 : index
    %c0_5 = arith.constant 0 : index
    %4 = vector.load %arg3[%c0_4, %c0_5] : memref<16x1xf32, #tpu.memory_space<vmem>>, vector<16x1xf32>
    %5 = vector.broadcast %4 : vector<16x1xf32> to vector<16x256xf32>
    %6 = arith.mulf %3, %5 : vector<16x256xf32>
    %c0_6 = arith.constant 0 : index
    %c0_7 = arith.constant 0 : index
    %7 = vector.load %arg4[%c0_6, %c0_7] : memref<16x1xf32, #tpu.memory_space<vmem>>, vector<16x1xf32>
    %8 = vector.broadcast %7 : vector<16x1xf32> to vector<16x256xf32>
    %9 = arith.addf %6, %8 : vector<16x256xf32>
    %cst_8 = arith.constant 0.000000e+00 : f32
    %10 = vector.broadcast %cst_8 : f32 to vector<16x256xf32>
    %11 = arith.cmpf ogt, %9, %10 : vector<16x256xf32>
    %cst_9 = arith.constant 1.000000e-01 : f32
    %12 = vector.broadcast %cst_9 : f32 to vector<16x256xf32>
    %13 = arith.mulf %12, %9 : vector<16x256xf32>
    %14 = arith.select %11, %9, %13 : vector<16x256xi1>, vector<16x256xf32>
    %c0_10 = arith.constant 0 : index
    %c0_11 = arith.constant 0 : index
    %c0_12 = arith.constant 0 : index
    %15 = vector.load %arg6[%c0_10, %c0_11, %c0_12] : memref<1x16x256xf32, #tpu.memory_space<vmem>>, vector<1x16x256xf32>
    %16 = vector.shape_cast %15 : vector<1x16x256xf32> to vector<16x256xf32>
    %17 = vector.shape_cast %14 : vector<16x256xf32> to vector<1x16x256xf32>
    tpu.vector_store %arg6[%c0_10, %c0_11, %c0_12], %17 {strides = array<i32>} : memref<1x16x256xf32, #tpu.memory_space<vmem>>, vector<1x16x256xf32>,
    return
  }
  func.func @transform_0(%arg0: i32, %arg1: i32) -> (i32, i32) {
    %c0_i32 = arith.constant 0 : i32
    %c0_i32_0 = arith.constant 0 : i32
    %c0_i32_1 = arith.constant 0 : i32
    return %c0_i32, %c0_i32_0 : i32, i32
  }
  func.func @transform_1(%arg0: i32, %arg1: i32) -> (i32, i32) {
    %c0_i32 = arith.constant 0 : i32
    %c0_i32_0 = arith.constant 0 : i32
    %c0_i32_1 = arith.constant 0 : i32
    return %c0_i32, %c0_i32_0 : i32, i32
  }
  func.func @transform_2(%arg0: i32, %arg1: i32) -> (i32, i32) {
    %c0_i32 = arith.constant 0 : i32
    %c0_i32_0 = arith.constant 0 : i32
    %c0_i32_1 = arith.constant 0 : i32
    return %c0_i32, %c0_i32_0 : i32, i32
  }
  func.func @transform_3(%arg0: i32, %arg1: i32) -> (i32, i32, i32) {
    %c0_i32 = arith.constant 0 : i32
    %c0_i32_0 = arith.constant 0 : i32
    return %arg0, %c0_i32, %arg1 : i32, i32, i32
  }
  func.func @transform_4(%arg0: i32, %arg1: i32) -> (i32, i32, i32) {
    %c0_i32 = arith.constant 0 : i32
    %c0_i32_0 = arith.constant 0 : i32
    return %arg0, %c0_i32, %arg1 : i32, i32, i32
  }
}

module attributes {stable_mosaic.version = 11 : i64} {
  func.func @_conv_gemm_kernel(%arg0: i32, %arg1: i32, %arg2: memref<8x16xbf16, #tpu.memory_space<vmem>>, %arg3: memref<8x1xf32, #tpu.memory_space<vmem>>, %arg4: memref<8x1xf32, #tpu.memory_space<vmem>>, %arg5: memref<1x16x256xbf16, #tpu.memory_space<vmem>>, %arg6: memref<1x8x256xf32, #tpu.memory_space<vmem>>) attributes {dimension_semantics = [#tpu.dimension_semantics<parallel>, #tpu.dimension_semantics<parallel>], iteration_bounds = array<i64: 2, 1>, scalar_prefetch = 0 : i64, scratch_operands = 0 : i64, tpu.core_type = #tpu.core_type<tc>, window_params = [{pipeline_mode = #tpu.pipeline_mode<synchronous>, transform_indices = @transform_0, window_bounds = array<i64: 8, 16>}, {pipeline_mode = #tpu.pipeline_mode<synchronous>, transform_indices = @transform_1, window_bounds = array<i64: 8, 1>}, {pipeline_mode = #tpu.pipeline_mode<synchronous>, transform_indices = @transform_2, window_bounds = array<i64: 8, 1>}, {transform_indices = @transform_3, window_bounds = array<i64: 1, 16, 256>}, {transform_indices = @transform_4, window_bounds = array<i64: 1, 8, 256>}]} {
    %c0 = arith.constant 0 : index
    %c0_0 = arith.constant 0 : index
    %0 = vector.load %arg2[%c0, %c0_0] : memref<8x16xbf16, #tpu.memory_space<vmem>>, vector<8x16xbf16>
    %c0_1 = arith.constant 0 : index
    %c0_2 = arith.constant 0 : index
    %c0_3 = arith.constant 0 : index
    %1 = vector.load %arg5[%c0_1, %c0_2, %c0_3] : memref<1x16x256xbf16, #tpu.memory_space<vmem>>, vector<1x16x256xbf16>
    %2 = vector.shape_cast %1 : vector<1x16x256xbf16> to vector<16x256xbf16>
    %cst = arith.constant dense<0.000000e+00> : vector<8x256xf32>
    %3 = tpu.matmul %0, %2, %cst {dimension_numbers = #tpu.dot_dimension_numbers<[1], [0], [0], [1], [0, 0, 1, 1], [], []>} : vector<8x16xbf16>, vector<16x256xbf16>, vector<8x256xf32> -> vector<8x256xf32>
    %c0_4 = arith.constant 0 : index
    %c0_5 = arith.constant 0 : index
    %4 = vector.load %arg3[%c0_4, %c0_5] : memref<8x1xf32, #tpu.memory_space<vmem>>, vector<8x1xf32>
    %5 = vector.broadcast %4 : vector<8x1xf32> to vector<8x256xf32>
    %6 = arith.mulf %3, %5 : vector<8x256xf32>
    %c0_6 = arith.constant 0 : index
    %c0_7 = arith.constant 0 : index
    %7 = vector.load %arg4[%c0_6, %c0_7] : memref<8x1xf32, #tpu.memory_space<vmem>>, vector<8x1xf32>
    %8 = vector.broadcast %7 : vector<8x1xf32> to vector<8x256xf32>
    %9 = arith.addf %6, %8 : vector<8x256xf32>
    %cst_8 = arith.constant 0.000000e+00 : f32
    %10 = vector.broadcast %cst_8 : f32 to vector<8x256xf32>
    %11 = arith.cmpf ogt, %9, %10 : vector<8x256xf32>
    %cst_9 = arith.constant 1.000000e-01 : f32
    %12 = vector.broadcast %cst_9 : f32 to vector<8x256xf32>
    %13 = arith.mulf %12, %9 : vector<8x256xf32>
    %14 = arith.select %11, %9, %13 : vector<8x256xi1>, vector<8x256xf32>
    %c0_10 = arith.constant 0 : index
    %c0_11 = arith.constant 0 : index
    %c0_12 = arith.constant 0 : index
    %15 = vector.load %arg6[%c0_10, %c0_11, %c0_12] : memref<1x8x256xf32, #tpu.memory_space<vmem>>, vector<1x8x256xf32>
    %16 = vector.shape_cast %15 : vector<1x8x256xf32> to vector<8x256xf32>
    %17 = vector.shape_cast %14 : vector<8x256xf32> to vector<1x8x256xf32>
    tpu.vector_store %arg6[%c0_10, %c0_11, %c0_12], %17 {strides = array<i32>} : memref<1x8x256xf32, #tpu.memory_space<vmem>>, vector<1x8x256xf32>,
    return
  }
  func.func @transform_0(%arg0: i32, %arg1: i32) -> (i32, i32) {
    %c0_i32 = arith.constant 0 : i32
    %c0_i32_0 = arith.constant 0 : i32
    %c0_i32_1 = arith.constant 0 : i32
    return %c0_i32, %c0_i32_0 : i32, i32
  }
  func.func @transform_1(%arg0: i32, %arg1: i32) -> (i32, i32) {
    %c0_i32 = arith.constant 0 : i32
    %c0_i32_0 = arith.constant 0 : i32
    %c0_i32_1 = arith.constant 0 : i32
    return %c0_i32, %c0_i32_0 : i32, i32
  }
  func.func @transform_2(%arg0: i32, %arg1: i32) -> (i32, i32) {
    %c0_i32 = arith.constant 0 : i32
    %c0_i32_0 = arith.constant 0 : i32
    %c0_i32_1 = arith.constant 0 : i32
    return %c0_i32, %c0_i32_0 : i32, i32
  }
  func.func @transform_3(%arg0: i32, %arg1: i32) -> (i32, i32, i32) {
    %c0_i32 = arith.constant 0 : i32
    %c0_i32_0 = arith.constant 0 : i32
    return %arg0, %c0_i32, %arg1 : i32, i32, i32
  }
  func.func @transform_4(%arg0: i32, %arg1: i32) -> (i32, i32, i32) {
    %c0_i32 = arith.constant 0 : i32
    %c0_i32_0 = arith.constant 0 : i32
    return %arg0, %c0_i32, %arg1 : i32, i32, i32
  }
}

module attributes {stable_mosaic.version = 11 : i64} {
  func.func @_conv_gemm_kernel(%arg0: i32, %arg1: i32, %arg2: memref<16x72xbf16, #tpu.memory_space<vmem>>, %arg3: memref<16x1xf32, #tpu.memory_space<vmem>>, %arg4: memref<16x1xf32, #tpu.memory_space<vmem>>, %arg5: memref<1x72x256xbf16, #tpu.memory_space<vmem>>, %arg6: memref<1x16x256xf32, #tpu.memory_space<vmem>>, %arg7: memref<1x16x256xf32, #tpu.memory_space<vmem>>) attributes {dimension_semantics = [#tpu.dimension_semantics<parallel>, #tpu.dimension_semantics<parallel>], iteration_bounds = array<i64: 2, 1>, scalar_prefetch = 0 : i64, scratch_operands = 0 : i64, tpu.core_type = #tpu.core_type<tc>, window_params = [{pipeline_mode = #tpu.pipeline_mode<synchronous>, transform_indices = @transform_0, window_bounds = array<i64: 16, 72>}, {pipeline_mode = #tpu.pipeline_mode<synchronous>, transform_indices = @transform_1, window_bounds = array<i64: 16, 1>}, {pipeline_mode = #tpu.pipeline_mode<synchronous>, transform_indices = @transform_2, window_bounds = array<i64: 16, 1>}, {transform_indices = @transform_3, window_bounds = array<i64: 1, 72, 256>}, {transform_indices = @transform_4, window_bounds = array<i64: 1, 16, 256>}, {transform_indices = @transform_5, window_bounds = array<i64: 1, 16, 256>}]} {
    %c0 = arith.constant 0 : index
    %c0_0 = arith.constant 0 : index
    %0 = vector.load %arg2[%c0, %c0_0] : memref<16x72xbf16, #tpu.memory_space<vmem>>, vector<16x72xbf16>
    %c0_1 = arith.constant 0 : index
    %c0_2 = arith.constant 0 : index
    %c0_3 = arith.constant 0 : index
    %1 = vector.load %arg5[%c0_1, %c0_2, %c0_3] : memref<1x72x256xbf16, #tpu.memory_space<vmem>>, vector<1x72x256xbf16>
    %2 = vector.shape_cast %1 : vector<1x72x256xbf16> to vector<72x256xbf16>
    %cst = arith.constant dense<0.000000e+00> : vector<16x256xf32>
    %3 = tpu.matmul %0, %2, %cst {dimension_numbers = #tpu.dot_dimension_numbers<[1], [0], [0], [1], [0, 0, 1, 1], [], []>} : vector<16x72xbf16>, vector<72x256xbf16>, vector<16x256xf32> -> vector<16x256xf32>
    %c0_4 = arith.constant 0 : index
    %c0_5 = arith.constant 0 : index
    %4 = vector.load %arg3[%c0_4, %c0_5] : memref<16x1xf32, #tpu.memory_space<vmem>>, vector<16x1xf32>
    %5 = vector.broadcast %4 : vector<16x1xf32> to vector<16x256xf32>
    %6 = arith.mulf %3, %5 : vector<16x256xf32>
    %c0_6 = arith.constant 0 : index
    %c0_7 = arith.constant 0 : index
    %7 = vector.load %arg4[%c0_6, %c0_7] : memref<16x1xf32, #tpu.memory_space<vmem>>, vector<16x1xf32>
    %8 = vector.broadcast %7 : vector<16x1xf32> to vector<16x256xf32>
    %9 = arith.addf %6, %8 : vector<16x256xf32>
    %cst_8 = arith.constant 0.000000e+00 : f32
    %10 = vector.broadcast %cst_8 : f32 to vector<16x256xf32>
    %11 = arith.cmpf ogt, %9, %10 : vector<16x256xf32>
    %cst_9 = arith.constant 1.000000e-01 : f32
    %12 = vector.broadcast %cst_9 : f32 to vector<16x256xf32>
    %13 = arith.mulf %12, %9 : vector<16x256xf32>
    %14 = arith.select %11, %9, %13 : vector<16x256xi1>, vector<16x256xf32>
    %c0_10 = arith.constant 0 : index
    %c0_11 = arith.constant 0 : index
    %c0_12 = arith.constant 0 : index
    %15 = vector.load %arg6[%c0_10, %c0_11, %c0_12] : memref<1x16x256xf32, #tpu.memory_space<vmem>>, vector<1x16x256xf32>
    %16 = vector.shape_cast %15 : vector<1x16x256xf32> to vector<16x256xf32>
    %17 = arith.addf %14, %16 : vector<16x256xf32>
    %c0_13 = arith.constant 0 : index
    %c0_14 = arith.constant 0 : index
    %c0_15 = arith.constant 0 : index
    %18 = vector.load %arg7[%c0_13, %c0_14, %c0_15] : memref<1x16x256xf32, #tpu.memory_space<vmem>>, vector<1x16x256xf32>
    %19 = vector.shape_cast %18 : vector<1x16x256xf32> to vector<16x256xf32>
    %20 = vector.shape_cast %17 : vector<16x256xf32> to vector<1x16x256xf32>
    tpu.vector_store %arg7[%c0_13, %c0_14, %c0_15], %20 {strides = array<i32>} : memref<1x16x256xf32, #tpu.memory_space<vmem>>, vector<1x16x256xf32>,
    return
  }
  func.func @transform_0(%arg0: i32, %arg1: i32) -> (i32, i32) {
    %c0_i32 = arith.constant 0 : i32
    %c0_i32_0 = arith.constant 0 : i32
    %c0_i32_1 = arith.constant 0 : i32
    return %c0_i32, %c0_i32_0 : i32, i32
  }
  func.func @transform_1(%arg0: i32, %arg1: i32) -> (i32, i32) {
    %c0_i32 = arith.constant 0 : i32
    %c0_i32_0 = arith.constant 0 : i32
    %c0_i32_1 = arith.constant 0 : i32
    return %c0_i32, %c0_i32_0 : i32, i32
  }
  func.func @transform_2(%arg0: i32, %arg1: i32) -> (i32, i32) {
    %c0_i32 = arith.constant 0 : i32
    %c0_i32_0 = arith.constant 0 : i32
    %c0_i32_1 = arith.constant 0 : i32
    return %c0_i32, %c0_i32_0 : i32, i32
  }
  func.func @transform_3(%arg0: i32, %arg1: i32) -> (i32, i32, i32) {
    %c0_i32 = arith.constant 0 : i32
    %c0_i32_0 = arith.constant 0 : i32
    return %arg0, %c0_i32, %arg1 : i32, i32, i32
  }
  func.func @transform_4(%arg0: i32, %arg1: i32) -> (i32, i32, i32) {
    %c0_i32 = arith.constant 0 : i32
    %c0_i32_0 = arith.constant 0 : i32
    return %arg0, %c0_i32, %arg1 : i32, i32, i32
  }
  func.func @transform_5(%arg0: i32, %arg1: i32) -> (i32, i32, i32) {
    %c0_i32 = arith.constant 0 : i32
    %c0_i32_0 = arith.constant 0 : i32
    return %arg0, %c0_i32, %arg1 : i32, i32, i32
  }
}

module attributes {stable_mosaic.version = 11 : i64} {
  func.func @_conv_gemm_kernel(%arg0: i32, %arg1: i32, %arg2: memref<32x144xbf16, #tpu.memory_space<vmem>>, %arg3: memref<32x1xf32, #tpu.memory_space<vmem>>, %arg4: memref<32x1xf32, #tpu.memory_space<vmem>>, %arg5: memref<1x144x64xbf16, #tpu.memory_space<vmem>>, %arg6: memref<1x32x64xf32, #tpu.memory_space<vmem>>) attributes {dimension_semantics = [#tpu.dimension_semantics<parallel>, #tpu.dimension_semantics<parallel>], iteration_bounds = array<i64: 2, 1>, scalar_prefetch = 0 : i64, scratch_operands = 0 : i64, tpu.core_type = #tpu.core_type<tc>, window_params = [{pipeline_mode = #tpu.pipeline_mode<synchronous>, transform_indices = @transform_0, window_bounds = array<i64: 32, 144>}, {pipeline_mode = #tpu.pipeline_mode<synchronous>, transform_indices = @transform_1, window_bounds = array<i64: 32, 1>}, {pipeline_mode = #tpu.pipeline_mode<synchronous>, transform_indices = @transform_2, window_bounds = array<i64: 32, 1>}, {transform_indices = @transform_3, window_bounds = array<i64: 1, 144, 64>}, {transform_indices = @transform_4, window_bounds = array<i64: 1, 32, 64>}]} {
    %c0 = arith.constant 0 : index
    %c0_0 = arith.constant 0 : index
    %0 = vector.load %arg2[%c0, %c0_0] : memref<32x144xbf16, #tpu.memory_space<vmem>>, vector<32x144xbf16>
    %c0_1 = arith.constant 0 : index
    %c0_2 = arith.constant 0 : index
    %c0_3 = arith.constant 0 : index
    %1 = vector.load %arg5[%c0_1, %c0_2, %c0_3] : memref<1x144x64xbf16, #tpu.memory_space<vmem>>, vector<1x144x64xbf16>
    %2 = vector.shape_cast %1 : vector<1x144x64xbf16> to vector<144x64xbf16>
    %cst = arith.constant dense<0.000000e+00> : vector<32x64xf32>
    %3 = tpu.matmul %0, %2, %cst {dimension_numbers = #tpu.dot_dimension_numbers<[1], [0], [0], [1], [0, 0, 1, 1], [], []>} : vector<32x144xbf16>, vector<144x64xbf16>, vector<32x64xf32> -> vector<32x64xf32>
    %c0_4 = arith.constant 0 : index
    %c0_5 = arith.constant 0 : index
    %4 = vector.load %arg3[%c0_4, %c0_5] : memref<32x1xf32, #tpu.memory_space<vmem>>, vector<32x1xf32>
    %5 = vector.broadcast %4 : vector<32x1xf32> to vector<32x64xf32>
    %6 = arith.mulf %3, %5 : vector<32x64xf32>
    %c0_6 = arith.constant 0 : index
    %c0_7 = arith.constant 0 : index
    %7 = vector.load %arg4[%c0_6, %c0_7] : memref<32x1xf32, #tpu.memory_space<vmem>>, vector<32x1xf32>
    %8 = vector.broadcast %7 : vector<32x1xf32> to vector<32x64xf32>
    %9 = arith.addf %6, %8 : vector<32x64xf32>
    %cst_8 = arith.constant 0.000000e+00 : f32
    %10 = vector.broadcast %cst_8 : f32 to vector<32x64xf32>
    %11 = arith.cmpf ogt, %9, %10 : vector<32x64xf32>
    %cst_9 = arith.constant 1.000000e-01 : f32
    %12 = vector.broadcast %cst_9 : f32 to vector<32x64xf32>
    %13 = arith.mulf %12, %9 : vector<32x64xf32>
    %14 = arith.select %11, %9, %13 : vector<32x64xi1>, vector<32x64xf32>
    %c0_10 = arith.constant 0 : index
    %c0_11 = arith.constant 0 : index
    %c0_12 = arith.constant 0 : index
    %15 = vector.load %arg6[%c0_10, %c0_11, %c0_12] : memref<1x32x64xf32, #tpu.memory_space<vmem>>, vector<1x32x64xf32>
    %16 = vector.shape_cast %15 : vector<1x32x64xf32> to vector<32x64xf32>
    %17 = vector.shape_cast %14 : vector<32x64xf32> to vector<1x32x64xf32>
    tpu.vector_store %arg6[%c0_10, %c0_11, %c0_12], %17 {strides = array<i32>} : memref<1x32x64xf32, #tpu.memory_space<vmem>>, vector<1x32x64xf32>,
    return
  }
  func.func @transform_0(%arg0: i32, %arg1: i32) -> (i32, i32) {
    %c0_i32 = arith.constant 0 : i32
    %c0_i32_0 = arith.constant 0 : i32
    %c0_i32_1 = arith.constant 0 : i32
    return %c0_i32, %c0_i32_0 : i32, i32
  }
  func.func @transform_1(%arg0: i32, %arg1: i32) -> (i32, i32) {
    %c0_i32 = arith.constant 0 : i32
    %c0_i32_0 = arith.constant 0 : i32
    %c0_i32_1 = arith.constant 0 : i32
    return %c0_i32, %c0_i32_0 : i32, i32
  }
  func.func @transform_2(%arg0: i32, %arg1: i32) -> (i32, i32) {
    %c0_i32 = arith.constant 0 : i32
    %c0_i32_0 = arith.constant 0 : i32
    %c0_i32_1 = arith.constant 0 : i32
    return %c0_i32, %c0_i32_0 : i32, i32
  }
  func.func @transform_3(%arg0: i32, %arg1: i32) -> (i32, i32, i32) {
    %c0_i32 = arith.constant 0 : i32
    %c0_i32_0 = arith.constant 0 : i32
    return %arg0, %c0_i32, %arg1 : i32, i32, i32
  }
  func.func @transform_4(%arg0: i32, %arg1: i32) -> (i32, i32, i32) {
    %c0_i32 = arith.constant 0 : i32
    %c0_i32_0 = arith.constant 0 : i32
    return %arg0, %c0_i32, %arg1 : i32, i32, i32
  }
}

module attributes {stable_mosaic.version = 11 : i64} {
  func.func @_conv_gemm_kernel(%arg0: i32, %arg1: i32, %arg2: memref<16x32xbf16, #tpu.memory_space<vmem>>, %arg3: memref<16x1xf32, #tpu.memory_space<vmem>>, %arg4: memref<16x1xf32, #tpu.memory_space<vmem>>, %arg5: memref<1x32x64xbf16, #tpu.memory_space<vmem>>, %arg6: memref<1x16x64xf32, #tpu.memory_space<vmem>>) attributes {dimension_semantics = [#tpu.dimension_semantics<parallel>, #tpu.dimension_semantics<parallel>], iteration_bounds = array<i64: 2, 1>, scalar_prefetch = 0 : i64, scratch_operands = 0 : i64, tpu.core_type = #tpu.core_type<tc>, window_params = [{pipeline_mode = #tpu.pipeline_mode<synchronous>, transform_indices = @transform_0, window_bounds = array<i64: 16, 32>}, {pipeline_mode = #tpu.pipeline_mode<synchronous>, transform_indices = @transform_1, window_bounds = array<i64: 16, 1>}, {pipeline_mode = #tpu.pipeline_mode<synchronous>, transform_indices = @transform_2, window_bounds = array<i64: 16, 1>}, {transform_indices = @transform_3, window_bounds = array<i64: 1, 32, 64>}, {transform_indices = @transform_4, window_bounds = array<i64: 1, 16, 64>}]} {
    %c0 = arith.constant 0 : index
    %c0_0 = arith.constant 0 : index
    %0 = vector.load %arg2[%c0, %c0_0] : memref<16x32xbf16, #tpu.memory_space<vmem>>, vector<16x32xbf16>
    %c0_1 = arith.constant 0 : index
    %c0_2 = arith.constant 0 : index
    %c0_3 = arith.constant 0 : index
    %1 = vector.load %arg5[%c0_1, %c0_2, %c0_3] : memref<1x32x64xbf16, #tpu.memory_space<vmem>>, vector<1x32x64xbf16>
    %2 = vector.shape_cast %1 : vector<1x32x64xbf16> to vector<32x64xbf16>
    %cst = arith.constant dense<0.000000e+00> : vector<16x64xf32>
    %3 = tpu.matmul %0, %2, %cst {dimension_numbers = #tpu.dot_dimension_numbers<[1], [0], [0], [1], [0, 0, 1, 1], [], []>} : vector<16x32xbf16>, vector<32x64xbf16>, vector<16x64xf32> -> vector<16x64xf32>
    %c0_4 = arith.constant 0 : index
    %c0_5 = arith.constant 0 : index
    %4 = vector.load %arg3[%c0_4, %c0_5] : memref<16x1xf32, #tpu.memory_space<vmem>>, vector<16x1xf32>
    %5 = vector.broadcast %4 : vector<16x1xf32> to vector<16x64xf32>
    %6 = arith.mulf %3, %5 : vector<16x64xf32>
    %c0_6 = arith.constant 0 : index
    %c0_7 = arith.constant 0 : index
    %7 = vector.load %arg4[%c0_6, %c0_7] : memref<16x1xf32, #tpu.memory_space<vmem>>, vector<16x1xf32>
    %8 = vector.broadcast %7 : vector<16x1xf32> to vector<16x64xf32>
    %9 = arith.addf %6, %8 : vector<16x64xf32>
    %cst_8 = arith.constant 0.000000e+00 : f32
    %10 = vector.broadcast %cst_8 : f32 to vector<16x64xf32>
    %11 = arith.cmpf ogt, %9, %10 : vector<16x64xf32>
    %cst_9 = arith.constant 1.000000e-01 : f32
    %12 = vector.broadcast %cst_9 : f32 to vector<16x64xf32>
    %13 = arith.mulf %12, %9 : vector<16x64xf32>
    %14 = arith.select %11, %9, %13 : vector<16x64xi1>, vector<16x64xf32>
    %c0_10 = arith.constant 0 : index
    %c0_11 = arith.constant 0 : index
    %c0_12 = arith.constant 0 : index
    %15 = vector.load %arg6[%c0_10, %c0_11, %c0_12] : memref<1x16x64xf32, #tpu.memory_space<vmem>>, vector<1x16x64xf32>
    %16 = vector.shape_cast %15 : vector<1x16x64xf32> to vector<16x64xf32>
    %17 = vector.shape_cast %14 : vector<16x64xf32> to vector<1x16x64xf32>
    tpu.vector_store %arg6[%c0_10, %c0_11, %c0_12], %17 {strides = array<i32>} : memref<1x16x64xf32, #tpu.memory_space<vmem>>, vector<1x16x64xf32>,
    return
  }
  func.func @transform_0(%arg0: i32, %arg1: i32) -> (i32, i32) {
    %c0_i32 = arith.constant 0 : i32
    %c0_i32_0 = arith.constant 0 : i32
    %c0_i32_1 = arith.constant 0 : i32
    return %c0_i32, %c0_i32_0 : i32, i32
  }
  func.func @transform_1(%arg0: i32, %arg1: i32) -> (i32, i32) {
    %c0_i32 = arith.constant 0 : i32
    %c0_i32_0 = arith.constant 0 : i32
    %c0_i32_1 = arith.constant 0 : i32
    return %c0_i32, %c0_i32_0 : i32, i32
  }
  func.func @transform_2(%arg0: i32, %arg1: i32) -> (i32, i32) {
    %c0_i32 = arith.constant 0 : i32
    %c0_i32_0 = arith.constant 0 : i32
    %c0_i32_1 = arith.constant 0 : i32
    return %c0_i32, %c0_i32_0 : i32, i32
  }
  func.func @transform_3(%arg0: i32, %arg1: i32) -> (i32, i32, i32) {
    %c0_i32 = arith.constant 0 : i32
    %c0_i32_0 = arith.constant 0 : i32
    return %arg0, %c0_i32, %arg1 : i32, i32, i32
  }
  func.func @transform_4(%arg0: i32, %arg1: i32) -> (i32, i32, i32) {
    %c0_i32 = arith.constant 0 : i32
    %c0_i32_0 = arith.constant 0 : i32
    return %arg0, %c0_i32, %arg1 : i32, i32, i32
  }
}

module attributes {stable_mosaic.version = 11 : i64} {
  func.func @_upsample_kernel(%arg0: i32, %arg1: memref<256x128xf32, #tpu.memory_space<vmem>>, %arg2: memref<8x16xf32, #tpu.memory_space<vmem>>, %arg3: memref<1x128x8xf32, #tpu.memory_space<vmem>>, %arg4: memref<1x256x16xf32, #tpu.memory_space<vmem>>) attributes {dimension_semantics = [#tpu.dimension_semantics<parallel>], iteration_bounds = array<i64: 2>, scalar_prefetch = 0 : i64, scratch_operands = 0 : i64, tpu.core_type = #tpu.core_type<tc>, window_params = [{pipeline_mode = #tpu.pipeline_mode<synchronous>, transform_indices = @transform_0, window_bounds = array<i64: 256, 128>}, {pipeline_mode = #tpu.pipeline_mode<synchronous>, transform_indices = @transform_1, window_bounds = array<i64: 8, 16>}, {transform_indices = @transform_2, window_bounds = array<i64: 1, 128, 8>}, {transform_indices = @transform_3, window_bounds = array<i64: 1, 256, 16>}]} {
    %c0 = arith.constant 0 : index
    %c0_0 = arith.constant 0 : index
    %c0_1 = arith.constant 0 : index
    %0 = vector.load %arg3[%c0, %c0_0, %c0_1] : memref<1x128x8xf32, #tpu.memory_space<vmem>>, vector<1x128x8xf32>
    %1 = vector.shape_cast %0 : vector<1x128x8xf32> to vector<128x8xf32>
    %c0_2 = arith.constant 0 : index
    %c0_3 = arith.constant 0 : index
    %2 = vector.load %arg2[%c0_2, %c0_3] : memref<8x16xf32, #tpu.memory_space<vmem>>, vector<8x16xf32>
    %cst = arith.constant dense<0.000000e+00> : vector<128x16xf32>
    %3 = tpu.matmul %1, %2, %cst {dimension_numbers = #tpu.dot_dimension_numbers<[1], [0], [0], [1], [0, 0, 1, 1], [], []>} : vector<128x8xf32>, vector<8x16xf32>, vector<128x16xf32> -> vector<128x16xf32>
    %c0_4 = arith.constant 0 : index
    %c0_5 = arith.constant 0 : index
    %4 = vector.load %arg1[%c0_4, %c0_5] : memref<256x128xf32, #tpu.memory_space<vmem>>, vector<256x128xf32>
    %cst_6 = arith.constant dense<0.000000e+00> : vector<256x16xf32>
    %5 = tpu.matmul %4, %3, %cst_6 {dimension_numbers = #tpu.dot_dimension_numbers<[1], [0], [0], [1], [0, 0, 1, 1], [], []>} : vector<256x128xf32>, vector<128x16xf32>, vector<256x16xf32> -> vector<256x16xf32>
    %c0_7 = arith.constant 0 : index
    %c0_8 = arith.constant 0 : index
    %c0_9 = arith.constant 0 : index
    %6 = vector.load %arg4[%c0_7, %c0_8, %c0_9] : memref<1x256x16xf32, #tpu.memory_space<vmem>>, vector<1x256x16xf32>
    %7 = vector.shape_cast %6 : vector<1x256x16xf32> to vector<256x16xf32>
    %8 = vector.shape_cast %5 : vector<256x16xf32> to vector<1x256x16xf32>
    tpu.vector_store %arg4[%c0_7, %c0_8, %c0_9], %8 {strides = array<i32>} : memref<1x256x16xf32, #tpu.memory_space<vmem>>, vector<1x256x16xf32>,
    return
  }
  func.func @transform_0(%arg0: i32) -> (i32, i32) {
    %c0_i32 = arith.constant 0 : i32
    %c0_i32_0 = arith.constant 0 : i32
    %c0_i32_1 = arith.constant 0 : i32
    return %c0_i32, %c0_i32_0 : i32, i32
  }
  func.func @transform_1(%arg0: i32) -> (i32, i32) {
    %c0_i32 = arith.constant 0 : i32
    %c0_i32_0 = arith.constant 0 : i32
    %c0_i32_1 = arith.constant 0 : i32
    return %c0_i32, %c0_i32_0 : i32, i32
  }
  func.func @transform_2(%arg0: i32) -> (i32, i32, i32) {
    %c0_i32 = arith.constant 0 : i32
    %c0_i32_0 = arith.constant 0 : i32
    %c0_i32_1 = arith.constant 0 : i32
    return %arg0, %c0_i32, %c0_i32_0 : i32, i32, i32
  }
  func.func @transform_3(%arg0: i32) -> (i32, i32, i32) {
    %c0_i32 = arith.constant 0 : i32
    %c0_i32_0 = arith.constant 0 : i32
    %c0_i32_1 = arith.constant 0 : i32
    return %arg0, %c0_i32, %c0_i32_0 : i32, i32, i32
  }
}

module attributes {stable_mosaic.version = 11 : i64} {
  func.func @_conv_gemm_kernel(%arg0: i32, %arg1: i32, %arg2: memref<16x288xbf16, #tpu.memory_space<vmem>>, %arg3: memref<16x1xf32, #tpu.memory_space<vmem>>, %arg4: memref<16x1xf32, #tpu.memory_space<vmem>>, %arg5: memref<1x288x256xbf16, #tpu.memory_space<vmem>>, %arg6: memref<1x16x256xf32, #tpu.memory_space<vmem>>) attributes {dimension_semantics = [#tpu.dimension_semantics<parallel>, #tpu.dimension_semantics<parallel>], iteration_bounds = array<i64: 2, 1>, scalar_prefetch = 0 : i64, scratch_operands = 0 : i64, tpu.core_type = #tpu.core_type<tc>, window_params = [{pipeline_mode = #tpu.pipeline_mode<synchronous>, transform_indices = @transform_0, window_bounds = array<i64: 16, 288>}, {pipeline_mode = #tpu.pipeline_mode<synchronous>, transform_indices = @transform_1, window_bounds = array<i64: 16, 1>}, {pipeline_mode = #tpu.pipeline_mode<synchronous>, transform_indices = @transform_2, window_bounds = array<i64: 16, 1>}, {transform_indices = @transform_3, window_bounds = array<i64: 1, 288, 256>}, {transform_indices = @transform_4, window_bounds = array<i64: 1, 16, 256>}]} {
    %c0 = arith.constant 0 : index
    %c0_0 = arith.constant 0 : index
    %0 = vector.load %arg2[%c0, %c0_0] : memref<16x288xbf16, #tpu.memory_space<vmem>>, vector<16x288xbf16>
    %c0_1 = arith.constant 0 : index
    %c0_2 = arith.constant 0 : index
    %c0_3 = arith.constant 0 : index
    %1 = vector.load %arg5[%c0_1, %c0_2, %c0_3] : memref<1x288x256xbf16, #tpu.memory_space<vmem>>, vector<1x288x256xbf16>
    %2 = vector.shape_cast %1 : vector<1x288x256xbf16> to vector<288x256xbf16>
    %cst = arith.constant dense<0.000000e+00> : vector<16x256xf32>
    %3 = tpu.matmul %0, %2, %cst {dimension_numbers = #tpu.dot_dimension_numbers<[1], [0], [0], [1], [0, 0, 1, 1], [], []>} : vector<16x288xbf16>, vector<288x256xbf16>, vector<16x256xf32> -> vector<16x256xf32>
    %c0_4 = arith.constant 0 : index
    %c0_5 = arith.constant 0 : index
    %4 = vector.load %arg3[%c0_4, %c0_5] : memref<16x1xf32, #tpu.memory_space<vmem>>, vector<16x1xf32>
    %5 = vector.broadcast %4 : vector<16x1xf32> to vector<16x256xf32>
    %6 = arith.mulf %3, %5 : vector<16x256xf32>
    %c0_6 = arith.constant 0 : index
    %c0_7 = arith.constant 0 : index
    %7 = vector.load %arg4[%c0_6, %c0_7] : memref<16x1xf32, #tpu.memory_space<vmem>>, vector<16x1xf32>
    %8 = vector.broadcast %7 : vector<16x1xf32> to vector<16x256xf32>
    %9 = arith.addf %6, %8 : vector<16x256xf32>
    %cst_8 = arith.constant 0.000000e+00 : f32
    %10 = vector.broadcast %cst_8 : f32 to vector<16x256xf32>
    %11 = arith.cmpf ogt, %9, %10 : vector<16x256xf32>
    %cst_9 = arith.constant 1.000000e-01 : f32
    %12 = vector.broadcast %cst_9 : f32 to vector<16x256xf32>
    %13 = arith.mulf %12, %9 : vector<16x256xf32>
    %14 = arith.select %11, %9, %13 : vector<16x256xi1>, vector<16x256xf32>
    %c0_10 = arith.constant 0 : index
    %c0_11 = arith.constant 0 : index
    %c0_12 = arith.constant 0 : index
    %15 = vector.load %arg6[%c0_10, %c0_11, %c0_12] : memref<1x16x256xf32, #tpu.memory_space<vmem>>, vector<1x16x256xf32>
    %16 = vector.shape_cast %15 : vector<1x16x256xf32> to vector<16x256xf32>
    %17 = vector.shape_cast %14 : vector<16x256xf32> to vector<1x16x256xf32>
    tpu.vector_store %arg6[%c0_10, %c0_11, %c0_12], %17 {strides = array<i32>} : memref<1x16x256xf32, #tpu.memory_space<vmem>>, vector<1x16x256xf32>,
    return
  }
  func.func @transform_0(%arg0: i32, %arg1: i32) -> (i32, i32) {
    %c0_i32 = arith.constant 0 : i32
    %c0_i32_0 = arith.constant 0 : i32
    %c0_i32_1 = arith.constant 0 : i32
    return %c0_i32, %c0_i32_0 : i32, i32
  }
  func.func @transform_1(%arg0: i32, %arg1: i32) -> (i32, i32) {
    %c0_i32 = arith.constant 0 : i32
    %c0_i32_0 = arith.constant 0 : i32
    %c0_i32_1 = arith.constant 0 : i32
    return %c0_i32, %c0_i32_0 : i32, i32
  }
  func.func @transform_2(%arg0: i32, %arg1: i32) -> (i32, i32) {
    %c0_i32 = arith.constant 0 : i32
    %c0_i32_0 = arith.constant 0 : i32
    %c0_i32_1 = arith.constant 0 : i32
    return %c0_i32, %c0_i32_0 : i32, i32
  }
  func.func @transform_3(%arg0: i32, %arg1: i32) -> (i32, i32, i32) {
    %c0_i32 = arith.constant 0 : i32
    %c0_i32_0 = arith.constant 0 : i32
    return %arg0, %c0_i32, %arg1 : i32, i32, i32
  }
  func.func @transform_4(%arg0: i32, %arg1: i32) -> (i32, i32, i32) {
    %c0_i32 = arith.constant 0 : i32
    %c0_i32_0 = arith.constant 0 : i32
    return %arg0, %c0_i32, %arg1 : i32, i32, i32
  }
}

module attributes {stable_mosaic.version = 11 : i64} {
  func.func @_conv_gemm_kernel(%arg0: i32, %arg1: i32, %arg2: memref<21x16xbf16, #tpu.memory_space<vmem>>, %arg3: memref<21x1xf32, #tpu.memory_space<vmem>>, %arg4: memref<21x1xf32, #tpu.memory_space<vmem>>, %arg5: memref<1x16x256xbf16, #tpu.memory_space<vmem>>, %arg6: memref<1x21x256xf32, #tpu.memory_space<vmem>>) attributes {dimension_semantics = [#tpu.dimension_semantics<parallel>, #tpu.dimension_semantics<parallel>], iteration_bounds = array<i64: 2, 1>, scalar_prefetch = 0 : i64, scratch_operands = 0 : i64, tpu.core_type = #tpu.core_type<tc>, window_params = [{pipeline_mode = #tpu.pipeline_mode<synchronous>, transform_indices = @transform_0, window_bounds = array<i64: 21, 16>}, {pipeline_mode = #tpu.pipeline_mode<synchronous>, transform_indices = @transform_1, window_bounds = array<i64: 21, 1>}, {pipeline_mode = #tpu.pipeline_mode<synchronous>, transform_indices = @transform_2, window_bounds = array<i64: 21, 1>}, {transform_indices = @transform_3, window_bounds = array<i64: 1, 16, 256>}, {transform_indices = @transform_4, window_bounds = array<i64: 1, 21, 256>}]} {
    %c0 = arith.constant 0 : index
    %c0_0 = arith.constant 0 : index
    %0 = vector.load %arg2[%c0, %c0_0] : memref<21x16xbf16, #tpu.memory_space<vmem>>, vector<21x16xbf16>
    %c0_1 = arith.constant 0 : index
    %c0_2 = arith.constant 0 : index
    %c0_3 = arith.constant 0 : index
    %1 = vector.load %arg5[%c0_1, %c0_2, %c0_3] : memref<1x16x256xbf16, #tpu.memory_space<vmem>>, vector<1x16x256xbf16>
    %2 = vector.shape_cast %1 : vector<1x16x256xbf16> to vector<16x256xbf16>
    %cst = arith.constant dense<0.000000e+00> : vector<21x256xf32>
    %3 = tpu.matmul %0, %2, %cst {dimension_numbers = #tpu.dot_dimension_numbers<[1], [0], [0], [1], [0, 0, 1, 1], [], []>} : vector<21x16xbf16>, vector<16x256xbf16>, vector<21x256xf32> -> vector<21x256xf32>
    %c0_4 = arith.constant 0 : index
    %c0_5 = arith.constant 0 : index
    %4 = vector.load %arg3[%c0_4, %c0_5] : memref<21x1xf32, #tpu.memory_space<vmem>>, vector<21x1xf32>
    %5 = vector.broadcast %4 : vector<21x1xf32> to vector<21x256xf32>
    %6 = arith.mulf %3, %5 : vector<21x256xf32>
    %c0_6 = arith.constant 0 : index
    %c0_7 = arith.constant 0 : index
    %7 = vector.load %arg4[%c0_6, %c0_7] : memref<21x1xf32, #tpu.memory_space<vmem>>, vector<21x1xf32>
    %8 = vector.broadcast %7 : vector<21x1xf32> to vector<21x256xf32>
    %9 = arith.addf %6, %8 : vector<21x256xf32>
    %c0_8 = arith.constant 0 : index
    %c0_9 = arith.constant 0 : index
    %c0_10 = arith.constant 0 : index
    %10 = vector.load %arg6[%c0_8, %c0_9, %c0_10] : memref<1x21x256xf32, #tpu.memory_space<vmem>>, vector<1x21x256xf32>
    %11 = vector.shape_cast %10 : vector<1x21x256xf32> to vector<21x256xf32>
    %12 = vector.shape_cast %9 : vector<21x256xf32> to vector<1x21x256xf32>
    tpu.vector_store %arg6[%c0_8, %c0_9, %c0_10], %12 {strides = array<i32>} : memref<1x21x256xf32, #tpu.memory_space<vmem>>, vector<1x21x256xf32>,
    return
  }
  func.func @transform_0(%arg0: i32, %arg1: i32) -> (i32, i32) {
    %c0_i32 = arith.constant 0 : i32
    %c0_i32_0 = arith.constant 0 : i32
    %c0_i32_1 = arith.constant 0 : i32
    return %c0_i32, %c0_i32_0 : i32, i32
  }
  func.func @transform_1(%arg0: i32, %arg1: i32) -> (i32, i32) {
    %c0_i32 = arith.constant 0 : i32
    %c0_i32_0 = arith.constant 0 : i32
    %c0_i32_1 = arith.constant 0 : i32
    return %c0_i32, %c0_i32_0 : i32, i32
  }
  func.func @transform_2(%arg0: i32, %arg1: i32) -> (i32, i32) {
    %c0_i32 = arith.constant 0 : i32
    %c0_i32_0 = arith.constant 0 : i32
    %c0_i32_1 = arith.constant 0 : i32
    return %c0_i32, %c0_i32_0 : i32, i32
  }
  func.func @transform_3(%arg0: i32, %arg1: i32) -> (i32, i32, i32) {
    %c0_i32 = arith.constant 0 : i32
    %c0_i32_0 = arith.constant 0 : i32
    return %arg0, %c0_i32, %arg1 : i32, i32, i32
  }
  func.func @transform_4(%arg0: i32, %arg1: i32) -> (i32, i32, i32) {
    %c0_i32 = arith.constant 0 : i32
    %c0_i32_0 = arith.constant 0 : i32
    return %arg0, %c0_i32, %arg1 : i32, i32, i32
  }
}

module attributes {stable_mosaic.version = 11 : i64} {
  func.func @_yolo_kernel(%arg0: i32, %arg1: memref<21x256xf32, #tpu.memory_space<vmem>>, %arg2: memref<21x1xf32, #tpu.memory_space<vmem>>, %arg3: memref<21x1xf32, #tpu.memory_space<vmem>>, %arg4: memref<1x21x256xf32, #tpu.memory_space<vmem>>, %arg5: memref<1x21x256xf32, #tpu.memory_space<vmem>>) attributes {dimension_semantics = [#tpu.dimension_semantics<parallel>], iteration_bounds = array<i64: 2>, scalar_prefetch = 0 : i64, scratch_operands = 0 : i64, tpu.core_type = #tpu.core_type<tc>, window_params = [{pipeline_mode = #tpu.pipeline_mode<synchronous>, transform_indices = @transform_0, window_bounds = array<i64: 21, 256>}, {pipeline_mode = #tpu.pipeline_mode<synchronous>, transform_indices = @transform_1, window_bounds = array<i64: 21, 1>}, {pipeline_mode = #tpu.pipeline_mode<synchronous>, transform_indices = @transform_2, window_bounds = array<i64: 21, 1>}, {transform_indices = @transform_3, window_bounds = array<i64: 1, 21, 256>}, {transform_indices = @transform_4, window_bounds = array<i64: 1, 21, 256>}]} {
    %c0 = arith.constant 0 : index
    %c0_0 = arith.constant 0 : index
    %c0_1 = arith.constant 0 : index
    %0 = vector.load %arg4[%c0, %c0_0, %c0_1] : memref<1x21x256xf32, #tpu.memory_space<vmem>>, vector<1x21x256xf32>
    %1 = vector.shape_cast %0 : vector<1x21x256xf32> to vector<21x256xf32>
    %c0_2 = arith.constant 0 : index
    %c0_3 = arith.constant 0 : index
    %2 = vector.load %arg3[%c0_2, %c0_3] : memref<21x1xf32, #tpu.memory_space<vmem>>, vector<21x1xf32>
    %cst = arith.constant 5.000000e-01 : f32
    %3 = vector.broadcast %cst : f32 to vector<21x1xf32>
    %4 = arith.cmpf ogt, %2, %3 : vector<21x1xf32>
    %cst_4 = arith.constant 0.000000e+00 : f32
    %5 = vector.broadcast %cst_4 : f32 to vector<21x256xf32>
    %6 = arith.subf %5, %1 : vector<21x256xf32>
    %7 = math.exp %6 : vector<21x256xf32>
    %cst_5 = arith.constant 1.000000e+00 : f32
    %8 = vector.broadcast %cst_5 : f32 to vector<21x256xf32>
    %9 = arith.addf %8, %7 : vector<21x256xf32>
    %cst_6 = arith.constant 1.000000e+00 : f32
    %10 = vector.broadcast %cst_6 : f32 to vector<21x256xf32>
    %11 = arith.divf %10, %9 : vector<21x256xf32>
    %cst_7 = arith.constant 8.000000e+01 : f32
    %12 = vector.broadcast %cst_7 : f32 to vector<21x256xf32>
    %13 = arith.minimumf %1, %12 : vector<21x256xf32>
    %14 = math.exp %13 : vector<21x256xf32>
    %c0_8 = arith.constant 0 : index
    %c0_9 = arith.constant 0 : index
    %15 = vector.load %arg1[%c0_8, %c0_9] : memref<21x256xf32, #tpu.memory_space<vmem>>, vector<21x256xf32>
    %16 = arith.addf %11, %15 : vector<21x256xf32>
    %17 = vector.shape_cast %4 : vector<21x1xi1> to vector<21x1xi1>
    %18 = vector.broadcast %17 : vector<21x1xi1> to vector<21x256xi1>
    %19 = arith.select %18, %14, %16 : vector<21x256xi1>, vector<21x256xf32>
    %c0_10 = arith.constant 0 : index
    %c0_11 = arith.constant 0 : index
    %20 = vector.load %arg2[%c0_10, %c0_11] : memref<21x1xf32, #tpu.memory_space<vmem>>, vector<21x1xf32>
    %21 = vector.broadcast %20 : vector<21x1xf32> to vector<21x256xf32>
    %22 = arith.mulf %19, %21 : vector<21x256xf32>
    %c0_12 = arith.constant 0 : index
    %c0_13 = arith.constant 0 : index
    %c0_14 = arith.constant 0 : index
    %23 = vector.load %arg5[%c0_12, %c0_13, %c0_14] : memref<1x21x256xf32, #tpu.memory_space<vmem>>, vector<1x21x256xf32>
    %24 = vector.shape_cast %23 : vector<1x21x256xf32> to vector<21x256xf32>
    %25 = vector.shape_cast %22 : vector<21x256xf32> to vector<1x21x256xf32>
    tpu.vector_store %arg5[%c0_12, %c0_13, %c0_14], %25 {strides = array<i32>} : memref<1x21x256xf32, #tpu.memory_space<vmem>>, vector<1x21x256xf32>,
    return
  }
  func.func @transform_0(%arg0: i32) -> (i32, i32) {
    %c0_i32 = arith.constant 0 : i32
    %c0_i32_0 = arith.constant 0 : i32
    %c0_i32_1 = arith.constant 0 : i32
    return %c0_i32, %c0_i32_0 : i32, i32
  }
  func.func @transform_1(%arg0: i32) -> (i32, i32) {
    %c0_i32 = arith.constant 0 : i32
    %c0_i32_0 = arith.constant 0 : i32
    %c0_i32_1 = arith.constant 0 : i32
    return %c0_i32, %c0_i32_0 : i32, i32
  }
  func.func @transform_2(%arg0: i32) -> (i32, i32) {
    %c0_i32 = arith.constant 0 : i32
    %c0_i32_0 = arith.constant 0 : i32
    %c0_i32_1 = arith.constant 0 : i32
    return %c0_i32, %c0_i32_0 : i32, i32
  }
  func.func @transform_3(%arg0: i32) -> (i32, i32, i32) {
    %c0_i32 = arith.constant 0 : i32
    %c0_i32_0 = arith.constant 0 : i32
    %c0_i32_1 = arith.constant 0 : i32
    return %arg0, %c0_i32, %c0_i32_0 : i32, i32, i32
  }
  func.func @transform_4(%arg0: i32) -> (i32, i32, i32) {
    %c0_i32 = arith.constant 0 : i32
    %c0_i32_0 = arith.constant 0 : i32
    %c0_i32_1 = arith.constant 0 : i32
    return %arg0, %c0_i32, %c0_i32_0 : i32, i32, i32
  }
}

module attributes {stable_mosaic.version = 11 : i64} {
  func.func @_conv_gemm_kernel(%arg0: i32, %arg1: i32, %arg2: memref<21x32xbf16, #tpu.memory_space<vmem>>, %arg3: memref<21x1xf32, #tpu.memory_space<vmem>>, %arg4: memref<21x1xf32, #tpu.memory_space<vmem>>, %arg5: memref<1x32x64xbf16, #tpu.memory_space<vmem>>, %arg6: memref<1x21x64xf32, #tpu.memory_space<vmem>>) attributes {dimension_semantics = [#tpu.dimension_semantics<parallel>, #tpu.dimension_semantics<parallel>], iteration_bounds = array<i64: 2, 1>, scalar_prefetch = 0 : i64, scratch_operands = 0 : i64, tpu.core_type = #tpu.core_type<tc>, window_params = [{pipeline_mode = #tpu.pipeline_mode<synchronous>, transform_indices = @transform_0, window_bounds = array<i64: 21, 32>}, {pipeline_mode = #tpu.pipeline_mode<synchronous>, transform_indices = @transform_1, window_bounds = array<i64: 21, 1>}, {pipeline_mode = #tpu.pipeline_mode<synchronous>, transform_indices = @transform_2, window_bounds = array<i64: 21, 1>}, {transform_indices = @transform_3, window_bounds = array<i64: 1, 32, 64>}, {transform_indices = @transform_4, window_bounds = array<i64: 1, 21, 64>}]} {
    %c0 = arith.constant 0 : index
    %c0_0 = arith.constant 0 : index
    %0 = vector.load %arg2[%c0, %c0_0] : memref<21x32xbf16, #tpu.memory_space<vmem>>, vector<21x32xbf16>
    %c0_1 = arith.constant 0 : index
    %c0_2 = arith.constant 0 : index
    %c0_3 = arith.constant 0 : index
    %1 = vector.load %arg5[%c0_1, %c0_2, %c0_3] : memref<1x32x64xbf16, #tpu.memory_space<vmem>>, vector<1x32x64xbf16>
    %2 = vector.shape_cast %1 : vector<1x32x64xbf16> to vector<32x64xbf16>
    %cst = arith.constant dense<0.000000e+00> : vector<21x64xf32>
    %3 = tpu.matmul %0, %2, %cst {dimension_numbers = #tpu.dot_dimension_numbers<[1], [0], [0], [1], [0, 0, 1, 1], [], []>} : vector<21x32xbf16>, vector<32x64xbf16>, vector<21x64xf32> -> vector<21x64xf32>
    %c0_4 = arith.constant 0 : index
    %c0_5 = arith.constant 0 : index
    %4 = vector.load %arg3[%c0_4, %c0_5] : memref<21x1xf32, #tpu.memory_space<vmem>>, vector<21x1xf32>
    %5 = vector.broadcast %4 : vector<21x1xf32> to vector<21x64xf32>
    %6 = arith.mulf %3, %5 : vector<21x64xf32>
    %c0_6 = arith.constant 0 : index
    %c0_7 = arith.constant 0 : index
    %7 = vector.load %arg4[%c0_6, %c0_7] : memref<21x1xf32, #tpu.memory_space<vmem>>, vector<21x1xf32>
    %8 = vector.broadcast %7 : vector<21x1xf32> to vector<21x64xf32>
    %9 = arith.addf %6, %8 : vector<21x64xf32>
    %c0_8 = arith.constant 0 : index
    %c0_9 = arith.constant 0 : index
    %c0_10 = arith.constant 0 : index
    %10 = vector.load %arg6[%c0_8, %c0_9, %c0_10] : memref<1x21x64xf32, #tpu.memory_space<vmem>>, vector<1x21x64xf32>
    %11 = vector.shape_cast %10 : vector<1x21x64xf32> to vector<21x64xf32>
    %12 = vector.shape_cast %9 : vector<21x64xf32> to vector<1x21x64xf32>
    tpu.vector_store %arg6[%c0_8, %c0_9, %c0_10], %12 {strides = array<i32>} : memref<1x21x64xf32, #tpu.memory_space<vmem>>, vector<1x21x64xf32>,
    return
  }
  func.func @transform_0(%arg0: i32, %arg1: i32) -> (i32, i32) {
    %c0_i32 = arith.constant 0 : i32
    %c0_i32_0 = arith.constant 0 : i32
    %c0_i32_1 = arith.constant 0 : i32
    return %c0_i32, %c0_i32_0 : i32, i32
  }
  func.func @transform_1(%arg0: i32, %arg1: i32) -> (i32, i32) {
    %c0_i32 = arith.constant 0 : i32
    %c0_i32_0 = arith.constant 0 : i32
    %c0_i32_1 = arith.constant 0 : i32
    return %c0_i32, %c0_i32_0 : i32, i32
  }
  func.func @transform_2(%arg0: i32, %arg1: i32) -> (i32, i32) {
    %c0_i32 = arith.constant 0 : i32
    %c0_i32_0 = arith.constant 0 : i32
    %c0_i32_1 = arith.constant 0 : i32
    return %c0_i32, %c0_i32_0 : i32, i32
  }
  func.func @transform_3(%arg0: i32, %arg1: i32) -> (i32, i32, i32) {
    %c0_i32 = arith.constant 0 : i32
    %c0_i32_0 = arith.constant 0 : i32
    return %arg0, %c0_i32, %arg1 : i32, i32, i32
  }
  func.func @transform_4(%arg0: i32, %arg1: i32) -> (i32, i32, i32) {
    %c0_i32 = arith.constant 0 : i32
    %c0_i32_0 = arith.constant 0 : i32
    return %arg0, %c0_i32, %arg1 : i32, i32, i32
  }
}

module attributes {stable_mosaic.version = 11 : i64} {
  func.func @_yolo_kernel(%arg0: i32, %arg1: memref<21x64xf32, #tpu.memory_space<vmem>>, %arg2: memref<21x1xf32, #tpu.memory_space<vmem>>, %arg3: memref<21x1xf32, #tpu.memory_space<vmem>>, %arg4: memref<1x21x64xf32, #tpu.memory_space<vmem>>, %arg5: memref<1x21x64xf32, #tpu.memory_space<vmem>>) attributes {dimension_semantics = [#tpu.dimension_semantics<parallel>], iteration_bounds = array<i64: 2>, scalar_prefetch = 0 : i64, scratch_operands = 0 : i64, tpu.core_type = #tpu.core_type<tc>, window_params = [{pipeline_mode = #tpu.pipeline_mode<synchronous>, transform_indices = @transform_0, window_bounds = array<i64: 21, 64>}, {pipeline_mode = #tpu.pipeline_mode<synchronous>, transform_indices = @transform_1, window_bounds = array<i64: 21, 1>}, {pipeline_mode = #tpu.pipeline_mode<synchronous>, transform_indices = @transform_2, window_bounds = array<i64: 21, 1>}, {transform_indices = @transform_3, window_bounds = array<i64: 1, 21, 64>}, {transform_indices = @transform_4, window_bounds = array<i64: 1, 21, 64>}]} {
    %c0 = arith.constant 0 : index
    %c0_0 = arith.constant 0 : index
    %c0_1 = arith.constant 0 : index
    %0 = vector.load %arg4[%c0, %c0_0, %c0_1] : memref<1x21x64xf32, #tpu.memory_space<vmem>>, vector<1x21x64xf32>
    %1 = vector.shape_cast %0 : vector<1x21x64xf32> to vector<21x64xf32>
    %c0_2 = arith.constant 0 : index
    %c0_3 = arith.constant 0 : index
    %2 = vector.load %arg3[%c0_2, %c0_3] : memref<21x1xf32, #tpu.memory_space<vmem>>, vector<21x1xf32>
    %cst = arith.constant 5.000000e-01 : f32
    %3 = vector.broadcast %cst : f32 to vector<21x1xf32>
    %4 = arith.cmpf ogt, %2, %3 : vector<21x1xf32>
    %cst_4 = arith.constant 0.000000e+00 : f32
    %5 = vector.broadcast %cst_4 : f32 to vector<21x64xf32>
    %6 = arith.subf %5, %1 : vector<21x64xf32>
    %7 = math.exp %6 : vector<21x64xf32>
    %cst_5 = arith.constant 1.000000e+00 : f32
    %8 = vector.broadcast %cst_5 : f32 to vector<21x64xf32>
    %9 = arith.addf %8, %7 : vector<21x64xf32>
    %cst_6 = arith.constant 1.000000e+00 : f32
    %10 = vector.broadcast %cst_6 : f32 to vector<21x64xf32>
    %11 = arith.divf %10, %9 : vector<21x64xf32>
    %cst_7 = arith.constant 8.000000e+01 : f32
    %12 = vector.broadcast %cst_7 : f32 to vector<21x64xf32>
    %13 = arith.minimumf %1, %12 : vector<21x64xf32>
    %14 = math.exp %13 : vector<21x64xf32>
    %c0_8 = arith.constant 0 : index
    %c0_9 = arith.constant 0 : index
    %15 = vector.load %arg1[%c0_8, %c0_9] : memref<21x64xf32, #tpu.memory_space<vmem>>, vector<21x64xf32>
    %16 = arith.addf %11, %15 : vector<21x64xf32>
    %17 = vector.shape_cast %4 : vector<21x1xi1> to vector<21x1xi1>
    %18 = vector.broadcast %17 : vector<21x1xi1> to vector<21x64xi1>
    %19 = arith.select %18, %14, %16 : vector<21x64xi1>, vector<21x64xf32>
    %c0_10 = arith.constant 0 : index
    %c0_11 = arith.constant 0 : index
    %20 = vector.load %arg2[%c0_10, %c0_11] : memref<21x1xf32, #tpu.memory_space<vmem>>, vector<21x1xf32>
    %21 = vector.broadcast %20 : vector<21x1xf32> to vector<21x64xf32>
    %22 = arith.mulf %19, %21 : vector<21x64xf32>
    %c0_12 = arith.constant 0 : index
    %c0_13 = arith.constant 0 : index
    %c0_14 = arith.constant 0 : index
    %23 = vector.load %arg5[%c0_12, %c0_13, %c0_14] : memref<1x21x64xf32, #tpu.memory_space<vmem>>, vector<1x21x64xf32>
    %24 = vector.shape_cast %23 : vector<1x21x64xf32> to vector<21x64xf32>
    %25 = vector.shape_cast %22 : vector<21x64xf32> to vector<1x21x64xf32>
    tpu.vector_store %arg5[%c0_12, %c0_13, %c0_14], %25 {strides = array<i32>} : memref<1x21x64xf32, #tpu.memory_space<vmem>>, vector<1x21x64xf32>,
    return
  }
  func.func @transform_0(%arg0: i32) -> (i32, i32) {
    %c0_i32 = arith.constant 0 : i32
    %c0_i32_0 = arith.constant 0 : i32
    %c0_i32_1 = arith.constant 0 : i32
    return %c0_i32, %c0_i32_0 : i32, i32
  }
  func.func @transform_1(%arg0: i32) -> (i32, i32) {
    %c0_i32 = arith.constant 0 : i32
    %c0_i32_0 = arith.constant 0 : i32
    %c0_i32_1 = arith.constant 0 : i32
    return %c0_i32, %c0_i32_0 : i32, i32
  }
  func.func @transform_2(%arg0: i32) -> (i32, i32) {
    %c0_i32 = arith.constant 0 : i32
    %c0_i32_0 = arith.constant 0 : i32
    %c0_i32_1 = arith.constant 0 : i32
    return %c0_i32, %c0_i32_0 : i32, i32
  }
  func.func @transform_3(%arg0: i32) -> (i32, i32, i32) {
    %c0_i32 = arith.constant 0 : i32
    %c0_i32_0 = arith.constant 0 : i32
    %c0_i32_1 = arith.constant 0 : i32
    return %arg0, %c0_i32, %c0_i32_0 : i32, i32, i32
  }
  func.func @transform_4(%arg0: i32) -> (i32, i32, i32) {
    %c0_i32 = arith.constant 0 : i32
    %c0_i32_0 = arith.constant 0 : i32
    %c0_i32_1 = arith.constant 0 : i32
    return %arg0, %c0_i32, %c0_i32_0 : i32, i32, i32
  }
}

</mosaic_0001>

<llo_original>
// kernel: _lambda_.12
$region0: #{_lambda_.12}
  #allocation0 [shape = 'u32[]', space=smem, size = 0x4, offset = 0x4, fixed_abs, tag = 'smem constant byte address 0x4 - core index']
  #allocation1 [shape = 'u32[144,128]{1,0:T(1,128)}', space=vmem, size = 0x12000, scoped, tag = 'internal scratch']
  %s0 = inlined_call_operand.vmem [shape: bf16[8,27], index: 0, kind: input, shape index: {}]
  %s1 = inlined_call_operand.vmem [shape: f32[8,1], index: 1, kind: input, shape index: {}]
  %s2 = inlined_call_operand.vmem [shape: f32[8,1], index: 2, kind: input, shape index: {}]
  %s3 = inlined_call_operand.vmem [shape: bf16[2,27,1024], index: 3, kind: input, shape index: {}]
  %s4 = inlined_call_operand.vmem [shape: f32[2,8,1024], index: 4, kind: output, shape index: {}]
  %s5 = sld [smem:[#allocation0]]
  $region72: #{_lambda_.12} parent=0
    _
  %s7 = ssub.s32 1, %s5
  %s8 = scalar_select 0, %s7, %s5
  $region1: #{_lambda_.12} parent=0
    #allocation2 [shape = 'u8[65536]{0}', space=vmem, size = 0x10000, scoped, tag = 'input window, operand 3']
    loop: start=0, step=1, limit=6
    $region2: #{_lambda_.12} parent=1 // loop_pre_header
      _
    $region3: #{_lambda_.12} parent=1 // loop_header
      %s10 = sphi 0, %s14
      %p11 = scmp.ge.s32.totalorder %s10, 6
      %s17 = sphi 0, %s29
      %s18 = sphi 0, %s25
      %s19 = sphi 0, %s17
      %s20 = sphi 0, %s18
      %s21 = sphi 0, %s19
      %s22 = sphi 0, %s20
      %s30 = sphi 0, %s30
      %s32 = sphi 0, %s30
      %s33 = sphi 0, %s32
      %s47 = sphi 0, %s33
      %s51 = sphi 0, %s51
      %s53 = sphi 0, %s51
      %s54 = sphi 0, %s53
      %s68 = sphi 0, %s54
      %s72 = sphi 0, %s72
      %s74 = sphi 0, %s72
      %s75 = sphi 0, %s74
      %s89 = sphi 0, %s75
      %s97 = sphi 0, %s99
      %s100 = sphi 0, %s97
      %s101 = sphi 0, %s100
      %s117 = sphi 0, %s101
      %s125 = sphi 0, %s127
      %s128 = sphi 0, %s125
      %s129 = sphi 0, %s128
      %s145 = sphi 0, %s129
    $region4: #{_lambda_.12} parent=1 // loop_header_branch
      %13 = sbr.rel (%p11) target = $region8
    $region5: #{_lambda_.12} parent=1 // loop_body
      %s15 = ssub.s32 %s10, 1
      %s16 = ssub.s32 %s10, 2
      %s23 = sadd.s32 1, %s18
      %p24 = scmp.ge.s32.totalorder %s23, 2
      %s25 = scalar_select %p24, 0, %s23
      %s26 = sadd.s32 1, %s17
      %s27 = scalar_select %p24, %s26, %s17
      %p28 = scmp.ge.s32.totalorder %s27, 2
      %s29 = scalar_select %p28, 0, %s27
      %s31 = sadd.s32 %s30, 1
      %p34 = scmp.eq.s32.totalorder %s10, 3
      %p35 = scmp.ne.s32.totalorder %s30, %s32
      %p36 = scmp.eq.s32.totalorder %s10, 0
      %p37 = por %p35, %p36
      %p38 = scmp.ne.s32.totalorder %s30, %s32
      %p39 = scmp.eq.s32.totalorder %s15, 3
      %p40 = por %p38, %p39
      %p41 = scmp.ne.s32.totalorder %s32, %s33
      %p42 = scmp.eq.s32.totalorder %s15, 0
      %p43 = por %p41, %p42
      %p44 = scmp.ne.s32.totalorder %s32, %s33
      %p45 = scmp.eq.s32.totalorder %s16, 3
      %p46 = por %p44, %p45
      %p48 = scmp.ne.s32.totalorder %s33, %s47
      %p49 = scmp.eq.s32.totalorder %s16, 0
      %p50 = por %p48, %p49
      %s52 = sadd.s32 %s51, 1
      %p55 = scmp.eq.s32.totalorder %s10, 3
      %p56 = scmp.ne.s32.totalorder %s51, %s53
      %p57 = scmp.eq.s32.totalorder %s10, 0
      %p58 = por %p56, %p57
      %p59 = scmp.ne.s32.totalorder %s51, %s53
      %p60 = scmp.eq.s32.totalorder %s15, 3
      %p61 = por %p59, %p60
      %p62 = scmp.ne.s32.totalorder %s53, %s54
      %p63 = scmp.eq.s32.totalorder %s15, 0
      %p64 = por %p62, %p63
      %p65 = scmp.ne.s32.totalorder %s53, %s54
      %p66 = scmp.eq.s32.totalorder %s16, 3
      %p67 = por %p65, %p66
      %p69 = scmp.ne.s32.totalorder %s54, %s68
      %p70 = scmp.eq.s32.totalorder %s16, 0
      %p71 = por %p69, %p70
      %s73 = sadd.s32 %s72, 1
      %p76 = scmp.eq.s32.totalorder %s10, 3
      %p77 = scmp.ne.s32.totalorder %s72, %s74
      %p78 = scmp.eq.s32.totalorder %s10, 0
      %p79 = por %p77, %p78
      %p80 = scmp.ne.s32.totalorder %s72, %s74
      %p81 = scmp.eq.s32.totalorder %s15, 3
      %p82 = por %p80, %p81
      %p83 = scmp.ne.s32.totalorder %s74, %s75
      %p84 = scmp.eq.s32.totalorder %s15, 0
      %p85 = por %p83, %p84
      %p86 = scmp.ne.s32.totalorder %s74, %s75
      %p87 = scmp.eq.s32.totalorder %s16, 3
      %p88 = por %p86, %p87
      %p90 = scmp.ne.s32.totalorder %s75, %s89
      %p91 = scmp.eq.s32.totalorder %s16, 0
      %p92 = por %p90, %p91
      %s93 = ssub.s32 %s17, %s29
      %s94 = ssub.s32 %s18, %s25
      %s95 = sor.u32 %s93, %s94
      %p96 = scmp.eq.s32.totalorder %s95, 0
      %s98 = sadd.s32 %s97, 1
      %s99 = scalar_select %p96, %s97, %s98
      %p102 = pneg %p96
      %p103 = scmp.eq.s32.totalorder %s10, 3
      %p104 = por %p102, %p103
      %p105 = scmp.ne.s32.totalorder %s97, %s100
      %p106 = scmp.eq.s32.totalorder %s10, 0
      %p107 = por %p105, %p106
      %p108 = scmp.ne.s32.totalorder %s97, %s100
      %p109 = scmp.eq.s32.totalorder %s15, 3
      %p110 = por %p108, %p109
      %p111 = scmp.ne.s32.totalorder %s100, %s101
      %p112 = scmp.eq.s32.totalorder %s15, 0
      %p113 = por %p111, %p112
      %p114 = scmp.ne.s32.totalorder %s100, %s101
      %p115 = scmp.eq.s32.totalorder %s16, 3
      %p116 = por %p114, %p115
      %p118 = scmp.ne.s32.totalorder %s101, %s117
      %p119 = scmp.eq.s32.totalorder %s16, 0
      %p120 = por %p118, %p119
      %s121 = ssub.s32 %s17, %s29
      %s122 = ssub.s32 %s18, %s25
      %s123 = sor.u32 %s121, %s122
      %p124 = scmp.eq.s32.totalorder %s123, 0
      %s126 = sadd.s32 %s125, 1
      %s127 = scalar_select %p124, %s125, %s126
      %p130 = pneg %p124
      %p131 = scmp.eq.s32.totalorder %s10, 3
      %p132 = por %p130, %p131
      %p133 = scmp.ne.s32.totalorder %s125, %s128
      %p134 = scmp.eq.s32.totalorder %s10, 0
      %p135 = por %p133, %p134
      %p136 = scmp.ne.s32.totalorder %s125, %s128
      %p137 = scmp.eq.s32.totalorder %s15, 3
      %p138 = por %p136, %p137
      %p139 = scmp.ne.s32.totalorder %s128, %s129
      %p140 = scmp.eq.s32.totalorder %s15, 0
      %p141 = por %p139, %p140
      %p142 = scmp.ne.s32.totalorder %s128, %s129
      %p143 = scmp.eq.s32.totalorder %s16, 3
      %p144 = por %p142, %p143
      %p146 = scmp.ne.s32.totalorder %s129, %s145
      %p147 = scmp.eq.s32.totalorder %s16, 0
      %p148 = por %p146, %p147
      %p149 = scmp.le.s32.totalorder 1, %s10
      %p150 = scmp.lt.s32.totalorder %s10, 5
      %p151 = pnand %p149, %p150
      %p152 = pneg %p151
      // Predicated region
      $region9: #{_lambda_.12} parent=5 // pred_check
        _
      $region10: #{_lambda_.12} parent=5 // pred_check_branch
        %154 = sbr.rel (%p151) target = $region12
      $region11: #{_lambda_.12} parent=5 // pred_region
        %s155 = ssub.s32 %s10, 1
        // Predicated region
        $region13: #{_lambda_.12} parent=11 // pred_check
          %p156 = pneg %p43
        $region14: #{_lambda_.12} parent=11 // pred_check_branch
          %158 = sbr.rel (%p156) target = $region16
        $region15: #{_lambda_.12} parent=11 // pred_region
          _
        $region16: #{_lambda_.12} parent=11 // pred_fallthru
          _
        // Predicated region
        $region17: #{_lambda_.12} parent=11 // pred_check
          %p159 = pneg %p64
        $region18: #{_lambda_.12} parent=11 // pred_check_branch
          %161 = sbr.rel (%p159) target = $region20
        $region19: #{_lambda_.12} parent=11 // pred_region
          _
        $region20: #{_lambda_.12} parent=11 // pred_fallthru
          _
        // Predicated region
        $region21: #{_lambda_.12} parent=11 // pred_check
          %p162 = pneg %p85
        $region22: #{_lambda_.12} parent=11 // pred_check_branch
          %164 = sbr.rel (%p162) target = $region24
        $region23: #{_lambda_.12} parent=11 // pred_region
          _
        $region24: #{_lambda_.12} parent=11 // pred_fallthru
          _
      $region12: #{_lambda_.12} parent=5 // pred_fallthru
        _
      %p165 = scmp.lt.s32.totalorder %s10, 4
      // Predicated region
      $region25: #{_lambda_.12} parent=5 // pred_check
        %p166 = pneg %p165
      $region26: #{_lambda_.12} parent=5 // pred_check_branch
        %168 = sbr.rel (%p166) target = $region28
      $region27: #{_lambda_.12} parent=5 // pred_region
        // Predicated region
        $region29: #{_lambda_.12} parent=27 // pred_check
          %p169 = pneg %p107
        $region30: #{_lambda_.12} parent=27 // pred_check_branch
          %171 = sbr.rel (%p169) target = $region32
        $region31: #{_lambda_.12} parent=27 // pred_region
          %s172 = sand.u32 %s97, 1
          %s173 = sand.u32 %s97, 1
          %s174 = smul.addr %s173, 64
          %s175 = scalar_lea.vmem [#allocation2], %s174
          %s176 = smul.u32 4, %s18
          %s177 = smul.addr %s17, 32
          %s178 = sadd.s32 %s176, %s177
          %s179 = smul.addr %s178, 4
          %s180 = scalar_lea.vmem %s3, %s179
          // Predicated region
          $region33: #{_lambda_.12} parent=31 // pred_check
            _
          $region34: #{_lambda_.12} parent=31 // pred_check_branch
            %182 = sbr.rel (0) target = $region36
          $region35: #{_lambda_.12} parent=31 // pred_region
            // Predicated region
            $region37: #{_lambda_.12} parent=35 // pred_check
              _
            $region38: #{_lambda_.12} parent=35 // pred_check_branch
              %184 = sbr.rel (0) target = $region40
            $region39: #{_lambda_.12} parent=35 // pred_region
              loop: start=0, step=1, limit=1
              $region41: #{_lambda_.12} parent=39 // loop_pre_header
                _
              $region42: #{_lambda_.12} parent=39 // loop_header
                %s186 = sphi 0, %s190
                %p187 = scmp.ge.s32.totalorder %s186, 1
                %s191 = sphi %s180, %s180
                %s192 = sphi %s175, %s175
              $region43: #{_lambda_.12} parent=39 // loop_header_branch
                %189 = sbr.rel (%p187) target = $region47
              $region44: #{_lambda_.12} parent=39 // loop_body
                %v193 = vld [vmem:[%s191] sm:$0xff]
                %194 = vst [vmem:[%s192] sm:$0xff] %v193
                %v195 = vld [vmem:[%s191 + $0x8] sm:$0xff]
                %196 = vst [vmem:[%s192 + $0x8] sm:$0xff] %v195
                %v197 = vld [vmem:[%s191 + $0x20] sm:$0xff]
                %198 = vst [vmem:[%s192 + $0x10] sm:$0xff] %v197
                %v199 = vld [vmem:[%s191 + $0x28] sm:$0xff]
                %200 = vst [vmem:[%s192 + $0x18] sm:$0xff] %v199
                %v201 = vld [vmem:[%s191 + $0x40] sm:$0xff]
                %202 = vst [vmem:[%s192 + $0x20] sm:$0xff] %v201
                %v203 = vld [vmem:[%s191 + $0x48] sm:$0xff]
                %204 = vst [vmem:[%s192 + $0x28] sm:$0xff] %v203
                %v205 = vld [vmem:[%s191 + $0x60] sm:$0xff]
                %206 = vst [vmem:[%s192 + $0x30] sm:$0xff] %v205
                %v207 = vld [vmem:[%s191 + $0x68] sm:$0xff]
                %208 = vst [vmem:[%s192 + $0x38] sm:$0xff] %v207
              $region45: #{_lambda_.12} parent=39 // loop_footer
                %s190 = sadd.s32 1, %s186
              $region46: #{_lambda_.12} parent=39 // loop_footer_branch
                %185 = sbr.rel target = $region42
              $region47: #{_lambda_.12} parent=39 // loop_exit
                _
            $region40: #{_lambda_.12} parent=35 // pred_fallthru
              _
            // Predicated region
            $region48: #{_lambda_.12} parent=35 // pred_check
              _
            $region49: #{_lambda_.12} parent=35 // pred_check_branch
              %210 = sbr.rel target = $region51
            $region50: #{_lambda_.12} parent=35 // pred_region
              _
            $region51: #{_lambda_.12} parent=35 // pred_fallthru
              _
          $region36: #{_lambda_.12} parent=31 // pred_fallthru
            _
          %211 = vnop
        $region32: #{_lambda_.12} parent=27 // pred_fallthru
          _
      $region28: #{_lambda_.12} parent=5 // pred_fallthru
        _
      %p212 = scmp.le.s32.totalorder 1, %s10
      %p213 = scmp.lt.s32.totalorder %s10, 5
      %p214 = pnand %p212, %p213
      %p215 = pneg %p214
      // Predicated region
      $region52: #{_lambda_.12} parent=5 // pred_check
        _
      $region53: #{_lambda_.12} parent=5 // pred_check_branch
        %217 = sbr.rel (%p214) target = $region55
      $region54: #{_lambda_.12} parent=5 // pred_region
        %s218 = ssub.s32 %s10, 1
        %s219 = sand.u32 %s100, 1
        %s220 = sand.u32 %s100, 1
        %s221 = smul.addr %s220, 64
        %s222 = scalar_lea.vmem [#allocation2], %s221
        // Predicated region
        $region56: #{_lambda_.12} parent=54 // pred_check
          %p223 = pneg %p113
        $region57: #{_lambda_.12} parent=54 // pred_check_branch
          %225 = sbr.rel (%p223) target = $region59
        $region58: #{_lambda_.12} parent=54 // pred_region
          _
        $region59: #{_lambda_.12} parent=54 // pred_fallthru
          _
        %p226 = pneg %p43
        %p227 = pneg %p40
        %p228 = pneg %p64
        %p229 = pneg %p61
        %p230 = pneg %p85
        %p231 = pneg %p82
        %s232 = sand.u32 %s100, 1
        %s233 = sand.u32 %s100, 1
        %s234 = smul.addr %s233, 64
        %s235 = scalar_lea.vmem [#allocation2], %s234
        %p236 = pneg %p113
        %p237 = pneg %p110
        %p238 = pneg %p141
        %p239 = pneg %p138
        %s240 = smul.u32 4, %s20
        %p241 = scmp.lt.s32.totalorder %s19, 1
        %s242 = scalar_select %p241, %s19, 1
        %p243 = scmp.lt.s32.totalorder %s240, 7
        %s244 = scalar_select %p243, %s240, 7
        %s245 = smul.addr %s242, 8
        %s246 = sadd.s32 %s244, %s245
        %s247 = smul.addr %s246, 8
        %s248 = scalar_lea.vmem %s4, %s247
        %s249 = smul.u32 4, %s20
        %s250 = smul.u32 4, %s20
        %p251 = scmp.lt.s32.totalorder %s19, 1
        %s252 = scalar_select %p251, %s19, 1
        %p253 = scmp.lt.s32.totalorder %s250, 7
        %s254 = scalar_select %p253, %s250, 7
        %s255 = smul.addr %s252, 8
        %s256 = sadd.s32 %s254, %s255
        %s257 = smul.addr %s256, 8
        %s258 = scalar_lea.vmem %s4, %s257
        %s259 = smul.u32 4, %s20
        %v261 = vld [vmem:[%s0] sm:$0xf]
        %v262 = vld [vmem:[%s222] sm:$0xff]
        %v263 = vld [vmem:[%s222 + $0x8] sm:$0xff]
        %v264 = vld [vmem:[%s222 + $0x10] sm:$0xff]
        %v265 = vld [vmem:[%s222 + $0x18] sm:$0xff]
        %v266 = vld [vmem:[%s222 + $0x20] sm:$0xff]
        %v267 = vld [vmem:[%s222 + $0x28] sm:$0xff]
        %v268 = vld [vmem:[%s222 + $0x30] sm:$0x33]
        %v269 = vld [vmem:[%s222 + $0x38] sm:$0x33]
        %v278 = vunpack.c.l.b16 %v262
        %v279 = vunpack.c.h.b16 %v262
        %v280 = vunpack.c.l.b16 %v263
        %v281 = vunpack.c.h.b16 %v263
        %v282 = vunpack.c.l.b16 %v264
        %v283 = vunpack.c.h.b16 %v264
        %v284 = vunpack.c.l.b16 %v265
        %v285 = vunpack.c.h.b16 %v265
        %v286 = vunpack.c.l.b16 %v266
        %v287 = vunpack.c.h.b16 %v266
        %v288 = vunpack.c.l.b16 %v267
        %v289 = vunpack.c.h.b16 %v267
        %v290 = vunpack.c.l.b16 %v268
        %v291 = vunpack.c.h.b16 %v268
        %v292 = vunpack.c.l.b16 %v269
        %v293 = vunpack.c.h.b16 %v269
        %v294 = vpack.c.b16 %v282, %v278
        %v295 = vpack.c.b16 %v283, %v279
        %v296 = vpack.c.b16 %v284, %v280
        %v297 = vpack.c.b16 %v285, %v281
        %v298 = vpack.c.b16 %v290, %v286
        %v299 = vpack.c.b16 %v291, %v287
        %v300 = vpack.c.b16 %v292, %v288
        %v301 = vpack.c.b16 %v293, %v289
        %vm306 = vcmask 220160
        %v308 = vsel %vm306, %v261, 0
        %vm310 = vcmask 1044480
        %vm311 = vcmask 1045504
        %v312 = vsel %vm310, 4294967295, 65535
        %v313 = vsel %vm311, %v312, 0
        %v315 = vand.u32 %v298, %v313
        %v318 = vand.u32 %v299, %v313
        %v321 = vand.u32 %v300, %v313
        %v324 = vand.u32 %v301, %v313
        %326 = vmatprep.subr.bf16.mxu0 %v295
        %327 = vmatpush1.bf16.msra.mxu0 %v294
        %328 = vmatprep.subr.bf16.mxu0 %v318
        %329 = vmatpush1.bf16.msra.mxu0 %v315
        %330 = vmatprep.subr.bf16.mxu0 0
        %331 = vmatpush1.bf16.msra.mxu0 0
        %332 = vmatprep.subr.bf16.mxu0 0
        %333 = vmatpush1.bf16.msra.mxu0 0
        %334 = vmatprep.subr.bf16.mxu0 0
        %335 = vmatpush1.bf16.msra.mxu0 0
        %336 = vmatprep.subr.bf16.mxu0 0
        %337 = vmatpush1.bf16.msra.mxu0 0
        %338 = vmatprep.subr.bf16.mxu0 0
        %339 = vmatpush1.bf16.msra.mxu0 0
        %340 = vmatprep.subr.bf16.mxu0 0
        %341 = vmatpush1.bf16.msra.mxu0 0
        %342 = vmatprep.subr.bf16.mxu0 0
        %343 = vmatpush1.bf16.msra.mxu0 0
        %344 = vmatprep.subr.bf16.mxu0 0
        %345 = vmatpush1.bf16.msra.mxu0 0
        %346 = vmatprep.subr.bf16.mxu0 0
        %347 = vmatpush1.bf16.msra.mxu0 0
        %348 = vmatprep.subr.bf16.mxu0 0
        %349 = vmatpush1.bf16.msra.mxu0 0
        %350 = vmatprep.subr.bf16.mxu0 0
        %351 = vmatpush1.bf16.msra.mxu0 0
        %352 = vmatprep.subr.bf16.mxu0 0
        %353 = vmatpush1.bf16.msra.mxu0 0
        %354 = vmatprep.subr.bf16.mxu0 0
        %355 = vmatpush1.bf16.msra.mxu0 0
        %356 = vmatprep.subr.bf16.mxu0 0
        %357 = vmatpush1.bf16.msra.mxu0 0
        %358 = vmatprep.mubr.bf16.mxu0 0
        %359 = vmatmul.mubr.bf16.gmra.mrb[0].mxu0 %v308
        %v360 = vpop.f32.mrb[0].mxu0
        %v361 = vadd.f32 0.0, %v360
        %v362 = vpop.f32.mrb[0].mxu0
        %v363 = vadd.f32 0.0, %v362
        %v364 = vpop.f32.mrb[0].mxu0
        %v365 = vpop.f32.mrb[0].mxu0
        %366 = vdwg.mxu0
        %367 = vmatprep.subr.bf16.mxu0 %v297
        %368 = vmatpush1.bf16.msra.mxu0 %v296
        %369 = vmatprep.subr.bf16.mxu0 %v324
        %370 = vmatpush1.bf16.msra.mxu0 %v321
        %371 = vmatprep.subr.bf16.mxu0 0
        %372 = vmatpush1.bf16.msra.mxu0 0
        %373 = vmatprep.subr.bf16.mxu0 0
        %374 = vmatpush1.bf16.msra.mxu0 0
        %375 = vmatprep.subr.bf16.mxu0 0
        %376 = vmatpush1.bf16.msra.mxu0 0
        %377 = vmatprep.subr.bf16.mxu0 0
        %378 = vmatpush1.bf16.msra.mxu0 0
        %379 = vmatprep.subr.bf16.mxu0 0
        %380 = vmatpush1.bf16.msra.mxu0 0
        %381 = vmatprep.subr.bf16.mxu0 0
        %382 = vmatpush1.bf16.msra.mxu0 0
        %383 = vmatprep.subr.bf16.mxu0 0
        %384 = vmatpush1.bf16.msra.mxu0 0
        %385 = vmatprep.subr.bf16.mxu0 0
        %386 = vmatpush1.bf16.msra.mxu0 0
        %387 = vmatprep.subr.bf16.mxu0 0
        %388 = vmatpush1.bf16.msra.mxu0 0
        %389 = vmatprep.subr.bf16.mxu0 0
        %390 = vmatpush1.bf16.msra.mxu0 0
        %391 = vmatprep.subr.bf16.mxu0 0
        %392 = vmatpush1.bf16.msra.mxu0 0
        %393 = vmatprep.subr.bf16.mxu0 0
        %394 = vmatpush1.bf16.msra.mxu0 0
        %395 = vmatprep.subr.bf16.mxu0 0
        %396 = vmatpush1.bf16.msra.mxu0 0
        %397 = vmatprep.subr.bf16.mxu0 0
        %398 = vmatpush1.bf16.msra.mxu0 0
        %399 = vmatprep.mubr.bf16.mxu0 0
        %400 = vmatmul.mubr.bf16.gmra.mrb[0].mxu0 %v308
        %v401 = vpop.f32.mrb[0].mxu0
        %v402 = vadd.f32 0.0, %v401
        %v403 = vpop.f32.mrb[0].mxu0
        %v404 = vadd.f32 0.0, %v403
        %v405 = vpop.f32.mrb[0].mxu0
        %v406 = vpop.f32.mrb[0].mxu0
        %407 = vdwg.mxu0
        %v408 = vld [vmem:[%s1] sm:$0xff]
        %410 = vset.pattern.permute.xlu0 0
        %411 = vperm.xlu0 %410, %v408
        %v412 = vpop.permute.xlu0 %411
        %v414 = vmul.f32 %v361, %v412
        %v415 = vmul.f32 %v363, %v412
        %v416 = vmul.f32 %v402, %v412
        %v417 = vmul.f32 %v404, %v412
        %v418 = vld [vmem:[%s2] sm:$0xff]
        %420 = vset.pattern.permute.xlu0 0
        %421 = vperm.xlu0 %420, %v418
        %v422 = vpop.permute.xlu0 %421
        %v424 = vadd.f32 %v414, %v422
        %v425 = vadd.f32 %v415, %v422
        %v426 = vadd.f32 %v416, %v422
        %v427 = vadd.f32 %v417, %v422
        %vm428 = vcmp.gt.f32.partialorder %v424, 0.0
        %vm429 = vcmp.gt.f32.partialorder %v425, 0.0
        %vm430 = vcmp.gt.f32.partialorder %v426, 0.0
        %vm431 = vcmp.gt.f32.partialorder %v427, 0.0
        %v432 = vmul.f32 %v424, 0.1
        %v433 = vmul.f32 %v425, 0.1
        %v434 = vmul.f32 %v426, 0.1
        %v435 = vmul.f32 %v427, 0.1
        %v436 = vsel %vm428, %v424, %v432
        %v437 = vsel %vm429, %v425, %v433
        %v438 = vsel %vm430, %v426, %v434
        %v439 = vsel %vm431, %v427, %v435
        %440 = vst [vmem:[%s258] sm:$0xff] %v436
        %441 = vst [vmem:[%s258 + $0x8] sm:$0xff] %v437
        %442 = vst [vmem:[%s258 + $0x10] sm:$0xff] %v438
        %443 = vst [vmem:[%s258 + $0x18] sm:$0xff] %v439
        %s444 = smul.u32 4, %s20
        %p445 = scmp.lt.s32.totalorder %s19, 1
        %s446 = scalar_select %p445, %s19, 1
        %p447 = scmp.lt.s32.totalorder %s444, 7
        %s448 = scalar_select %p447, %s444, 7
        %s449 = smul.addr %s446, 8
        %s450 = sadd.s32 %s448, %s449
        %s451 = smul.addr %s450, 8
        %s452 = scalar_lea.vmem %s4, %s451
        // Predicated region
        $region60: #{_lambda_.12} parent=54 // pred_check
          %p453 = pneg %p138
        $region61: #{_lambda_.12} parent=54 // pred_check_branch
          %455 = sbr.rel (%p453) target = $region63
        $region62: #{_lambda_.12} parent=54 // pred_region
          %s456 = smul.u32 4, %s20
        $region63: #{_lambda_.12} parent=54 // pred_fallthru
          _
      $region55: #{_lambda_.12} parent=5 // pred_fallthru
        _
      %p457 = scmp.le.s32.totalorder 2, %s10
      // Predicated region
      $region64: #{_lambda_.12} parent=5 // pred_check
        %p458 = pneg %p457
      $region65: #{_lambda_.12} parent=5 // pred_check_branch
        %460 = sbr.rel (%p458) target = $region67
      $region66: #{_lambda_.12} parent=5 // pred_region
        %s461 = ssub.s32 %s10, 2
        // Predicated region
        $region68: #{_lambda_.12} parent=66 // pred_check
          %p462 = pneg %p144
        $region69: #{_lambda_.12} parent=66 // pred_check_branch
          %464 = sbr.rel (%p462) target = $region71
        $region70: #{_lambda_.12} parent=66 // pred_region
          %s465 = smul.u32 4, %s22
          %p466 = scmp.lt.s32.totalorder %s21, 1
          %s467 = scalar_select %p466, %s21, 1
          %p468 = scmp.lt.s32.totalorder %s465, 7
          %s469 = scalar_select %p468, %s465, 7
          %s470 = smul.addr %s467, 8
          %s471 = sadd.s32 %s469, %s470
          %s472 = smul.addr %s471, 8
          %s473 = scalar_lea.vmem %s4, %s472
        $region71: #{_lambda_.12} parent=66 // pred_fallthru
          _
      $region67: #{_lambda_.12} parent=5 // pred_fallthru
        _
    $region6: #{_lambda_.12} parent=1 // loop_footer
      %s14 = sadd.s32 1, %s10
    $region7: #{_lambda_.12} parent=1 // loop_footer_branch
      %9 = sbr.rel target = $region3
    $region8: #{_lambda_.12} parent=1 // loop_exit
      _

// kernel: _lambda_.13
$region0: #{_lambda_.13}
  #allocation0 [shape = 'u32[]', space=smem, size = 0x4, offset = 0x4, fixed_abs, tag = 'smem constant byte address 0x4 - core index']
  #allocation1 [shape = 'u32[144,128]{1,0:T(1,128)}', space=vmem, size = 0x12000, scoped, tag = 'internal scratch']
  %s0 = inlined_call_operand.vmem [shape: bf16[16,72], index: 0, kind: input, shape index: {}]
  %s1 = inlined_call_operand.vmem [shape: f32[16,1], index: 1, kind: input, shape index: {}]
  %s2 = inlined_call_operand.vmem [shape: f32[16,1], index: 2, kind: input, shape index: {}]
  %s3 = inlined_call_operand.vmem [shape: bf16[2,72,256], index: 3, kind: input, shape index: {}]
  %s4 = inlined_call_operand.vmem [shape: f32[2,16,256], index: 4, kind: output, shape index: {}]
  %s5 = sld [smem:[#allocation0]]
  $region49: #{_lambda_.13} parent=0
    _
  %s7 = ssub.s32 1, %s5
  %s8 = scalar_select 0, %s7, %s5
  loop: start=0, step=1, limit=4
  $region2: #{_lambda_.13} parent=0 // loop_pre_header
    _
  $region3: #{_lambda_.13} parent=0 // loop_header
    %s10 = sphi 0, %s14
    %p11 = scmp.ge.s32.totalorder %s10, 4
    %s17 = sphi 0, %s29
    %s18 = sphi 0, %s25
    %s19 = sphi 0, %s17
    %s20 = sphi 0, %s18
    %s21 = sphi 0, %s19
    %s22 = sphi 0, %s20
    %s30 = sphi 0, %s30
    %s32 = sphi 0, %s30
    %s33 = sphi 0, %s32
    %s47 = sphi 0, %s33
    %s51 = sphi 0, %s51
    %s53 = sphi 0, %s51
    %s54 = sphi 0, %s53
    %s68 = sphi 0, %s54
    %s72 = sphi 0, %s72
    %s74 = sphi 0, %s72
    %s75 = sphi 0, %s74
    %s89 = sphi 0, %s75
    %s97 = sphi 0, %s99
    %s100 = sphi 0, %s97
    %s101 = sphi 0, %s100
    %s117 = sphi 0, %s101
    %s125 = sphi 0, %s127
    %s128 = sphi 0, %s125
    %s129 = sphi 0, %s128
    %s145 = sphi 0, %s129
  $region4: #{_lambda_.13} parent=0 // loop_header_branch
    %13 = sbr.rel (%p11) target = $region8
  $region5: #{_lambda_.13} parent=0 // loop_body
    %s15 = ssub.s32 %s10, 1
    %s16 = ssub.s32 %s10, 2
    %s23 = sadd.s32 1, %s18
    %p24 = scmp.ge.s32.totalorder %s23, 1
    %s25 = scalar_select %p24, 0, %s23
    %s26 = sadd.s32 1, %s17
    %s27 = scalar_select %p24, %s26, %s17
    %p28 = scmp.ge.s32.totalorder %s27, 2
    %s29 = scalar_select %p28, 0, %s27
    %s31 = sadd.s32 %s30, 1
    %p34 = scmp.eq.s32.totalorder %s10, 1
    %p35 = scmp.ne.s32.totalorder %s30, %s32
    %p36 = scmp.eq.s32.totalorder %s10, 0
    %p37 = por %p35, %p36
    %p38 = scmp.ne.s32.totalorder %s30, %s32
    %p39 = scmp.eq.s32.totalorder %s15, 1
    %p40 = por %p38, %p39
    %p41 = scmp.ne.s32.totalorder %s32, %s33
    %p42 = scmp.eq.s32.totalorder %s15, 0
    %p43 = por %p41, %p42
    %p44 = scmp.ne.s32.totalorder %s32, %s33
    %p45 = scmp.eq.s32.totalorder %s16, 1
    %p46 = por %p44, %p45
    %p48 = scmp.ne.s32.totalorder %s33, %s47
    %p49 = scmp.eq.s32.totalorder %s16, 0
    %p50 = por %p48, %p49
    %s52 = sadd.s32 %s51, 1
    %p55 = scmp.eq.s32.totalorder %s10, 1
    %p56 = scmp.ne.s32.totalorder %s51, %s53
    %p57 = scmp.eq.s32.totalorder %s10, 0
    %p58 = por %p56, %p57
    %p59 = scmp.ne.s32.totalorder %s51, %s53
    %p60 = scmp.eq.s32.totalorder %s15, 1
    %p61 = por %p59, %p60
    %p62 = scmp.ne.s32.totalorder %s53, %s54
    %p63 = scmp.eq.s32.totalorder %s15, 0
    %p64 = por %p62, %p63
    %p65 = scmp.ne.s32.totalorder %s53, %s54
    %p66 = scmp.eq.s32.totalorder %s16, 1
    %p67 = por %p65, %p66
    %p69 = scmp.ne.s32.totalorder %s54, %s68
    %p70 = scmp.eq.s32.totalorder %s16, 0
    %p71 = por %p69, %p70
    %s73 = sadd.s32 %s72, 1
    %p76 = scmp.eq.s32.totalorder %s10, 1
    %p77 = scmp.ne.s32.totalorder %s72, %s74
    %p78 = scmp.eq.s32.totalorder %s10, 0
    %p79 = por %p77, %p78
    %p80 = scmp.ne.s32.totalorder %s72, %s74
    %p81 = scmp.eq.s32.totalorder %s15, 1
    %p82 = por %p80, %p81
    %p83 = scmp.ne.s32.totalorder %s74, %s75
    %p84 = scmp.eq.s32.totalorder %s15, 0
    %p85 = por %p83, %p84
    %p86 = scmp.ne.s32.totalorder %s74, %s75
    %p87 = scmp.eq.s32.totalorder %s16, 1
    %p88 = por %p86, %p87
    %p90 = scmp.ne.s32.totalorder %s75, %s89
    %p91 = scmp.eq.s32.totalorder %s16, 0
    %p92 = por %p90, %p91
    %s93 = ssub.s32 %s17, %s29
    %s94 = ssub.s32 %s18, %s25
    %s95 = sor.u32 %s93, %s94
    %p96 = scmp.eq.s32.totalorder %s95, 0
    %s98 = sadd.s32 %s97, 1
    %s99 = scalar_select %p96, %s97, %s98
    %p102 = pneg %p96
    %p103 = scmp.eq.s32.totalorder %s10, 1
    %p104 = por %p102, %p103
    %p105 = scmp.ne.s32.totalorder %s97, %s100
    %p106 = scmp.eq.s32.totalorder %s10, 0
    %p107 = por %p105, %p106
    %p108 = scmp.ne.s32.totalorder %s97, %s100
    %p109 = scmp.eq.s32.totalorder %s15, 1
    %p110 = por %p108, %p109
    %p111 = scmp.ne.s32.totalorder %s100, %s101
    %p112 = scmp.eq.s32.totalorder %s15, 0
    %p113 = por %p111, %p112
    %p114 = scmp.ne.s32.totalorder %s100, %s101
    %p115 = scmp.eq.s32.totalorder %s16, 1
    %p116 = por %p114, %p115
    %p118 = scmp.ne.s32.totalorder %s101, %s117
    %p119 = scmp.eq.s32.totalorder %s16, 0
    %p120 = por %p118, %p119
    %s121 = ssub.s32 %s17, %s29
    %s122 = ssub.s32 %s18, %s25
    %s123 = sor.u32 %s121, %s122
    %p124 = scmp.eq.s32.totalorder %s123, 0
    %s126 = sadd.s32 %s125, 1
    %s127 = scalar_select %p124, %s125, %s126
    %p130 = pneg %p124
    %p131 = scmp.eq.s32.totalorder %s10, 1
    %p132 = por %p130, %p131
    %p133 = scmp.ne.s32.totalorder %s125, %s128
    %p134 = scmp.eq.s32.totalorder %s10, 0
    %p135 = por %p133, %p134
    %p136 = scmp.ne.s32.totalorder %s125, %s128
    %p137 = scmp.eq.s32.totalorder %s15, 1
    %p138 = por %p136, %p137
    %p139 = scmp.ne.s32.totalorder %s128, %s129
    %p140 = scmp.eq.s32.totalorder %s15, 0
    %p141 = por %p139, %p140
    %p142 = scmp.ne.s32.totalorder %s128, %s129
    %p143 = scmp.eq.s32.totalorder %s16, 1
    %p144 = por %p142, %p143
    %p146 = scmp.ne.s32.totalorder %s129, %s145
    %p147 = scmp.eq.s32.totalorder %s16, 0
    %p148 = por %p146, %p147
    %p149 = scmp.le.s32.totalorder 1, %s10
    %p150 = scmp.lt.s32.totalorder %s10, 3
    %p151 = pnand %p149, %p150
    %p152 = pneg %p151
    // Predicated region
    $region9: #{_lambda_.13} parent=5 // pred_check
      _
    $region10: #{_lambda_.13} parent=5 // pred_check_branch
      %154 = sbr.rel (%p151) target = $region12
    $region11: #{_lambda_.13} parent=5 // pred_region
      %s155 = ssub.s32 %s10, 1
      // Predicated region
      $region13: #{_lambda_.13} parent=11 // pred_check
        %p156 = pneg %p43
      $region14: #{_lambda_.13} parent=11 // pred_check_branch
        %158 = sbr.rel (%p156) target = $region16
      $region15: #{_lambda_.13} parent=11 // pred_region
        _
      $region16: #{_lambda_.13} parent=11 // pred_fallthru
        _
      // Predicated region
      $region17: #{_lambda_.13} parent=11 // pred_check
        %p159 = pneg %p64
      $region18: #{_lambda_.13} parent=11 // pred_check_branch
        %161 = sbr.rel (%p159) target = $region20
      $region19: #{_lambda_.13} parent=11 // pred_region
        _
      $region20: #{_lambda_.13} parent=11 // pred_fallthru
        _
      // Predicated region
      $region21: #{_lambda_.13} parent=11 // pred_check
        %p162 = pneg %p85
      $region22: #{_lambda_.13} parent=11 // pred_check_branch
        %164 = sbr.rel (%p162) target = $region24
      $region23: #{_lambda_.13} parent=11 // pred_region
        _
      $region24: #{_lambda_.13} parent=11 // pred_fallthru
        _
    $region12: #{_lambda_.13} parent=5 // pred_fallthru
      _
    %p165 = scmp.lt.s32.totalorder %s10, 2
    // Predicated region
    $region25: #{_lambda_.13} parent=5 // pred_check
      %p166 = pneg %p165
    $region26: #{_lambda_.13} parent=5 // pred_check_branch
      %168 = sbr.rel (%p166) target = $region28
    $region27: #{_lambda_.13} parent=5 // pred_region
      // Predicated region
      $region29: #{_lambda_.13} parent=27 // pred_check
        %p169 = pneg %p107
      $region30: #{_lambda_.13} parent=27 // pred_check_branch
        %171 = sbr.rel (%p169) target = $region32
      $region31: #{_lambda_.13} parent=27 // pred_region
        %s172 = smul.u32 2, %s18
        %p173 = scmp.lt.s32.totalorder %s17, 1
        %s174 = scalar_select %p173, %s17, 1
        %p175 = scmp.lt.s32.totalorder %s172, 1
        %s176 = scalar_select %p175, %s172, 1
        %s177 = smul.addr %s174, 18
        %s178 = sadd.s32 %s176, %s177
        %s179 = smul.addr %s178, 4
        %s180 = scalar_lea.vmem %s3, %s179
        %s181 = smul.u32 2, %s18
      $region32: #{_lambda_.13} parent=27 // pred_fallthru
        _
    $region28: #{_lambda_.13} parent=5 // pred_fallthru
      _
    %p182 = scmp.le.s32.totalorder 1, %s10
    %p183 = scmp.lt.s32.totalorder %s10, 3
    %p184 = pnand %p182, %p183
    %p185 = pneg %p184
    // Predicated region
    $region33: #{_lambda_.13} parent=5 // pred_check
      _
    $region34: #{_lambda_.13} parent=5 // pred_check_branch
      %187 = sbr.rel (%p184) target = $region36
    $region35: #{_lambda_.13} parent=5 // pred_region
      %s188 = ssub.s32 %s10, 1
      %p189 = pneg %p43
      %p190 = pneg %p40
      %p191 = pneg %p64
      %p192 = pneg %p61
      %p193 = pneg %p85
      %p194 = pneg %p82
      %s195 = smul.u32 2, %s20
      %p196 = scmp.lt.s32.totalorder %s19, 1
      %s197 = scalar_select %p196, %s19, 1
      %p198 = scmp.lt.s32.totalorder %s195, 1
      %s199 = scalar_select %p198, %s195, 1
      %s200 = smul.addr %s197, 18
      %s201 = sadd.s32 %s199, %s200
      %s202 = smul.addr %s201, 4
      %s203 = scalar_lea.vmem %s3, %s202
      %p204 = pneg %p113
      %p205 = pneg %p110
      %p206 = pneg %p141
      %p207 = pneg %p138
      %s208 = smul.u32 2, %s20
      %p209 = scmp.lt.s32.totalorder %s19, 1
      %s210 = scalar_select %p209, %s19, 1
      %p211 = scmp.lt.s32.totalorder %s208, 1
      %s212 = scalar_select %p211, %s208, 1
      %s213 = smul.addr %s210, 4
      %s214 = sadd.s32 %s212, %s213
      %s215 = smul.addr %s214, 8
      %s216 = scalar_lea.vmem %s4, %s215
      %s217 = smul.u32 2, %s20
      %p218 = scmp.lt.s32.totalorder %s19, 1
      %s219 = scalar_select %p218, %s19, 1
      %p220 = scmp.lt.s32.totalorder %s217, 1
      %s221 = scalar_select %p220, %s217, 1
      %s222 = smul.addr %s219, 18
      %s223 = sadd.s32 %s221, %s222
      %s224 = smul.addr %s223, 4
      %s225 = scalar_lea.vmem %s3, %s224
      %s226 = smul.u32 2, %s20
      %s227 = smul.u32 2, %s20
      %p228 = scmp.lt.s32.totalorder %s19, 1
      %s229 = scalar_select %p228, %s19, 1
      %p230 = scmp.lt.s32.totalorder %s227, 1
      %s231 = scalar_select %p230, %s227, 1
      %s232 = smul.addr %s229, 4
      %s233 = sadd.s32 %s231, %s232
      %s234 = smul.addr %s233, 8
      %s235 = scalar_lea.vmem %s4, %s234
      %s236 = smul.u32 2, %s20
      %v238 = vld [vmem:[%s0] sm:$0xf]
      %v239 = vld [vmem:[%s0 + $0x4] sm:$0xf]
      %v240 = vld [vmem:[%s225] sm:$0xff]
      %v241 = vld [vmem:[%s225 + $0x8] sm:$0xff]
      %v242 = vld [vmem:[%s225 + $0x10] sm:$0xff]
      %v243 = vld [vmem:[%s225 + $0x18] sm:$0xff]
      %v244 = vld [vmem:[%s225 + $0x20] sm:$0xff]
      %v245 = vld [vmem:[%s225 + $0x28] sm:$0xff]
      %v246 = vld [vmem:[%s225 + $0x30] sm:$0xff]
      %v247 = vld [vmem:[%s225 + $0x38] sm:$0xff]
      %v248 = vld [vmem:[%s225 + $0x40] sm:$0xff]
      %v251 = vunpack.c.l.b16 %v238
      %v252 = vunpack.c.l.b16 %v239
      %v253 = vpack.c.b16 %v252, %v251
      %v263 = vunpack.c.l.b16 %v240
      %v264 = vunpack.c.h.b16 %v240
      %v265 = vunpack.c.l.b16 %v241
      %v266 = vunpack.c.h.b16 %v241
      %v267 = vunpack.c.l.b16 %v242
      %v268 = vunpack.c.h.b16 %v242
      %v269 = vunpack.c.l.b16 %v243
      %v270 = vunpack.c.h.b16 %v243
      %v271 = vunpack.c.l.b16 %v244
      %v272 = vunpack.c.h.b16 %v244
      %v273 = vunpack.c.l.b16 %v245
      %v274 = vunpack.c.h.b16 %v245
      %v275 = vunpack.c.l.b16 %v246
      %v276 = vunpack.c.h.b16 %v246
      %v277 = vunpack.c.l.b16 %v247
      %v278 = vunpack.c.h.b16 %v247
      %v279 = vunpack.c.l.b16 %v248
      %v280 = vunpack.c.h.b16 %v248
      %v281 = vpack.c.b16 %v265, %v263
      %v282 = vpack.c.b16 %v266, %v264
      %v283 = vpack.c.b16 %v269, %v267
      %v284 = vpack.c.b16 %v270, %v268
      %v285 = vpack.c.b16 %v273, %v271
      %v286 = vpack.c.b16 %v274, %v272
      %v287 = vpack.c.b16 %v277, %v275
      %v288 = vpack.c.b16 %v278, %v276
      %v289 = vpack.c.b16 %v279, %v279
      %v290 = vpack.c.b16 %v280, %v280
      %vm299 = vcmask 588800
      %v301 = vsel %vm299, %v253, 0
      %vm303 = vcmask 1043456
      %v305 = vsel %vm303, %v289, 0
      %v308 = vsel %vm303, %v290, 0
      %310 = vmatprep.subr.bf16.mxu0 %v282
      %311 = vmatpush1.bf16.msra.mxu0 %v281
      %312 = vmatprep.subr.bf16.mxu0 %v284
      %313 = vmatpush1.bf16.msra.mxu0 %v283
      %314 = vmatprep.subr.bf16.mxu0 %v286
      %315 = vmatpush1.bf16.msra.mxu0 %v285
      %316 = vmatprep.subr.bf16.mxu0 %v288
      %317 = vmatpush1.bf16.msra.mxu0 %v287
      %318 = vmatprep.subr.bf16.mxu0 %v308
      %319 = vmatpush1.bf16.msra.mxu0 %v305
      %320 = vmatprep.subr.bf16.mxu0 0
      %321 = vmatpush1.bf16.msra.mxu0 0
      %322 = vmatprep.subr.bf16.mxu0 0
      %323 = vmatpush1.bf16.msra.mxu0 0
      %324 = vmatprep.subr.bf16.mxu0 0
      %325 = vmatpush1.bf16.msra.mxu0 0
      %326 = vmatprep.subr.bf16.mxu0 0
      %327 = vmatpush1.bf16.msra.mxu0 0
      %328 = vmatprep.subr.bf16.mxu0 0
      %329 = vmatpush1.bf16.msra.mxu0 0
      %330 = vmatprep.subr.bf16.mxu0 0
      %331 = vmatpush1.bf16.msra.mxu0 0
      %332 = vmatprep.subr.bf16.mxu0 0
      %333 = vmatpush1.bf16.msra.mxu0 0
      %334 = vmatprep.subr.bf16.mxu0 0
      %335 = vmatpush1.bf16.msra.mxu0 0
      %336 = vmatprep.subr.bf16.mxu0 0
      %337 = vmatpush1.bf16.msra.mxu0 0
      %338 = vmatprep.subr.bf16.mxu0 0
      %339 = vmatpush1.bf16.msra.mxu0 0
      %340 = vmatprep.subr.bf16.mxu0 0
      %341 = vmatpush1.bf16.msra.mxu0 0
      %342 = vmatprep.mubr.bf16.mxu0 0
      %343 = vmatmul.mubr.bf16.gmra.mrb[0].mxu0 %v301
      %v344 = vpop.f32.mrb[0].mxu0
      %v345 = vadd.f32 0.0, %v344
      %v346 = vpop.f32.mrb[0].mxu0
      %v347 = vadd.f32 0.0, %v346
      %v348 = vpop.f32.mrb[0].mxu0
      %v349 = vadd.f32 0.0, %v348
      %v350 = vpop.f32.mrb[0].mxu0
      %v351 = vadd.f32 0.0, %v350
      %352 = vdwg.mxu0
      %v353 = vld [vmem:[%s1] sm:$0xff]
      %v354 = vld [vmem:[%s1 + $0x8] sm:$0xff]
      %356 = vset.pattern.permute.xlu0 0
      %357 = vperm.xlu0 %356, %v353
      %v358 = vpop.permute.xlu0 %357
      %361 = vset.pattern.permute.xlu0 0
      %362 = vperm.xlu0 %361, %v354
      %v363 = vpop.permute.xlu0 %362
      %v365 = vmul.f32 %v345, %v358
      %v366 = vmul.f32 %v347, %v358
      %v367 = vmul.f32 %v349, %v363
      %v368 = vmul.f32 %v351, %v363
      %v369 = vld [vmem:[%s2] sm:$0xff]
      %v370 = vld [vmem:[%s2 + $0x8] sm:$0xff]
      %372 = vset.pattern.permute.xlu0 0
      %373 = vperm.xlu0 %372, %v369
      %v374 = vpop.permute.xlu0 %373
      %377 = vset.pattern.permute.xlu0 0
      %378 = vperm.xlu0 %377, %v370
      %v379 = vpop.permute.xlu0 %378
      %v381 = vadd.f32 %v365, %v374
      %v382 = vadd.f32 %v366, %v374
      %v383 = vadd.f32 %v367, %v379
      %v384 = vadd.f32 %v368, %v379
      %vm385 = vcmp.gt.f32.partialorder %v381, 0.0
      %vm386 = vcmp.gt.f32.partialorder %v382, 0.0
      %vm387 = vcmp.gt.f32.partialorder %v383, 0.0
      %vm388 = vcmp.gt.f32.partialorder %v384, 0.0
      %v389 = vmul.f32 %v381, 0.1
      %v390 = vmul.f32 %v382, 0.1
      %v391 = vmul.f32 %v383, 0.1
      %v392 = vmul.f32 %v384, 0.1
      %v393 = vsel %vm385, %v381, %v389
      %v394 = vsel %vm386, %v382, %v390
      %v395 = vsel %vm387, %v383, %v391
      %v396 = vsel %vm388, %v384, %v392
      %397 = vst [vmem:[%s235] sm:$0xff] %v393
      %398 = vst [vmem:[%s235 + $0x8] sm:$0xff] %v394
      %399 = vst [vmem:[%s235 + $0x10] sm:$0xff] %v395
      %400 = vst [vmem:[%s235 + $0x18] sm:$0xff] %v396
      %s401 = smul.u32 2, %s20
      %p402 = scmp.lt.s32.totalorder %s19, 1
      %s403 = scalar_select %p402, %s19, 1
      %p404 = scmp.lt.s32.totalorder %s401, 1
      %s405 = scalar_select %p404, %s401, 1
      %s406 = smul.addr %s403, 4
      %s407 = sadd.s32 %s405, %s406
      %s408 = smul.addr %s407, 8
      %s409 = scalar_lea.vmem %s4, %s408
      // Predicated region
      $region37: #{_lambda_.13} parent=35 // pred_check
        %p410 = pneg %p138
      $region38: #{_lambda_.13} parent=35 // pred_check_branch
        %412 = sbr.rel (%p410) target = $region40
      $region39: #{_lambda_.13} parent=35 // pred_region
        %s413 = smul.u32 2, %s20
      $region40: #{_lambda_.13} parent=35 // pred_fallthru
        _
    $region36: #{_lambda_.13} parent=5 // pred_fallthru
      _
    %p414 = scmp.le.s32.totalorder 2, %s10
    // Predicated region
    $region41: #{_lambda_.13} parent=5 // pred_check
      %p415 = pneg %p414
    $region42: #{_lambda_.13} parent=5 // pred_check_branch
      %417 = sbr.rel (%p415) target = $region44
    $region43: #{_lambda_.13} parent=5 // pred_region
      %s418 = ssub.s32 %s10, 2
      // Predicated region
      $region45: #{_lambda_.13} parent=43 // pred_check
        %p419 = pneg %p144
      $region46: #{_lambda_.13} parent=43 // pred_check_branch
        %421 = sbr.rel (%p419) target = $region48
      $region47: #{_lambda_.13} parent=43 // pred_region
        %s422 = smul.u32 2, %s22
        %p423 = scmp.lt.s32.totalorder %s21, 1
        %s424 = scalar_select %p423, %s21, 1
        %p425 = scmp.lt.s32.totalorder %s422, 1
        %s426 = scalar_select %p425, %s422, 1
        %s427 = smul.addr %s424, 4
        %s428 = sadd.s32 %s426, %s427
        %s429 = smul.addr %s428, 8
        %s430 = scalar_lea.vmem %s4, %s429
      $region48: #{_lambda_.13} parent=43 // pred_fallthru
        _
    $region44: #{_lambda_.13} parent=5 // pred_fallthru
      _
  $region6: #{_lambda_.13} parent=0 // loop_footer
    %s14 = sadd.s32 1, %s10
  $region7: #{_lambda_.13} parent=0 // loop_footer_branch
    %9 = sbr.rel target = $region3
  $region8: #{_lambda_.13} parent=0 // loop_exit
    _

// kernel: _lambda_.14
$region0: #{_lambda_.14}
  #allocation0 [shape = 'u32[]', space=smem, size = 0x4, offset = 0x4, fixed_abs, tag = 'smem constant byte address 0x4 - core index']
  #allocation1 [shape = 'u32[144,128]{1,0:T(1,128)}', space=vmem, size = 0x12000, scoped, tag = 'internal scratch']
  %s0 = inlined_call_operand.vmem [shape: bf16[8,16], index: 0, kind: input, shape index: {}]
  %s1 = inlined_call_operand.vmem [shape: f32[8,1], index: 1, kind: input, shape index: {}]
  %s2 = inlined_call_operand.vmem [shape: f32[8,1], index: 2, kind: input, shape index: {}]
  %s3 = inlined_call_operand.vmem [shape: bf16[2,16,256], index: 3, kind: input, shape index: {}]
  %s4 = inlined_call_operand.vmem [shape: f32[2,8,256], index: 4, kind: output, shape index: {}]
  %s5 = sld [smem:[#allocation0]]
  $region49: #{_lambda_.14} parent=0
    _
  %s7 = ssub.s32 1, %s5
  %s8 = scalar_select 0, %s7, %s5
  loop: start=0, step=1, limit=4
  $region2: #{_lambda_.14} parent=0 // loop_pre_header
    _
  $region3: #{_lambda_.14} parent=0 // loop_header
    %s10 = sphi 0, %s14
    %p11 = scmp.ge.s32.totalorder %s10, 4
    %s17 = sphi 0, %s29
    %s18 = sphi 0, %s25
    %s19 = sphi 0, %s17
    %s20 = sphi 0, %s18
    %s21 = sphi 0, %s19
    %s22 = sphi 0, %s20
    %s30 = sphi 0, %s30
    %s32 = sphi 0, %s30
    %s33 = sphi 0, %s32
    %s47 = sphi 0, %s33
    %s51 = sphi 0, %s51
    %s53 = sphi 0, %s51
    %s54 = sphi 0, %s53
    %s68 = sphi 0, %s54
    %s72 = sphi 0, %s72
    %s74 = sphi 0, %s72
    %s75 = sphi 0, %s74
    %s89 = sphi 0, %s75
    %s97 = sphi 0, %s99
    %s100 = sphi 0, %s97
    %s101 = sphi 0, %s100
    %s117 = sphi 0, %s101
    %s125 = sphi 0, %s127
    %s128 = sphi 0, %s125
    %s129 = sphi 0, %s128
    %s145 = sphi 0, %s129
  $region4: #{_lambda_.14} parent=0 // loop_header_branch
    %13 = sbr.rel (%p11) target = $region8
  $region5: #{_lambda_.14} parent=0 // loop_body
    %s15 = ssub.s32 %s10, 1
    %s16 = ssub.s32 %s10, 2
    %s23 = sadd.s32 1, %s18
    %p24 = scmp.ge.s32.totalorder %s23, 1
    %s25 = scalar_select %p24, 0, %s23
    %s26 = sadd.s32 1, %s17
    %s27 = scalar_select %p24, %s26, %s17
    %p28 = scmp.ge.s32.totalorder %s27, 2
    %s29 = scalar_select %p28, 0, %s27
    %s31 = sadd.s32 %s30, 1
    %p34 = scmp.eq.s32.totalorder %s10, 1
    %p35 = scmp.ne.s32.totalorder %s30, %s32
    %p36 = scmp.eq.s32.totalorder %s10, 0
    %p37 = por %p35, %p36
    %p38 = scmp.ne.s32.totalorder %s30, %s32
    %p39 = scmp.eq.s32.totalorder %s15, 1
    %p40 = por %p38, %p39
    %p41 = scmp.ne.s32.totalorder %s32, %s33
    %p42 = scmp.eq.s32.totalorder %s15, 0
    %p43 = por %p41, %p42
    %p44 = scmp.ne.s32.totalorder %s32, %s33
    %p45 = scmp.eq.s32.totalorder %s16, 1
    %p46 = por %p44, %p45
    %p48 = scmp.ne.s32.totalorder %s33, %s47
    %p49 = scmp.eq.s32.totalorder %s16, 0
    %p50 = por %p48, %p49
    %s52 = sadd.s32 %s51, 1
    %p55 = scmp.eq.s32.totalorder %s10, 1
    %p56 = scmp.ne.s32.totalorder %s51, %s53
    %p57 = scmp.eq.s32.totalorder %s10, 0
    %p58 = por %p56, %p57
    %p59 = scmp.ne.s32.totalorder %s51, %s53
    %p60 = scmp.eq.s32.totalorder %s15, 1
    %p61 = por %p59, %p60
    %p62 = scmp.ne.s32.totalorder %s53, %s54
    %p63 = scmp.eq.s32.totalorder %s15, 0
    %p64 = por %p62, %p63
    %p65 = scmp.ne.s32.totalorder %s53, %s54
    %p66 = scmp.eq.s32.totalorder %s16, 1
    %p67 = por %p65, %p66
    %p69 = scmp.ne.s32.totalorder %s54, %s68
    %p70 = scmp.eq.s32.totalorder %s16, 0
    %p71 = por %p69, %p70
    %s73 = sadd.s32 %s72, 1
    %p76 = scmp.eq.s32.totalorder %s10, 1
    %p77 = scmp.ne.s32.totalorder %s72, %s74
    %p78 = scmp.eq.s32.totalorder %s10, 0
    %p79 = por %p77, %p78
    %p80 = scmp.ne.s32.totalorder %s72, %s74
    %p81 = scmp.eq.s32.totalorder %s15, 1
    %p82 = por %p80, %p81
    %p83 = scmp.ne.s32.totalorder %s74, %s75
    %p84 = scmp.eq.s32.totalorder %s15, 0
    %p85 = por %p83, %p84
    %p86 = scmp.ne.s32.totalorder %s74, %s75
    %p87 = scmp.eq.s32.totalorder %s16, 1
    %p88 = por %p86, %p87
    %p90 = scmp.ne.s32.totalorder %s75, %s89
    %p91 = scmp.eq.s32.totalorder %s16, 0
    %p92 = por %p90, %p91
    %s93 = ssub.s32 %s17, %s29
    %s94 = ssub.s32 %s18, %s25
    %s95 = sor.u32 %s93, %s94
    %p96 = scmp.eq.s32.totalorder %s95, 0
    %s98 = sadd.s32 %s97, 1
    %s99 = scalar_select %p96, %s97, %s98
    %p102 = pneg %p96
    %p103 = scmp.eq.s32.totalorder %s10, 1
    %p104 = por %p102, %p103
    %p105 = scmp.ne.s32.totalorder %s97, %s100
    %p106 = scmp.eq.s32.totalorder %s10, 0
    %p107 = por %p105, %p106
    %p108 = scmp.ne.s32.totalorder %s97, %s100
    %p109 = scmp.eq.s32.totalorder %s15, 1
    %p110 = por %p108, %p109
    %p111 = scmp.ne.s32.totalorder %s100, %s101
    %p112 = scmp.eq.s32.totalorder %s15, 0
    %p113 = por %p111, %p112
    %p114 = scmp.ne.s32.totalorder %s100, %s101
    %p115 = scmp.eq.s32.totalorder %s16, 1
    %p116 = por %p114, %p115
    %p118 = scmp.ne.s32.totalorder %s101, %s117
    %p119 = scmp.eq.s32.totalorder %s16, 0
    %p120 = por %p118, %p119
    %s121 = ssub.s32 %s17, %s29
    %s122 = ssub.s32 %s18, %s25
    %s123 = sor.u32 %s121, %s122
    %p124 = scmp.eq.s32.totalorder %s123, 0
    %s126 = sadd.s32 %s125, 1
    %s127 = scalar_select %p124, %s125, %s126
    %p130 = pneg %p124
    %p131 = scmp.eq.s32.totalorder %s10, 1
    %p132 = por %p130, %p131
    %p133 = scmp.ne.s32.totalorder %s125, %s128
    %p134 = scmp.eq.s32.totalorder %s10, 0
    %p135 = por %p133, %p134
    %p136 = scmp.ne.s32.totalorder %s125, %s128
    %p137 = scmp.eq.s32.totalorder %s15, 1
    %p138 = por %p136, %p137
    %p139 = scmp.ne.s32.totalorder %s128, %s129
    %p140 = scmp.eq.s32.totalorder %s15, 0
    %p141 = por %p139, %p140
    %p142 = scmp.ne.s32.totalorder %s128, %s129
    %p143 = scmp.eq.s32.totalorder %s16, 1
    %p144 = por %p142, %p143
    %p146 = scmp.ne.s32.totalorder %s129, %s145
    %p147 = scmp.eq.s32.totalorder %s16, 0
    %p148 = por %p146, %p147
    %p149 = scmp.le.s32.totalorder 1, %s10
    %p150 = scmp.lt.s32.totalorder %s10, 3
    %p151 = pnand %p149, %p150
    %p152 = pneg %p151
    // Predicated region
    $region9: #{_lambda_.14} parent=5 // pred_check
      _
    $region10: #{_lambda_.14} parent=5 // pred_check_branch
      %154 = sbr.rel (%p151) target = $region12
    $region11: #{_lambda_.14} parent=5 // pred_region
      %s155 = ssub.s32 %s10, 1
      // Predicated region
      $region13: #{_lambda_.14} parent=11 // pred_check
        %p156 = pneg %p43
      $region14: #{_lambda_.14} parent=11 // pred_check_branch
        %158 = sbr.rel (%p156) target = $region16
      $region15: #{_lambda_.14} parent=11 // pred_region
        _
      $region16: #{_lambda_.14} parent=11 // pred_fallthru
        _
      // Predicated region
      $region17: #{_lambda_.14} parent=11 // pred_check
        %p159 = pneg %p64
      $region18: #{_lambda_.14} parent=11 // pred_check_branch
        %161 = sbr.rel (%p159) target = $region20
      $region19: #{_lambda_.14} parent=11 // pred_region
        _
      $region20: #{_lambda_.14} parent=11 // pred_fallthru
        _
      // Predicated region
      $region21: #{_lambda_.14} parent=11 // pred_check
        %p162 = pneg %p85
      $region22: #{_lambda_.14} parent=11 // pred_check_branch
        %164 = sbr.rel (%p162) target = $region24
      $region23: #{_lambda_.14} parent=11 // pred_region
        _
      $region24: #{_lambda_.14} parent=11 // pred_fallthru
        _
    $region12: #{_lambda_.14} parent=5 // pred_fallthru
      _
    %p165 = scmp.lt.s32.totalorder %s10, 2
    // Predicated region
    $region25: #{_lambda_.14} parent=5 // pred_check
      %p166 = pneg %p165
    $region26: #{_lambda_.14} parent=5 // pred_check_branch
      %168 = sbr.rel (%p166) target = $region28
    $region27: #{_lambda_.14} parent=5 // pred_region
      // Predicated region
      $region29: #{_lambda_.14} parent=27 // pred_check
        %p169 = pneg %p107
      $region30: #{_lambda_.14} parent=27 // pred_check_branch
        %171 = sbr.rel (%p169) target = $region32
      $region31: #{_lambda_.14} parent=27 // pred_region
        %s172 = smul.u32 2, %s18
        %p173 = scmp.lt.s32.totalorder %s17, 1
        %s174 = scalar_select %p173, %s17, 1
        %p175 = scmp.lt.s32.totalorder %s172, 1
        %s176 = scalar_select %p175, %s172, 1
        %s177 = smul.addr %s174, 4
        %s178 = sadd.s32 %s176, %s177
        %s179 = smul.addr %s178, 4
        %s180 = scalar_lea.vmem %s3, %s179
        %s181 = smul.u32 2, %s18
      $region32: #{_lambda_.14} parent=27 // pred_fallthru
        _
    $region28: #{_lambda_.14} parent=5 // pred_fallthru
      _
    %p182 = scmp.le.s32.totalorder 1, %s10
    %p183 = scmp.lt.s32.totalorder %s10, 3
    %p184 = pnand %p182, %p183
    %p185 = pneg %p184
    // Predicated region
    $region33: #{_lambda_.14} parent=5 // pred_check
      _
    $region34: #{_lambda_.14} parent=5 // pred_check_branch
      %187 = sbr.rel (%p184) target = $region36
    $region35: #{_lambda_.14} parent=5 // pred_region
      %s188 = ssub.s32 %s10, 1
      %p189 = pneg %p43
      %p190 = pneg %p40
      %p191 = pneg %p64
      %p192 = pneg %p61
      %p193 = pneg %p85
      %p194 = pneg %p82
      %s195 = smul.u32 2, %s20
      %p196 = scmp.lt.s32.totalorder %s19, 1
      %s197 = scalar_select %p196, %s19, 1
      %p198 = scmp.lt.s32.totalorder %s195, 1
      %s199 = scalar_select %p198, %s195, 1
      %s200 = smul.addr %s197, 4
      %s201 = sadd.s32 %s199, %s200
      %s202 = smul.addr %s201, 4
      %s203 = scalar_lea.vmem %s3, %s202
      %p204 = pneg %p113
      %p205 = pneg %p110
      %p206 = pneg %p141
      %p207 = pneg %p138
      %s208 = smul.u32 2, %s20
      %p209 = scmp.lt.s32.totalorder %s19, 1
      %s210 = scalar_select %p209, %s19, 1
      %p211 = scmp.lt.s32.totalorder %s208, 1
      %s212 = scalar_select %p211, %s208, 1
      %s213 = smul.addr %s210, 2
      %s214 = sadd.s32 %s212, %s213
      %s215 = smul.addr %s214, 8
      %s216 = scalar_lea.vmem %s4, %s215
      %s217 = smul.u32 2, %s20
      %p218 = scmp.lt.s32.totalorder %s19, 1
      %s219 = scalar_select %p218, %s19, 1
      %p220 = scmp.lt.s32.totalorder %s217, 1
      %s221 = scalar_select %p220, %s217, 1
      %s222 = smul.addr %s219, 4
      %s223 = sadd.s32 %s221, %s222
      %s224 = smul.addr %s223, 4
      %s225 = scalar_lea.vmem %s3, %s224
      %s226 = smul.u32 2, %s20
      %s227 = smul.u32 2, %s20
      %p228 = scmp.lt.s32.totalorder %s19, 1
      %s229 = scalar_select %p228, %s19, 1
      %p230 = scmp.lt.s32.totalorder %s227, 1
      %s231 = scalar_select %p230, %s227, 1
      %s232 = smul.addr %s229, 2
      %s233 = sadd.s32 %s231, %s232
      %s234 = smul.addr %s233, 8
      %s235 = scalar_lea.vmem %s4, %s234
      %s236 = smul.u32 2, %s20
      %v238 = vld [vmem:[%s0] sm:$0xf]
      %v239 = vld [vmem:[%s225] sm:$0xff]
      %v240 = vld [vmem:[%s225 + $0x8] sm:$0xff]
      %v243 = vunpack.c.l.b16 %v239
      %v244 = vunpack.c.h.b16 %v239
      %v245 = vunpack.c.l.b16 %v240
      %v246 = vunpack.c.h.b16 %v240
      %v247 = vpack.c.b16 %v245, %v243
      %v248 = vpack.c.b16 %v246, %v244
      %vm251 = vcmask 130048
      %v253 = vsel %vm251, %v238, 0
      %255 = vmatprep.subr.bf16.mxu0 %v248
      %256 = vmatpush1.bf16.msra.mxu0 %v247
      %257 = vmatprep.subr.bf16.mxu0 0
      %258 = vmatpush1.bf16.msra.mxu0 0
      %259 = vmatprep.subr.bf16.mxu0 0
      %260 = vmatpush1.bf16.msra.mxu0 0
      %261 = vmatprep.subr.bf16.mxu0 0
      %262 = vmatpush1.bf16.msra.mxu0 0
      %263 = vmatprep.subr.bf16.mxu0 0
      %264 = vmatpush1.bf16.msra.mxu0 0
      %265 = vmatprep.subr.bf16.mxu0 0
      %266 = vmatpush1.bf16.msra.mxu0 0
      %267 = vmatprep.subr.bf16.mxu0 0
      %268 = vmatpush1.bf16.msra.mxu0 0
      %269 = vmatprep.subr.bf16.mxu0 0
      %270 = vmatpush1.bf16.msra.mxu0 0
      %271 = vmatprep.subr.bf16.mxu0 0
      %272 = vmatpush1.bf16.msra.mxu0 0
      %273 = vmatprep.subr.bf16.mxu0 0
      %274 = vmatpush1.bf16.msra.mxu0 0
      %275 = vmatprep.subr.bf16.mxu0 0
      %276 = vmatpush1.bf16.msra.mxu0 0
      %277 = vmatprep.subr.bf16.mxu0 0
      %278 = vmatpush1.bf16.msra.mxu0 0
      %279 = vmatprep.subr.bf16.mxu0 0
      %280 = vmatpush1.bf16.msra.mxu0 0
      %281 = vmatprep.subr.bf16.mxu0 0
      %282 = vmatpush1.bf16.msra.mxu0 0
      %283 = vmatprep.subr.bf16.mxu0 0
      %284 = vmatpush1.bf16.msra.mxu0 0
      %285 = vmatprep.subr.bf16.mxu0 0
      %286 = vmatpush1.bf16.msra.mxu0 0
      %287 = vmatprep.mubr.bf16.mxu0 0
      %288 = vmatmul.mubr.bf16.gmra.mrb[0].mxu0 %v253
      %v289 = vpop.f32.mrb[0].mxu0
      %v290 = vadd.f32 0.0, %v289
      %v291 = vpop.f32.mrb[0].mxu0
      %v292 = vadd.f32 0.0, %v291
      %v293 = vpop.f32.mrb[0].mxu0
      %v294 = vpop.f32.mrb[0].mxu0
      %295 = vdwg.mxu0
      %v296 = vld [vmem:[%s1] sm:$0xff]
      %298 = vset.pattern.permute.xlu0 0
      %299 = vperm.xlu0 %298, %v296
      %v300 = vpop.permute.xlu0 %299
      %v302 = vmul.f32 %v290, %v300
      %v303 = vmul.f32 %v292, %v300
      %v304 = vld [vmem:[%s2] sm:$0xff]
      %306 = vset.pattern.permute.xlu0 0
      %307 = vperm.xlu0 %306, %v304
      %v308 = vpop.permute.xlu0 %307
      %v310 = vadd.f32 %v302, %v308
      %v311 = vadd.f32 %v303, %v308
      %vm312 = vcmp.gt.f32.partialorder %v310, 0.0
      %vm313 = vcmp.gt.f32.partialorder %v311, 0.0
      %v314 = vmul.f32 %v310, 0.1
      %v315 = vmul.f32 %v311, 0.1
      %v316 = vsel %vm312, %v310, %v314
      %v317 = vsel %vm313, %v311, %v315
      %318 = vst [vmem:[%s235] sm:$0xff] %v316
      %319 = vst [vmem:[%s235 + $0x8] sm:$0xff] %v317
      %s320 = smul.u32 2, %s20
      %p321 = scmp.lt.s32.totalorder %s19, 1
      %s322 = scalar_select %p321, %s19, 1
      %p323 = scmp.lt.s32.totalorder %s320, 1
      %s324 = scalar_select %p323, %s320, 1
      %s325 = smul.addr %s322, 2
      %s326 = sadd.s32 %s324, %s325
      %s327 = smul.addr %s326, 8
      %s328 = scalar_lea.vmem %s4, %s327
      // Predicated region
      $region37: #{_lambda_.14} parent=35 // pred_check
        %p329 = pneg %p138
      $region38: #{_lambda_.14} parent=35 // pred_check_branch
        %331 = sbr.rel (%p329) target = $region40
      $region39: #{_lambda_.14} parent=35 // pred_region
        %s332 = smul.u32 2, %s20
      $region40: #{_lambda_.14} parent=35 // pred_fallthru
        _
    $region36: #{_lambda_.14} parent=5 // pred_fallthru
      _
    %p333 = scmp.le.s32.totalorder 2, %s10
    // Predicated region
    $region41: #{_lambda_.14} parent=5 // pred_check
      %p334 = pneg %p333
    $region42: #{_lambda_.14} parent=5 // pred_check_branch
      %336 = sbr.rel (%p334) target = $region44
    $region43: #{_lambda_.14} parent=5 // pred_region
      %s337 = ssub.s32 %s10, 2
      // Predicated region
      $region45: #{_lambda_.14} parent=43 // pred_check
        %p338 = pneg %p144
      $region46: #{_lambda_.14} parent=43 // pred_check_branch
        %340 = sbr.rel (%p338) target = $region48
      $region47: #{_lambda_.14} parent=43 // pred_region
        %s341 = smul.u32 2, %s22
        %p342 = scmp.lt.s32.totalorder %s21, 1
        %s343 = scalar_select %p342, %s21, 1
        %p344 = scmp.lt.s32.totalorder %s341, 1
        %s345 = scalar_select %p344, %s341, 1
        %s346 = smul.addr %s343, 2
        %s347 = sadd.s32 %s345, %s346
        %s348 = smul.addr %s347, 8
        %s349 = scalar_lea.vmem %s4, %s348
      $region48: #{_lambda_.14} parent=43 // pred_fallthru
        _
    $region44: #{_lambda_.14} parent=5 // pred_fallthru
      _
  $region6: #{_lambda_.14} parent=0 // loop_footer
    %s14 = sadd.s32 1, %s10
  $region7: #{_lambda_.14} parent=0 // loop_footer_branch
    %9 = sbr.rel target = $region3
  $region8: #{_lambda_.14} parent=0 // loop_exit
    _

// kernel: _lambda_.15
$region0: #{_lambda_.15}
  #allocation0 [shape = 'u32[]', space=smem, size = 0x4, offset = 0x4, fixed_abs, tag = 'smem constant byte address 0x4 - core index']
  #allocation1 [shape = 'u32[144,128]{1,0:T(1,128)}', space=vmem, size = 0x12000, scoped, tag = 'internal scratch']
  %s0 = inlined_call_operand.vmem [shape: bf16[16,72], index: 0, kind: input, shape index: {}]
  %s1 = inlined_call_operand.vmem [shape: f32[16,1], index: 1, kind: input, shape index: {}]
  %s2 = inlined_call_operand.vmem [shape: f32[16,1], index: 2, kind: input, shape index: {}]
  %s3 = inlined_call_operand.vmem [shape: bf16[2,72,256], index: 3, kind: input, shape index: {}]
  %s4 = inlined_call_operand.vmem [shape: f32[2,16,256], index: 4, kind: input, shape index: {}]
  %s5 = inlined_call_operand.vmem [shape: f32[2,16,256], index: 5, kind: output, shape index: {}]
  %s6 = sld [smem:[#allocation0]]
  $region53: #{_lambda_.15} parent=0
    _
  %s8 = ssub.s32 1, %s6
  %s9 = scalar_select 0, %s8, %s6
  loop: start=0, step=1, limit=4
  $region2: #{_lambda_.15} parent=0 // loop_pre_header
    _
  $region3: #{_lambda_.15} parent=0 // loop_header
    %s11 = sphi 0, %s15
    %p12 = scmp.ge.s32.totalorder %s11, 4
    %s18 = sphi 0, %s30
    %s19 = sphi 0, %s26
    %s20 = sphi 0, %s18
    %s21 = sphi 0, %s19
    %s22 = sphi 0, %s20
    %s23 = sphi 0, %s21
    %s31 = sphi 0, %s31
    %s33 = sphi 0, %s31
    %s34 = sphi 0, %s33
    %s48 = sphi 0, %s34
    %s52 = sphi 0, %s52
    %s54 = sphi 0, %s52
    %s55 = sphi 0, %s54
    %s69 = sphi 0, %s55
    %s73 = sphi 0, %s73
    %s75 = sphi 0, %s73
    %s76 = sphi 0, %s75
    %s90 = sphi 0, %s76
    %s98 = sphi 0, %s100
    %s101 = sphi 0, %s98
    %s102 = sphi 0, %s101
    %s118 = sphi 0, %s102
    %s126 = sphi 0, %s128
    %s129 = sphi 0, %s126
    %s130 = sphi 0, %s129
    %s146 = sphi 0, %s130
    %s154 = sphi 0, %s156
    %s157 = sphi 0, %s154
    %s158 = sphi 0, %s157
    %s174 = sphi 0, %s158
  $region4: #{_lambda_.15} parent=0 // loop_header_branch
    %14 = sbr.rel (%p12) target = $region8
  $region5: #{_lambda_.15} parent=0 // loop_body
    %s16 = ssub.s32 %s11, 1
    %s17 = ssub.s32 %s11, 2
    %s24 = sadd.s32 1, %s19
    %p25 = scmp.ge.s32.totalorder %s24, 1
    %s26 = scalar_select %p25, 0, %s24
    %s27 = sadd.s32 1, %s18
    %s28 = scalar_select %p25, %s27, %s18
    %p29 = scmp.ge.s32.totalorder %s28, 2
    %s30 = scalar_select %p29, 0, %s28
    %s32 = sadd.s32 %s31, 1
    %p35 = scmp.eq.s32.totalorder %s11, 1
    %p36 = scmp.ne.s32.totalorder %s31, %s33
    %p37 = scmp.eq.s32.totalorder %s11, 0
    %p38 = por %p36, %p37
    %p39 = scmp.ne.s32.totalorder %s31, %s33
    %p40 = scmp.eq.s32.totalorder %s16, 1
    %p41 = por %p39, %p40
    %p42 = scmp.ne.s32.totalorder %s33, %s34
    %p43 = scmp.eq.s32.totalorder %s16, 0
    %p44 = por %p42, %p43
    %p45 = scmp.ne.s32.totalorder %s33, %s34
    %p46 = scmp.eq.s32.totalorder %s17, 1
    %p47 = por %p45, %p46
    %p49 = scmp.ne.s32.totalorder %s34, %s48
    %p50 = scmp.eq.s32.totalorder %s17, 0
    %p51 = por %p49, %p50
    %s53 = sadd.s32 %s52, 1
    %p56 = scmp.eq.s32.totalorder %s11, 1
    %p57 = scmp.ne.s32.totalorder %s52, %s54
    %p58 = scmp.eq.s32.totalorder %s11, 0
    %p59 = por %p57, %p58
    %p60 = scmp.ne.s32.totalorder %s52, %s54
    %p61 = scmp.eq.s32.totalorder %s16, 1
    %p62 = por %p60, %p61
    %p63 = scmp.ne.s32.totalorder %s54, %s55
    %p64 = scmp.eq.s32.totalorder %s16, 0
    %p65 = por %p63, %p64
    %p66 = scmp.ne.s32.totalorder %s54, %s55
    %p67 = scmp.eq.s32.totalorder %s17, 1
    %p68 = por %p66, %p67
    %p70 = scmp.ne.s32.totalorder %s55, %s69
    %p71 = scmp.eq.s32.totalorder %s17, 0
    %p72 = por %p70, %p71
    %s74 = sadd.s32 %s73, 1
    %p77 = scmp.eq.s32.totalorder %s11, 1
    %p78 = scmp.ne.s32.totalorder %s73, %s75
    %p79 = scmp.eq.s32.totalorder %s11, 0
    %p80 = por %p78, %p79
    %p81 = scmp.ne.s32.totalorder %s73, %s75
    %p82 = scmp.eq.s32.totalorder %s16, 1
    %p83 = por %p81, %p82
    %p84 = scmp.ne.s32.totalorder %s75, %s76
    %p85 = scmp.eq.s32.totalorder %s16, 0
    %p86 = por %p84, %p85
    %p87 = scmp.ne.s32.totalorder %s75, %s76
    %p88 = scmp.eq.s32.totalorder %s17, 1
    %p89 = por %p87, %p88
    %p91 = scmp.ne.s32.totalorder %s76, %s90
    %p92 = scmp.eq.s32.totalorder %s17, 0
    %p93 = por %p91, %p92
    %s94 = ssub.s32 %s18, %s30
    %s95 = ssub.s32 %s19, %s26
    %s96 = sor.u32 %s94, %s95
    %p97 = scmp.eq.s32.totalorder %s96, 0
    %s99 = sadd.s32 %s98, 1
    %s100 = scalar_select %p97, %s98, %s99
    %p103 = pneg %p97
    %p104 = scmp.eq.s32.totalorder %s11, 1
    %p105 = por %p103, %p104
    %p106 = scmp.ne.s32.totalorder %s98, %s101
    %p107 = scmp.eq.s32.totalorder %s11, 0
    %p108 = por %p106, %p107
    %p109 = scmp.ne.s32.totalorder %s98, %s101
    %p110 = scmp.eq.s32.totalorder %s16, 1
    %p111 = por %p109, %p110
    %p112 = scmp.ne.s32.totalorder %s101, %s102
    %p113 = scmp.eq.s32.totalorder %s16, 0
    %p114 = por %p112, %p113
    %p115 = scmp.ne.s32.totalorder %s101, %s102
    %p116 = scmp.eq.s32.totalorder %s17, 1
    %p117 = por %p115, %p116
    %p119 = scmp.ne.s32.totalorder %s102, %s118
    %p120 = scmp.eq.s32.totalorder %s17, 0
    %p121 = por %p119, %p120
    %s122 = ssub.s32 %s18, %s30
    %s123 = ssub.s32 %s19, %s26
    %s124 = sor.u32 %s122, %s123
    %p125 = scmp.eq.s32.totalorder %s124, 0
    %s127 = sadd.s32 %s126, 1
    %s128 = scalar_select %p125, %s126, %s127
    %p131 = pneg %p125
    %p132 = scmp.eq.s32.totalorder %s11, 1
    %p133 = por %p131, %p132
    %p134 = scmp.ne.s32.totalorder %s126, %s129
    %p135 = scmp.eq.s32.totalorder %s11, 0
    %p136 = por %p134, %p135
    %p137 = scmp.ne.s32.totalorder %s126, %s129
    %p138 = scmp.eq.s32.totalorder %s16, 1
    %p139 = por %p137, %p138
    %p140 = scmp.ne.s32.totalorder %s129, %s130
    %p141 = scmp.eq.s32.totalorder %s16, 0
    %p142 = por %p140, %p141
    %p143 = scmp.ne.s32.totalorder %s129, %s130
    %p144 = scmp.eq.s32.totalorder %s17, 1
    %p145 = por %p143, %p144
    %p147 = scmp.ne.s32.totalorder %s130, %s146
    %p148 = scmp.eq.s32.totalorder %s17, 0
    %p149 = por %p147, %p148
    %s150 = ssub.s32 %s18, %s30
    %s151 = ssub.s32 %s19, %s26
    %s152 = sor.u32 %s150, %s151
    %p153 = scmp.eq.s32.totalorder %s152, 0
    %s155 = sadd.s32 %s154, 1
    %s156 = scalar_select %p153, %s154, %s155
    %p159 = pneg %p153
    %p160 = scmp.eq.s32.totalorder %s11, 1
    %p161 = por %p159, %p160
    %p162 = scmp.ne.s32.totalorder %s154, %s157
    %p163 = scmp.eq.s32.totalorder %s11, 0
    %p164 = por %p162, %p163
    %p165 = scmp.ne.s32.totalorder %s154, %s157
    %p166 = scmp.eq.s32.totalorder %s16, 1
    %p167 = por %p165, %p166
    %p168 = scmp.ne.s32.totalorder %s157, %s158
    %p169 = scmp.eq.s32.totalorder %s16, 0
    %p170 = por %p168, %p169
    %p171 = scmp.ne.s32.totalorder %s157, %s158
    %p172 = scmp.eq.s32.totalorder %s17, 1
    %p173 = por %p171, %p172
    %p175 = scmp.ne.s32.totalorder %s158, %s174
    %p176 = scmp.eq.s32.totalorder %s17, 0
    %p177 = por %p175, %p176
    %p178 = scmp.le.s32.totalorder 1, %s11
    %p179 = scmp.lt.s32.totalorder %s11, 3
    %p180 = pnand %p178, %p179
    %p181 = pneg %p180
    // Predicated region
    $region9: #{_lambda_.15} parent=5 // pred_check
      _
    $region10: #{_lambda_.15} parent=5 // pred_check_branch
      %183 = sbr.rel (%p180) target = $region12
    $region11: #{_lambda_.15} parent=5 // pred_region
      %s184 = ssub.s32 %s11, 1
      // Predicated region
      $region13: #{_lambda_.15} parent=11 // pred_check
        %p185 = pneg %p44
      $region14: #{_lambda_.15} parent=11 // pred_check_branch
        %187 = sbr.rel (%p185) target = $region16
      $region15: #{_lambda_.15} parent=11 // pred_region
        _
      $region16: #{_lambda_.15} parent=11 // pred_fallthru
        _
      // Predicated region
      $region17: #{_lambda_.15} parent=11 // pred_check
        %p188 = pneg %p65
      $region18: #{_lambda_.15} parent=11 // pred_check_branch
        %190 = sbr.rel (%p188) target = $region20
      $region19: #{_lambda_.15} parent=11 // pred_region
        _
      $region20: #{_lambda_.15} parent=11 // pred_fallthru
        _
      // Predicated region
      $region21: #{_lambda_.15} parent=11 // pred_check
        %p191 = pneg %p86
      $region22: #{_lambda_.15} parent=11 // pred_check_branch
        %193 = sbr.rel (%p191) target = $region24
      $region23: #{_lambda_.15} parent=11 // pred_region
        _
      $region24: #{_lambda_.15} parent=11 // pred_fallthru
        _
    $region12: #{_lambda_.15} parent=5 // pred_fallthru
      _
    %p194 = scmp.lt.s32.totalorder %s11, 2
    // Predicated region
    $region25: #{_lambda_.15} parent=5 // pred_check
      %p195 = pneg %p194
    $region26: #{_lambda_.15} parent=5 // pred_check_branch
      %197 = sbr.rel (%p195) target = $region28
    $region27: #{_lambda_.15} parent=5 // pred_region
      // Predicated region
      $region29: #{_lambda_.15} parent=27 // pred_check
        %p198 = pneg %p108
      $region30: #{_lambda_.15} parent=27 // pred_check_branch
        %200 = sbr.rel (%p198) target = $region32
      $region31: #{_lambda_.15} parent=27 // pred_region
        %s201 = smul.u32 2, %s19
        %p202 = scmp.lt.s32.totalorder %s18, 1
        %s203 = scalar_select %p202, %s18, 1
        %p204 = scmp.lt.s32.totalorder %s201, 1
        %s205 = scalar_select %p204, %s201, 1
        %s206 = smul.addr %s203, 18
        %s207 = sadd.s32 %s205, %s206
        %s208 = smul.addr %s207, 4
        %s209 = scalar_lea.vmem %s3, %s208
        %s210 = smul.u32 2, %s19
      $region32: #{_lambda_.15} parent=27 // pred_fallthru
        _
      // Predicated region
      $region33: #{_lambda_.15} parent=27 // pred_check
        %p211 = pneg %p136
      $region34: #{_lambda_.15} parent=27 // pred_check_branch
        %213 = sbr.rel (%p211) target = $region36
      $region35: #{_lambda_.15} parent=27 // pred_region
        %s214 = smul.u32 2, %s19
        %p215 = scmp.lt.s32.totalorder %s18, 1
        %s216 = scalar_select %p215, %s18, 1
        %p217 = scmp.lt.s32.totalorder %s214, 1
        %s218 = scalar_select %p217, %s214, 1
        %s219 = smul.addr %s216, 4
        %s220 = sadd.s32 %s218, %s219
        %s221 = smul.addr %s220, 8
        %s222 = scalar_lea.vmem %s4, %s221
        %s223 = smul.u32 2, %s19
      $region36: #{_lambda_.15} parent=27 // pred_fallthru
        _
    $region28: #{_lambda_.15} parent=5 // pred_fallthru
      _
    %p224 = scmp.le.s32.totalorder 1, %s11
    %p225 = scmp.lt.s32.totalorder %s11, 3
    %p226 = pnand %p224, %p225
    %p227 = pneg %p226
    // Predicated region
    $region37: #{_lambda_.15} parent=5 // pred_check
      _
    $region38: #{_lambda_.15} parent=5 // pred_check_branch
      %229 = sbr.rel (%p226) target = $region40
    $region39: #{_lambda_.15} parent=5 // pred_region
      %s230 = ssub.s32 %s11, 1
      %p231 = pneg %p44
      %p232 = pneg %p41
      %p233 = pneg %p65
      %p234 = pneg %p62
      %p235 = pneg %p86
      %p236 = pneg %p83
      %s237 = smul.u32 2, %s21
      %p238 = scmp.lt.s32.totalorder %s20, 1
      %s239 = scalar_select %p238, %s20, 1
      %p240 = scmp.lt.s32.totalorder %s237, 1
      %s241 = scalar_select %p240, %s237, 1
      %s242 = smul.addr %s239, 18
      %s243 = sadd.s32 %s241, %s242
      %s244 = smul.addr %s243, 4
      %s245 = scalar_lea.vmem %s3, %s244
      %p246 = pneg %p114
      %p247 = pneg %p111
      %s248 = smul.u32 2, %s21
      %p249 = scmp.lt.s32.totalorder %s20, 1
      %s250 = scalar_select %p249, %s20, 1
      %p251 = scmp.lt.s32.totalorder %s248, 1
      %s252 = scalar_select %p251, %s248, 1
      %s253 = smul.addr %s250, 4
      %s254 = sadd.s32 %s252, %s253
      %s255 = smul.addr %s254, 8
      %s256 = scalar_lea.vmem %s4, %s255
      %p257 = pneg %p142
      %p258 = pneg %p139
      %p259 = pneg %p170
      %p260 = pneg %p167
      %s261 = smul.u32 2, %s21
      %p262 = scmp.lt.s32.totalorder %s20, 1
      %s263 = scalar_select %p262, %s20, 1
      %p264 = scmp.lt.s32.totalorder %s261, 1
      %s265 = scalar_select %p264, %s261, 1
      %s266 = smul.addr %s263, 4
      %s267 = sadd.s32 %s265, %s266
      %s268 = smul.addr %s267, 8
      %s269 = scalar_lea.vmem %s5, %s268
      %s270 = smul.u32 2, %s21
      %p271 = scmp.lt.s32.totalorder %s20, 1
      %s272 = scalar_select %p271, %s20, 1
      %p273 = scmp.lt.s32.totalorder %s270, 1
      %s274 = scalar_select %p273, %s270, 1
      %s275 = smul.addr %s272, 18
      %s276 = sadd.s32 %s274, %s275
      %s277 = smul.addr %s276, 4
      %s278 = scalar_lea.vmem %s3, %s277
      %s279 = smul.u32 2, %s21
      %s280 = smul.u32 2, %s21
      %p281 = scmp.lt.s32.totalorder %s20, 1
      %s282 = scalar_select %p281, %s20, 1
      %p283 = scmp.lt.s32.totalorder %s280, 1
      %s284 = scalar_select %p283, %s280, 1
      %s285 = smul.addr %s282, 4
      %s286 = sadd.s32 %s284, %s285
      %s287 = smul.addr %s286, 8
      %s288 = scalar_lea.vmem %s4, %s287
      %s289 = smul.u32 2, %s21
      %s290 = smul.u32 2, %s21
      %p291 = scmp.lt.s32.totalorder %s20, 1
      %s292 = scalar_select %p291, %s20, 1
      %p293 = scmp.lt.s32.totalorder %s290, 1
      %s294 = scalar_select %p293, %s290, 1
      %s295 = smul.addr %s292, 4
      %s296 = sadd.s32 %s294, %s295
      %s297 = smul.addr %s296, 8
      %s298 = scalar_lea.vmem %s5, %s297
      %s299 = smul.u32 2, %s21
      %v301 = vld [vmem:[%s0] sm:$0xf]
      %v302 = vld [vmem:[%s0 + $0x4] sm:$0xf]
      %v303 = vld [vmem:[%s278] sm:$0xff]
      %v304 = vld [vmem:[%s278 + $0x8] sm:$0xff]
      %v305 = vld [vmem:[%s278 + $0x10] sm:$0xff]
      %v306 = vld [vmem:[%s278 + $0x18] sm:$0xff]
      %v307 = vld [vmem:[%s278 + $0x20] sm:$0xff]
      %v308 = vld [vmem:[%s278 + $0x28] sm:$0xff]
      %v309 = vld [vmem:[%s278 + $0x30] sm:$0xff]
      %v310 = vld [vmem:[%s278 + $0x38] sm:$0xff]
      %v311 = vld [vmem:[%s278 + $0x40] sm:$0xff]
      %v314 = vunpack.c.l.b16 %v301
      %v315 = vunpack.c.l.b16 %v302
      %v316 = vpack.c.b16 %v315, %v314
      %v326 = vunpack.c.l.b16 %v303
      %v327 = vunpack.c.h.b16 %v303
      %v328 = vunpack.c.l.b16 %v304
      %v329 = vunpack.c.h.b16 %v304
      %v330 = vunpack.c.l.b16 %v305
      %v331 = vunpack.c.h.b16 %v305
      %v332 = vunpack.c.l.b16 %v306
      %v333 = vunpack.c.h.b16 %v306
      %v334 = vunpack.c.l.b16 %v307
      %v335 = vunpack.c.h.b16 %v307
      %v336 = vunpack.c.l.b16 %v308
      %v337 = vunpack.c.h.b16 %v308
      %v338 = vunpack.c.l.b16 %v309
      %v339 = vunpack.c.h.b16 %v309
      %v340 = vunpack.c.l.b16 %v310
      %v341 = vunpack.c.h.b16 %v310
      %v342 = vunpack.c.l.b16 %v311
      %v343 = vunpack.c.h.b16 %v311
      %v344 = vpack.c.b16 %v328, %v326
      %v345 = vpack.c.b16 %v329, %v327
      %v346 = vpack.c.b16 %v332, %v330
      %v347 = vpack.c.b16 %v333, %v331
      %v348 = vpack.c.b16 %v336, %v334
      %v349 = vpack.c.b16 %v337, %v335
      %v350 = vpack.c.b16 %v340, %v338
      %v351 = vpack.c.b16 %v341, %v339
      %v352 = vpack.c.b16 %v342, %v342
      %v353 = vpack.c.b16 %v343, %v343
      %vm362 = vcmask 588800
      %v364 = vsel %vm362, %v316, 0
      %vm366 = vcmask 1043456
      %v368 = vsel %vm366, %v352, 0
      %v371 = vsel %vm366, %v353, 0
      %373 = vmatprep.subr.bf16.mxu0 %v345
      %374 = vmatpush1.bf16.msra.mxu0 %v344
      %375 = vmatprep.subr.bf16.mxu0 %v347
      %376 = vmatpush1.bf16.msra.mxu0 %v346
      %377 = vmatprep.subr.bf16.mxu0 %v349
      %378 = vmatpush1.bf16.msra.mxu0 %v348
      %379 = vmatprep.subr.bf16.mxu0 %v351
      %380 = vmatpush1.bf16.msra.mxu0 %v350
      %381 = vmatprep.subr.bf16.mxu0 %v371
      %382 = vmatpush1.bf16.msra.mxu0 %v368
      %383 = vmatprep.subr.bf16.mxu0 0
      %384 = vmatpush1.bf16.msra.mxu0 0
      %385 = vmatprep.subr.bf16.mxu0 0
      %386 = vmatpush1.bf16.msra.mxu0 0
      %387 = vmatprep.subr.bf16.mxu0 0
      %388 = vmatpush1.bf16.msra.mxu0 0
      %389 = vmatprep.subr.bf16.mxu0 0
      %390 = vmatpush1.bf16.msra.mxu0 0
      %391 = vmatprep.subr.bf16.mxu0 0
      %392 = vmatpush1.bf16.msra.mxu0 0
      %393 = vmatprep.subr.bf16.mxu0 0
      %394 = vmatpush1.bf16.msra.mxu0 0
      %395 = vmatprep.subr.bf16.mxu0 0
      %396 = vmatpush1.bf16.msra.mxu0 0
      %397 = vmatprep.subr.bf16.mxu0 0
      %398 = vmatpush1.bf16.msra.mxu0 0
      %399 = vmatprep.subr.bf16.mxu0 0
      %400 = vmatpush1.bf16.msra.mxu0 0
      %401 = vmatprep.subr.bf16.mxu0 0
      %402 = vmatpush1.bf16.msra.mxu0 0
      %403 = vmatprep.subr.bf16.mxu0 0
      %404 = vmatpush1.bf16.msra.mxu0 0
      %405 = vmatprep.mubr.bf16.mxu0 0
      %406 = vmatmul.mubr.bf16.gmra.mrb[0].mxu0 %v364
      %v407 = vpop.f32.mrb[0].mxu0
      %v408 = vadd.f32 0.0, %v407
      %v409 = vpop.f32.mrb[0].mxu0
      %v410 = vadd.f32 0.0, %v409
      %v411 = vpop.f32.mrb[0].mxu0
      %v412 = vadd.f32 0.0, %v411
      %v413 = vpop.f32.mrb[0].mxu0
      %v414 = vadd.f32 0.0, %v413
      %415 = vdwg.mxu0
      %v416 = vld [vmem:[%s1] sm:$0xff]
      %v417 = vld [vmem:[%s1 + $0x8] sm:$0xff]
      %419 = vset.pattern.permute.xlu0 0
      %420 = vperm.xlu0 %419, %v416
      %v421 = vpop.permute.xlu0 %420
      %424 = vset.pattern.permute.xlu0 0
      %425 = vperm.xlu0 %424, %v417
      %v426 = vpop.permute.xlu0 %425
      %v428 = vmul.f32 %v408, %v421
      %v429 = vmul.f32 %v410, %v421
      %v430 = vmul.f32 %v412, %v426
      %v431 = vmul.f32 %v414, %v426
      %v432 = vld [vmem:[%s2] sm:$0xff]
      %v433 = vld [vmem:[%s2 + $0x8] sm:$0xff]
      %435 = vset.pattern.permute.xlu0 0
      %436 = vperm.xlu0 %435, %v432
      %v437 = vpop.permute.xlu0 %436
      %440 = vset.pattern.permute.xlu0 0
      %441 = vperm.xlu0 %440, %v433
      %v442 = vpop.permute.xlu0 %441
      %v444 = vadd.f32 %v428, %v437
      %v445 = vadd.f32 %v429, %v437
      %v446 = vadd.f32 %v430, %v442
      %v447 = vadd.f32 %v431, %v442
      %vm448 = vcmp.gt.f32.partialorder %v444, 0.0
      %vm449 = vcmp.gt.f32.partialorder %v445, 0.0
      %vm450 = vcmp.gt.f32.partialorder %v446, 0.0
      %vm451 = vcmp.gt.f32.partialorder %v447, 0.0
      %v452 = vmul.f32 %v444, 0.1
      %v453 = vmul.f32 %v445, 0.1
      %v454 = vmul.f32 %v446, 0.1
      %v455 = vmul.f32 %v447, 0.1
      %v456 = vsel %vm448, %v444, %v452
      %v457 = vsel %vm449, %v445, %v453
      %v458 = vsel %vm450, %v446, %v454
      %v459 = vsel %vm451, %v447, %v455
      %v460 = vld [vmem:[%s288] sm:$0xff]
      %v461 = vld [vmem:[%s288 + $0x8] sm:$0xff]
      %v462 = vld [vmem:[%s288 + $0x10] sm:$0xff]
      %v463 = vld [vmem:[%s288 + $0x18] sm:$0xff]
      %v464 = vadd.f32 %v456, %v460
      %v465 = vadd.f32 %v457, %v461
      %v466 = vadd.f32 %v458, %v462
      %v467 = vadd.f32 %v459, %v463
      %468 = vst [vmem:[%s298] sm:$0xff] %v464
      %469 = vst [vmem:[%s298 + $0x8] sm:$0xff] %v465
      %470 = vst [vmem:[%s298 + $0x10] sm:$0xff] %v466
      %471 = vst [vmem:[%s298 + $0x18] sm:$0xff] %v467
      %s472 = smul.u32 2, %s21
      %p473 = scmp.lt.s32.totalorder %s20, 1
      %s474 = scalar_select %p473, %s20, 1
      %p475 = scmp.lt.s32.totalorder %s472, 1
      %s476 = scalar_select %p475, %s472, 1
      %s477 = smul.addr %s474, 4
      %s478 = sadd.s32 %s476, %s477
      %s479 = smul.addr %s478, 8
      %s480 = scalar_lea.vmem %s5, %s479
      // Predicated region
      $region41: #{_lambda_.15} parent=39 // pred_check
        %p481 = pneg %p167
      $region42: #{_lambda_.15} parent=39 // pred_check_branch
        %483 = sbr.rel (%p481) target = $region44
      $region43: #{_lambda_.15} parent=39 // pred_region
        %s484 = smul.u32 2, %s21
      $region44: #{_lambda_.15} parent=39 // pred_fallthru
        _
    $region40: #{_lambda_.15} parent=5 // pred_fallthru
      _
    %p485 = scmp.le.s32.totalorder 2, %s11
    // Predicated region
    $region45: #{_lambda_.15} parent=5 // pred_check
      %p486 = pneg %p485
    $region46: #{_lambda_.15} parent=5 // pred_check_branch
      %488 = sbr.rel (%p486) target = $region48
    $region47: #{_lambda_.15} parent=5 // pred_region
      %s489 = ssub.s32 %s11, 2
      // Predicated region
      $region49: #{_lambda_.15} parent=47 // pred_check
        %p490 = pneg %p173
      $region50: #{_lambda_.15} parent=47 // pred_check_branch
        %492 = sbr.rel (%p490) target = $region52
      $region51: #{_lambda_.15} parent=47 // pred_region
        %s493 = smul.u32 2, %s23
        %p494 = scmp.lt.s32.totalorder %s22, 1
        %s495 = scalar_select %p494, %s22, 1
        %p496 = scmp.lt.s32.totalorder %s493, 1
        %s497 = scalar_select %p496, %s493, 1
        %s498 = smul.addr %s495, 4
        %s499 = sadd.s32 %s497, %s498
        %s500 = smul.addr %s499, 8
        %s501 = scalar_lea.vmem %s5, %s500
      $region52: #{_lambda_.15} parent=47 // pred_fallthru
        _
    $region48: #{_lambda_.15} parent=5 // pred_fallthru
      _
  $region6: #{_lambda_.15} parent=0 // loop_footer
    %s15 = sadd.s32 1, %s11
  $region7: #{_lambda_.15} parent=0 // loop_footer_branch
    %10 = sbr.rel target = $region3
  $region8: #{_lambda_.15} parent=0 // loop_exit
    _

// kernel: _lambda_.16
$region0: #{_lambda_.16}
  #allocation0 [shape = 'u32[]', space=smem, size = 0x4, offset = 0x4, fixed_abs, tag = 'smem constant byte address 0x4 - core index']
  #allocation1 [shape = 'u32[144,128]{1,0:T(1,128)}', space=vmem, size = 0x12000, scoped, tag = 'internal scratch']
  %s0 = inlined_call_operand.vmem [shape: bf16[32,144], index: 0, kind: input, shape index: {}]
  %s1 = inlined_call_operand.vmem [shape: f32[32,1], index: 1, kind: input, shape index: {}]
  %s2 = inlined_call_operand.vmem [shape: f32[32,1], index: 2, kind: input, shape index: {}]
  %s3 = inlined_call_operand.vmem [shape: bf16[2,144,64], index: 3, kind: input, shape index: {}]
  %s4 = inlined_call_operand.vmem [shape: f32[2,32,64], index: 4, kind: output, shape index: {}]
  %s5 = sld [smem:[#allocation0]]
  $region49: #{_lambda_.16} parent=0
    _
  %s7 = ssub.s32 1, %s5
  %s8 = scalar_select 0, %s7, %s5
  loop: start=0, step=1, limit=4
  $region2: #{_lambda_.16} parent=0 // loop_pre_header
    _
  $region3: #{_lambda_.16} parent=0 // loop_header
    %s10 = sphi 0, %s14
    %p11 = scmp.ge.s32.totalorder %s10, 4
    %s17 = sphi 0, %s29
    %s18 = sphi 0, %s25
    %s19 = sphi 0, %s17
    %s20 = sphi 0, %s18
    %s21 = sphi 0, %s19
    %s22 = sphi 0, %s20
    %s30 = sphi 0, %s30
    %s32 = sphi 0, %s30
    %s33 = sphi 0, %s32
    %s47 = sphi 0, %s33
    %s51 = sphi 0, %s51
    %s53 = sphi 0, %s51
    %s54 = sphi 0, %s53
    %s68 = sphi 0, %s54
    %s72 = sphi 0, %s72
    %s74 = sphi 0, %s72
    %s75 = sphi 0, %s74
    %s89 = sphi 0, %s75
    %s97 = sphi 0, %s99
    %s100 = sphi 0, %s97
    %s101 = sphi 0, %s100
    %s117 = sphi 0, %s101
    %s125 = sphi 0, %s127
    %s128 = sphi 0, %s125
    %s129 = sphi 0, %s128
    %s145 = sphi 0, %s129
  $region4: #{_lambda_.16} parent=0 // loop_header_branch
    %13 = sbr.rel (%p11) target = $region8
  $region5: #{_lambda_.16} parent=0 // loop_body
    %s15 = ssub.s32 %s10, 1
    %s16 = ssub.s32 %s10, 2
    %s23 = sadd.s32 1, %s18
    %p24 = scmp.ge.s32.totalorder %s23, 1
    %s25 = scalar_select %p24, 0, %s23
    %s26 = sadd.s32 1, %s17
    %s27 = scalar_select %p24, %s26, %s17
    %p28 = scmp.ge.s32.totalorder %s27, 2
    %s29 = scalar_select %p28, 0, %s27
    %s31 = sadd.s32 %s30, 1
    %p34 = scmp.eq.s32.totalorder %s10, 1
    %p35 = scmp.ne.s32.totalorder %s30, %s32
    %p36 = scmp.eq.s32.totalorder %s10, 0
    %p37 = por %p35, %p36
    %p38 = scmp.ne.s32.totalorder %s30, %s32
    %p39 = scmp.eq.s32.totalorder %s15, 1
    %p40 = por %p38, %p39
    %p41 = scmp.ne.s32.totalorder %s32, %s33
    %p42 = scmp.eq.s32.totalorder %s15, 0
    %p43 = por %p41, %p42
    %p44 = scmp.ne.s32.totalorder %s32, %s33
    %p45 = scmp.eq.s32.totalorder %s16, 1
    %p46 = por %p44, %p45
    %p48 = scmp.ne.s32.totalorder %s33, %s47
    %p49 = scmp.eq.s32.totalorder %s16, 0
    %p50 = por %p48, %p49
    %s52 = sadd.s32 %s51, 1
    %p55 = scmp.eq.s32.totalorder %s10, 1
    %p56 = scmp.ne.s32.totalorder %s51, %s53
    %p57 = scmp.eq.s32.totalorder %s10, 0
    %p58 = por %p56, %p57
    %p59 = scmp.ne.s32.totalorder %s51, %s53
    %p60 = scmp.eq.s32.totalorder %s15, 1
    %p61 = por %p59, %p60
    %p62 = scmp.ne.s32.totalorder %s53, %s54
    %p63 = scmp.eq.s32.totalorder %s15, 0
    %p64 = por %p62, %p63
    %p65 = scmp.ne.s32.totalorder %s53, %s54
    %p66 = scmp.eq.s32.totalorder %s16, 1
    %p67 = por %p65, %p66
    %p69 = scmp.ne.s32.totalorder %s54, %s68
    %p70 = scmp.eq.s32.totalorder %s16, 0
    %p71 = por %p69, %p70
    %s73 = sadd.s32 %s72, 1
    %p76 = scmp.eq.s32.totalorder %s10, 1
    %p77 = scmp.ne.s32.totalorder %s72, %s74
    %p78 = scmp.eq.s32.totalorder %s10, 0
    %p79 = por %p77, %p78
    %p80 = scmp.ne.s32.totalorder %s72, %s74
    %p81 = scmp.eq.s32.totalorder %s15, 1
    %p82 = por %p80, %p81
    %p83 = scmp.ne.s32.totalorder %s74, %s75
    %p84 = scmp.eq.s32.totalorder %s15, 0
    %p85 = por %p83, %p84
    %p86 = scmp.ne.s32.totalorder %s74, %s75
    %p87 = scmp.eq.s32.totalorder %s16, 1
    %p88 = por %p86, %p87
    %p90 = scmp.ne.s32.totalorder %s75, %s89
    %p91 = scmp.eq.s32.totalorder %s16, 0
    %p92 = por %p90, %p91
    %s93 = ssub.s32 %s17, %s29
    %s94 = ssub.s32 %s18, %s25
    %s95 = sor.u32 %s93, %s94
    %p96 = scmp.eq.s32.totalorder %s95, 0
    %s98 = sadd.s32 %s97, 1
    %s99 = scalar_select %p96, %s97, %s98
    %p102 = pneg %p96
    %p103 = scmp.eq.s32.totalorder %s10, 1
    %p104 = por %p102, %p103
    %p105 = scmp.ne.s32.totalorder %s97, %s100
    %p106 = scmp.eq.s32.totalorder %s10, 0
    %p107 = por %p105, %p106
    %p108 = scmp.ne.s32.totalorder %s97, %s100
    %p109 = scmp.eq.s32.totalorder %s15, 1
    %p110 = por %p108, %p109
    %p111 = scmp.ne.s32.totalorder %s100, %s101
    %p112 = scmp.eq.s32.totalorder %s15, 0
    %p113 = por %p111, %p112
    %p114 = scmp.ne.s32.totalorder %s100, %s101
    %p115 = scmp.eq.s32.totalorder %s16, 1
    %p116 = por %p114, %p115
    %p118 = scmp.ne.s32.totalorder %s101, %s117
    %p119 = scmp.eq.s32.totalorder %s16, 0
    %p120 = por %p118, %p119
    %s121 = ssub.s32 %s17, %s29
    %s122 = ssub.s32 %s18, %s25
    %s123 = sor.u32 %s121, %s122
    %p124 = scmp.eq.s32.totalorder %s123, 0
    %s126 = sadd.s32 %s125, 1
    %s127 = scalar_select %p124, %s125, %s126
    %p130 = pneg %p124
    %p131 = scmp.eq.s32.totalorder %s10, 1
    %p132 = por %p130, %p131
    %p133 = scmp.ne.s32.totalorder %s125, %s128
    %p134 = scmp.eq.s32.totalorder %s10, 0
    %p135 = por %p133, %p134
    %p136 = scmp.ne.s32.totalorder %s125, %s128
    %p137 = scmp.eq.s32.totalorder %s15, 1
    %p138 = por %p136, %p137
    %p139 = scmp.ne.s32.totalorder %s128, %s129
    %p140 = scmp.eq.s32.totalorder %s15, 0
    %p141 = por %p139, %p140
    %p142 = scmp.ne.s32.totalorder %s128, %s129
    %p143 = scmp.eq.s32.totalorder %s16, 1
    %p144 = por %p142, %p143
    %p146 = scmp.ne.s32.totalorder %s129, %s145
    %p147 = scmp.eq.s32.totalorder %s16, 0
    %p148 = por %p146, %p147
    %p149 = scmp.le.s32.totalorder 1, %s10
    %p150 = scmp.lt.s32.totalorder %s10, 3
    %p151 = pnand %p149, %p150
    %p152 = pneg %p151
    // Predicated region
    $region9: #{_lambda_.16} parent=5 // pred_check
      _
    $region10: #{_lambda_.16} parent=5 // pred_check_branch
      %154 = sbr.rel (%p151) target = $region12
    $region11: #{_lambda_.16} parent=5 // pred_region
      %s155 = ssub.s32 %s10, 1
      // Predicated region
      $region13: #{_lambda_.16} parent=11 // pred_check
        %p156 = pneg %p43
      $region14: #{_lambda_.16} parent=11 // pred_check_branch
        %158 = sbr.rel (%p156) target = $region16
      $region15: #{_lambda_.16} parent=11 // pred_region
        _
      $region16: #{_lambda_.16} parent=11 // pred_fallthru
        _
      // Predicated region
      $region17: #{_lambda_.16} parent=11 // pred_check
        %p159 = pneg %p64
      $region18: #{_lambda_.16} parent=11 // pred_check_branch
        %161 = sbr.rel (%p159) target = $region20
      $region19: #{_lambda_.16} parent=11 // pred_region
        _
      $region20: #{_lambda_.16} parent=11 // pred_fallthru
        _
      // Predicated region
      $region21: #{_lambda_.16} parent=11 // pred_check
        %p162 = pneg %p85
      $region22: #{_lambda_.16} parent=11 // pred_check_branch
        %164 = sbr.rel (%p162) target = $region24
      $region23: #{_lambda_.16} parent=11 // pred_region
        _
      $region24: #{_lambda_.16} parent=11 // pred_fallthru
        _
    $region12: #{_lambda_.16} parent=5 // pred_fallthru
      _
    %p165 = scmp.lt.s32.totalorder %s10, 2
    // Predicated region
    $region25: #{_lambda_.16} parent=5 // pred_check
      %p166 = pneg %p165
    $region26: #{_lambda_.16} parent=5 // pred_check_branch
      %168 = sbr.rel (%p166) target = $region28
    $region27: #{_lambda_.16} parent=5 // pred_region
      // Predicated region
      $region29: #{_lambda_.16} parent=27 // pred_check
        %p169 = pneg %p107
      $region30: #{_lambda_.16} parent=27 // pred_check_branch
        %171 = sbr.rel (%p169) target = $region32
      $region31: #{_lambda_.16} parent=27 // pred_region
        %p172 = scmp.lt.s32.totalorder %s17, 1
        %s173 = scalar_select %p172, %s17, 1
        %p174 = scmp.lt.s32.totalorder %s18, 0
        %s175 = scalar_select %p174, %s18, 0
        %s176 = smul.addr %s173, 18
        %s177 = sadd.s32 %s175, %s176
        %s178 = smul.addr %s177, 4
        %s179 = scalar_lea.vmem %s3, %s178
      $region32: #{_lambda_.16} parent=27 // pred_fallthru
        _
    $region28: #{_lambda_.16} parent=5 // pred_fallthru
      _
    %p180 = scmp.le.s32.totalorder 1, %s10
    %p181 = scmp.lt.s32.totalorder %s10, 3
    %p182 = pnand %p180, %p181
    %p183 = pneg %p182
    // Predicated region
    $region33: #{_lambda_.16} parent=5 // pred_check
      _
    $region34: #{_lambda_.16} parent=5 // pred_check_branch
      %185 = sbr.rel (%p182) target = $region36
    $region35: #{_lambda_.16} parent=5 // pred_region
      %s186 = ssub.s32 %s10, 1
      %p187 = pneg %p43
      %p188 = pneg %p40
      %p189 = pneg %p64
      %p190 = pneg %p61
      %p191 = pneg %p85
      %p192 = pneg %p82
      %p193 = scmp.lt.s32.totalorder %s19, 1
      %s194 = scalar_select %p193, %s19, 1
      %p195 = scmp.lt.s32.totalorder %s20, 0
      %s196 = scalar_select %p195, %s20, 0
      %s197 = smul.addr %s194, 18
      %s198 = sadd.s32 %s196, %s197
      %s199 = smul.addr %s198, 4
      %s200 = scalar_lea.vmem %s3, %s199
      %p201 = pneg %p113
      %p202 = pneg %p110
      %p203 = pneg %p141
      %p204 = pneg %p138
      %p205 = scmp.lt.s32.totalorder %s19, 1
      %s206 = scalar_select %p205, %s19, 1
      %p207 = scmp.lt.s32.totalorder %s20, 0
      %s208 = scalar_select %p207, %s20, 0
      %s209 = smul.addr %s206, 4
      %s210 = sadd.s32 %s208, %s209
      %s211 = smul.addr %s210, 8
      %s212 = scalar_lea.vmem %s4, %s211
      %p213 = scmp.lt.s32.totalorder %s19, 1
      %s214 = scalar_select %p213, %s19, 1
      %p215 = scmp.lt.s32.totalorder %s20, 0
      %s216 = scalar_select %p215, %s20, 0
      %s217 = smul.addr %s214, 18
      %s218 = sadd.s32 %s216, %s217
      %s219 = smul.addr %s218, 4
      %s220 = scalar_lea.vmem %s3, %s219
      %p221 = scmp.lt.s32.totalorder %s19, 1
      %s222 = scalar_select %p221, %s19, 1
      %p223 = scmp.lt.s32.totalorder %s20, 0
      %s224 = scalar_select %p223, %s20, 0
      %s225 = smul.addr %s222, 4
      %s226 = sadd.s32 %s224, %s225
      %s227 = smul.addr %s226, 8
      %s228 = scalar_lea.vmem %s4, %s227
      %v230 = vld [vmem:[%s0] sm:$0xff]
      %v231 = vld [vmem:[%s0 + $0x8] sm:$0xff]
      %v232 = vld [vmem:[%s0 + $0x10] sm:$0xff]
      %v233 = vld [vmem:[%s0 + $0x18] sm:$0xff]
      %v234 = vld [vmem:[%s220] sm:$0xf]
      %v235 = vld [vmem:[%s220 + $0x4] sm:$0xf]
      %v236 = vld [vmem:[%s220 + $0x8] sm:$0xf]
      %v237 = vld [vmem:[%s220 + $0xc] sm:$0xf]
      %v238 = vld [vmem:[%s220 + $0x10] sm:$0xf]
      %v239 = vld [vmem:[%s220 + $0x14] sm:$0xf]
      %v240 = vld [vmem:[%s220 + $0x18] sm:$0xf]
      %v241 = vld [vmem:[%s220 + $0x1c] sm:$0xf]
      %v242 = vld [vmem:[%s220 + $0x20] sm:$0xf]
      %v243 = vld [vmem:[%s220 + $0x24] sm:$0xf]
      %v244 = vld [vmem:[%s220 + $0x28] sm:$0xf]
      %v245 = vld [vmem:[%s220 + $0x2c] sm:$0xf]
      %v246 = vld [vmem:[%s220 + $0x30] sm:$0xf]
      %v247 = vld [vmem:[%s220 + $0x34] sm:$0xf]
      %v248 = vld [vmem:[%s220 + $0x38] sm:$0xf]
      %v249 = vld [vmem:[%s220 + $0x3c] sm:$0xf]
      %v250 = vld [vmem:[%s220 + $0x40] sm:$0xf]
      %v251 = vld [vmem:[%s220 + $0x44] sm:$0xf]
      %v256 = vunpack.c.l.b16 %v230
      %v257 = vunpack.c.h.b16 %v230
      %v258 = vunpack.c.l.b16 %v231
      %v259 = vunpack.c.h.b16 %v231
      %v260 = vunpack.c.l.b16 %v232
      %v261 = vunpack.c.h.b16 %v232
      %v262 = vunpack.c.l.b16 %v233
      %v263 = vunpack.c.h.b16 %v233
      %v264 = vpack.c.b16 %v258, %v256
      %v265 = vpack.c.b16 %v259, %v257
      %v266 = vpack.c.b16 %v262, %v260
      %v267 = vpack.c.b16 %v263, %v261
      %v288 = vunpack.c.l.b16 %v234
      %v289 = vunpack.c.l.b16 %v235
      %v290 = vunpack.c.l.b16 %v236
      %v291 = vunpack.c.l.b16 %v237
      %v292 = vunpack.c.l.b16 %v238
      %v293 = vunpack.c.l.b16 %v239
      %v294 = vunpack.c.l.b16 %v240
      %v295 = vunpack.c.l.b16 %v241
      %v296 = vunpack.c.l.b16 %v242
      %v297 = vunpack.c.l.b16 %v243
      %v298 = vunpack.c.l.b16 %v244
      %v299 = vunpack.c.l.b16 %v245
      %v300 = vunpack.c.l.b16 %v246
      %v301 = vunpack.c.l.b16 %v247
      %v302 = vunpack.c.l.b16 %v248
      %v303 = vunpack.c.l.b16 %v249
      %v304 = vunpack.c.l.b16 %v250
      %v305 = vunpack.c.l.b16 %v251
      %v306 = vpack.c.b16 %v289, %v288
      %v307 = vpack.c.b16 %v291, %v290
      %v308 = vpack.c.b16 %v293, %v292
      %v309 = vpack.c.b16 %v295, %v294
      %v310 = vpack.c.b16 %v297, %v296
      %v311 = vpack.c.b16 %v299, %v298
      %v312 = vpack.c.b16 %v301, %v300
      %v313 = vpack.c.b16 %v303, %v302
      %v314 = vpack.c.b16 %v305, %v304
      %vm324 = vcmask 130048
      %v326 = vsel %vm324, %v265, 0
      %v329 = vsel %vm324, %v267, 0
      %331 = vmatprep.subr.bf16.mxu0 0
      %332 = vmatpush1.bf16.msra.mxu0 %v306
      %333 = vmatprep.subr.bf16.mxu0 0
      %334 = vmatpush1.bf16.msra.mxu0 %v307
      %335 = vmatprep.subr.bf16.mxu0 0
      %336 = vmatpush1.bf16.msra.mxu0 %v308
      %337 = vmatprep.subr.bf16.mxu0 0
      %338 = vmatpush1.bf16.msra.mxu0 %v309
      %339 = vmatprep.subr.bf16.mxu0 0
      %340 = vmatpush1.bf16.msra.mxu0 %v310
      %341 = vmatprep.subr.bf16.mxu0 0
      %342 = vmatpush1.bf16.msra.mxu0 %v311
      %343 = vmatprep.subr.bf16.mxu0 0
      %344 = vmatpush1.bf16.msra.mxu0 %v312
      %345 = vmatprep.subr.bf16.mxu0 0
      %346 = vmatpush1.bf16.msra.mxu0 %v313
      %347 = vmatprep.subr.bf16.mxu0 0
      %348 = vmatpush1.bf16.msra.mxu0 %v314
      %349 = vmatprep.subr.bf16.mxu0 0
      %350 = vmatpush1.bf16.msra.mxu0 0
      %351 = vmatprep.subr.bf16.mxu0 0
      %352 = vmatpush1.bf16.msra.mxu0 0
      %353 = vmatprep.subr.bf16.mxu0 0
      %354 = vmatpush1.bf16.msra.mxu0 0
      %355 = vmatprep.subr.bf16.mxu0 0
      %356 = vmatpush1.bf16.msra.mxu0 0
      %357 = vmatprep.subr.bf16.mxu0 0
      %358 = vmatpush1.bf16.msra.mxu0 0
      %359 = vmatprep.subr.bf16.mxu0 0
      %360 = vmatpush1.bf16.msra.mxu0 0
      %361 = vmatprep.subr.bf16.mxu0 0
      %362 = vmatpush1.bf16.msra.mxu0 0
      %363 = vmatprep.mubr.bf16.mxu0 %v326
      %364 = vmatmul.mubr.bf16.gmra.mrb[0].mxu0 %v264
      %v365 = vpop.f32.mrb[0].mxu0
      %v366 = vadd.f32 0.0, %v365
      %v367 = vpop.f32.mrb[0].mxu0
      %v368 = vpop.f32.mrb[0].mxu0
      %v369 = vadd.f32 0.0, %v368
      %v370 = vpop.f32.mrb[0].mxu0
      %371 = vmatprep.mubr.bf16.mxu0 %v329
      %372 = vmatmul.mubr.bf16.gmra.mrb[0].mxu0 %v266
      %v373 = vpop.f32.mrb[0].mxu0
      %v374 = vadd.f32 0.0, %v373
      %v375 = vpop.f32.mrb[0].mxu0
      %v376 = vpop.f32.mrb[0].mxu0
      %v377 = vadd.f32 0.0, %v376
      %v378 = vpop.f32.mrb[0].mxu0
      %379 = vdwg.mxu0
      %v380 = vld [vmem:[%s1] sm:$0xff]
      %v381 = vld [vmem:[%s1 + $0x8] sm:$0xff]
      %v382 = vld [vmem:[%s1 + $0x10] sm:$0xff]
      %v383 = vld [vmem:[%s1 + $0x18] sm:$0xff]
      %385 = vset.pattern.permute.xlu0 0
      %386 = vperm.xlu0 %385, %v380
      %v387 = vpop.permute.xlu0 %386
      %390 = vset.pattern.permute.xlu0 0
      %391 = vperm.xlu0 %390, %v381
      %v392 = vpop.permute.xlu0 %391
      %395 = vset.pattern.permute.xlu0 0
      %396 = vperm.xlu0 %395, %v382
      %v397 = vpop.permute.xlu0 %396
      %400 = vset.pattern.permute.xlu0 0
      %401 = vperm.xlu0 %400, %v383
      %v402 = vpop.permute.xlu0 %401
      %v404 = vmul.f32 %v366, %v387
      %v405 = vmul.f32 %v369, %v392
      %v406 = vmul.f32 %v374, %v397
      %v407 = vmul.f32 %v377, %v402
      %v408 = vld [vmem:[%s2] sm:$0xff]
      %v409 = vld [vmem:[%s2 + $0x8] sm:$0xff]
      %v410 = vld [vmem:[%s2 + $0x10] sm:$0xff]
      %v411 = vld [vmem:[%s2 + $0x18] sm:$0xff]
      %413 = vset.pattern.permute.xlu0 0
      %414 = vperm.xlu0 %413, %v408
      %v415 = vpop.permute.xlu0 %414
      %418 = vset.pattern.permute.xlu0 0
      %419 = vperm.xlu0 %418, %v409
      %v420 = vpop.permute.xlu0 %419
      %423 = vset.pattern.permute.xlu0 0
      %424 = vperm.xlu0 %423, %v410
      %v425 = vpop.permute.xlu0 %424
      %428 = vset.pattern.permute.xlu0 0
      %429 = vperm.xlu0 %428, %v411
      %v430 = vpop.permute.xlu0 %429
      %v432 = vadd.f32 %v404, %v415
      %v433 = vadd.f32 %v405, %v420
      %v434 = vadd.f32 %v406, %v425
      %v435 = vadd.f32 %v407, %v430
      %vm436 = vcmp.gt.f32.partialorder %v432, 0.0
      %vm437 = vcmp.gt.f32.partialorder %v433, 0.0
      %vm438 = vcmp.gt.f32.partialorder %v434, 0.0
      %vm439 = vcmp.gt.f32.partialorder %v435, 0.0
      %v440 = vmul.f32 %v432, 0.1
      %v441 = vmul.f32 %v433, 0.1
      %v442 = vmul.f32 %v434, 0.1
      %v443 = vmul.f32 %v435, 0.1
      %v444 = vsel %vm436, %v432, %v440
      %v445 = vsel %vm437, %v433, %v441
      %v446 = vsel %vm438, %v434, %v442
      %v447 = vsel %vm439, %v435, %v443
      %vm448 = vcmask 523264
      %449 = vst.msk [vmem:[%s228] sm:$0xff] %vm448, %v444
      %450 = vst.msk [vmem:[%s228 + $0x8] sm:$0xff] %vm448, %v445
      %451 = vst.msk [vmem:[%s228 + $0x10] sm:$0xff] %vm448, %v446
      %452 = vst.msk [vmem:[%s228 + $0x18] sm:$0xff] %vm448, %v447
      %p453 = scmp.lt.s32.totalorder %s19, 1
      %s454 = scalar_select %p453, %s19, 1
      %p455 = scmp.lt.s32.totalorder %s20, 0
      %s456 = scalar_select %p455, %s20, 0
      %s457 = smul.addr %s454, 4
      %s458 = sadd.s32 %s456, %s457
      %s459 = smul.addr %s458, 8
      %s460 = scalar_lea.vmem %s4, %s459
      // Predicated region
      $region37: #{_lambda_.16} parent=35 // pred_check
        %p461 = pneg %p138
      $region38: #{_lambda_.16} parent=35 // pred_check_branch
        %463 = sbr.rel (%p461) target = $region40
      $region39: #{_lambda_.16} parent=35 // pred_region
        _
      $region40: #{_lambda_.16} parent=35 // pred_fallthru
        _
    $region36: #{_lambda_.16} parent=5 // pred_fallthru
      _
    %p464 = scmp.le.s32.totalorder 2, %s10
    // Predicated region
    $region41: #{_lambda_.16} parent=5 // pred_check
      %p465 = pneg %p464
    $region42: #{_lambda_.16} parent=5 // pred_check_branch
      %467 = sbr.rel (%p465) target = $region44
    $region43: #{_lambda_.16} parent=5 // pred_region
      %s468 = ssub.s32 %s10, 2
      // Predicated region
      $region45: #{_lambda_.16} parent=43 // pred_check
        %p469 = pneg %p144
      $region46: #{_lambda_.16} parent=43 // pred_check_branch
        %471 = sbr.rel (%p469) target = $region48
      $region47: #{_lambda_.16} parent=43 // pred_region
        %p472 = scmp.lt.s32.totalorder %s21, 1
        %s473 = scalar_select %p472, %s21, 1
        %p474 = scmp.lt.s32.totalorder %s22, 0
        %s475 = scalar_select %p474, %s22, 0
        %s476 = smul.addr %s473, 4
        %s477 = sadd.s32 %s475, %s476
        %s478 = smul.addr %s477, 8
        %s479 = scalar_lea.vmem %s4, %s478
      $region48: #{_lambda_.16} parent=43 // pred_fallthru
        _
    $region44: #{_lambda_.16} parent=5 // pred_fallthru
      _
  $region6: #{_lambda_.16} parent=0 // loop_footer
    %s14 = sadd.s32 1, %s10
  $region7: #{_lambda_.16} parent=0 // loop_footer_branch
    %9 = sbr.rel target = $region3
  $region8: #{_lambda_.16} parent=0 // loop_exit
    _

// kernel: _lambda_.19
$region0: #{_lambda_.19}
  #allocation0 [shape = 'u32[]', space=smem, size = 0x4, offset = 0x4, fixed_abs, tag = 'smem constant byte address 0x4 - core index']
  #allocation1 [shape = 'u32[144,128]{1,0:T(1,128)}', space=vmem, size = 0x12000, scoped, tag = 'internal scratch']
  %s0 = inlined_call_operand.vmem [shape: bf16[16,32], index: 0, kind: input, shape index: {}]
  %s1 = inlined_call_operand.vmem [shape: f32[16,1], index: 1, kind: input, shape index: {}]
  %s2 = inlined_call_operand.vmem [shape: f32[16,1], index: 2, kind: input, shape index: {}]
  %s3 = inlined_call_operand.vmem [shape: bf16[2,32,64], index: 3, kind: input, shape index: {}]
  %s4 = inlined_call_operand.vmem [shape: f32[2,16,64], index: 4, kind: output, shape index: {}]
  %s5 = sld [smem:[#allocation0]]
  $region49: #{_lambda_.19} parent=0
    _
  %s7 = ssub.s32 1, %s5
  %s8 = scalar_select 0, %s7, %s5
  loop: start=0, step=1, limit=4
  $region2: #{_lambda_.19} parent=0 // loop_pre_header
    _
  $region3: #{_lambda_.19} parent=0 // loop_header
    %s10 = sphi 0, %s14
    %p11 = scmp.ge.s32.totalorder %s10, 4
    %s17 = sphi 0, %s29
    %s18 = sphi 0, %s25
    %s19 = sphi 0, %s17
    %s20 = sphi 0, %s18
    %s21 = sphi 0, %s19
    %s22 = sphi 0, %s20
    %s30 = sphi 0, %s30
    %s32 = sphi 0, %s30
    %s33 = sphi 0, %s32
    %s47 = sphi 0, %s33
    %s51 = sphi 0, %s51
    %s53 = sphi 0, %s51
    %s54 = sphi 0, %s53
    %s68 = sphi 0, %s54
    %s72 = sphi 0, %s72
    %s74 = sphi 0, %s72
    %s75 = sphi 0, %s74
    %s89 = sphi 0, %s75
    %s97 = sphi 0, %s99
    %s100 = sphi 0, %s97
    %s101 = sphi 0, %s100
    %s117 = sphi 0, %s101
    %s125 = sphi 0, %s127
    %s128 = sphi 0, %s125
    %s129 = sphi 0, %s128
    %s145 = sphi 0, %s129
  $region4: #{_lambda_.19} parent=0 // loop_header_branch
    %13 = sbr.rel (%p11) target = $region8
  $region5: #{_lambda_.19} parent=0 // loop_body
    %s15 = ssub.s32 %s10, 1
    %s16 = ssub.s32 %s10, 2
    %s23 = sadd.s32 1, %s18
    %p24 = scmp.ge.s32.totalorder %s23, 1
    %s25 = scalar_select %p24, 0, %s23
    %s26 = sadd.s32 1, %s17
    %s27 = scalar_select %p24, %s26, %s17
    %p28 = scmp.ge.s32.totalorder %s27, 2
    %s29 = scalar_select %p28, 0, %s27
    %s31 = sadd.s32 %s30, 1
    %p34 = scmp.eq.s32.totalorder %s10, 1
    %p35 = scmp.ne.s32.totalorder %s30, %s32
    %p36 = scmp.eq.s32.totalorder %s10, 0
    %p37 = por %p35, %p36
    %p38 = scmp.ne.s32.totalorder %s30, %s32
    %p39 = scmp.eq.s32.totalorder %s15, 1
    %p40 = por %p38, %p39
    %p41 = scmp.ne.s32.totalorder %s32, %s33
    %p42 = scmp.eq.s32.totalorder %s15, 0
    %p43 = por %p41, %p42
    %p44 = scmp.ne.s32.totalorder %s32, %s33
    %p45 = scmp.eq.s32.totalorder %s16, 1
    %p46 = por %p44, %p45
    %p48 = scmp.ne.s32.totalorder %s33, %s47
    %p49 = scmp.eq.s32.totalorder %s16, 0
    %p50 = por %p48, %p49
    %s52 = sadd.s32 %s51, 1
    %p55 = scmp.eq.s32.totalorder %s10, 1
    %p56 = scmp.ne.s32.totalorder %s51, %s53
    %p57 = scmp.eq.s32.totalorder %s10, 0
    %p58 = por %p56, %p57
    %p59 = scmp.ne.s32.totalorder %s51, %s53
    %p60 = scmp.eq.s32.totalorder %s15, 1
    %p61 = por %p59, %p60
    %p62 = scmp.ne.s32.totalorder %s53, %s54
    %p63 = scmp.eq.s32.totalorder %s15, 0
    %p64 = por %p62, %p63
    %p65 = scmp.ne.s32.totalorder %s53, %s54
    %p66 = scmp.eq.s32.totalorder %s16, 1
    %p67 = por %p65, %p66
    %p69 = scmp.ne.s32.totalorder %s54, %s68
    %p70 = scmp.eq.s32.totalorder %s16, 0
    %p71 = por %p69, %p70
    %s73 = sadd.s32 %s72, 1
    %p76 = scmp.eq.s32.totalorder %s10, 1
    %p77 = scmp.ne.s32.totalorder %s72, %s74
    %p78 = scmp.eq.s32.totalorder %s10, 0
    %p79 = por %p77, %p78
    %p80 = scmp.ne.s32.totalorder %s72, %s74
    %p81 = scmp.eq.s32.totalorder %s15, 1
    %p82 = por %p80, %p81
    %p83 = scmp.ne.s32.totalorder %s74, %s75
    %p84 = scmp.eq.s32.totalorder %s15, 0
    %p85 = por %p83, %p84
    %p86 = scmp.ne.s32.totalorder %s74, %s75
    %p87 = scmp.eq.s32.totalorder %s16, 1
    %p88 = por %p86, %p87
    %p90 = scmp.ne.s32.totalorder %s75, %s89
    %p91 = scmp.eq.s32.totalorder %s16, 0
    %p92 = por %p90, %p91
    %s93 = ssub.s32 %s17, %s29
    %s94 = ssub.s32 %s18, %s25
    %s95 = sor.u32 %s93, %s94
    %p96 = scmp.eq.s32.totalorder %s95, 0
    %s98 = sadd.s32 %s97, 1
    %s99 = scalar_select %p96, %s97, %s98
    %p102 = pneg %p96
    %p103 = scmp.eq.s32.totalorder %s10, 1
    %p104 = por %p102, %p103
    %p105 = scmp.ne.s32.totalorder %s97, %s100
    %p106 = scmp.eq.s32.totalorder %s10, 0
    %p107 = por %p105, %p106
    %p108 = scmp.ne.s32.totalorder %s97, %s100
    %p109 = scmp.eq.s32.totalorder %s15, 1
    %p110 = por %p108, %p109
    %p111 = scmp.ne.s32.totalorder %s100, %s101
    %p112 = scmp.eq.s32.totalorder %s15, 0
    %p113 = por %p111, %p112
    %p114 = scmp.ne.s32.totalorder %s100, %s101
    %p115 = scmp.eq.s32.totalorder %s16, 1
    %p116 = por %p114, %p115
    %p118 = scmp.ne.s32.totalorder %s101, %s117
    %p119 = scmp.eq.s32.totalorder %s16, 0
    %p120 = por %p118, %p119
    %s121 = ssub.s32 %s17, %s29
    %s122 = ssub.s32 %s18, %s25
    %s123 = sor.u32 %s121, %s122
    %p124 = scmp.eq.s32.totalorder %s123, 0
    %s126 = sadd.s32 %s125, 1
    %s127 = scalar_select %p124, %s125, %s126
    %p130 = pneg %p124
    %p131 = scmp.eq.s32.totalorder %s10, 1
    %p132 = por %p130, %p131
    %p133 = scmp.ne.s32.totalorder %s125, %s128
    %p134 = scmp.eq.s32.totalorder %s10, 0
    %p135 = por %p133, %p134
    %p136 = scmp.ne.s32.totalorder %s125, %s128
    %p137 = scmp.eq.s32.totalorder %s15, 1
    %p138 = por %p136, %p137
    %p139 = scmp.ne.s32.totalorder %s128, %s129
    %p140 = scmp.eq.s32.totalorder %s15, 0
    %p141 = por %p139, %p140
    %p142 = scmp.ne.s32.totalorder %s128, %s129
    %p143 = scmp.eq.s32.totalorder %s16, 1
    %p144 = por %p142, %p143
    %p146 = scmp.ne.s32.totalorder %s129, %s145
    %p147 = scmp.eq.s32.totalorder %s16, 0
    %p148 = por %p146, %p147
    %p149 = scmp.le.s32.totalorder 1, %s10
    %p150 = scmp.lt.s32.totalorder %s10, 3
    %p151 = pnand %p149, %p150
    %p152 = pneg %p151
    // Predicated region
    $region9: #{_lambda_.19} parent=5 // pred_check
      _
    $region10: #{_lambda_.19} parent=5 // pred_check_branch
      %154 = sbr.rel (%p151) target = $region12
    $region11: #{_lambda_.19} parent=5 // pred_region
      %s155 = ssub.s32 %s10, 1
      // Predicated region
      $region13: #{_lambda_.19} parent=11 // pred_check
        %p156 = pneg %p43
      $region14: #{_lambda_.19} parent=11 // pred_check_branch
        %158 = sbr.rel (%p156) target = $region16
      $region15: #{_lambda_.19} parent=11 // pred_region
        _
      $region16: #{_lambda_.19} parent=11 // pred_fallthru
        _
      // Predicated region
      $region17: #{_lambda_.19} parent=11 // pred_check
        %p159 = pneg %p64
      $region18: #{_lambda_.19} parent=11 // pred_check_branch
        %161 = sbr.rel (%p159) target = $region20
      $region19: #{_lambda_.19} parent=11 // pred_region
        _
      $region20: #{_lambda_.19} parent=11 // pred_fallthru
        _
      // Predicated region
      $region21: #{_lambda_.19} parent=11 // pred_check
        %p162 = pneg %p85
      $region22: #{_lambda_.19} parent=11 // pred_check_branch
        %164 = sbr.rel (%p162) target = $region24
      $region23: #{_lambda_.19} parent=11 // pred_region
        _
      $region24: #{_lambda_.19} parent=11 // pred_fallthru
        _
    $region12: #{_lambda_.19} parent=5 // pred_fallthru
      _
    %p165 = scmp.lt.s32.totalorder %s10, 2
    // Predicated region
    $region25: #{_lambda_.19} parent=5 // pred_check
      %p166 = pneg %p165
    $region26: #{_lambda_.19} parent=5 // pred_check_branch
      %168 = sbr.rel (%p166) target = $region28
    $region27: #{_lambda_.19} parent=5 // pred_region
      // Predicated region
      $region29: #{_lambda_.19} parent=27 // pred_check
        %p169 = pneg %p107
      $region30: #{_lambda_.19} parent=27 // pred_check_branch
        %171 = sbr.rel (%p169) target = $region32
      $region31: #{_lambda_.19} parent=27 // pred_region
        %p172 = scmp.lt.s32.totalorder %s17, 1
        %s173 = scalar_select %p172, %s17, 1
        %p174 = scmp.lt.s32.totalorder %s18, 0
        %s175 = scalar_select %p174, %s18, 0
        %s176 = smul.addr %s173, 4
        %s177 = sadd.s32 %s175, %s176
        %s178 = smul.addr %s177, 4
        %s179 = scalar_lea.vmem %s3, %s178
      $region32: #{_lambda_.19} parent=27 // pred_fallthru
        _
    $region28: #{_lambda_.19} parent=5 // pred_fallthru
      _
    %p180 = scmp.le.s32.totalorder 1, %s10
    %p181 = scmp.lt.s32.totalorder %s10, 3
    %p182 = pnand %p180, %p181
    %p183 = pneg %p182
    // Predicated region
    $region33: #{_lambda_.19} parent=5 // pred_check
      _
    $region34: #{_lambda_.19} parent=5 // pred_check_branch
      %185 = sbr.rel (%p182) target = $region36
    $region35: #{_lambda_.19} parent=5 // pred_region
      %s186 = ssub.s32 %s10, 1
      %p187 = pneg %p43
      %p188 = pneg %p40
      %p189 = pneg %p64
      %p190 = pneg %p61
      %p191 = pneg %p85
      %p192 = pneg %p82
      %p193 = scmp.lt.s32.totalorder %s19, 1
      %s194 = scalar_select %p193, %s19, 1
      %p195 = scmp.lt.s32.totalorder %s20, 0
      %s196 = scalar_select %p195, %s20, 0
      %s197 = smul.addr %s194, 4
      %s198 = sadd.s32 %s196, %s197
      %s199 = smul.addr %s198, 4
      %s200 = scalar_lea.vmem %s3, %s199
      %p201 = pneg %p113
      %p202 = pneg %p110
      %p203 = pneg %p141
      %p204 = pneg %p138
      %p205 = scmp.lt.s32.totalorder %s19, 1
      %s206 = scalar_select %p205, %s19, 1
      %p207 = scmp.lt.s32.totalorder %s20, 0
      %s208 = scalar_select %p207, %s20, 0
      %s209 = smul.addr %s206, 2
      %s210 = sadd.s32 %s208, %s209
      %s211 = smul.addr %s210, 8
      %s212 = scalar_lea.vmem %s4, %s211
      %p213 = scmp.lt.s32.totalorder %s19, 1
      %s214 = scalar_select %p213, %s19, 1
      %p215 = scmp.lt.s32.totalorder %s20, 0
      %s216 = scalar_select %p215, %s20, 0
      %s217 = smul.addr %s214, 4
      %s218 = sadd.s32 %s216, %s217
      %s219 = smul.addr %s218, 4
      %s220 = scalar_lea.vmem %s3, %s219
      %p221 = scmp.lt.s32.totalorder %s19, 1
      %s222 = scalar_select %p221, %s19, 1
      %p223 = scmp.lt.s32.totalorder %s20, 0
      %s224 = scalar_select %p223, %s20, 0
      %s225 = smul.addr %s222, 2
      %s226 = sadd.s32 %s224, %s225
      %s227 = smul.addr %s226, 8
      %s228 = scalar_lea.vmem %s4, %s227
      %v230 = vld [vmem:[%s0] sm:$0xf]
      %v231 = vld [vmem:[%s0 + $0x4] sm:$0xf]
      %v232 = vld [vmem:[%s220] sm:$0xf]
      %v233 = vld [vmem:[%s220 + $0x4] sm:$0xf]
      %v234 = vld [vmem:[%s220 + $0x8] sm:$0xf]
      %v235 = vld [vmem:[%s220 + $0xc] sm:$0xf]
      %v238 = vunpack.c.l.b16 %v230
      %v239 = vunpack.c.l.b16 %v231
      %v240 = vpack.c.b16 %v239, %v238
      %v245 = vunpack.c.l.b16 %v232
      %v246 = vunpack.c.l.b16 %v233
      %v247 = vunpack.c.l.b16 %v234
      %v248 = vunpack.c.l.b16 %v235
      %v249 = vpack.c.b16 %v246, %v245
      %v250 = vpack.c.b16 %v248, %v247
      %vm253 = vcmask 261120
      %v255 = vsel %vm253, %v240, 0
      %257 = vmatprep.subr.bf16.mxu0 0
      %258 = vmatpush1.bf16.msra.mxu0 %v249
      %259 = vmatprep.subr.bf16.mxu0 0
      %260 = vmatpush1.bf16.msra.mxu0 %v250
      %261 = vmatprep.subr.bf16.mxu0 0
      %262 = vmatpush1.bf16.msra.mxu0 0
      %263 = vmatprep.subr.bf16.mxu0 0
      %264 = vmatpush1.bf16.msra.mxu0 0
      %265 = vmatprep.subr.bf16.mxu0 0
      %266 = vmatpush1.bf16.msra.mxu0 0
      %267 = vmatprep.subr.bf16.mxu0 0
      %268 = vmatpush1.bf16.msra.mxu0 0
      %269 = vmatprep.subr.bf16.mxu0 0
      %270 = vmatpush1.bf16.msra.mxu0 0
      %271 = vmatprep.subr.bf16.mxu0 0
      %272 = vmatpush1.bf16.msra.mxu0 0
      %273 = vmatprep.subr.bf16.mxu0 0
      %274 = vmatpush1.bf16.msra.mxu0 0
      %275 = vmatprep.subr.bf16.mxu0 0
      %276 = vmatpush1.bf16.msra.mxu0 0
      %277 = vmatprep.subr.bf16.mxu0 0
      %278 = vmatpush1.bf16.msra.mxu0 0
      %279 = vmatprep.subr.bf16.mxu0 0
      %280 = vmatpush1.bf16.msra.mxu0 0
      %281 = vmatprep.subr.bf16.mxu0 0
      %282 = vmatpush1.bf16.msra.mxu0 0
      %283 = vmatprep.subr.bf16.mxu0 0
      %284 = vmatpush1.bf16.msra.mxu0 0
      %285 = vmatprep.subr.bf16.mxu0 0
      %286 = vmatpush1.bf16.msra.mxu0 0
      %287 = vmatprep.subr.bf16.mxu0 0
      %288 = vmatpush1.bf16.msra.mxu0 0
      %289 = vmatprep.mubr.bf16.mxu0 0
      %290 = vmatmul.mubr.bf16.gmra.mrb[0].mxu0 %v255
      %v291 = vpop.f32.mrb[0].mxu0
      %v292 = vadd.f32 0.0, %v291
      %v293 = vpop.f32.mrb[0].mxu0
      %v294 = vpop.f32.mrb[0].mxu0
      %v295 = vadd.f32 0.0, %v294
      %v296 = vpop.f32.mrb[0].mxu0
      %297 = vdwg.mxu0
      %v298 = vld [vmem:[%s1] sm:$0xff]
      %v299 = vld [vmem:[%s1 + $0x8] sm:$0xff]
      %301 = vset.pattern.permute.xlu0 0
      %302 = vperm.xlu0 %301, %v298
      %v303 = vpop.permute.xlu0 %302
      %306 = vset.pattern.permute.xlu0 0
      %307 = vperm.xlu0 %306, %v299
      %v308 = vpop.permute.xlu0 %307
      %v310 = vmul.f32 %v292, %v303
      %v311 = vmul.f32 %v295, %v308
      %v312 = vld [vmem:[%s2] sm:$0xff]
      %v313 = vld [vmem:[%s2 + $0x8] sm:$0xff]
      %315 = vset.pattern.permute.xlu0 0
      %316 = vperm.xlu0 %315, %v312
      %v317 = vpop.permute.xlu0 %316
      %320 = vset.pattern.permute.xlu0 0
      %321 = vperm.xlu0 %320, %v313
      %v322 = vpop.permute.xlu0 %321
      %v324 = vadd.f32 %v310, %v317
      %v325 = vadd.f32 %v311, %v322
      %vm326 = vcmp.gt.f32.partialorder %v324, 0.0
      %vm327 = vcmp.gt.f32.partialorder %v325, 0.0
      %v328 = vmul.f32 %v324, 0.1
      %v329 = vmul.f32 %v325, 0.1
      %v330 = vsel %vm326, %v324, %v328
      %v331 = vsel %vm327, %v325, %v329
      %vm332 = vcmask 523264
      %333 = vst.msk [vmem:[%s228] sm:$0xff] %vm332, %v330
      %334 = vst.msk [vmem:[%s228 + $0x8] sm:$0xff] %vm332, %v331
      %p335 = scmp.lt.s32.totalorder %s19, 1
      %s336 = scalar_select %p335, %s19, 1
      %p337 = scmp.lt.s32.totalorder %s20, 0
      %s338 = scalar_select %p337, %s20, 0
      %s339 = smul.addr %s336, 2
      %s340 = sadd.s32 %s338, %s339
      %s341 = smul.addr %s340, 8
      %s342 = scalar_lea.vmem %s4, %s341
      // Predicated region
      $region37: #{_lambda_.19} parent=35 // pred_check
        %p343 = pneg %p138
      $region38: #{_lambda_.19} parent=35 // pred_check_branch
        %345 = sbr.rel (%p343) target = $region40
      $region39: #{_lambda_.19} parent=35 // pred_region
        _
      $region40: #{_lambda_.19} parent=35 // pred_fallthru
        _
    $region36: #{_lambda_.19} parent=5 // pred_fallthru
      _
    %p346 = scmp.le.s32.totalorder 2, %s10
    // Predicated region
    $region41: #{_lambda_.19} parent=5 // pred_check
      %p347 = pneg %p346
    $region42: #{_lambda_.19} parent=5 // pred_check_branch
      %349 = sbr.rel (%p347) target = $region44
    $region43: #{_lambda_.19} parent=5 // pred_region
      %s350 = ssub.s32 %s10, 2
      // Predicated region
      $region45: #{_lambda_.19} parent=43 // pred_check
        %p351 = pneg %p144
      $region46: #{_lambda_.19} parent=43 // pred_check_branch
        %353 = sbr.rel (%p351) target = $region48
      $region47: #{_lambda_.19} parent=43 // pred_region
        %p354 = scmp.lt.s32.totalorder %s21, 1
        %s355 = scalar_select %p354, %s21, 1
        %p356 = scmp.lt.s32.totalorder %s22, 0
        %s357 = scalar_select %p356, %s22, 0
        %s358 = smul.addr %s355, 2
        %s359 = sadd.s32 %s357, %s358
        %s360 = smul.addr %s359, 8
        %s361 = scalar_lea.vmem %s4, %s360
      $region48: #{_lambda_.19} parent=43 // pred_fallthru
        _
    $region44: #{_lambda_.19} parent=5 // pred_fallthru
      _
  $region6: #{_lambda_.19} parent=0 // loop_footer
    %s14 = sadd.s32 1, %s10
  $region7: #{_lambda_.19} parent=0 // loop_footer_branch
    %9 = sbr.rel target = $region3
  $region8: #{_lambda_.19} parent=0 // loop_exit
    _

// kernel: _lambda_.20
$region0: #{_lambda_.20}
  #allocation0 [shape = 'u32[]', space=smem, size = 0x4, offset = 0x4, fixed_abs, tag = 'smem constant byte address 0x4 - core index']
  #allocation1 [shape = 'u32[144,128]{1,0:T(1,128)}', space=vmem, size = 0x12000, scoped, tag = 'internal scratch']
  %s0 = inlined_call_operand.vmem [shape: f32[256,128], index: 0, kind: input, shape index: {}]
  %s1 = inlined_call_operand.vmem [shape: f32[8,16], index: 1, kind: input, shape index: {}]
  %s2 = inlined_call_operand.vmem [shape: f32[2,128,8], index: 2, kind: input, shape index: {}]
  %s3 = inlined_call_operand.vmem [shape: f32[2,256,16], index: 3, kind: output, shape index: {}]
  %s4 = sld [smem:[#allocation0]]
  $region45: #{_lambda_.20} parent=0
    _
  %s6 = ssub.s32 1, %s4
  %s7 = scalar_select 0, %s6, %s4
  loop: start=0, step=1, limit=4
  $region2: #{_lambda_.20} parent=0 // loop_pre_header
    _
  $region3: #{_lambda_.20} parent=0 // loop_header
    %s9 = sphi 0, %s13
    %p10 = scmp.ge.s32.totalorder %s9, 4
    %s17 = sphi 0, %s17
    %s19 = sphi 0, %s17
    %s20 = sphi 0, %s19
    %s34 = sphi 0, %s20
    %s38 = sphi 0, %s38
    %s40 = sphi 0, %s38
    %s41 = sphi 0, %s40
    %s55 = sphi 0, %s41
    %s61 = sphi 0, %s63
    %s64 = sphi 0, %s61
    %s65 = sphi 0, %s64
    %s81 = sphi 0, %s65
    %s87 = sphi 0, %s89
    %s90 = sphi 0, %s87
    %s91 = sphi 0, %s90
    %s107 = sphi 0, %s91
  $region4: #{_lambda_.20} parent=0 // loop_header_branch
    %12 = sbr.rel (%p10) target = $region8
  $region5: #{_lambda_.20} parent=0 // loop_body
    %s14 = ssub.s32 %s9, 1
    %s15 = ssub.s32 %s9, 2
    %s16 = sadd.s32 %s9, 1
    %s18 = sadd.s32 %s17, 1
    %p21 = scmp.eq.s32.totalorder %s9, 1
    %p22 = scmp.ne.s32.totalorder %s17, %s19
    %p23 = scmp.eq.s32.totalorder %s9, 0
    %p24 = por %p22, %p23
    %p25 = scmp.ne.s32.totalorder %s17, %s19
    %p26 = scmp.eq.s32.totalorder %s14, 1
    %p27 = por %p25, %p26
    %p28 = scmp.ne.s32.totalorder %s19, %s20
    %p29 = scmp.eq.s32.totalorder %s14, 0
    %p30 = por %p28, %p29
    %p31 = scmp.ne.s32.totalorder %s19, %s20
    %p32 = scmp.eq.s32.totalorder %s15, 1
    %p33 = por %p31, %p32
    %p35 = scmp.ne.s32.totalorder %s20, %s34
    %p36 = scmp.eq.s32.totalorder %s15, 0
    %p37 = por %p35, %p36
    %s39 = sadd.s32 %s38, 1
    %p42 = scmp.eq.s32.totalorder %s9, 1
    %p43 = scmp.ne.s32.totalorder %s38, %s40
    %p44 = scmp.eq.s32.totalorder %s9, 0
    %p45 = por %p43, %p44
    %p46 = scmp.ne.s32.totalorder %s38, %s40
    %p47 = scmp.eq.s32.totalorder %s14, 1
    %p48 = por %p46, %p47
    %p49 = scmp.ne.s32.totalorder %s40, %s41
    %p50 = scmp.eq.s32.totalorder %s14, 0
    %p51 = por %p49, %p50
    %p52 = scmp.ne.s32.totalorder %s40, %s41
    %p53 = scmp.eq.s32.totalorder %s15, 1
    %p54 = por %p52, %p53
    %p56 = scmp.ne.s32.totalorder %s41, %s55
    %p57 = scmp.eq.s32.totalorder %s15, 0
    %p58 = por %p56, %p57
    %s59 = ssub.s32 %s9, %s16
    %p60 = scmp.eq.s32.totalorder %s59, 0
    %s62 = sadd.s32 %s61, 1
    %s63 = scalar_select %p60, %s61, %s62
    %p66 = pneg %p60
    %p67 = scmp.eq.s32.totalorder %s9, 1
    %p68 = por %p66, %p67
    %p69 = scmp.ne.s32.totalorder %s61, %s64
    %p70 = scmp.eq.s32.totalorder %s9, 0
    %p71 = por %p69, %p70
    %p72 = scmp.ne.s32.totalorder %s61, %s64
    %p73 = scmp.eq.s32.totalorder %s14, 1
    %p74 = por %p72, %p73
    %p75 = scmp.ne.s32.totalorder %s64, %s65
    %p76 = scmp.eq.s32.totalorder %s14, 0
    %p77 = por %p75, %p76
    %p78 = scmp.ne.s32.totalorder %s64, %s65
    %p79 = scmp.eq.s32.totalorder %s15, 1
    %p80 = por %p78, %p79
    %p82 = scmp.ne.s32.totalorder %s65, %s81
    %p83 = scmp.eq.s32.totalorder %s15, 0
    %p84 = por %p82, %p83
    %s85 = ssub.s32 %s9, %s16
    %p86 = scmp.eq.s32.totalorder %s85, 0
    %s88 = sadd.s32 %s87, 1
    %s89 = scalar_select %p86, %s87, %s88
    %p92 = pneg %p86
    %p93 = scmp.eq.s32.totalorder %s9, 1
    %p94 = por %p92, %p93
    %p95 = scmp.ne.s32.totalorder %s87, %s90
    %p96 = scmp.eq.s32.totalorder %s9, 0
    %p97 = por %p95, %p96
    %p98 = scmp.ne.s32.totalorder %s87, %s90
    %p99 = scmp.eq.s32.totalorder %s14, 1
    %p100 = por %p98, %p99
    %p101 = scmp.ne.s32.totalorder %s90, %s91
    %p102 = scmp.eq.s32.totalorder %s14, 0
    %p103 = por %p101, %p102
    %p104 = scmp.ne.s32.totalorder %s90, %s91
    %p105 = scmp.eq.s32.totalorder %s15, 1
    %p106 = por %p104, %p105
    %p108 = scmp.ne.s32.totalorder %s91, %s107
    %p109 = scmp.eq.s32.totalorder %s15, 0
    %p110 = por %p108, %p109
    %p111 = scmp.le.s32.totalorder 1, %s9
    %p112 = scmp.lt.s32.totalorder %s9, 3
    %p113 = pnand %p111, %p112
    %p114 = pneg %p113
    // Predicated region
    $region9: #{_lambda_.20} parent=5 // pred_check
      _
    $region10: #{_lambda_.20} parent=5 // pred_check_branch
      %116 = sbr.rel (%p113) target = $region12
    $region11: #{_lambda_.20} parent=5 // pred_region
      %s117 = ssub.s32 %s9, 1
      // Predicated region
      $region13: #{_lambda_.20} parent=11 // pred_check
        %p118 = pneg %p30
      $region14: #{_lambda_.20} parent=11 // pred_check_branch
        %120 = sbr.rel (%p118) target = $region16
      $region15: #{_lambda_.20} parent=11 // pred_region
        _
      $region16: #{_lambda_.20} parent=11 // pred_fallthru
        _
      // Predicated region
      $region17: #{_lambda_.20} parent=11 // pred_check
        %p121 = pneg %p51
      $region18: #{_lambda_.20} parent=11 // pred_check_branch
        %123 = sbr.rel (%p121) target = $region20
      $region19: #{_lambda_.20} parent=11 // pred_region
        _
      $region20: #{_lambda_.20} parent=11 // pred_fallthru
        _
    $region12: #{_lambda_.20} parent=5 // pred_fallthru
      _
    %p124 = scmp.lt.s32.totalorder %s9, 2
    // Predicated region
    $region21: #{_lambda_.20} parent=5 // pred_check
      %p125 = pneg %p124
    $region22: #{_lambda_.20} parent=5 // pred_check_branch
      %127 = sbr.rel (%p125) target = $region24
    $region23: #{_lambda_.20} parent=5 // pred_region
      // Predicated region
      $region25: #{_lambda_.20} parent=23 // pred_check
        %p128 = pneg %p71
      $region26: #{_lambda_.20} parent=23 // pred_check_branch
        %130 = sbr.rel (%p128) target = $region28
      $region27: #{_lambda_.20} parent=23 // pred_region
        %p131 = scmp.lt.s32.totalorder %s9, 1
        %s132 = scalar_select %p131, %s9, 1
        %s133 = smul.addr %s132, 16
        %s134 = smul.addr %s133, 8
        %s135 = scalar_lea.vmem %s2, %s134
      $region28: #{_lambda_.20} parent=23 // pred_fallthru
        _
    $region24: #{_lambda_.20} parent=5 // pred_fallthru
      _
    %p136 = scmp.le.s32.totalorder 1, %s9
    %p137 = scmp.lt.s32.totalorder %s9, 3
    %p138 = pnand %p136, %p137
    %p139 = pneg %p138
    // Predicated region
    $region29: #{_lambda_.20} parent=5 // pred_check
      _
    $region30: #{_lambda_.20} parent=5 // pred_check_branch
      %141 = sbr.rel (%p138) target = $region32
    $region31: #{_lambda_.20} parent=5 // pred_region
      %s142 = ssub.s32 %s9, 1
      %p143 = pneg %p30
      %p144 = pneg %p27
      %p145 = pneg %p51
      %p146 = pneg %p48
      %p147 = scmp.lt.s32.totalorder %s14, 1
      %s148 = scalar_select %p147, %s14, 1
      %s149 = smul.addr %s148, 16
      %s150 = smul.addr %s149, 8
      %s151 = scalar_lea.vmem %s2, %s150
      %p152 = pneg %p77
      %p153 = pneg %p74
      %p154 = pneg %p103
      %p155 = pneg %p100
      %p156 = scmp.lt.s32.totalorder %s14, 1
      %s157 = scalar_select %p156, %s14, 1
      %s158 = smul.addr %s157, 32
      %s159 = smul.addr %s158, 8
      %s160 = scalar_lea.vmem %s3, %s159
      %p161 = scmp.lt.s32.totalorder %s14, 1
      %s162 = scalar_select %p161, %s14, 1
      %s163 = smul.addr %s162, 16
      %s164 = smul.addr %s163, 8
      %s165 = scalar_lea.vmem %s2, %s164
      %p166 = scmp.lt.s32.totalorder %s14, 1
      %s167 = scalar_select %p166, %s14, 1
      %s168 = smul.addr %s167, 32
      %s169 = smul.addr %s168, 8
      %s170 = scalar_lea.vmem %s3, %s169
      %v171 = vld [vmem:[%s165] sm:$0xff]
      %v172 = vld [vmem:[%s165 + $0x8] sm:$0xff]
      %v173 = vld [vmem:[%s165 + $0x10] sm:$0xff]
      %v174 = vld [vmem:[%s165 + $0x18] sm:$0xff]
      %v175 = vld [vmem:[%s165 + $0x20] sm:$0xff]
      %v176 = vld [vmem:[%s165 + $0x28] sm:$0xff]
      %v177 = vld [vmem:[%s165 + $0x30] sm:$0xff]
      %v178 = vld [vmem:[%s165 + $0x38] sm:$0xff]
      %v179 = vld [vmem:[%s165 + $0x40] sm:$0xff]
      %v180 = vld [vmem:[%s165 + $0x48] sm:$0xff]
      %v181 = vld [vmem:[%s165 + $0x50] sm:$0xff]
      %v182 = vld [vmem:[%s165 + $0x58] sm:$0xff]
      %v183 = vld [vmem:[%s165 + $0x60] sm:$0xff]
      %v184 = vld [vmem:[%s165 + $0x68] sm:$0xff]
      %v185 = vld [vmem:[%s165 + $0x70] sm:$0xff]
      %v186 = vld [vmem:[%s165 + $0x78] sm:$0xff]
      %v187 = vld [vmem:[%s1] sm:$0xff]
      %vm188 = vcmask 64512
      %v190 = vsel %vm188, %v171, 0
      %v193 = vsel %vm188, %v172, 0
      %v196 = vsel %vm188, %v173, 0
      %v199 = vsel %vm188, %v174, 0
      %v202 = vsel %vm188, %v175, 0
      %v205 = vsel %vm188, %v176, 0
      %v208 = vsel %vm188, %v177, 0
      %v211 = vsel %vm188, %v178, 0
      %v214 = vsel %vm188, %v179, 0
      %v217 = vsel %vm188, %v180, 0
      %v220 = vsel %vm188, %v181, 0
      %v223 = vsel %vm188, %v182, 0
      %v226 = vsel %vm188, %v183, 0
      %v229 = vsel %vm188, %v184, 0
      %v232 = vsel %vm188, %v185, 0
      %v235 = vsel %vm188, %v186, 0
      %237 = vmatprep.subr.mxu0 0.0
      %238 = vmatpush1.msra.mxu0 %v187
      %239 = vmatprep.subr.mxu0 0.0
      %240 = vmatpush1.msra.mxu0 0.0
      %241 = vmatprep.subr.mxu0 0.0
      %242 = vmatpush1.msra.mxu0 0.0
      %243 = vmatprep.subr.mxu0 0.0
      %244 = vmatpush1.msra.mxu0 0.0
      %245 = vmatprep.subr.mxu0 0.0
      %246 = vmatpush1.msra.mxu0 0.0
      %247 = vmatprep.subr.mxu0 0.0
      %248 = vmatpush1.msra.mxu0 0.0
      %249 = vmatprep.subr.mxu0 0.0
      %250 = vmatpush1.msra.mxu0 0.0
      %251 = vmatprep.subr.mxu0 0.0
      %252 = vmatpush1.msra.mxu0 0.0
      %253 = vmatprep.subr.mxu0 0.0
      %254 = vmatpush1.msra.mxu0 0.0
      %255 = vmatprep.subr.mxu0 0.0
      %256 = vmatpush1.msra.mxu0 0.0
      %257 = vmatprep.subr.mxu0 0.0
      %258 = vmatpush1.msra.mxu0 0.0
      %259 = vmatprep.subr.mxu0 0.0
      %260 = vmatpush1.msra.mxu0 0.0
      %261 = vmatprep.subr.mxu0 0.0
      %262 = vmatpush1.msra.mxu0 0.0
      %263 = vmatprep.subr.mxu0 0.0
      %264 = vmatpush1.msra.mxu0 0.0
      %265 = vmatprep.subr.mxu0 0.0
      %266 = vmatpush1.msra.mxu0 0.0
      %267 = vmatprep.subr.mxu0 0.0
      %268 = vmatpush1.msra.mxu0 0.0
      %269 = vmatprep.subr.mxu0 0.0
      %270 = vmatpush1.msra.mxu0 0.0
      %271 = vmatprep.subr.mxu0 0.0
      %272 = vmatpush1.msra.mxu0 0.0
      %273 = vmatprep.subr.mxu0 0.0
      %274 = vmatpush1.msra.mxu0 0.0
      %275 = vmatprep.subr.mxu0 0.0
      %276 = vmatpush1.msra.mxu0 0.0
      %277 = vmatprep.subr.mxu0 0.0
      %278 = vmatpush1.msra.mxu0 0.0
      %279 = vmatprep.subr.mxu0 0.0
      %280 = vmatpush1.msra.mxu0 0.0
      %281 = vmatprep.subr.mxu0 0.0
      %282 = vmatpush1.msra.mxu0 0.0
      %283 = vmatprep.subr.mxu0 0.0
      %284 = vmatpush1.msra.mxu0 0.0
      %285 = vmatprep.subr.mxu0 0.0
      %286 = vmatpush1.msra.mxu0 0.0
      %287 = vmatprep.subr.mxu0 0.0
      %288 = vmatpush1.msra.mxu0 0.0
      %289 = vmatprep.subr.mxu0 0.0
      %290 = vmatpush1.msra.mxu0 0.0
      %291 = vmatprep.subr.mxu0 0.0
      %292 = vmatpush1.msra.mxu0 0.0
      %293 = vmatprep.subr.mxu0 0.0
      %294 = vmatpush1.msra.mxu0 0.0
      %295 = vmatprep.subr.mxu0 0.0
      %296 = vmatpush1.msra.mxu0 0.0
      %297 = vmatprep.subr.mxu0 0.0
      %298 = vmatpush1.msra.mxu0 0.0
      %299 = vmatprep.subr.mxu0 0.0
      %300 = vmatpush1.msra.mxu0 0.0
      %301 = vmatprep.mubr.f32.mxu0 0.0
      %302 = vmatmul.mubr.f32.gmra.mrb[0].mxu0 %v190
      %v303 = vpop.f32.mrb[0].mxu0
      %v304 = vadd.f32 0.0, %v303
      %v305 = vpop.f32.mrb[0].mxu0
      %306 = vmatprep.mubr.f32.mxu0 0.0
      %307 = vmatmul.mubr.f32.gmra.mrb[0].mxu0 %v193
      %v308 = vpop.f32.mrb[0].mxu0
      %v309 = vadd.f32 0.0, %v308
      %v310 = vpop.f32.mrb[0].mxu0
      %311 = vmatprep.mubr.f32.mxu0 0.0
      %312 = vmatmul.mubr.f32.gmra.mrb[0].mxu0 %v196
      %v313 = vpop.f32.mrb[0].mxu0
      %v314 = vadd.f32 0.0, %v313
      %v315 = vpop.f32.mrb[0].mxu0
      %316 = vmatprep.mubr.f32.mxu0 0.0
      %317 = vmatmul.mubr.f32.gmra.mrb[0].mxu0 %v199
      %v318 = vpop.f32.mrb[0].mxu0
      %v319 = vadd.f32 0.0, %v318
      %v320 = vpop.f32.mrb[0].mxu0
      %321 = vmatprep.mubr.f32.mxu0 0.0
      %322 = vmatmul.mubr.f32.gmra.mrb[0].mxu0 %v202
      %v323 = vpop.f32.mrb[0].mxu0
      %v324 = vadd.f32 0.0, %v323
      %v325 = vpop.f32.mrb[0].mxu0
      %326 = vmatprep.mubr.f32.mxu0 0.0
      %327 = vmatmul.mubr.f32.gmra.mrb[0].mxu0 %v205
      %v328 = vpop.f32.mrb[0].mxu0
      %v329 = vadd.f32 0.0, %v328
      %v330 = vpop.f32.mrb[0].mxu0
      %331 = vmatprep.mubr.f32.mxu0 0.0
      %332 = vmatmul.mubr.f32.gmra.mrb[0].mxu0 %v208
      %v333 = vpop.f32.mrb[0].mxu0
      %v334 = vadd.f32 0.0, %v333
      %v335 = vpop.f32.mrb[0].mxu0
      %336 = vmatprep.mubr.f32.mxu0 0.0
      %337 = vmatmul.mubr.f32.gmra.mrb[0].mxu0 %v211
      %v338 = vpop.f32.mrb[0].mxu0
      %v339 = vadd.f32 0.0, %v338
      %v340 = vpop.f32.mrb[0].mxu0
      %341 = vmatprep.mubr.f32.mxu0 0.0
      %342 = vmatmul.mubr.f32.gmra.mrb[0].mxu0 %v214
      %v343 = vpop.f32.mrb[0].mxu0
      %v344 = vadd.f32 0.0, %v343
      %v345 = vpop.f32.mrb[0].mxu0
      %346 = vmatprep.mubr.f32.mxu0 0.0
      %347 = vmatmul.mubr.f32.gmra.mrb[0].mxu0 %v217
      %v348 = vpop.f32.mrb[0].mxu0
      %v349 = vadd.f32 0.0, %v348
      %v350 = vpop.f32.mrb[0].mxu0
      %351 = vmatprep.mubr.f32.mxu0 0.0
      %352 = vmatmul.mubr.f32.gmra.mrb[0].mxu0 %v220
      %v353 = vpop.f32.mrb[0].mxu0
      %v354 = vadd.f32 0.0, %v353
      %v355 = vpop.f32.mrb[0].mxu0
      %356 = vmatprep.mubr.f32.mxu0 0.0
      %357 = vmatmul.mubr.f32.gmra.mrb[0].mxu0 %v223
      %v358 = vpop.f32.mrb[0].mxu0
      %v359 = vadd.f32 0.0, %v358
      %v360 = vpop.f32.mrb[0].mxu0
      %361 = vmatprep.mubr.f32.mxu0 0.0
      %362 = vmatmul.mubr.f32.gmra.mrb[0].mxu0 %v226
      %v363 = vpop.f32.mrb[0].mxu0
      %v364 = vadd.f32 0.0, %v363
      %v365 = vpop.f32.mrb[0].mxu0
      %366 = vmatprep.mubr.f32.mxu0 0.0
      %367 = vmatmul.mubr.f32.gmra.mrb[0].mxu0 %v229
      %v368 = vpop.f32.mrb[0].mxu0
      %v369 = vadd.f32 0.0, %v368
      %v370 = vpop.f32.mrb[0].mxu0
      %371 = vmatprep.mubr.f32.mxu0 0.0
      %372 = vmatmul.mubr.f32.gmra.mrb[0].mxu0 %v232
      %v373 = vpop.f32.mrb[0].mxu0
      %v374 = vadd.f32 0.0, %v373
      %v375 = vpop.f32.mrb[0].mxu0
      %376 = vmatprep.mubr.f32.mxu0 0.0
      %377 = vmatmul.mubr.f32.gmra.mrb[0].mxu0 %v235
      %v378 = vpop.f32.mrb[0].mxu0
      %v379 = vadd.f32 0.0, %v378
      %v380 = vpop.f32.mrb[0].mxu0
      %381 = vdwg.mxu0
      %v382 = vld [vmem:[%s0] sm:$0xff]
      %v383 = vld [vmem:[%s0 + $0x8] sm:$0xff]
      %v384 = vld [vmem:[%s0 + $0x10] sm:$0xff]
      %v385 = vld [vmem:[%s0 + $0x18] sm:$0xff]
      %v386 = vld [vmem:[%s0 + $0x20] sm:$0xff]
      %v387 = vld [vmem:[%s0 + $0x28] sm:$0xff]
      %v388 = vld [vmem:[%s0 + $0x30] sm:$0xff]
      %v389 = vld [vmem:[%s0 + $0x38] sm:$0xff]
      %v390 = vld [vmem:[%s0 + $0x40] sm:$0xff]
      %v391 = vld [vmem:[%s0 + $0x48] sm:$0xff]
      %v392 = vld [vmem:[%s0 + $0x50] sm:$0xff]
      %v393 = vld [vmem:[%s0 + $0x58] sm:$0xff]
      %v394 = vld [vmem:[%s0 + $0x60] sm:$0xff]
      %v395 = vld [vmem:[%s0 + $0x68] sm:$0xff]
      %v396 = vld [vmem:[%s0 + $0x70] sm:$0xff]
      %v397 = vld [vmem:[%s0 + $0x78] sm:$0xff]
      %v398 = vld [vmem:[%s0 + $0x80] sm:$0xff]
      %v399 = vld [vmem:[%s0 + $0x88] sm:$0xff]
      %v400 = vld [vmem:[%s0 + $0x90] sm:$0xff]
      %v401 = vld [vmem:[%s0 + $0x98] sm:$0xff]
      %v402 = vld [vmem:[%s0 + $0xa0] sm:$0xff]
      %v403 = vld [vmem:[%s0 + $0xa8] sm:$0xff]
      %v404 = vld [vmem:[%s0 + $0xb0] sm:$0xff]
      %v405 = vld [vmem:[%s0 + $0xb8] sm:$0xff]
      %v406 = vld [vmem:[%s0 + $0xc0] sm:$0xff]
      %v407 = vld [vmem:[%s0 + $0xc8] sm:$0xff]
      %v408 = vld [vmem:[%s0 + $0xd0] sm:$0xff]
      %v409 = vld [vmem:[%s0 + $0xd8] sm:$0xff]
      %v410 = vld [vmem:[%s0 + $0xe0] sm:$0xff]
      %v411 = vld [vmem:[%s0 + $0xe8] sm:$0xff]
      %v412 = vld [vmem:[%s0 + $0xf0] sm:$0xff]
      %v413 = vld [vmem:[%s0 + $0xf8] sm:$0xff]
      %414 = vmatprep.subr.mxu0 0.0
      %415 = vmatpush1.msra.mxu0 %v304
      %416 = vmatprep.subr.mxu0 0.0
      %417 = vmatpush1.msra.mxu0 %v309
      %418 = vmatprep.subr.mxu0 0.0
      %419 = vmatpush1.msra.mxu0 %v314
      %420 = vmatprep.subr.mxu0 0.0
      %421 = vmatpush1.msra.mxu0 %v319
      %422 = vmatprep.subr.mxu0 0.0
      %423 = vmatpush1.msra.mxu0 %v324
      %424 = vmatprep.subr.mxu0 0.0
      %425 = vmatpush1.msra.mxu0 %v329
      %426 = vmatprep.subr.mxu0 0.0
      %427 = vmatpush1.msra.mxu0 %v334
      %428 = vmatprep.subr.mxu0 0.0
      %429 = vmatpush1.msra.mxu0 %v339
      %430 = vmatprep.subr.mxu0 0.0
      %431 = vmatpush1.msra.mxu0 %v344
      %432 = vmatprep.subr.mxu0 0.0
      %433 = vmatpush1.msra.mxu0 %v349
      %434 = vmatprep.subr.mxu0 0.0
      %435 = vmatpush1.msra.mxu0 %v354
      %436 = vmatprep.subr.mxu0 0.0
      %437 = vmatpush1.msra.mxu0 %v359
      %438 = vmatprep.subr.mxu0 0.0
      %439 = vmatpush1.msra.mxu0 %v364
      %440 = vmatprep.subr.mxu0 0.0
      %441 = vmatpush1.msra.mxu0 %v369
      %442 = vmatprep.subr.mxu0 0.0
      %443 = vmatpush1.msra.mxu0 %v374
      %444 = vmatprep.subr.mxu0 0.0
      %445 = vmatpush1.msra.mxu0 %v379
      %446 = vmatprep.subr.mxu0 0.0
      %447 = vmatpush1.msra.mxu0 0.0
      %448 = vmatprep.subr.mxu0 0.0
      %449 = vmatpush1.msra.mxu0 0.0
      %450 = vmatprep.subr.mxu0 0.0
      %451 = vmatpush1.msra.mxu0 0.0
      %452 = vmatprep.subr.mxu0 0.0
      %453 = vmatpush1.msra.mxu0 0.0
      %454 = vmatprep.subr.mxu0 0.0
      %455 = vmatpush1.msra.mxu0 0.0
      %456 = vmatprep.subr.mxu0 0.0
      %457 = vmatpush1.msra.mxu0 0.0
      %458 = vmatprep.subr.mxu0 0.0
      %459 = vmatpush1.msra.mxu0 0.0
      %460 = vmatprep.subr.mxu0 0.0
      %461 = vmatpush1.msra.mxu0 0.0
      %462 = vmatprep.subr.mxu0 0.0
      %463 = vmatpush1.msra.mxu0 0.0
      %464 = vmatprep.subr.mxu0 0.0
      %465 = vmatpush1.msra.mxu0 0.0
      %466 = vmatprep.subr.mxu0 0.0
      %467 = vmatpush1.msra.mxu0 0.0
      %468 = vmatprep.subr.mxu0 0.0
      %469 = vmatpush1.msra.mxu0 0.0
      %470 = vmatprep.subr.mxu0 0.0
      %471 = vmatpush1.msra.mxu0 0.0
      %472 = vmatprep.subr.mxu0 0.0
      %473 = vmatpush1.msra.mxu0 0.0
      %474 = vmatprep.subr.mxu0 0.0
      %475 = vmatpush1.msra.mxu0 0.0
      %476 = vmatprep.subr.mxu0 0.0
      %477 = vmatpush1.msra.mxu0 0.0
      %478 = vmatprep.mubr.f32.mxu0 0.0
      %479 = vmatmul.mubr.f32.gmra.mrb[0].mxu0 %v382
      %v480 = vpop.f32.mrb[0].mxu0
      %v481 = vadd.f32 0.0, %v480
      %v482 = vpop.f32.mrb[0].mxu0
      %483 = vmatprep.mubr.f32.mxu0 0.0
      %484 = vmatmul.mubr.f32.gmra.mrb[0].mxu0 %v383
      %v485 = vpop.f32.mrb[0].mxu0
      %v486 = vadd.f32 0.0, %v485
      %v487 = vpop.f32.mrb[0].mxu0
      %488 = vmatprep.mubr.f32.mxu0 0.0
      %489 = vmatmul.mubr.f32.gmra.mrb[0].mxu0 %v384
      %v490 = vpop.f32.mrb[0].mxu0
      %v491 = vadd.f32 0.0, %v490
      %v492 = vpop.f32.mrb[0].mxu0
      %493 = vmatprep.mubr.f32.mxu0 0.0
      %494 = vmatmul.mubr.f32.gmra.mrb[0].mxu0 %v385
      %v495 = vpop.f32.mrb[0].mxu0
      %v496 = vadd.f32 0.0, %v495
      %v497 = vpop.f32.mrb[0].mxu0
      %498 = vmatprep.mubr.f32.mxu0 0.0
      %499 = vmatmul.mubr.f32.gmra.mrb[0].mxu0 %v386
      %v500 = vpop.f32.mrb[0].mxu0
      %v501 = vadd.f32 0.0, %v500
      %v502 = vpop.f32.mrb[0].mxu0
      %503 = vmatprep.mubr.f32.mxu0 0.0
      %504 = vmatmul.mubr.f32.gmra.mrb[0].mxu0 %v387
      %v505 = vpop.f32.mrb[0].mxu0
      %v506 = vadd.f32 0.0, %v505
      %v507 = vpop.f32.mrb[0].mxu0
      %508 = vmatprep.mubr.f32.mxu0 0.0
      %509 = vmatmul.mubr.f32.gmra.mrb[0].mxu0 %v388
      %v510 = vpop.f32.mrb[0].mxu0
      %v511 = vadd.f32 0.0, %v510
      %v512 = vpop.f32.mrb[0].mxu0
      %513 = vmatprep.mubr.f32.mxu0 0.0
      %514 = vmatmul.mubr.f32.gmra.mrb[0].mxu0 %v389
      %v515 = vpop.f32.mrb[0].mxu0
      %v516 = vadd.f32 0.0, %v515
      %v517 = vpop.f32.mrb[0].mxu0
      %518 = vmatprep.mubr.f32.mxu0 0.0
      %519 = vmatmul.mubr.f32.gmra.mrb[0].mxu0 %v390
      %v520 = vpop.f32.mrb[0].mxu0
      %v521 = vadd.f32 0.0, %v520
      %v522 = vpop.f32.mrb[0].mxu0
      %523 = vmatprep.mubr.f32.mxu0 0.0
      %524 = vmatmul.mubr.f32.gmra.mrb[0].mxu0 %v391
      %v525 = vpop.f32.mrb[0].mxu0
      %v526 = vadd.f32 0.0, %v525
      %v527 = vpop.f32.mrb[0].mxu0
      %528 = vmatprep.mubr.f32.mxu0 0.0
      %529 = vmatmul.mubr.f32.gmra.mrb[0].mxu0 %v392
      %v530 = vpop.f32.mrb[0].mxu0
      %v531 = vadd.f32 0.0, %v530
      %v532 = vpop.f32.mrb[0].mxu0
      %533 = vmatprep.mubr.f32.mxu0 0.0
      %534 = vmatmul.mubr.f32.gmra.mrb[0].mxu0 %v393
      %v535 = vpop.f32.mrb[0].mxu0
      %v536 = vadd.f32 0.0, %v535
      %v537 = vpop.f32.mrb[0].mxu0
      %538 = vmatprep.mubr.f32.mxu0 0.0
      %539 = vmatmul.mubr.f32.gmra.mrb[0].mxu0 %v394
      %v540 = vpop.f32.mrb[0].mxu0
      %v541 = vadd.f32 0.0, %v540
      %v542 = vpop.f32.mrb[0].mxu0
      %543 = vmatprep.mubr.f32.mxu0 0.0
      %544 = vmatmul.mubr.f32.gmra.mrb[0].mxu0 %v395
      %v545 = vpop.f32.mrb[0].mxu0
      %v546 = vadd.f32 0.0, %v545
      %v547 = vpop.f32.mrb[0].mxu0
      %548 = vmatprep.mubr.f32.mxu0 0.0
      %549 = vmatmul.mubr.f32.gmra.mrb[0].mxu0 %v396
      %v550 = vpop.f32.mrb[0].mxu0
      %v551 = vadd.f32 0.0, %v550
      %v552 = vpop.f32.mrb[0].mxu0
      %553 = vmatprep.mubr.f32.mxu0 0.0
      %554 = vmatmul.mubr.f32.gmra.mrb[0].mxu0 %v397
      %v555 = vpop.f32.mrb[0].mxu0
      %v556 = vadd.f32 0.0, %v555
      %v557 = vpop.f32.mrb[0].mxu0
      %558 = vmatprep.mubr.f32.mxu0 0.0
      %559 = vmatmul.mubr.f32.gmra.mrb[0].mxu0 %v398
      %v560 = vpop.f32.mrb[0].mxu0
      %v561 = vadd.f32 0.0, %v560
      %v562 = vpop.f32.mrb[0].mxu0
      %563 = vmatprep.mubr.f32.mxu0 0.0
      %564 = vmatmul.mubr.f32.gmra.mrb[0].mxu0 %v399
      %v565 = vpop.f32.mrb[0].mxu0
      %v566 = vadd.f32 0.0, %v565
      %v567 = vpop.f32.mrb[0].mxu0
      %568 = vmatprep.mubr.f32.mxu0 0.0
      %569 = vmatmul.mubr.f32.gmra.mrb[0].mxu0 %v400
      %v570 = vpop.f32.mrb[0].mxu0
      %v571 = vadd.f32 0.0, %v570
      %v572 = vpop.f32.mrb[0].mxu0
      %573 = vmatprep.mubr.f32.mxu0 0.0
      %574 = vmatmul.mubr.f32.gmra.mrb[0].mxu0 %v401
      %v575 = vpop.f32.mrb[0].mxu0
      %v576 = vadd.f32 0.0, %v575
      %v577 = vpop.f32.mrb[0].mxu0
      %578 = vmatprep.mubr.f32.mxu0 0.0
      %579 = vmatmul.mubr.f32.gmra.mrb[0].mxu0 %v402
      %v580 = vpop.f32.mrb[0].mxu0
      %v581 = vadd.f32 0.0, %v580
      %v582 = vpop.f32.mrb[0].mxu0
      %583 = vmatprep.mubr.f32.mxu0 0.0
      %584 = vmatmul.mubr.f32.gmra.mrb[0].mxu0 %v403
      %v585 = vpop.f32.mrb[0].mxu0
      %v586 = vadd.f32 0.0, %v585
      %v587 = vpop.f32.mrb[0].mxu0
      %588 = vmatprep.mubr.f32.mxu0 0.0
      %589 = vmatmul.mubr.f32.gmra.mrb[0].mxu0 %v404
      %v590 = vpop.f32.mrb[0].mxu0
      %v591 = vadd.f32 0.0, %v590
      %v592 = vpop.f32.mrb[0].mxu0
      %593 = vmatprep.mubr.f32.mxu0 0.0
      %594 = vmatmul.mubr.f32.gmra.mrb[0].mxu0 %v405
      %v595 = vpop.f32.mrb[0].mxu0
      %v596 = vadd.f32 0.0, %v595
      %v597 = vpop.f32.mrb[0].mxu0
      %598 = vmatprep.mubr.f32.mxu0 0.0
      %599 = vmatmul.mubr.f32.gmra.mrb[0].mxu0 %v406
      %v600 = vpop.f32.mrb[0].mxu0
      %v601 = vadd.f32 0.0, %v600
      %v602 = vpop.f32.mrb[0].mxu0
      %603 = vmatprep.mubr.f32.mxu0 0.0
      %604 = vmatmul.mubr.f32.gmra.mrb[0].mxu0 %v407
      %v605 = vpop.f32.mrb[0].mxu0
      %v606 = vadd.f32 0.0, %v605
      %v607 = vpop.f32.mrb[0].mxu0
      %608 = vmatprep.mubr.f32.mxu0 0.0
      %609 = vmatmul.mubr.f32.gmra.mrb[0].mxu0 %v408
      %v610 = vpop.f32.mrb[0].mxu0
      %v611 = vadd.f32 0.0, %v610
      %v612 = vpop.f32.mrb[0].mxu0
      %613 = vmatprep.mubr.f32.mxu0 0.0
      %614 = vmatmul.mubr.f32.gmra.mrb[0].mxu0 %v409
      %v615 = vpop.f32.mrb[0].mxu0
      %v616 = vadd.f32 0.0, %v615
      %v617 = vpop.f32.mrb[0].mxu0
      %618 = vmatprep.mubr.f32.mxu0 0.0
      %619 = vmatmul.mubr.f32.gmra.mrb[0].mxu0 %v410
      %v620 = vpop.f32.mrb[0].mxu0
      %v621 = vadd.f32 0.0, %v620
      %v622 = vpop.f32.mrb[0].mxu0
      %623 = vmatprep.mubr.f32.mxu0 0.0
      %624 = vmatmul.mubr.f32.gmra.mrb[0].mxu0 %v411
      %v625 = vpop.f32.mrb[0].mxu0
      %v626 = vadd.f32 0.0, %v625
      %v627 = vpop.f32.mrb[0].mxu0
      %628 = vmatprep.mubr.f32.mxu0 0.0
      %629 = vmatmul.mubr.f32.gmra.mrb[0].mxu0 %v412
      %v630 = vpop.f32.mrb[0].mxu0
      %v631 = vadd.f32 0.0, %v630
      %v632 = vpop.f32.mrb[0].mxu0
      %633 = vmatprep.mubr.f32.mxu0 0.0
      %634 = vmatmul.mubr.f32.gmra.mrb[0].mxu0 %v413
      %v635 = vpop.f32.mrb[0].mxu0
      %v636 = vadd.f32 0.0, %v635
      %v637 = vpop.f32.mrb[0].mxu0
      %638 = vdwg.mxu0
      %vm639 = vcmask 130048
      %640 = vst.msk [vmem:[%s170] sm:$0xff] %vm639, %v481
      %641 = vst.msk [vmem:[%s170 + $0x8] sm:$0xff] %vm639, %v486
      %642 = vst.msk [vmem:[%s170 + $0x10] sm:$0xff] %vm639, %v491
      %643 = vst.msk [vmem:[%s170 + $0x18] sm:$0xff] %vm639, %v496
      %644 = vst.msk [vmem:[%s170 + $0x20] sm:$0xff] %vm639, %v501
      %645 = vst.msk [vmem:[%s170 + $0x28] sm:$0xff] %vm639, %v506
      %646 = vst.msk [vmem:[%s170 + $0x30] sm:$0xff] %vm639, %v511
      %647 = vst.msk [vmem:[%s170 + $0x38] sm:$0xff] %vm639, %v516
      %648 = vst.msk [vmem:[%s170 + $0x40] sm:$0xff] %vm639, %v521
      %649 = vst.msk [vmem:[%s170 + $0x48] sm:$0xff] %vm639, %v526
      %650 = vst.msk [vmem:[%s170 + $0x50] sm:$0xff] %vm639, %v531
      %651 = vst.msk [vmem:[%s170 + $0x58] sm:$0xff] %vm639, %v536
      %652 = vst.msk [vmem:[%s170 + $0x60] sm:$0xff] %vm639, %v541
      %653 = vst.msk [vmem:[%s170 + $0x68] sm:$0xff] %vm639, %v546
      %654 = vst.msk [vmem:[%s170 + $0x70] sm:$0xff] %vm639, %v551
      %655 = vst.msk [vmem:[%s170 + $0x78] sm:$0xff] %vm639, %v556
      %656 = vst.msk [vmem:[%s170 + $0x80] sm:$0xff] %vm639, %v561
      %657 = vst.msk [vmem:[%s170 + $0x88] sm:$0xff] %vm639, %v566
      %658 = vst.msk [vmem:[%s170 + $0x90] sm:$0xff] %vm639, %v571
      %659 = vst.msk [vmem:[%s170 + $0x98] sm:$0xff] %vm639, %v576
      %660 = vst.msk [vmem:[%s170 + $0xa0] sm:$0xff] %vm639, %v581
      %661 = vst.msk [vmem:[%s170 + $0xa8] sm:$0xff] %vm639, %v586
      %662 = vst.msk [vmem:[%s170 + $0xb0] sm:$0xff] %vm639, %v591
      %663 = vst.msk [vmem:[%s170 + $0xb8] sm:$0xff] %vm639, %v596
      %664 = vst.msk [vmem:[%s170 + $0xc0] sm:$0xff] %vm639, %v601
      %665 = vst.msk [vmem:[%s170 + $0xc8] sm:$0xff] %vm639, %v606
      %666 = vst.msk [vmem:[%s170 + $0xd0] sm:$0xff] %vm639, %v611
      %667 = vst.msk [vmem:[%s170 + $0xd8] sm:$0xff] %vm639, %v616
      %668 = vst.msk [vmem:[%s170 + $0xe0] sm:$0xff] %vm639, %v621
      %669 = vst.msk [vmem:[%s170 + $0xe8] sm:$0xff] %vm639, %v626
      %670 = vst.msk [vmem:[%s170 + $0xf0] sm:$0xff] %vm639, %v631
      %671 = vst.msk [vmem:[%s170 + $0xf8] sm:$0xff] %vm639, %v636
      %p672 = scmp.lt.s32.totalorder %s14, 1
      %s673 = scalar_select %p672, %s14, 1
      %s674 = smul.addr %s673, 32
      %s675 = smul.addr %s674, 8
      %s676 = scalar_lea.vmem %s3, %s675
      // Predicated region
      $region33: #{_lambda_.20} parent=31 // pred_check
        %p677 = pneg %p100
      $region34: #{_lambda_.20} parent=31 // pred_check_branch
        %679 = sbr.rel (%p677) target = $region36
      $region35: #{_lambda_.20} parent=31 // pred_region
        _
      $region36: #{_lambda_.20} parent=31 // pred_fallthru
        _
    $region32: #{_lambda_.20} parent=5 // pred_fallthru
      _
    %p680 = scmp.le.s32.totalorder 2, %s9
    // Predicated region
    $region37: #{_lambda_.20} parent=5 // pred_check
      %p681 = pneg %p680
    $region38: #{_lambda_.20} parent=5 // pred_check_branch
      %683 = sbr.rel (%p681) target = $region40
    $region39: #{_lambda_.20} parent=5 // pred_region
      %s684 = ssub.s32 %s9, 2
      // Predicated region
      $region41: #{_lambda_.20} parent=39 // pred_check
        %p685 = pneg %p106
      $region42: #{_lambda_.20} parent=39 // pred_check_branch
        %687 = sbr.rel (%p685) target = $region44
      $region43: #{_lambda_.20} parent=39 // pred_region
        %p688 = scmp.lt.s32.totalorder %s15, 1
        %s689 = scalar_select %p688, %s15, 1
        %s690 = smul.addr %s689, 32
        %s691 = smul.addr %s690, 8
        %s692 = scalar_lea.vmem %s3, %s691
      $region44: #{_lambda_.20} parent=39 // pred_fallthru
        _
    $region40: #{_lambda_.20} parent=5 // pred_fallthru
      _
  $region6: #{_lambda_.20} parent=0 // loop_footer
    %s13 = sadd.s32 1, %s9
  $region7: #{_lambda_.20} parent=0 // loop_footer_branch
    %8 = sbr.rel target = $region3
  $region8: #{_lambda_.20} parent=0 // loop_exit
    _

// kernel: _lambda_.21
$region0: #{_lambda_.21}
  #allocation0 [shape = 'u32[]', space=smem, size = 0x4, offset = 0x4, fixed_abs, tag = 'smem constant byte address 0x4 - core index']
  #allocation1 [shape = 'u32[144,128]{1,0:T(1,128)}', space=vmem, size = 0x12000, scoped, tag = 'internal scratch']
  %s0 = inlined_call_operand.vmem [shape: bf16[16,288], index: 0, kind: input, shape index: {}]
  %s1 = inlined_call_operand.vmem [shape: f32[16,1], index: 1, kind: input, shape index: {}]
  %s2 = inlined_call_operand.vmem [shape: f32[16,1], index: 2, kind: input, shape index: {}]
  %s3 = inlined_call_operand.vmem [shape: bf16[2,288,256], index: 3, kind: input, shape index: {}]
  %s4 = inlined_call_operand.vmem [shape: f32[2,16,256], index: 4, kind: output, shape index: {}]
  %s5 = sld [smem:[#allocation0]]
  $region49: #{_lambda_.21} parent=0
    _
  %s7 = ssub.s32 1, %s5
  %s8 = scalar_select 0, %s7, %s5
  loop: start=0, step=1, limit=4
  $region2: #{_lambda_.21} parent=0 // loop_pre_header
    _
  $region3: #{_lambda_.21} parent=0 // loop_header
    %s10 = sphi 0, %s14
    %p11 = scmp.ge.s32.totalorder %s10, 4
    %s17 = sphi 0, %s29
    %s18 = sphi 0, %s25
    %s19 = sphi 0, %s17
    %s20 = sphi 0, %s18
    %s21 = sphi 0, %s19
    %s22 = sphi 0, %s20
    %s30 = sphi 0, %s30
    %s32 = sphi 0, %s30
    %s33 = sphi 0, %s32
    %s47 = sphi 0, %s33
    %s51 = sphi 0, %s51
    %s53 = sphi 0, %s51
    %s54 = sphi 0, %s53
    %s68 = sphi 0, %s54
    %s72 = sphi 0, %s72
    %s74 = sphi 0, %s72
    %s75 = sphi 0, %s74
    %s89 = sphi 0, %s75
    %s97 = sphi 0, %s99
    %s100 = sphi 0, %s97
    %s101 = sphi 0, %s100
    %s117 = sphi 0, %s101
    %s125 = sphi 0, %s127
    %s128 = sphi 0, %s125
    %s129 = sphi 0, %s128
    %s145 = sphi 0, %s129
  $region4: #{_lambda_.21} parent=0 // loop_header_branch
    %13 = sbr.rel (%p11) target = $region8
  $region5: #{_lambda_.21} parent=0 // loop_body
    %s15 = ssub.s32 %s10, 1
    %s16 = ssub.s32 %s10, 2
    %s23 = sadd.s32 1, %s18
    %p24 = scmp.ge.s32.totalorder %s23, 1
    %s25 = scalar_select %p24, 0, %s23
    %s26 = sadd.s32 1, %s17
    %s27 = scalar_select %p24, %s26, %s17
    %p28 = scmp.ge.s32.totalorder %s27, 2
    %s29 = scalar_select %p28, 0, %s27
    %s31 = sadd.s32 %s30, 1
    %p34 = scmp.eq.s32.totalorder %s10, 1
    %p35 = scmp.ne.s32.totalorder %s30, %s32
    %p36 = scmp.eq.s32.totalorder %s10, 0
    %p37 = por %p35, %p36
    %p38 = scmp.ne.s32.totalorder %s30, %s32
    %p39 = scmp.eq.s32.totalorder %s15, 1
    %p40 = por %p38, %p39
    %p41 = scmp.ne.s32.totalorder %s32, %s33
    %p42 = scmp.eq.s32.totalorder %s15, 0
    %p43 = por %p41, %p42
    %p44 = scmp.ne.s32.totalorder %s32, %s33
    %p45 = scmp.eq.s32.totalorder %s16, 1
    %p46 = por %p44, %p45
    %p48 = scmp.ne.s32.totalorder %s33, %s47
    %p49 = scmp.eq.s32.totalorder %s16, 0
    %p50 = por %p48, %p49
    %s52 = sadd.s32 %s51, 1
    %p55 = scmp.eq.s32.totalorder %s10, 1
    %p56 = scmp.ne.s32.totalorder %s51, %s53
    %p57 = scmp.eq.s32.totalorder %s10, 0
    %p58 = por %p56, %p57
    %p59 = scmp.ne.s32.totalorder %s51, %s53
    %p60 = scmp.eq.s32.totalorder %s15, 1
    %p61 = por %p59, %p60
    %p62 = scmp.ne.s32.totalorder %s53, %s54
    %p63 = scmp.eq.s32.totalorder %s15, 0
    %p64 = por %p62, %p63
    %p65 = scmp.ne.s32.totalorder %s53, %s54
    %p66 = scmp.eq.s32.totalorder %s16, 1
    %p67 = por %p65, %p66
    %p69 = scmp.ne.s32.totalorder %s54, %s68
    %p70 = scmp.eq.s32.totalorder %s16, 0
    %p71 = por %p69, %p70
    %s73 = sadd.s32 %s72, 1
    %p76 = scmp.eq.s32.totalorder %s10, 1
    %p77 = scmp.ne.s32.totalorder %s72, %s74
    %p78 = scmp.eq.s32.totalorder %s10, 0
    %p79 = por %p77, %p78
    %p80 = scmp.ne.s32.totalorder %s72, %s74
    %p81 = scmp.eq.s32.totalorder %s15, 1
    %p82 = por %p80, %p81
    %p83 = scmp.ne.s32.totalorder %s74, %s75
    %p84 = scmp.eq.s32.totalorder %s15, 0
    %p85 = por %p83, %p84
    %p86 = scmp.ne.s32.totalorder %s74, %s75
    %p87 = scmp.eq.s32.totalorder %s16, 1
    %p88 = por %p86, %p87
    %p90 = scmp.ne.s32.totalorder %s75, %s89
    %p91 = scmp.eq.s32.totalorder %s16, 0
    %p92 = por %p90, %p91
    %s93 = ssub.s32 %s17, %s29
    %s94 = ssub.s32 %s18, %s25
    %s95 = sor.u32 %s93, %s94
    %p96 = scmp.eq.s32.totalorder %s95, 0
    %s98 = sadd.s32 %s97, 1
    %s99 = scalar_select %p96, %s97, %s98
    %p102 = pneg %p96
    %p103 = scmp.eq.s32.totalorder %s10, 1
    %p104 = por %p102, %p103
    %p105 = scmp.ne.s32.totalorder %s97, %s100
    %p106 = scmp.eq.s32.totalorder %s10, 0
    %p107 = por %p105, %p106
    %p108 = scmp.ne.s32.totalorder %s97, %s100
    %p109 = scmp.eq.s32.totalorder %s15, 1
    %p110 = por %p108, %p109
    %p111 = scmp.ne.s32.totalorder %s100, %s101
    %p112 = scmp.eq.s32.totalorder %s15, 0
    %p113 = por %p111, %p112
    %p114 = scmp.ne.s32.totalorder %s100, %s101
    %p115 = scmp.eq.s32.totalorder %s16, 1
    %p116 = por %p114, %p115
    %p118 = scmp.ne.s32.totalorder %s101, %s117
    %p119 = scmp.eq.s32.totalorder %s16, 0
    %p120 = por %p118, %p119
    %s121 = ssub.s32 %s17, %s29
    %s122 = ssub.s32 %s18, %s25
    %s123 = sor.u32 %s121, %s122
    %p124 = scmp.eq.s32.totalorder %s123, 0
    %s126 = sadd.s32 %s125, 1
    %s127 = scalar_select %p124, %s125, %s126
    %p130 = pneg %p124
    %p131 = scmp.eq.s32.totalorder %s10, 1
    %p132 = por %p130, %p131
    %p133 = scmp.ne.s32.totalorder %s125, %s128
    %p134 = scmp.eq.s32.totalorder %s10, 0
    %p135 = por %p133, %p134
    %p136 = scmp.ne.s32.totalorder %s125, %s128
    %p137 = scmp.eq.s32.totalorder %s15, 1
    %p138 = por %p136, %p137
    %p139 = scmp.ne.s32.totalorder %s128, %s129
    %p140 = scmp.eq.s32.totalorder %s15, 0
    %p141 = por %p139, %p140
    %p142 = scmp.ne.s32.totalorder %s128, %s129
    %p143 = scmp.eq.s32.totalorder %s16, 1
    %p144 = por %p142, %p143
    %p146 = scmp.ne.s32.totalorder %s129, %s145
    %p147 = scmp.eq.s32.totalorder %s16, 0
    %p148 = por %p146, %p147
    %p149 = scmp.le.s32.totalorder 1, %s10
    %p150 = scmp.lt.s32.totalorder %s10, 3
    %p151 = pnand %p149, %p150
    %p152 = pneg %p151
    // Predicated region
    $region9: #{_lambda_.21} parent=5 // pred_check
      _
    $region10: #{_lambda_.21} parent=5 // pred_check_branch
      %154 = sbr.rel (%p151) target = $region12
    $region11: #{_lambda_.21} parent=5 // pred_region
      %s155 = ssub.s32 %s10, 1
      // Predicated region
      $region13: #{_lambda_.21} parent=11 // pred_check
        %p156 = pneg %p43
      $region14: #{_lambda_.21} parent=11 // pred_check_branch
        %158 = sbr.rel (%p156) target = $region16
      $region15: #{_lambda_.21} parent=11 // pred_region
        _
      $region16: #{_lambda_.21} parent=11 // pred_fallthru
        _
      // Predicated region
      $region17: #{_lambda_.21} parent=11 // pred_check
        %p159 = pneg %p64
      $region18: #{_lambda_.21} parent=11 // pred_check_branch
        %161 = sbr.rel (%p159) target = $region20
      $region19: #{_lambda_.21} parent=11 // pred_region
        _
      $region20: #{_lambda_.21} parent=11 // pred_fallthru
        _
      // Predicated region
      $region21: #{_lambda_.21} parent=11 // pred_check
        %p162 = pneg %p85
      $region22: #{_lambda_.21} parent=11 // pred_check_branch
        %164 = sbr.rel (%p162) target = $region24
      $region23: #{_lambda_.21} parent=11 // pred_region
        _
      $region24: #{_lambda_.21} parent=11 // pred_fallthru
        _
    $region12: #{_lambda_.21} parent=5 // pred_fallthru
      _
    %p165 = scmp.lt.s32.totalorder %s10, 2
    // Predicated region
    $region25: #{_lambda_.21} parent=5 // pred_check
      %p166 = pneg %p165
    $region26: #{_lambda_.21} parent=5 // pred_check_branch
      %168 = sbr.rel (%p166) target = $region28
    $region27: #{_lambda_.21} parent=5 // pred_region
      // Predicated region
      $region29: #{_lambda_.21} parent=27 // pred_check
        %p169 = pneg %p107
      $region30: #{_lambda_.21} parent=27 // pred_check_branch
        %171 = sbr.rel (%p169) target = $region32
      $region31: #{_lambda_.21} parent=27 // pred_region
        %s172 = smul.u32 2, %s18
        %p173 = scmp.lt.s32.totalorder %s17, 1
        %s174 = scalar_select %p173, %s17, 1
        %p175 = scmp.lt.s32.totalorder %s172, 1
        %s176 = scalar_select %p175, %s172, 1
        %s177 = smul.addr %s174, 72
        %s178 = sadd.s32 %s176, %s177
        %s179 = smul.addr %s178, 4
        %s180 = scalar_lea.vmem %s3, %s179
        %s181 = smul.u32 2, %s18
      $region32: #{_lambda_.21} parent=27 // pred_fallthru
        _
    $region28: #{_lambda_.21} parent=5 // pred_fallthru
      _
    %p182 = scmp.le.s32.totalorder 1, %s10
    %p183 = scmp.lt.s32.totalorder %s10, 3
    %p184 = pnand %p182, %p183
    %p185 = pneg %p184
    // Predicated region
    $region33: #{_lambda_.21} parent=5 // pred_check
      _
    $region34: #{_lambda_.21} parent=5 // pred_check_branch
      %187 = sbr.rel (%p184) target = $region36
    $region35: #{_lambda_.21} parent=5 // pred_region
      %s188 = ssub.s32 %s10, 1
      %p189 = pneg %p43
      %p190 = pneg %p40
      %p191 = pneg %p64
      %p192 = pneg %p61
      %p193 = pneg %p85
      %p194 = pneg %p82
      %s195 = smul.u32 2, %s20
      %p196 = scmp.lt.s32.totalorder %s19, 1
      %s197 = scalar_select %p196, %s19, 1
      %p198 = scmp.lt.s32.totalorder %s195, 1
      %s199 = scalar_select %p198, %s195, 1
      %s200 = smul.addr %s197, 72
      %s201 = sadd.s32 %s199, %s200
      %s202 = smul.addr %s201, 4
      %s203 = scalar_lea.vmem %s3, %s202
      %p204 = pneg %p113
      %p205 = pneg %p110
      %p206 = pneg %p141
      %p207 = pneg %p138
      %s208 = smul.u32 2, %s20
      %p209 = scmp.lt.s32.totalorder %s19, 1
      %s210 = scalar_select %p209, %s19, 1
      %p211 = scmp.lt.s32.totalorder %s208, 1
      %s212 = scalar_select %p211, %s208, 1
      %s213 = smul.addr %s210, 4
      %s214 = sadd.s32 %s212, %s213
      %s215 = smul.addr %s214, 8
      %s216 = scalar_lea.vmem %s4, %s215
      %s217 = smul.u32 2, %s20
      %p218 = scmp.lt.s32.totalorder %s19, 1
      %s219 = scalar_select %p218, %s19, 1
      %p220 = scmp.lt.s32.totalorder %s217, 1
      %s221 = scalar_select %p220, %s217, 1
      %s222 = smul.addr %s219, 72
      %s223 = sadd.s32 %s221, %s222
      %s224 = smul.addr %s223, 4
      %s225 = scalar_lea.vmem %s3, %s224
      %s226 = smul.u32 2, %s20
      %s227 = smul.u32 2, %s20
      %p228 = scmp.lt.s32.totalorder %s19, 1
      %s229 = scalar_select %p228, %s19, 1
      %p230 = scmp.lt.s32.totalorder %s227, 1
      %s231 = scalar_select %p230, %s227, 1
      %s232 = smul.addr %s229, 4
      %s233 = sadd.s32 %s231, %s232
      %s234 = smul.addr %s233, 8
      %s235 = scalar_lea.vmem %s4, %s234
      %s236 = smul.u32 2, %s20
      %v238 = vld [vmem:[%s0] sm:$0xff]
      %v239 = vld [vmem:[%s0 + $0x8] sm:$0xf]
      %v240 = vld [vmem:[%s0 + $0xc] sm:$0xff]
      %v241 = vld [vmem:[%s0 + $0x14] sm:$0xf]
      %v242 = vld [vmem:[%s225] sm:$0xff]
      %v243 = vld [vmem:[%s225 + $0x8] sm:$0xff]
      %v244 = vld [vmem:[%s225 + $0x10] sm:$0xff]
      %v245 = vld [vmem:[%s225 + $0x18] sm:$0xff]
      %v246 = vld [vmem:[%s225 + $0x20] sm:$0xff]
      %v247 = vld [vmem:[%s225 + $0x28] sm:$0xff]
      %v248 = vld [vmem:[%s225 + $0x30] sm:$0xff]
      %v249 = vld [vmem:[%s225 + $0x38] sm:$0xff]
      %v250 = vld [vmem:[%s225 + $0x40] sm:$0xff]
      %v251 = vld [vmem:[%s225 + $0x48] sm:$0xff]
      %v252 = vld [vmem:[%s225 + $0x50] sm:$0xff]
      %v253 = vld [vmem:[%s225 + $0x58] sm:$0xff]
      %v254 = vld [vmem:[%s225 + $0x60] sm:$0xff]
      %v255 = vld [vmem:[%s225 + $0x68] sm:$0xff]
      %v256 = vld [vmem:[%s225 + $0x70] sm:$0xff]
      %v257 = vld [vmem:[%s225 + $0x78] sm:$0xff]
      %v258 = vld [vmem:[%s225 + $0x80] sm:$0xff]
      %v259 = vld [vmem:[%s225 + $0x88] sm:$0xff]
      %v260 = vld [vmem:[%s225 + $0x90] sm:$0xff]
      %v261 = vld [vmem:[%s225 + $0x98] sm:$0xff]
      %v262 = vld [vmem:[%s225 + $0xa0] sm:$0xff]
      %v263 = vld [vmem:[%s225 + $0xa8] sm:$0xff]
      %v264 = vld [vmem:[%s225 + $0xb0] sm:$0xff]
      %v265 = vld [vmem:[%s225 + $0xb8] sm:$0xff]
      %v266 = vld [vmem:[%s225 + $0xc0] sm:$0xff]
      %v267 = vld [vmem:[%s225 + $0xc8] sm:$0xff]
      %v268 = vld [vmem:[%s225 + $0xd0] sm:$0xff]
      %v269 = vld [vmem:[%s225 + $0xd8] sm:$0xff]
      %v270 = vld [vmem:[%s225 + $0xe0] sm:$0xff]
      %v271 = vld [vmem:[%s225 + $0xe8] sm:$0xff]
      %v272 = vld [vmem:[%s225 + $0xf0] sm:$0xff]
      %v273 = vld [vmem:[%s225 + $0xf8] sm:$0xff]
      %v274 = vld [vmem:[%s225 + $0x100] sm:$0xff]
      %v275 = vld [vmem:[%s225 + $0x108] sm:$0xff]
      %v276 = vld [vmem:[%s225 + $0x110] sm:$0xff]
      %v277 = vld [vmem:[%s225 + $0x118] sm:$0xff]
      %v282 = vunpack.c.l.b16 %v238
      %v283 = vunpack.c.h.b16 %v238
      %v284 = vunpack.c.l.b16 %v239
      %v285 = vunpack.c.l.b16 %v240
      %v286 = vunpack.c.h.b16 %v240
      %v287 = vunpack.c.l.b16 %v241
      %v288 = vpack.c.b16 %v285, %v282
      %v289 = vpack.c.b16 %v286, %v283
      %v290 = vpack.c.b16 %v287, %v284
      %v329 = vunpack.c.l.b16 %v242
      %v330 = vunpack.c.h.b16 %v242
      %v331 = vunpack.c.l.b16 %v243
      %v332 = vunpack.c.h.b16 %v243
      %v333 = vunpack.c.l.b16 %v244
      %v334 = vunpack.c.h.b16 %v244
      %v335 = vunpack.c.l.b16 %v245
      %v336 = vunpack.c.h.b16 %v245
      %v337 = vunpack.c.l.b16 %v246
      %v338 = vunpack.c.h.b16 %v246
      %v339 = vunpack.c.l.b16 %v247
      %v340 = vunpack.c.h.b16 %v247
      %v341 = vunpack.c.l.b16 %v248
      %v342 = vunpack.c.h.b16 %v248
      %v343 = vunpack.c.l.b16 %v249
      %v344 = vunpack.c.h.b16 %v249
      %v345 = vunpack.c.l.b16 %v250
      %v346 = vunpack.c.h.b16 %v250
      %v347 = vunpack.c.l.b16 %v251
      %v348 = vunpack.c.h.b16 %v251
      %v349 = vunpack.c.l.b16 %v252
      %v350 = vunpack.c.h.b16 %v252
      %v351 = vunpack.c.l.b16 %v253
      %v352 = vunpack.c.h.b16 %v253
      %v353 = vunpack.c.l.b16 %v254
      %v354 = vunpack.c.h.b16 %v254
      %v355 = vunpack.c.l.b16 %v255
      %v356 = vunpack.c.h.b16 %v255
      %v357 = vunpack.c.l.b16 %v256
      %v358 = vunpack.c.h.b16 %v256
      %v359 = vunpack.c.l.b16 %v257
      %v360 = vunpack.c.h.b16 %v257
      %v361 = vunpack.c.l.b16 %v258
      %v362 = vunpack.c.h.b16 %v258
      %v363 = vunpack.c.l.b16 %v259
      %v364 = vunpack.c.h.b16 %v259
      %v365 = vunpack.c.l.b16 %v260
      %v366 = vunpack.c.h.b16 %v260
      %v367 = vunpack.c.l.b16 %v261
      %v368 = vunpack.c.h.b16 %v261
      %v369 = vunpack.c.l.b16 %v262
      %v370 = vunpack.c.h.b16 %v262
      %v371 = vunpack.c.l.b16 %v263
      %v372 = vunpack.c.h.b16 %v263
      %v373 = vunpack.c.l.b16 %v264
      %v374 = vunpack.c.h.b16 %v264
      %v375 = vunpack.c.l.b16 %v265
      %v376 = vunpack.c.h.b16 %v265
      %v377 = vunpack.c.l.b16 %v266
      %v378 = vunpack.c.h.b16 %v266
      %v379 = vunpack.c.l.b16 %v267
      %v380 = vunpack.c.h.b16 %v267
      %v381 = vunpack.c.l.b16 %v268
      %v382 = vunpack.c.h.b16 %v268
      %v383 = vunpack.c.l.b16 %v269
      %v384 = vunpack.c.h.b16 %v269
      %v385 = vunpack.c.l.b16 %v270
      %v386 = vunpack.c.h.b16 %v270
      %v387 = vunpack.c.l.b16 %v271
      %v388 = vunpack.c.h.b16 %v271
      %v389 = vunpack.c.l.b16 %v272
      %v390 = vunpack.c.h.b16 %v272
      %v391 = vunpack.c.l.b16 %v273
      %v392 = vunpack.c.h.b16 %v273
      %v393 = vunpack.c.l.b16 %v274
      %v394 = vunpack.c.h.b16 %v274
      %v395 = vunpack.c.l.b16 %v275
      %v396 = vunpack.c.h.b16 %v275
      %v397 = vunpack.c.l.b16 %v276
      %v398 = vunpack.c.h.b16 %v276
      %v399 = vunpack.c.l.b16 %v277
      %v400 = vunpack.c.h.b16 %v277
      %v401 = vpack.c.b16 %v331, %v329
      %v402 = vpack.c.b16 %v332, %v330
      %v403 = vpack.c.b16 %v335, %v333
      %v404 = vpack.c.b16 %v336, %v334
      %v405 = vpack.c.b16 %v339, %v337
      %v406 = vpack.c.b16 %v340, %v338
      %v407 = vpack.c.b16 %v343, %v341
      %v408 = vpack.c.b16 %v344, %v342
      %v409 = vpack.c.b16 %v347, %v345
      %v410 = vpack.c.b16 %v348, %v346
      %v411 = vpack.c.b16 %v351, %v349
      %v412 = vpack.c.b16 %v352, %v350
      %v413 = vpack.c.b16 %v355, %v353
      %v414 = vpack.c.b16 %v356, %v354
      %v415 = vpack.c.b16 %v359, %v357
      %v416 = vpack.c.b16 %v360, %v358
      %v417 = vpack.c.b16 %v363, %v361
      %v418 = vpack.c.b16 %v364, %v362
      %v419 = vpack.c.b16 %v367, %v365
      %v420 = vpack.c.b16 %v368, %v366
      %v421 = vpack.c.b16 %v371, %v369
      %v422 = vpack.c.b16 %v372, %v370
      %v423 = vpack.c.b16 %v375, %v373
      %v424 = vpack.c.b16 %v376, %v374
      %v425 = vpack.c.b16 %v379, %v377
      %v426 = vpack.c.b16 %v380, %v378
      %v427 = vpack.c.b16 %v383, %v381
      %v428 = vpack.c.b16 %v384, %v382
      %v429 = vpack.c.b16 %v387, %v385
      %v430 = vpack.c.b16 %v388, %v386
      %v431 = vpack.c.b16 %v391, %v389
      %v432 = vpack.c.b16 %v392, %v390
      %v433 = vpack.c.b16 %v395, %v393
      %v434 = vpack.c.b16 %v396, %v394
      %v435 = vpack.c.b16 %v399, %v397
      %v436 = vpack.c.b16 %v400, %v398
      %vm473 = vcmask 261120
      %v475 = vsel %vm473, %v290, 0
      %477 = vmatprep.subr.bf16.mxu0 %v402
      %478 = vmatpush1.bf16.msra.mxu0 %v401
      %479 = vmatprep.subr.bf16.mxu0 %v404
      %480 = vmatpush1.bf16.msra.mxu0 %v403
      %481 = vmatprep.subr.bf16.mxu0 %v406
      %482 = vmatpush1.bf16.msra.mxu0 %v405
      %483 = vmatprep.subr.bf16.mxu0 %v408
      %484 = vmatpush1.bf16.msra.mxu0 %v407
      %485 = vmatprep.subr.bf16.mxu0 %v410
      %486 = vmatpush1.bf16.msra.mxu0 %v409
      %487 = vmatprep.subr.bf16.mxu0 %v412
      %488 = vmatpush1.bf16.msra.mxu0 %v411
      %489 = vmatprep.subr.bf16.mxu0 %v414
      %490 = vmatpush1.bf16.msra.mxu0 %v413
      %491 = vmatprep.subr.bf16.mxu0 %v416
      %492 = vmatpush1.bf16.msra.mxu0 %v415
      %493 = vmatprep.subr.bf16.mxu0 %v418
      %494 = vmatpush1.bf16.msra.mxu0 %v417
      %495 = vmatprep.subr.bf16.mxu0 %v420
      %496 = vmatpush1.bf16.msra.mxu0 %v419
      %497 = vmatprep.subr.bf16.mxu0 %v422
      %498 = vmatpush1.bf16.msra.mxu0 %v421
      %499 = vmatprep.subr.bf16.mxu0 %v424
      %500 = vmatpush1.bf16.msra.mxu0 %v423
      %501 = vmatprep.subr.bf16.mxu0 %v426
      %502 = vmatpush1.bf16.msra.mxu0 %v425
      %503 = vmatprep.subr.bf16.mxu0 %v428
      %504 = vmatpush1.bf16.msra.mxu0 %v427
      %505 = vmatprep.subr.bf16.mxu0 %v430
      %506 = vmatpush1.bf16.msra.mxu0 %v429
      %507 = vmatprep.subr.bf16.mxu0 %v432
      %508 = vmatpush1.bf16.msra.mxu0 %v431
      %509 = vmatprep.mubr.bf16.mxu0 %v289
      %510 = vmatmul.mubr.bf16.gmra.mrb[0].mxu0 %v288
      %v511 = vpop.f32.mrb[0].mxu0
      %v512 = vadd.f32 0.0, %v511
      %v513 = vpop.f32.mrb[0].mxu0
      %v514 = vadd.f32 0.0, %v513
      %v515 = vpop.f32.mrb[0].mxu0
      %v516 = vadd.f32 0.0, %v515
      %v517 = vpop.f32.mrb[0].mxu0
      %v518 = vadd.f32 0.0, %v517
      %519 = vdwg.mxu0
      %520 = vmatprep.subr.bf16.mxu0 %v434
      %521 = vmatpush1.bf16.msra.mxu0 %v433
      %522 = vmatprep.subr.bf16.mxu0 %v436
      %523 = vmatpush1.bf16.msra.mxu0 %v435
      %524 = vmatprep.subr.bf16.mxu0 0
      %525 = vmatpush1.bf16.msra.mxu0 0
      %526 = vmatprep.subr.bf16.mxu0 0
      %527 = vmatpush1.bf16.msra.mxu0 0
      %528 = vmatprep.subr.bf16.mxu0 0
      %529 = vmatpush1.bf16.msra.mxu0 0
      %530 = vmatprep.subr.bf16.mxu0 0
      %531 = vmatpush1.bf16.msra.mxu0 0
      %532 = vmatprep.subr.bf16.mxu0 0
      %533 = vmatpush1.bf16.msra.mxu0 0
      %534 = vmatprep.subr.bf16.mxu0 0
      %535 = vmatpush1.bf16.msra.mxu0 0
      %536 = vmatprep.subr.bf16.mxu0 0
      %537 = vmatpush1.bf16.msra.mxu0 0
      %538 = vmatprep.subr.bf16.mxu0 0
      %539 = vmatpush1.bf16.msra.mxu0 0
      %540 = vmatprep.subr.bf16.mxu0 0
      %541 = vmatpush1.bf16.msra.mxu0 0
      %542 = vmatprep.subr.bf16.mxu0 0
      %543 = vmatpush1.bf16.msra.mxu0 0
      %544 = vmatprep.subr.bf16.mxu0 0
      %545 = vmatpush1.bf16.msra.mxu0 0
      %546 = vmatprep.subr.bf16.mxu0 0
      %547 = vmatpush1.bf16.msra.mxu0 0
      %548 = vmatprep.subr.bf16.mxu0 0
      %549 = vmatpush1.bf16.msra.mxu0 0
      %550 = vmatprep.subr.bf16.mxu0 0
      %551 = vmatpush1.bf16.msra.mxu0 0
      %552 = vmatprep.mubr.bf16.mxu0 0
      %553 = vmatmul.mubr.bf16.gmra.mrb[0].mxu0 %v475
      %v554 = vpop.f32.mrb[0].mxu0
      %v555 = vadd.f32 %v512, %v554
      %v556 = vpop.f32.mrb[0].mxu0
      %v557 = vadd.f32 %v514, %v556
      %v558 = vpop.f32.mrb[0].mxu0
      %v559 = vadd.f32 %v516, %v558
      %v560 = vpop.f32.mrb[0].mxu0
      %v561 = vadd.f32 %v518, %v560
      %562 = vdwg.mxu0
      %v563 = vld [vmem:[%s1] sm:$0xff]
      %v564 = vld [vmem:[%s1 + $0x8] sm:$0xff]
      %566 = vset.pattern.permute.xlu0 0
      %567 = vperm.xlu0 %566, %v563
      %v568 = vpop.permute.xlu0 %567
      %571 = vset.pattern.permute.xlu0 0
      %572 = vperm.xlu0 %571, %v564
      %v573 = vpop.permute.xlu0 %572
      %v575 = vmul.f32 %v555, %v568
      %v576 = vmul.f32 %v557, %v568
      %v577 = vmul.f32 %v559, %v573
      %v578 = vmul.f32 %v561, %v573
      %v579 = vld [vmem:[%s2] sm:$0xff]
      %v580 = vld [vmem:[%s2 + $0x8] sm:$0xff]
      %582 = vset.pattern.permute.xlu0 0
      %583 = vperm.xlu0 %582, %v579
      %v584 = vpop.permute.xlu0 %583
      %587 = vset.pattern.permute.xlu0 0
      %588 = vperm.xlu0 %587, %v580
      %v589 = vpop.permute.xlu0 %588
      %v591 = vadd.f32 %v575, %v584
      %v592 = vadd.f32 %v576, %v584
      %v593 = vadd.f32 %v577, %v589
      %v594 = vadd.f32 %v578, %v589
      %vm595 = vcmp.gt.f32.partialorder %v591, 0.0
      %vm596 = vcmp.gt.f32.partialorder %v592, 0.0
      %vm597 = vcmp.gt.f32.partialorder %v593, 0.0
      %vm598 = vcmp.gt.f32.partialorder %v594, 0.0
      %v599 = vmul.f32 %v591, 0.1
      %v600 = vmul.f32 %v592, 0.1
      %v601 = vmul.f32 %v593, 0.1
      %v602 = vmul.f32 %v594, 0.1
      %v603 = vsel %vm595, %v591, %v599
      %v604 = vsel %vm596, %v592, %v600
      %v605 = vsel %vm597, %v593, %v601
      %v606 = vsel %vm598, %v594, %v602
      %607 = vst [vmem:[%s235] sm:$0xff] %v603
      %608 = vst [vmem:[%s235 + $0x8] sm:$0xff] %v604
      %609 = vst [vmem:[%s235 + $0x10] sm:$0xff] %v605
      %610 = vst [vmem:[%s235 + $0x18] sm:$0xff] %v606
      %s611 = smul.u32 2, %s20
      %p612 = scmp.lt.s32.totalorder %s19, 1
      %s613 = scalar_select %p612, %s19, 1
      %p614 = scmp.lt.s32.totalorder %s611, 1
      %s615 = scalar_select %p614, %s611, 1
      %s616 = smul.addr %s613, 4
      %s617 = sadd.s32 %s615, %s616
      %s618 = smul.addr %s617, 8
      %s619 = scalar_lea.vmem %s4, %s618
      // Predicated region
      $region37: #{_lambda_.21} parent=35 // pred_check
        %p620 = pneg %p138
      $region38: #{_lambda_.21} parent=35 // pred_check_branch
        %622 = sbr.rel (%p620) target = $region40
      $region39: #{_lambda_.21} parent=35 // pred_region
        %s623 = smul.u32 2, %s20
      $region40: #{_lambda_.21} parent=35 // pred_fallthru
        _
    $region36: #{_lambda_.21} parent=5 // pred_fallthru
      _
    %p624 = scmp.le.s32.totalorder 2, %s10
    // Predicated region
    $region41: #{_lambda_.21} parent=5 // pred_check
      %p625 = pneg %p624
    $region42: #{_lambda_.21} parent=5 // pred_check_branch
      %627 = sbr.rel (%p625) target = $region44
    $region43: #{_lambda_.21} parent=5 // pred_region
      %s628 = ssub.s32 %s10, 2
      // Predicated region
      $region45: #{_lambda_.21} parent=43 // pred_check
        %p629 = pneg %p144
      $region46: #{_lambda_.21} parent=43 // pred_check_branch
        %631 = sbr.rel (%p629) target = $region48
      $region47: #{_lambda_.21} parent=43 // pred_region
        %s632 = smul.u32 2, %s22
        %p633 = scmp.lt.s32.totalorder %s21, 1
        %s634 = scalar_select %p633, %s21, 1
        %p635 = scmp.lt.s32.totalorder %s632, 1
        %s636 = scalar_select %p635, %s632, 1
        %s637 = smul.addr %s634, 4
        %s638 = sadd.s32 %s636, %s637
        %s639 = smul.addr %s638, 8
        %s640 = scalar_lea.vmem %s4, %s639
      $region48: #{_lambda_.21} parent=43 // pred_fallthru
        _
    $region44: #{_lambda_.21} parent=5 // pred_fallthru
      _
  $region6: #{_lambda_.21} parent=0 // loop_footer
    %s14 = sadd.s32 1, %s10
  $region7: #{_lambda_.21} parent=0 // loop_footer_branch
    %9 = sbr.rel target = $region3
  $region8: #{_lambda_.21} parent=0 // loop_exit
    _

// kernel: _lambda_.22
$region0: #{_lambda_.22}
  #allocation0 [shape = 'u32[]', space=smem, size = 0x4, offset = 0x4, fixed_abs, tag = 'smem constant byte address 0x4 - core index']
  #allocation1 [shape = 'u32[144,128]{1,0:T(1,128)}', space=vmem, size = 0x12000, scoped, tag = 'internal scratch']
  %s0 = inlined_call_operand.vmem [shape: bf16[21,16], index: 0, kind: input, shape index: {}]
  %s1 = inlined_call_operand.vmem [shape: f32[21,1], index: 1, kind: input, shape index: {}]
  %s2 = inlined_call_operand.vmem [shape: f32[21,1], index: 2, kind: input, shape index: {}]
  %s3 = inlined_call_operand.vmem [shape: bf16[2,16,256], index: 3, kind: input, shape index: {}]
  %s4 = inlined_call_operand.vmem [shape: f32[2,21,256], index: 4, kind: output, shape index: {}]
  %s5 = sld [smem:[#allocation0]]
  $region49: #{_lambda_.22} parent=0
    _
  %s7 = ssub.s32 1, %s5
  %s8 = scalar_select 0, %s7, %s5
  loop: start=0, step=1, limit=4
  $region2: #{_lambda_.22} parent=0 // loop_pre_header
    _
  $region3: #{_lambda_.22} parent=0 // loop_header
    %s10 = sphi 0, %s14
    %p11 = scmp.ge.s32.totalorder %s10, 4
    %s17 = sphi 0, %s29
    %s18 = sphi 0, %s25
    %s19 = sphi 0, %s17
    %s20 = sphi 0, %s18
    %s21 = sphi 0, %s19
    %s22 = sphi 0, %s20
    %s30 = sphi 0, %s30
    %s32 = sphi 0, %s30
    %s33 = sphi 0, %s32
    %s47 = sphi 0, %s33
    %s51 = sphi 0, %s51
    %s53 = sphi 0, %s51
    %s54 = sphi 0, %s53
    %s68 = sphi 0, %s54
    %s72 = sphi 0, %s72
    %s74 = sphi 0, %s72
    %s75 = sphi 0, %s74
    %s89 = sphi 0, %s75
    %s97 = sphi 0, %s99
    %s100 = sphi 0, %s97
    %s101 = sphi 0, %s100
    %s117 = sphi 0, %s101
    %s125 = sphi 0, %s127
    %s128 = sphi 0, %s125
    %s129 = sphi 0, %s128
    %s145 = sphi 0, %s129
  $region4: #{_lambda_.22} parent=0 // loop_header_branch
    %13 = sbr.rel (%p11) target = $region8
  $region5: #{_lambda_.22} parent=0 // loop_body
    %s15 = ssub.s32 %s10, 1
    %s16 = ssub.s32 %s10, 2
    %s23 = sadd.s32 1, %s18
    %p24 = scmp.ge.s32.totalorder %s23, 1
    %s25 = scalar_select %p24, 0, %s23
    %s26 = sadd.s32 1, %s17
    %s27 = scalar_select %p24, %s26, %s17
    %p28 = scmp.ge.s32.totalorder %s27, 2
    %s29 = scalar_select %p28, 0, %s27
    %s31 = sadd.s32 %s30, 1
    %p34 = scmp.eq.s32.totalorder %s10, 1
    %p35 = scmp.ne.s32.totalorder %s30, %s32
    %p36 = scmp.eq.s32.totalorder %s10, 0
    %p37 = por %p35, %p36
    %p38 = scmp.ne.s32.totalorder %s30, %s32
    %p39 = scmp.eq.s32.totalorder %s15, 1
    %p40 = por %p38, %p39
    %p41 = scmp.ne.s32.totalorder %s32, %s33
    %p42 = scmp.eq.s32.totalorder %s15, 0
    %p43 = por %p41, %p42
    %p44 = scmp.ne.s32.totalorder %s32, %s33
    %p45 = scmp.eq.s32.totalorder %s16, 1
    %p46 = por %p44, %p45
    %p48 = scmp.ne.s32.totalorder %s33, %s47
    %p49 = scmp.eq.s32.totalorder %s16, 0
    %p50 = por %p48, %p49
    %s52 = sadd.s32 %s51, 1
    %p55 = scmp.eq.s32.totalorder %s10, 1
    %p56 = scmp.ne.s32.totalorder %s51, %s53
    %p57 = scmp.eq.s32.totalorder %s10, 0
    %p58 = por %p56, %p57
    %p59 = scmp.ne.s32.totalorder %s51, %s53
    %p60 = scmp.eq.s32.totalorder %s15, 1
    %p61 = por %p59, %p60
    %p62 = scmp.ne.s32.totalorder %s53, %s54
    %p63 = scmp.eq.s32.totalorder %s15, 0
    %p64 = por %p62, %p63
    %p65 = scmp.ne.s32.totalorder %s53, %s54
    %p66 = scmp.eq.s32.totalorder %s16, 1
    %p67 = por %p65, %p66
    %p69 = scmp.ne.s32.totalorder %s54, %s68
    %p70 = scmp.eq.s32.totalorder %s16, 0
    %p71 = por %p69, %p70
    %s73 = sadd.s32 %s72, 1
    %p76 = scmp.eq.s32.totalorder %s10, 1
    %p77 = scmp.ne.s32.totalorder %s72, %s74
    %p78 = scmp.eq.s32.totalorder %s10, 0
    %p79 = por %p77, %p78
    %p80 = scmp.ne.s32.totalorder %s72, %s74
    %p81 = scmp.eq.s32.totalorder %s15, 1
    %p82 = por %p80, %p81
    %p83 = scmp.ne.s32.totalorder %s74, %s75
    %p84 = scmp.eq.s32.totalorder %s15, 0
    %p85 = por %p83, %p84
    %p86 = scmp.ne.s32.totalorder %s74, %s75
    %p87 = scmp.eq.s32.totalorder %s16, 1
    %p88 = por %p86, %p87
    %p90 = scmp.ne.s32.totalorder %s75, %s89
    %p91 = scmp.eq.s32.totalorder %s16, 0
    %p92 = por %p90, %p91
    %s93 = ssub.s32 %s17, %s29
    %s94 = ssub.s32 %s18, %s25
    %s95 = sor.u32 %s93, %s94
    %p96 = scmp.eq.s32.totalorder %s95, 0
    %s98 = sadd.s32 %s97, 1
    %s99 = scalar_select %p96, %s97, %s98
    %p102 = pneg %p96
    %p103 = scmp.eq.s32.totalorder %s10, 1
    %p104 = por %p102, %p103
    %p105 = scmp.ne.s32.totalorder %s97, %s100
    %p106 = scmp.eq.s32.totalorder %s10, 0
    %p107 = por %p105, %p106
    %p108 = scmp.ne.s32.totalorder %s97, %s100
    %p109 = scmp.eq.s32.totalorder %s15, 1
    %p110 = por %p108, %p109
    %p111 = scmp.ne.s32.totalorder %s100, %s101
    %p112 = scmp.eq.s32.totalorder %s15, 0
    %p113 = por %p111, %p112
    %p114 = scmp.ne.s32.totalorder %s100, %s101
    %p115 = scmp.eq.s32.totalorder %s16, 1
    %p116 = por %p114, %p115
    %p118 = scmp.ne.s32.totalorder %s101, %s117
    %p119 = scmp.eq.s32.totalorder %s16, 0
    %p120 = por %p118, %p119
    %s121 = ssub.s32 %s17, %s29
    %s122 = ssub.s32 %s18, %s25
    %s123 = sor.u32 %s121, %s122
    %p124 = scmp.eq.s32.totalorder %s123, 0
    %s126 = sadd.s32 %s125, 1
    %s127 = scalar_select %p124, %s125, %s126
    %p130 = pneg %p124
    %p131 = scmp.eq.s32.totalorder %s10, 1
    %p132 = por %p130, %p131
    %p133 = scmp.ne.s32.totalorder %s125, %s128
    %p134 = scmp.eq.s32.totalorder %s10, 0
    %p135 = por %p133, %p134
    %p136 = scmp.ne.s32.totalorder %s125, %s128
    %p137 = scmp.eq.s32.totalorder %s15, 1
    %p138 = por %p136, %p137
    %p139 = scmp.ne.s32.totalorder %s128, %s129
    %p140 = scmp.eq.s32.totalorder %s15, 0
    %p141 = por %p139, %p140
    %p142 = scmp.ne.s32.totalorder %s128, %s129
    %p143 = scmp.eq.s32.totalorder %s16, 1
    %p144 = por %p142, %p143
    %p146 = scmp.ne.s32.totalorder %s129, %s145
    %p147 = scmp.eq.s32.totalorder %s16, 0
    %p148 = por %p146, %p147
    %p149 = scmp.le.s32.totalorder 1, %s10
    %p150 = scmp.lt.s32.totalorder %s10, 3
    %p151 = pnand %p149, %p150
    %p152 = pneg %p151
    // Predicated region
    $region9: #{_lambda_.22} parent=5 // pred_check
      _
    $region10: #{_lambda_.22} parent=5 // pred_check_branch
      %154 = sbr.rel (%p151) target = $region12
    $region11: #{_lambda_.22} parent=5 // pred_region
      %s155 = ssub.s32 %s10, 1
      // Predicated region
      $region13: #{_lambda_.22} parent=11 // pred_check
        %p156 = pneg %p43
      $region14: #{_lambda_.22} parent=11 // pred_check_branch
        %158 = sbr.rel (%p156) target = $region16
      $region15: #{_lambda_.22} parent=11 // pred_region
        _
      $region16: #{_lambda_.22} parent=11 // pred_fallthru
        _
      // Predicated region
      $region17: #{_lambda_.22} parent=11 // pred_check
        %p159 = pneg %p64
      $region18: #{_lambda_.22} parent=11 // pred_check_branch
        %161 = sbr.rel (%p159) target = $region20
      $region19: #{_lambda_.22} parent=11 // pred_region
        _
      $region20: #{_lambda_.22} parent=11 // pred_fallthru
        _
      // Predicated region
      $region21: #{_lambda_.22} parent=11 // pred_check
        %p162 = pneg %p85
      $region22: #{_lambda_.22} parent=11 // pred_check_branch
        %164 = sbr.rel (%p162) target = $region24
      $region23: #{_lambda_.22} parent=11 // pred_region
        _
      $region24: #{_lambda_.22} parent=11 // pred_fallthru
        _
    $region12: #{_lambda_.22} parent=5 // pred_fallthru
      _
    %p165 = scmp.lt.s32.totalorder %s10, 2
    // Predicated region
    $region25: #{_lambda_.22} parent=5 // pred_check
      %p166 = pneg %p165
    $region26: #{_lambda_.22} parent=5 // pred_check_branch
      %168 = sbr.rel (%p166) target = $region28
    $region27: #{_lambda_.22} parent=5 // pred_region
      // Predicated region
      $region29: #{_lambda_.22} parent=27 // pred_check
        %p169 = pneg %p107
      $region30: #{_lambda_.22} parent=27 // pred_check_branch
        %171 = sbr.rel (%p169) target = $region32
      $region31: #{_lambda_.22} parent=27 // pred_region
        %s172 = smul.u32 2, %s18
        %p173 = scmp.lt.s32.totalorder %s17, 1
        %s174 = scalar_select %p173, %s17, 1
        %p175 = scmp.lt.s32.totalorder %s172, 1
        %s176 = scalar_select %p175, %s172, 1
        %s177 = smul.addr %s174, 4
        %s178 = sadd.s32 %s176, %s177
        %s179 = smul.addr %s178, 4
        %s180 = scalar_lea.vmem %s3, %s179
        %s181 = smul.u32 2, %s18
      $region32: #{_lambda_.22} parent=27 // pred_fallthru
        _
    $region28: #{_lambda_.22} parent=5 // pred_fallthru
      _
    %p182 = scmp.le.s32.totalorder 1, %s10
    %p183 = scmp.lt.s32.totalorder %s10, 3
    %p184 = pnand %p182, %p183
    %p185 = pneg %p184
    // Predicated region
    $region33: #{_lambda_.22} parent=5 // pred_check
      _
    $region34: #{_lambda_.22} parent=5 // pred_check_branch
      %187 = sbr.rel (%p184) target = $region36
    $region35: #{_lambda_.22} parent=5 // pred_region
      %s188 = ssub.s32 %s10, 1
      %p189 = pneg %p43
      %p190 = pneg %p40
      %p191 = pneg %p64
      %p192 = pneg %p61
      %p193 = pneg %p85
      %p194 = pneg %p82
      %s195 = smul.u32 2, %s20
      %p196 = scmp.lt.s32.totalorder %s19, 1
      %s197 = scalar_select %p196, %s19, 1
      %p198 = scmp.lt.s32.totalorder %s195, 1
      %s199 = scalar_select %p198, %s195, 1
      %s200 = smul.addr %s197, 4
      %s201 = sadd.s32 %s199, %s200
      %s202 = smul.addr %s201, 4
      %s203 = scalar_lea.vmem %s3, %s202
      %p204 = pneg %p113
      %p205 = pneg %p110
      %p206 = pneg %p141
      %p207 = pneg %p138
      %s208 = smul.u32 2, %s20
      %p209 = scmp.lt.s32.totalorder %s19, 1
      %s210 = scalar_select %p209, %s19, 1
      %p211 = scmp.lt.s32.totalorder %s208, 1
      %s212 = scalar_select %p211, %s208, 1
      %s213 = smul.addr %s210, 6
      %s214 = sadd.s32 %s212, %s213
      %s215 = smul.addr %s214, 8
      %s216 = scalar_lea.vmem %s4, %s215
      %s217 = smul.u32 2, %s20
      %p218 = scmp.lt.s32.totalorder %s19, 1
      %s219 = scalar_select %p218, %s19, 1
      %p220 = scmp.lt.s32.totalorder %s217, 1
      %s221 = scalar_select %p220, %s217, 1
      %s222 = smul.addr %s219, 4
      %s223 = sadd.s32 %s221, %s222
      %s224 = smul.addr %s223, 4
      %s225 = scalar_lea.vmem %s3, %s224
      %s226 = smul.u32 2, %s20
      %s227 = smul.u32 2, %s20
      %p228 = scmp.lt.s32.totalorder %s19, 1
      %s229 = scalar_select %p228, %s19, 1
      %p230 = scmp.lt.s32.totalorder %s227, 1
      %s231 = scalar_select %p230, %s227, 1
      %s232 = smul.addr %s229, 6
      %s233 = sadd.s32 %s231, %s232
      %s234 = smul.addr %s233, 8
      %s235 = scalar_lea.vmem %s4, %s234
      %s236 = smul.u32 2, %s20
      %v238 = vld [vmem:[%s0] sm:$0xf]
      %v239 = vld [vmem:[%s0 + $0x4] sm:$0xf]
      %v240 = vld [vmem:[%s0 + $0x8] sm:$0x7]
      %v241 = vld [vmem:[%s225] sm:$0xff]
      %v242 = vld [vmem:[%s225 + $0x8] sm:$0xff]
      %v246 = vunpack.c.l.b16 %v238
      %v247 = vunpack.c.l.b16 %v239
      %v248 = vunpack.c.l.b16 %v240
      %v249 = vpack.c.b16 %v247, %v246
      %v250 = vpack.c.b16 %v248, %v248
      %v253 = vunpack.c.l.b16 %v241
      %v254 = vunpack.c.h.b16 %v241
      %v255 = vunpack.c.l.b16 %v242
      %v256 = vunpack.c.h.b16 %v242
      %v257 = vpack.c.b16 %v255, %v253
      %v258 = vpack.c.b16 %v256, %v254
      %vm261 = vcmask 130048
      %v263 = vsel %vm261, %v249, 0
      %v266 = vsel %vm261, %v250, 0
      %268 = vmatprep.subr.bf16.mxu0 %v258
      %269 = vmatpush1.bf16.msra.mxu0 %v257
      %270 = vmatprep.subr.bf16.mxu0 0
      %271 = vmatpush1.bf16.msra.mxu0 0
      %272 = vmatprep.subr.bf16.mxu0 0
      %273 = vmatpush1.bf16.msra.mxu0 0
      %274 = vmatprep.subr.bf16.mxu0 0
      %275 = vmatpush1.bf16.msra.mxu0 0
      %276 = vmatprep.subr.bf16.mxu0 0
      %277 = vmatpush1.bf16.msra.mxu0 0
      %278 = vmatprep.subr.bf16.mxu0 0
      %279 = vmatpush1.bf16.msra.mxu0 0
      %280 = vmatprep.subr.bf16.mxu0 0
      %281 = vmatpush1.bf16.msra.mxu0 0
      %282 = vmatprep.subr.bf16.mxu0 0
      %283 = vmatpush1.bf16.msra.mxu0 0
      %284 = vmatprep.subr.bf16.mxu0 0
      %285 = vmatpush1.bf16.msra.mxu0 0
      %286 = vmatprep.subr.bf16.mxu0 0
      %287 = vmatpush1.bf16.msra.mxu0 0
      %288 = vmatprep.subr.bf16.mxu0 0
      %289 = vmatpush1.bf16.msra.mxu0 0
      %290 = vmatprep.subr.bf16.mxu0 0
      %291 = vmatpush1.bf16.msra.mxu0 0
      %292 = vmatprep.subr.bf16.mxu0 0
      %293 = vmatpush1.bf16.msra.mxu0 0
      %294 = vmatprep.subr.bf16.mxu0 0
      %295 = vmatpush1.bf16.msra.mxu0 0
      %296 = vmatprep.subr.bf16.mxu0 0
      %297 = vmatpush1.bf16.msra.mxu0 0
      %298 = vmatprep.subr.bf16.mxu0 0
      %299 = vmatpush1.bf16.msra.mxu0 0
      %300 = vmatprep.mubr.bf16.mxu0 0
      %301 = vmatmul.mubr.bf16.gmra.mrb[0].mxu0 %v263
      %v302 = vpop.f32.mrb[0].mxu0
      %v303 = vadd.f32 0.0, %v302
      %v304 = vpop.f32.mrb[0].mxu0
      %v305 = vadd.f32 0.0, %v304
      %v306 = vpop.f32.mrb[0].mxu0
      %v307 = vadd.f32 0.0, %v306
      %v308 = vpop.f32.mrb[0].mxu0
      %v309 = vadd.f32 0.0, %v308
      %310 = vmatprep.mubr.bf16.mxu0 0
      %311 = vmatmul.mubr.bf16.gmra.mrb[0].mxu0 %v266
      %v312 = vpop.f32.mrb[0].mxu0
      %v313 = vadd.f32 0.0, %v312
      %v314 = vpop.f32.mrb[0].mxu0
      %v315 = vadd.f32 0.0, %v314
      %v316 = vpop.f32.mrb[0].mxu0
      %v317 = vpop.f32.mrb[0].mxu0
      %318 = vdwg.mxu0
      %v319 = vld [vmem:[%s1] sm:$0xff]
      %v320 = vld [vmem:[%s1 + $0x8] sm:$0xff]
      %v321 = vld [vmem:[%s1 + $0x10] sm:$0x1f]
      %323 = vset.pattern.permute.xlu0 0
      %324 = vperm.xlu0 %323, %v319
      %v325 = vpop.permute.xlu0 %324
      %328 = vset.pattern.permute.xlu0 0
      %329 = vperm.xlu0 %328, %v320
      %v330 = vpop.permute.xlu0 %329
      %333 = vset.pattern.permute.xlu0 0
      %334 = vperm.xlu0 %333, %v321
      %v335 = vpop.permute.xlu0 %334
      %v337 = vmul.f32 %v303, %v325
      %v338 = vmul.f32 %v305, %v325
      %v339 = vmul.f32 %v307, %v330
      %v340 = vmul.f32 %v309, %v330
      %v341 = vmul.f32 %v313, %v335
      %v342 = vmul.f32 %v315, %v335
      %v343 = vld [vmem:[%s2] sm:$0xff]
      %v344 = vld [vmem:[%s2 + $0x8] sm:$0xff]
      %v345 = vld [vmem:[%s2 + $0x10] sm:$0x1f]
      %347 = vset.pattern.permute.xlu0 0
      %348 = vperm.xlu0 %347, %v343
      %v349 = vpop.permute.xlu0 %348
      %352 = vset.pattern.permute.xlu0 0
      %353 = vperm.xlu0 %352, %v344
      %v354 = vpop.permute.xlu0 %353
      %357 = vset.pattern.permute.xlu0 0
      %358 = vperm.xlu0 %357, %v345
      %v359 = vpop.permute.xlu0 %358
      %v361 = vadd.f32 %v337, %v349
      %v362 = vadd.f32 %v338, %v349
      %v363 = vadd.f32 %v339, %v354
      %v364 = vadd.f32 %v340, %v354
      %v365 = vadd.f32 %v341, %v359
      %v366 = vadd.f32 %v342, %v359
      %367 = vst [vmem:[%s235] sm:$0xff] %v361
      %368 = vst [vmem:[%s235 + $0x8] sm:$0xff] %v362
      %369 = vst [vmem:[%s235 + $0x10] sm:$0xff] %v363
      %370 = vst [vmem:[%s235 + $0x18] sm:$0xff] %v364
      %371 = vst [vmem:[%s235 + $0x20] sm:$0x1f] %v365
      %372 = vst [vmem:[%s235 + $0x28] sm:$0x1f] %v366
      %s373 = smul.u32 2, %s20
      %p374 = scmp.lt.s32.totalorder %s19, 1
      %s375 = scalar_select %p374, %s19, 1
      %p376 = scmp.lt.s32.totalorder %s373, 1
      %s377 = scalar_select %p376, %s373, 1
      %s378 = smul.addr %s375, 6
      %s379 = sadd.s32 %s377, %s378
      %s380 = smul.addr %s379, 8
      %s381 = scalar_lea.vmem %s4, %s380
      // Predicated region
      $region37: #{_lambda_.22} parent=35 // pred_check
        %p382 = pneg %p138
      $region38: #{_lambda_.22} parent=35 // pred_check_branch
        %384 = sbr.rel (%p382) target = $region40
      $region39: #{_lambda_.22} parent=35 // pred_region
        %s385 = smul.u32 2, %s20
      $region40: #{_lambda_.22} parent=35 // pred_fallthru
        _
    $region36: #{_lambda_.22} parent=5 // pred_fallthru
      _
    %p386 = scmp.le.s32.totalorder 2, %s10
    // Predicated region
    $region41: #{_lambda_.22} parent=5 // pred_check
      %p387 = pneg %p386
    $region42: #{_lambda_.22} parent=5 // pred_check_branch
      %389 = sbr.rel (%p387) target = $region44
    $region43: #{_lambda_.22} parent=5 // pred_region
      %s390 = ssub.s32 %s10, 2
      // Predicated region
      $region45: #{_lambda_.22} parent=43 // pred_check
        %p391 = pneg %p144
      $region46: #{_lambda_.22} parent=43 // pred_check_branch
        %393 = sbr.rel (%p391) target = $region48
      $region47: #{_lambda_.22} parent=43 // pred_region
        %s394 = smul.u32 2, %s22
        %p395 = scmp.lt.s32.totalorder %s21, 1
        %s396 = scalar_select %p395, %s21, 1
        %p397 = scmp.lt.s32.totalorder %s394, 1
        %s398 = scalar_select %p397, %s394, 1
        %s399 = smul.addr %s396, 6
        %s400 = sadd.s32 %s398, %s399
        %s401 = smul.addr %s400, 8
        %s402 = scalar_lea.vmem %s4, %s401
      $region48: #{_lambda_.22} parent=43 // pred_fallthru
        _
    $region44: #{_lambda_.22} parent=5 // pred_fallthru
      _
  $region6: #{_lambda_.22} parent=0 // loop_footer
    %s14 = sadd.s32 1, %s10
  $region7: #{_lambda_.22} parent=0 // loop_footer_branch
    %9 = sbr.rel target = $region3
  $region8: #{_lambda_.22} parent=0 // loop_exit
    _

// kernel: _lambda_.23
$region0: #{_lambda_.23}
  #allocation0 [shape = 'u32[]', space=smem, size = 0x4, offset = 0x4, fixed_abs, tag = 'smem constant byte address 0x4 - core index']
  #allocation1 [shape = 'u32[144,128]{1,0:T(1,128)}', space=vmem, size = 0x12000, scoped, tag = 'internal scratch']
  %s0 = inlined_call_operand.vmem [shape: f32[21,256], index: 0, kind: input, shape index: {}]
  %s1 = inlined_call_operand.vmem [shape: f32[21,1], index: 1, kind: input, shape index: {}]
  %s2 = inlined_call_operand.vmem [shape: f32[21,1], index: 2, kind: input, shape index: {}]
  %s3 = inlined_call_operand.vmem [shape: f32[2,21,256], index: 3, kind: input, shape index: {}]
  %s4 = inlined_call_operand.vmem [shape: f32[2,21,256], index: 4, kind: output, shape index: {}]
  %s5 = sld [smem:[#allocation0]]
  $region49: #{_lambda_.23} parent=0
    _
  %s7 = ssub.s32 1, %s5
  %s8 = scalar_select 0, %s7, %s5
  loop: start=0, step=1, limit=4
  $region2: #{_lambda_.23} parent=0 // loop_pre_header
    _
  $region3: #{_lambda_.23} parent=0 // loop_header
    %s10 = sphi 0, %s14
    %p11 = scmp.ge.s32.totalorder %s10, 4
    %s18 = sphi 0, %s18
    %s20 = sphi 0, %s18
    %s21 = sphi 0, %s20
    %s35 = sphi 0, %s21
    %s39 = sphi 0, %s39
    %s41 = sphi 0, %s39
    %s42 = sphi 0, %s41
    %s56 = sphi 0, %s42
    %s60 = sphi 0, %s60
    %s62 = sphi 0, %s60
    %s63 = sphi 0, %s62
    %s77 = sphi 0, %s63
    %s83 = sphi 0, %s85
    %s86 = sphi 0, %s83
    %s87 = sphi 0, %s86
    %s103 = sphi 0, %s87
    %s109 = sphi 0, %s111
    %s112 = sphi 0, %s109
    %s113 = sphi 0, %s112
    %s129 = sphi 0, %s113
  $region4: #{_lambda_.23} parent=0 // loop_header_branch
    %13 = sbr.rel (%p11) target = $region8
  $region5: #{_lambda_.23} parent=0 // loop_body
    %s15 = ssub.s32 %s10, 1
    %s16 = ssub.s32 %s10, 2
    %s17 = sadd.s32 %s10, 1
    %s19 = sadd.s32 %s18, 1
    %p22 = scmp.eq.s32.totalorder %s10, 1
    %p23 = scmp.ne.s32.totalorder %s18, %s20
    %p24 = scmp.eq.s32.totalorder %s10, 0
    %p25 = por %p23, %p24
    %p26 = scmp.ne.s32.totalorder %s18, %s20
    %p27 = scmp.eq.s32.totalorder %s15, 1
    %p28 = por %p26, %p27
    %p29 = scmp.ne.s32.totalorder %s20, %s21
    %p30 = scmp.eq.s32.totalorder %s15, 0
    %p31 = por %p29, %p30
    %p32 = scmp.ne.s32.totalorder %s20, %s21
    %p33 = scmp.eq.s32.totalorder %s16, 1
    %p34 = por %p32, %p33
    %p36 = scmp.ne.s32.totalorder %s21, %s35
    %p37 = scmp.eq.s32.totalorder %s16, 0
    %p38 = por %p36, %p37
    %s40 = sadd.s32 %s39, 1
    %p43 = scmp.eq.s32.totalorder %s10, 1
    %p44 = scmp.ne.s32.totalorder %s39, %s41
    %p45 = scmp.eq.s32.totalorder %s10, 0
    %p46 = por %p44, %p45
    %p47 = scmp.ne.s32.totalorder %s39, %s41
    %p48 = scmp.eq.s32.totalorder %s15, 1
    %p49 = por %p47, %p48
    %p50 = scmp.ne.s32.totalorder %s41, %s42
    %p51 = scmp.eq.s32.totalorder %s15, 0
    %p52 = por %p50, %p51
    %p53 = scmp.ne.s32.totalorder %s41, %s42
    %p54 = scmp.eq.s32.totalorder %s16, 1
    %p55 = por %p53, %p54
    %p57 = scmp.ne.s32.totalorder %s42, %s56
    %p58 = scmp.eq.s32.totalorder %s16, 0
    %p59 = por %p57, %p58
    %s61 = sadd.s32 %s60, 1
    %p64 = scmp.eq.s32.totalorder %s10, 1
    %p65 = scmp.ne.s32.totalorder %s60, %s62
    %p66 = scmp.eq.s32.totalorder %s10, 0
    %p67 = por %p65, %p66
    %p68 = scmp.ne.s32.totalorder %s60, %s62
    %p69 = scmp.eq.s32.totalorder %s15, 1
    %p70 = por %p68, %p69
    %p71 = scmp.ne.s32.totalorder %s62, %s63
    %p72 = scmp.eq.s32.totalorder %s15, 0
    %p73 = por %p71, %p72
    %p74 = scmp.ne.s32.totalorder %s62, %s63
    %p75 = scmp.eq.s32.totalorder %s16, 1
    %p76 = por %p74, %p75
    %p78 = scmp.ne.s32.totalorder %s63, %s77
    %p79 = scmp.eq.s32.totalorder %s16, 0
    %p80 = por %p78, %p79
    %s81 = ssub.s32 %s10, %s17
    %p82 = scmp.eq.s32.totalorder %s81, 0
    %s84 = sadd.s32 %s83, 1
    %s85 = scalar_select %p82, %s83, %s84
    %p88 = pneg %p82
    %p89 = scmp.eq.s32.totalorder %s10, 1
    %p90 = por %p88, %p89
    %p91 = scmp.ne.s32.totalorder %s83, %s86
    %p92 = scmp.eq.s32.totalorder %s10, 0
    %p93 = por %p91, %p92
    %p94 = scmp.ne.s32.totalorder %s83, %s86
    %p95 = scmp.eq.s32.totalorder %s15, 1
    %p96 = por %p94, %p95
    %p97 = scmp.ne.s32.totalorder %s86, %s87
    %p98 = scmp.eq.s32.totalorder %s15, 0
    %p99 = por %p97, %p98
    %p100 = scmp.ne.s32.totalorder %s86, %s87
    %p101 = scmp.eq.s32.totalorder %s16, 1
    %p102 = por %p100, %p101
    %p104 = scmp.ne.s32.totalorder %s87, %s103
    %p105 = scmp.eq.s32.totalorder %s16, 0
    %p106 = por %p104, %p105
    %s107 = ssub.s32 %s10, %s17
    %p108 = scmp.eq.s32.totalorder %s107, 0
    %s110 = sadd.s32 %s109, 1
    %s111 = scalar_select %p108, %s109, %s110
    %p114 = pneg %p108
    %p115 = scmp.eq.s32.totalorder %s10, 1
    %p116 = por %p114, %p115
    %p117 = scmp.ne.s32.totalorder %s109, %s112
    %p118 = scmp.eq.s32.totalorder %s10, 0
    %p119 = por %p117, %p118
    %p120 = scmp.ne.s32.totalorder %s109, %s112
    %p121 = scmp.eq.s32.totalorder %s15, 1
    %p122 = por %p120, %p121
    %p123 = scmp.ne.s32.totalorder %s112, %s113
    %p124 = scmp.eq.s32.totalorder %s15, 0
    %p125 = por %p123, %p124
    %p126 = scmp.ne.s32.totalorder %s112, %s113
    %p127 = scmp.eq.s32.totalorder %s16, 1
    %p128 = por %p126, %p127
    %p130 = scmp.ne.s32.totalorder %s113, %s129
    %p131 = scmp.eq.s32.totalorder %s16, 0
    %p132 = por %p130, %p131
    %p133 = scmp.le.s32.totalorder 1, %s10
    %p134 = scmp.lt.s32.totalorder %s10, 3
    %p135 = pnand %p133, %p134
    %p136 = pneg %p135
    // Predicated region
    $region9: #{_lambda_.23} parent=5 // pred_check
      _
    $region10: #{_lambda_.23} parent=5 // pred_check_branch
      %138 = sbr.rel (%p135) target = $region12
    $region11: #{_lambda_.23} parent=5 // pred_region
      %s139 = ssub.s32 %s10, 1
      // Predicated region
      $region13: #{_lambda_.23} parent=11 // pred_check
        %p140 = pneg %p31
      $region14: #{_lambda_.23} parent=11 // pred_check_branch
        %142 = sbr.rel (%p140) target = $region16
      $region15: #{_lambda_.23} parent=11 // pred_region
        _
      $region16: #{_lambda_.23} parent=11 // pred_fallthru
        _
      // Predicated region
      $region17: #{_lambda_.23} parent=11 // pred_check
        %p143 = pneg %p52
      $region18: #{_lambda_.23} parent=11 // pred_check_branch
        %145 = sbr.rel (%p143) target = $region20
      $region19: #{_lambda_.23} parent=11 // pred_region
        _
      $region20: #{_lambda_.23} parent=11 // pred_fallthru
        _
      // Predicated region
      $region21: #{_lambda_.23} parent=11 // pred_check
        %p146 = pneg %p73
      $region22: #{_lambda_.23} parent=11 // pred_check_branch
        %148 = sbr.rel (%p146) target = $region24
      $region23: #{_lambda_.23} parent=11 // pred_region
        _
      $region24: #{_lambda_.23} parent=11 // pred_fallthru
        _
    $region12: #{_lambda_.23} parent=5 // pred_fallthru
      _
    %p149 = scmp.lt.s32.totalorder %s10, 2
    // Predicated region
    $region25: #{_lambda_.23} parent=5 // pred_check
      %p150 = pneg %p149
    $region26: #{_lambda_.23} parent=5 // pred_check_branch
      %152 = sbr.rel (%p150) target = $region28
    $region27: #{_lambda_.23} parent=5 // pred_region
      // Predicated region
      $region29: #{_lambda_.23} parent=27 // pred_check
        %p153 = pneg %p93
      $region30: #{_lambda_.23} parent=27 // pred_check_branch
        %155 = sbr.rel (%p153) target = $region32
      $region31: #{_lambda_.23} parent=27 // pred_region
        %p156 = scmp.lt.s32.totalorder %s10, 1
        %s157 = scalar_select %p156, %s10, 1
        %s158 = smul.addr %s157, 6
        %s159 = smul.addr %s158, 8
        %s160 = scalar_lea.vmem %s3, %s159
      $region32: #{_lambda_.23} parent=27 // pred_fallthru
        _
    $region28: #{_lambda_.23} parent=5 // pred_fallthru
      _
    %p161 = scmp.le.s32.totalorder 1, %s10
    %p162 = scmp.lt.s32.totalorder %s10, 3
    %p163 = pnand %p161, %p162
    %p164 = pneg %p163
    // Predicated region
    $region33: #{_lambda_.23} parent=5 // pred_check
      _
    $region34: #{_lambda_.23} parent=5 // pred_check_branch
      %166 = sbr.rel (%p163) target = $region36
    $region35: #{_lambda_.23} parent=5 // pred_region
      %s167 = ssub.s32 %s10, 1
      %p168 = pneg %p31
      %p169 = pneg %p28
      %p170 = pneg %p52
      %p171 = pneg %p49
      %p172 = pneg %p73
      %p173 = pneg %p70
      %p174 = scmp.lt.s32.totalorder %s15, 1
      %s175 = scalar_select %p174, %s15, 1
      %s176 = smul.addr %s175, 6
      %s177 = smul.addr %s176, 8
      %s178 = scalar_lea.vmem %s3, %s177
      %p179 = pneg %p99
      %p180 = pneg %p96
      %p181 = pneg %p125
      %p182 = pneg %p122
      %p183 = scmp.lt.s32.totalorder %s15, 1
      %s184 = scalar_select %p183, %s15, 1
      %s185 = smul.addr %s184, 6
      %s186 = smul.addr %s185, 8
      %s187 = scalar_lea.vmem %s4, %s186
      %p188 = scmp.lt.s32.totalorder %s15, 1
      %s189 = scalar_select %p188, %s15, 1
      %s190 = smul.addr %s189, 6
      %s191 = smul.addr %s190, 8
      %s192 = scalar_lea.vmem %s3, %s191
      %p193 = scmp.lt.s32.totalorder %s15, 1
      %s194 = scalar_select %p193, %s15, 1
      %s195 = smul.addr %s194, 6
      %s196 = smul.addr %s195, 8
      %s197 = scalar_lea.vmem %s4, %s196
      %v198 = vld [vmem:[%s192] sm:$0xff]
      %v199 = vld [vmem:[%s192 + $0x8] sm:$0xff]
      %v200 = vld [vmem:[%s192 + $0x10] sm:$0xff]
      %v201 = vld [vmem:[%s192 + $0x18] sm:$0xff]
      %v202 = vld [vmem:[%s192 + $0x20] sm:$0x1f]
      %v203 = vld [vmem:[%s192 + $0x28] sm:$0x1f]
      %v204 = vld [vmem:[%s2] sm:$0xff]
      %v205 = vld [vmem:[%s2 + $0x8] sm:$0xff]
      %v206 = vld [vmem:[%s2 + $0x10] sm:$0x1f]
      %vm207 = vcmp.gt.f32.partialorder %v204, 0.5
      %vm208 = vcmp.gt.f32.partialorder %v205, 0.5
      %vm209 = vcmp.gt.f32.partialorder %v206, 0.5
      %v210 = vsub.f32 0.0, %v198
      %v211 = vsub.f32 0.0, %v199
      %v212 = vsub.f32 0.0, %v200
      %v213 = vsub.f32 0.0, %v201
      %v214 = vsub.f32 0.0, %v202
      %v215 = vsub.f32 0.0, %v203
      %v216 = vmul.f32 %v210, 1.442695
      %v217 = vpow.pop %v216
      %v218 = vmul.f32 %v211, 1.442695
      %v219 = vpow.pop %v218
      %v220 = vmul.f32 %v212, 1.442695
      %v221 = vpow.pop %v220
      %v222 = vmul.f32 %v213, 1.442695
      %v223 = vpow.pop %v222
      %v224 = vmul.f32 %v214, 1.442695
      %v225 = vpow.pop %v224
      %v226 = vmul.f32 %v215, 1.442695
      %v227 = vpow.pop %v226
      %v228 = vadd.f32 %v217, 1.0
      %v229 = vadd.f32 %v219, 1.0
      %v230 = vadd.f32 %v221, 1.0
      %v231 = vadd.f32 %v223, 1.0
      %v232 = vadd.f32 %v225, 1.0
      %v233 = vadd.f32 %v227, 1.0
      %v234 = vrcp.pop %v228
      %v235 = vmul.f32 1.0, %v234
      %v236 = vrcp.pop %v229
      %v237 = vmul.f32 1.0, %v236
      %v238 = vrcp.pop %v230
      %v239 = vmul.f32 1.0, %v238
      %v240 = vrcp.pop %v231
      %v241 = vmul.f32 1.0, %v240
      %v242 = vrcp.pop %v232
      %v243 = vmul.f32 1.0, %v242
      %v244 = vrcp.pop %v233
      %v245 = vmul.f32 1.0, %v244
      %v246 = vmin.f32 %v198, 80.0
      %v247 = vmin.f32 %v199, 80.0
      %v248 = vmin.f32 %v200, 80.0
      %v249 = vmin.f32 %v201, 80.0
      %v250 = vmin.f32 %v202, 80.0
      %v251 = vmin.f32 %v203, 80.0
      %v252 = vmul.f32 %v246, 1.442695
      %v253 = vpow.pop %v252
      %v254 = vmul.f32 %v247, 1.442695
      %v255 = vpow.pop %v254
      %v256 = vmul.f32 %v248, 1.442695
      %v257 = vpow.pop %v256
      %v258 = vmul.f32 %v249, 1.442695
      %v259 = vpow.pop %v258
      %v260 = vmul.f32 %v250, 1.442695
      %v261 = vpow.pop %v260
      %v262 = vmul.f32 %v251, 1.442695
      %v263 = vpow.pop %v262
      %v264 = vld [vmem:[%s0] sm:$0xff]
      %v265 = vld [vmem:[%s0 + $0x8] sm:$0xff]
      %v266 = vld [vmem:[%s0 + $0x10] sm:$0xff]
      %v267 = vld [vmem:[%s0 + $0x18] sm:$0xff]
      %v268 = vld [vmem:[%s0 + $0x20] sm:$0x1f]
      %v269 = vld [vmem:[%s0 + $0x28] sm:$0x1f]
      %v270 = vadd.f32 %v235, %v264
      %v271 = vadd.f32 %v237, %v265
      %v272 = vadd.f32 %v239, %v266
      %v273 = vadd.f32 %v241, %v267
      %v274 = vadd.f32 %v243, %v268
      %v275 = vadd.f32 %v245, %v269
      %v276 = vsel %vm207, 1, 0
      %v277 = vsel %vm208, 1, 0
      %v278 = vsel %vm209, 1, 0
      %279 = vset.pattern.permute.xlu0 0
      %280 = vperm.xlu0 %279, %v276
      %v281 = vpop.permute.xlu0 %280
      %282 = vset.pattern.permute.xlu0 0
      %283 = vperm.xlu0 %282, %v277
      %v284 = vpop.permute.xlu0 %283
      %285 = vset.pattern.permute.xlu0 0
      %286 = vperm.xlu0 %285, %v278
      %v287 = vpop.permute.xlu0 %286
      %vm288 = vcmp.eq.s32.totalorder %v281, 1
      %vm289 = vcmp.eq.s32.totalorder %v284, 1
      %vm290 = vcmp.eq.s32.totalorder %v287, 1
      %v291 = vsel %vm288, %v253, %v270
      %v292 = vsel %vm288, %v255, %v271
      %v293 = vsel %vm289, %v257, %v272
      %v294 = vsel %vm289, %v259, %v273
      %v295 = vsel %vm290, %v261, %v274
      %v296 = vsel %vm290, %v263, %v275
      %v297 = vld [vmem:[%s1] sm:$0xff]
      %v298 = vld [vmem:[%s1 + $0x8] sm:$0xff]
      %v299 = vld [vmem:[%s1 + $0x10] sm:$0x1f]
      %301 = vset.pattern.permute.xlu0 0
      %302 = vperm.xlu0 %301, %v297
      %v303 = vpop.permute.xlu0 %302
      %306 = vset.pattern.permute.xlu0 0
      %307 = vperm.xlu0 %306, %v298
      %v308 = vpop.permute.xlu0 %307
      %311 = vset.pattern.permute.xlu0 0
      %312 = vperm.xlu0 %311, %v299
      %v313 = vpop.permute.xlu0 %312
      %v315 = vmul.f32 %v291, %v303
      %v316 = vmul.f32 %v292, %v303
      %v317 = vmul.f32 %v293, %v308
      %v318 = vmul.f32 %v294, %v308
      %v319 = vmul.f32 %v295, %v313
      %v320 = vmul.f32 %v296, %v313
      %321 = vst [vmem:[%s197] sm:$0xff] %v315
      %322 = vst [vmem:[%s197 + $0x8] sm:$0xff] %v316
      %323 = vst [vmem:[%s197 + $0x10] sm:$0xff] %v317
      %324 = vst [vmem:[%s197 + $0x18] sm:$0xff] %v318
      %325 = vst [vmem:[%s197 + $0x20] sm:$0x1f] %v319
      %326 = vst [vmem:[%s197 + $0x28] sm:$0x1f] %v320
      %p327 = scmp.lt.s32.totalorder %s15, 1
      %s328 = scalar_select %p327, %s15, 1
      %s329 = smul.addr %s328, 6
      %s330 = smul.addr %s329, 8
      %s331 = scalar_lea.vmem %s4, %s330
      // Predicated region
      $region37: #{_lambda_.23} parent=35 // pred_check
        %p332 = pneg %p122
      $region38: #{_lambda_.23} parent=35 // pred_check_branch
        %334 = sbr.rel (%p332) target = $region40
      $region39: #{_lambda_.23} parent=35 // pred_region
        _
      $region40: #{_lambda_.23} parent=35 // pred_fallthru
        _
    $region36: #{_lambda_.23} parent=5 // pred_fallthru
      _
    %p335 = scmp.le.s32.totalorder 2, %s10
    // Predicated region
    $region41: #{_lambda_.23} parent=5 // pred_check
      %p336 = pneg %p335
    $region42: #{_lambda_.23} parent=5 // pred_check_branch
      %338 = sbr.rel (%p336) target = $region44
    $region43: #{_lambda_.23} parent=5 // pred_region
      %s339 = ssub.s32 %s10, 2
      // Predicated region
      $region45: #{_lambda_.23} parent=43 // pred_check
        %p340 = pneg %p128
      $region46: #{_lambda_.23} parent=43 // pred_check_branch
        %342 = sbr.rel (%p340) target = $region48
      $region47: #{_lambda_.23} parent=43 // pred_region
        %p343 = scmp.lt.s32.totalorder %s16, 1
        %s344 = scalar_select %p343, %s16, 1
        %s345 = smul.addr %s344, 6
        %s346 = smul.addr %s345, 8
        %s347 = scalar_lea.vmem %s4, %s346
      $region48: #{_lambda_.23} parent=43 // pred_fallthru
        _
    $region44: #{_lambda_.23} parent=5 // pred_fallthru
      _
  $region6: #{_lambda_.23} parent=0 // loop_footer
    %s14 = sadd.s32 1, %s10
  $region7: #{_lambda_.23} parent=0 // loop_footer_branch
    %9 = sbr.rel target = $region3
  $region8: #{_lambda_.23} parent=0 // loop_exit
    _

// kernel: _lambda_.17
$region0: #{_lambda_.17}
  #allocation0 [shape = 'u32[]', space=smem, size = 0x4, offset = 0x4, fixed_abs, tag = 'smem constant byte address 0x4 - core index']
  #allocation1 [shape = 'u32[144,128]{1,0:T(1,128)}', space=vmem, size = 0x12000, scoped, tag = 'internal scratch']
  %s0 = inlined_call_operand.vmem [shape: bf16[21,32], index: 0, kind: input, shape index: {}]
  %s1 = inlined_call_operand.vmem [shape: f32[21,1], index: 1, kind: input, shape index: {}]
  %s2 = inlined_call_operand.vmem [shape: f32[21,1], index: 2, kind: input, shape index: {}]
  %s3 = inlined_call_operand.vmem [shape: bf16[2,32,64], index: 3, kind: input, shape index: {}]
  %s4 = inlined_call_operand.vmem [shape: f32[2,21,64], index: 4, kind: output, shape index: {}]
  %s5 = sld [smem:[#allocation0]]
  $region49: #{_lambda_.17} parent=0
    _
  %s7 = ssub.s32 1, %s5
  %s8 = scalar_select 0, %s7, %s5
  loop: start=0, step=1, limit=4
  $region2: #{_lambda_.17} parent=0 // loop_pre_header
    _
  $region3: #{_lambda_.17} parent=0 // loop_header
    %s10 = sphi 0, %s14
    %p11 = scmp.ge.s32.totalorder %s10, 4
    %s17 = sphi 0, %s29
    %s18 = sphi 0, %s25
    %s19 = sphi 0, %s17
    %s20 = sphi 0, %s18
    %s21 = sphi 0, %s19
    %s22 = sphi 0, %s20
    %s30 = sphi 0, %s30
    %s32 = sphi 0, %s30
    %s33 = sphi 0, %s32
    %s47 = sphi 0, %s33
    %s51 = sphi 0, %s51
    %s53 = sphi 0, %s51
    %s54 = sphi 0, %s53
    %s68 = sphi 0, %s54
    %s72 = sphi 0, %s72
    %s74 = sphi 0, %s72
    %s75 = sphi 0, %s74
    %s89 = sphi 0, %s75
    %s97 = sphi 0, %s99
    %s100 = sphi 0, %s97
    %s101 = sphi 0, %s100
    %s117 = sphi 0, %s101
    %s125 = sphi 0, %s127
    %s128 = sphi 0, %s125
    %s129 = sphi 0, %s128
    %s145 = sphi 0, %s129
  $region4: #{_lambda_.17} parent=0 // loop_header_branch
    %13 = sbr.rel (%p11) target = $region8
  $region5: #{_lambda_.17} parent=0 // loop_body
    %s15 = ssub.s32 %s10, 1
    %s16 = ssub.s32 %s10, 2
    %s23 = sadd.s32 1, %s18
    %p24 = scmp.ge.s32.totalorder %s23, 1
    %s25 = scalar_select %p24, 0, %s23
    %s26 = sadd.s32 1, %s17
    %s27 = scalar_select %p24, %s26, %s17
    %p28 = scmp.ge.s32.totalorder %s27, 2
    %s29 = scalar_select %p28, 0, %s27
    %s31 = sadd.s32 %s30, 1
    %p34 = scmp.eq.s32.totalorder %s10, 1
    %p35 = scmp.ne.s32.totalorder %s30, %s32
    %p36 = scmp.eq.s32.totalorder %s10, 0
    %p37 = por %p35, %p36
    %p38 = scmp.ne.s32.totalorder %s30, %s32
    %p39 = scmp.eq.s32.totalorder %s15, 1
    %p40 = por %p38, %p39
    %p41 = scmp.ne.s32.totalorder %s32, %s33
    %p42 = scmp.eq.s32.totalorder %s15, 0
    %p43 = por %p41, %p42
    %p44 = scmp.ne.s32.totalorder %s32, %s33
    %p45 = scmp.eq.s32.totalorder %s16, 1
    %p46 = por %p44, %p45
    %p48 = scmp.ne.s32.totalorder %s33, %s47
    %p49 = scmp.eq.s32.totalorder %s16, 0
    %p50 = por %p48, %p49
    %s52 = sadd.s32 %s51, 1
    %p55 = scmp.eq.s32.totalorder %s10, 1
    %p56 = scmp.ne.s32.totalorder %s51, %s53
    %p57 = scmp.eq.s32.totalorder %s10, 0
    %p58 = por %p56, %p57
    %p59 = scmp.ne.s32.totalorder %s51, %s53
    %p60 = scmp.eq.s32.totalorder %s15, 1
    %p61 = por %p59, %p60
    %p62 = scmp.ne.s32.totalorder %s53, %s54
    %p63 = scmp.eq.s32.totalorder %s15, 0
    %p64 = por %p62, %p63
    %p65 = scmp.ne.s32.totalorder %s53, %s54
    %p66 = scmp.eq.s32.totalorder %s16, 1
    %p67 = por %p65, %p66
    %p69 = scmp.ne.s32.totalorder %s54, %s68
    %p70 = scmp.eq.s32.totalorder %s16, 0
    %p71 = por %p69, %p70
    %s73 = sadd.s32 %s72, 1
    %p76 = scmp.eq.s32.totalorder %s10, 1
    %p77 = scmp.ne.s32.totalorder %s72, %s74
    %p78 = scmp.eq.s32.totalorder %s10, 0
    %p79 = por %p77, %p78
    %p80 = scmp.ne.s32.totalorder %s72, %s74
    %p81 = scmp.eq.s32.totalorder %s15, 1
    %p82 = por %p80, %p81
    %p83 = scmp.ne.s32.totalorder %s74, %s75
    %p84 = scmp.eq.s32.totalorder %s15, 0
    %p85 = por %p83, %p84
    %p86 = scmp.ne.s32.totalorder %s74, %s75
    %p87 = scmp.eq.s32.totalorder %s16, 1
    %p88 = por %p86, %p87
    %p90 = scmp.ne.s32.totalorder %s75, %s89
    %p91 = scmp.eq.s32.totalorder %s16, 0
    %p92 = por %p90, %p91
    %s93 = ssub.s32 %s17, %s29
    %s94 = ssub.s32 %s18, %s25
    %s95 = sor.u32 %s93, %s94
    %p96 = scmp.eq.s32.totalorder %s95, 0
    %s98 = sadd.s32 %s97, 1
    %s99 = scalar_select %p96, %s97, %s98
    %p102 = pneg %p96
    %p103 = scmp.eq.s32.totalorder %s10, 1
    %p104 = por %p102, %p103
    %p105 = scmp.ne.s32.totalorder %s97, %s100
    %p106 = scmp.eq.s32.totalorder %s10, 0
    %p107 = por %p105, %p106
    %p108 = scmp.ne.s32.totalorder %s97, %s100
    %p109 = scmp.eq.s32.totalorder %s15, 1
    %p110 = por %p108, %p109
    %p111 = scmp.ne.s32.totalorder %s100, %s101
    %p112 = scmp.eq.s32.totalorder %s15, 0
    %p113 = por %p111, %p112
    %p114 = scmp.ne.s32.totalorder %s100, %s101
    %p115 = scmp.eq.s32.totalorder %s16, 1
    %p116 = por %p114, %p115
    %p118 = scmp.ne.s32.totalorder %s101, %s117
    %p119 = scmp.eq.s32.totalorder %s16, 0
    %p120 = por %p118, %p119
    %s121 = ssub.s32 %s17, %s29
    %s122 = ssub.s32 %s18, %s25
    %s123 = sor.u32 %s121, %s122
    %p124 = scmp.eq.s32.totalorder %s123, 0
    %s126 = sadd.s32 %s125, 1
    %s127 = scalar_select %p124, %s125, %s126
    %p130 = pneg %p124
    %p131 = scmp.eq.s32.totalorder %s10, 1
    %p132 = por %p130, %p131
    %p133 = scmp.ne.s32.totalorder %s125, %s128
    %p134 = scmp.eq.s32.totalorder %s10, 0
    %p135 = por %p133, %p134
    %p136 = scmp.ne.s32.totalorder %s125, %s128
    %p137 = scmp.eq.s32.totalorder %s15, 1
    %p138 = por %p136, %p137
    %p139 = scmp.ne.s32.totalorder %s128, %s129
    %p140 = scmp.eq.s32.totalorder %s15, 0
    %p141 = por %p139, %p140
    %p142 = scmp.ne.s32.totalorder %s128, %s129
    %p143 = scmp.eq.s32.totalorder %s16, 1
    %p144 = por %p142, %p143
    %p146 = scmp.ne.s32.totalorder %s129, %s145
    %p147 = scmp.eq.s32.totalorder %s16, 0
    %p148 = por %p146, %p147
    %p149 = scmp.le.s32.totalorder 1, %s10
    %p150 = scmp.lt.s32.totalorder %s10, 3
    %p151 = pnand %p149, %p150
    %p152 = pneg %p151
    // Predicated region
    $region9: #{_lambda_.17} parent=5 // pred_check
      _
    $region10: #{_lambda_.17} parent=5 // pred_check_branch
      %154 = sbr.rel (%p151) target = $region12
    $region11: #{_lambda_.17} parent=5 // pred_region
      %s155 = ssub.s32 %s10, 1
      // Predicated region
      $region13: #{_lambda_.17} parent=11 // pred_check
        %p156 = pneg %p43
      $region14: #{_lambda_.17} parent=11 // pred_check_branch
        %158 = sbr.rel (%p156) target = $region16
      $region15: #{_lambda_.17} parent=11 // pred_region
        _
      $region16: #{_lambda_.17} parent=11 // pred_fallthru
        _
      // Predicated region
      $region17: #{_lambda_.17} parent=11 // pred_check
        %p159 = pneg %p64
      $region18: #{_lambda_.17} parent=11 // pred_check_branch
        %161 = sbr.rel (%p159) target = $region20
      $region19: #{_lambda_.17} parent=11 // pred_region
        _
      $region20: #{_lambda_.17} parent=11 // pred_fallthru
        _
      // Predicated region
      $region21: #{_lambda_.17} parent=11 // pred_check
        %p162 = pneg %p85
      $region22: #{_lambda_.17} parent=11 // pred_check_branch
        %164 = sbr.rel (%p162) target = $region24
      $region23: #{_lambda_.17} parent=11 // pred_region
        _
      $region24: #{_lambda_.17} parent=11 // pred_fallthru
        _
    $region12: #{_lambda_.17} parent=5 // pred_fallthru
      _
    %p165 = scmp.lt.s32.totalorder %s10, 2
    // Predicated region
    $region25: #{_lambda_.17} parent=5 // pred_check
      %p166 = pneg %p165
    $region26: #{_lambda_.17} parent=5 // pred_check_branch
      %168 = sbr.rel (%p166) target = $region28
    $region27: #{_lambda_.17} parent=5 // pred_region
      // Predicated region
      $region29: #{_lambda_.17} parent=27 // pred_check
        %p169 = pneg %p107
      $region30: #{_lambda_.17} parent=27 // pred_check_branch
        %171 = sbr.rel (%p169) target = $region32
      $region31: #{_lambda_.17} parent=27 // pred_region
        %p172 = scmp.lt.s32.totalorder %s17, 1
        %s173 = scalar_select %p172, %s17, 1
        %p174 = scmp.lt.s32.totalorder %s18, 0
        %s175 = scalar_select %p174, %s18, 0
        %s176 = smul.addr %s173, 4
        %s177 = sadd.s32 %s175, %s176
        %s178 = smul.addr %s177, 4
        %s179 = scalar_lea.vmem %s3, %s178
      $region32: #{_lambda_.17} parent=27 // pred_fallthru
        _
    $region28: #{_lambda_.17} parent=5 // pred_fallthru
      _
    %p180 = scmp.le.s32.totalorder 1, %s10
    %p181 = scmp.lt.s32.totalorder %s10, 3
    %p182 = pnand %p180, %p181
    %p183 = pneg %p182
    // Predicated region
    $region33: #{_lambda_.17} parent=5 // pred_check
      _
    $region34: #{_lambda_.17} parent=5 // pred_check_branch
      %185 = sbr.rel (%p182) target = $region36
    $region35: #{_lambda_.17} parent=5 // pred_region
      %s186 = ssub.s32 %s10, 1
      %p187 = pneg %p43
      %p188 = pneg %p40
      %p189 = pneg %p64
      %p190 = pneg %p61
      %p191 = pneg %p85
      %p192 = pneg %p82
      %p193 = scmp.lt.s32.totalorder %s19, 1
      %s194 = scalar_select %p193, %s19, 1
      %p195 = scmp.lt.s32.totalorder %s20, 0
      %s196 = scalar_select %p195, %s20, 0
      %s197 = smul.addr %s194, 4
      %s198 = sadd.s32 %s196, %s197
      %s199 = smul.addr %s198, 4
      %s200 = scalar_lea.vmem %s3, %s199
      %p201 = pneg %p113
      %p202 = pneg %p110
      %p203 = pneg %p141
      %p204 = pneg %p138
      %p205 = scmp.lt.s32.totalorder %s19, 1
      %s206 = scalar_select %p205, %s19, 1
      %p207 = scmp.lt.s32.totalorder %s20, 0
      %s208 = scalar_select %p207, %s20, 0
      %s209 = smul.addr %s206, 3
      %s210 = sadd.s32 %s208, %s209
      %s211 = smul.addr %s210, 8
      %s212 = scalar_lea.vmem %s4, %s211
      %p213 = scmp.lt.s32.totalorder %s19, 1
      %s214 = scalar_select %p213, %s19, 1
      %p215 = scmp.lt.s32.totalorder %s20, 0
      %s216 = scalar_select %p215, %s20, 0
      %s217 = smul.addr %s214, 4
      %s218 = sadd.s32 %s216, %s217
      %s219 = smul.addr %s218, 4
      %s220 = scalar_lea.vmem %s3, %s219
      %p221 = scmp.lt.s32.totalorder %s19, 1
      %s222 = scalar_select %p221, %s19, 1
      %p223 = scmp.lt.s32.totalorder %s20, 0
      %s224 = scalar_select %p223, %s20, 0
      %s225 = smul.addr %s222, 3
      %s226 = sadd.s32 %s224, %s225
      %s227 = smul.addr %s226, 8
      %s228 = scalar_lea.vmem %s4, %s227
      %v230 = vld [vmem:[%s0] sm:$0xf]
      %v231 = vld [vmem:[%s0 + $0x4] sm:$0xf]
      %v232 = vld [vmem:[%s0 + $0x8] sm:$0x7]
      %v233 = vld [vmem:[%s220] sm:$0xf]
      %v234 = vld [vmem:[%s220 + $0x4] sm:$0xf]
      %v235 = vld [vmem:[%s220 + $0x8] sm:$0xf]
      %v236 = vld [vmem:[%s220 + $0xc] sm:$0xf]
      %v240 = vunpack.c.l.b16 %v230
      %v241 = vunpack.c.l.b16 %v231
      %v242 = vunpack.c.l.b16 %v232
      %v243 = vpack.c.b16 %v241, %v240
      %v244 = vpack.c.b16 %v242, %v242
      %v249 = vunpack.c.l.b16 %v233
      %v250 = vunpack.c.l.b16 %v234
      %v251 = vunpack.c.l.b16 %v235
      %v252 = vunpack.c.l.b16 %v236
      %v253 = vpack.c.b16 %v250, %v249
      %v254 = vpack.c.b16 %v252, %v251
      %vm257 = vcmask 261120
      %v259 = vsel %vm257, %v243, 0
      %v262 = vsel %vm257, %v244, 0
      %264 = vmatprep.subr.bf16.mxu0 0
      %265 = vmatpush1.bf16.msra.mxu0 %v253
      %266 = vmatprep.subr.bf16.mxu0 0
      %267 = vmatpush1.bf16.msra.mxu0 %v254
      %268 = vmatprep.subr.bf16.mxu0 0
      %269 = vmatpush1.bf16.msra.mxu0 0
      %270 = vmatprep.subr.bf16.mxu0 0
      %271 = vmatpush1.bf16.msra.mxu0 0
      %272 = vmatprep.subr.bf16.mxu0 0
      %273 = vmatpush1.bf16.msra.mxu0 0
      %274 = vmatprep.subr.bf16.mxu0 0
      %275 = vmatpush1.bf16.msra.mxu0 0
      %276 = vmatprep.subr.bf16.mxu0 0
      %277 = vmatpush1.bf16.msra.mxu0 0
      %278 = vmatprep.subr.bf16.mxu0 0
      %279 = vmatpush1.bf16.msra.mxu0 0
      %280 = vmatprep.subr.bf16.mxu0 0
      %281 = vmatpush1.bf16.msra.mxu0 0
      %282 = vmatprep.subr.bf16.mxu0 0
      %283 = vmatpush1.bf16.msra.mxu0 0
      %284 = vmatprep.subr.bf16.mxu0 0
      %285 = vmatpush1.bf16.msra.mxu0 0
      %286 = vmatprep.subr.bf16.mxu0 0
      %287 = vmatpush1.bf16.msra.mxu0 0
      %288 = vmatprep.subr.bf16.mxu0 0
      %289 = vmatpush1.bf16.msra.mxu0 0
      %290 = vmatprep.subr.bf16.mxu0 0
      %291 = vmatpush1.bf16.msra.mxu0 0
      %292 = vmatprep.subr.bf16.mxu0 0
      %293 = vmatpush1.bf16.msra.mxu0 0
      %294 = vmatprep.subr.bf16.mxu0 0
      %295 = vmatpush1.bf16.msra.mxu0 0
      %296 = vmatprep.mubr.bf16.mxu0 0
      %297 = vmatmul.mubr.bf16.gmra.mrb[0].mxu0 %v259
      %v298 = vpop.f32.mrb[0].mxu0
      %v299 = vadd.f32 0.0, %v298
      %v300 = vpop.f32.mrb[0].mxu0
      %v301 = vpop.f32.mrb[0].mxu0
      %v302 = vadd.f32 0.0, %v301
      %v303 = vpop.f32.mrb[0].mxu0
      %304 = vmatprep.mubr.bf16.mxu0 0
      %305 = vmatmul.mubr.bf16.gmra.mrb[0].mxu0 %v262
      %v306 = vpop.f32.mrb[0].mxu0
      %v307 = vadd.f32 0.0, %v306
      %v308 = vpop.f32.mrb[0].mxu0
      %v309 = vpop.f32.mrb[0].mxu0
      %v310 = vpop.f32.mrb[0].mxu0
      %311 = vdwg.mxu0
      %v312 = vld [vmem:[%s1] sm:$0xff]
      %v313 = vld [vmem:[%s1 + $0x8] sm:$0xff]
      %v314 = vld [vmem:[%s1 + $0x10] sm:$0x1f]
      %316 = vset.pattern.permute.xlu0 0
      %317 = vperm.xlu0 %316, %v312
      %v318 = vpop.permute.xlu0 %317
      %321 = vset.pattern.permute.xlu0 0
      %322 = vperm.xlu0 %321, %v313
      %v323 = vpop.permute.xlu0 %322
      %326 = vset.pattern.permute.xlu0 0
      %327 = vperm.xlu0 %326, %v314
      %v328 = vpop.permute.xlu0 %327
      %v330 = vmul.f32 %v299, %v318
      %v331 = vmul.f32 %v302, %v323
      %v332 = vmul.f32 %v307, %v328
      %v333 = vld [vmem:[%s2] sm:$0xff]
      %v334 = vld [vmem:[%s2 + $0x8] sm:$0xff]
      %v335 = vld [vmem:[%s2 + $0x10] sm:$0x1f]
      %337 = vset.pattern.permute.xlu0 0
      %338 = vperm.xlu0 %337, %v333
      %v339 = vpop.permute.xlu0 %338
      %342 = vset.pattern.permute.xlu0 0
      %343 = vperm.xlu0 %342, %v334
      %v344 = vpop.permute.xlu0 %343
      %347 = vset.pattern.permute.xlu0 0
      %348 = vperm.xlu0 %347, %v335
      %v349 = vpop.permute.xlu0 %348
      %v351 = vadd.f32 %v330, %v339
      %v352 = vadd.f32 %v331, %v344
      %v353 = vadd.f32 %v332, %v349
      %vm354 = vcmask 523264
      %355 = vst.msk [vmem:[%s228] sm:$0xff] %vm354, %v351
      %356 = vst.msk [vmem:[%s228 + $0x8] sm:$0xff] %vm354, %v352
      %vm357 = vcmask 520192
      %358 = vst.msk [vmem:[%s228 + $0x10] sm:$0x1f] %vm357, %v353
      %p359 = scmp.lt.s32.totalorder %s19, 1
      %s360 = scalar_select %p359, %s19, 1
      %p361 = scmp.lt.s32.totalorder %s20, 0
      %s362 = scalar_select %p361, %s20, 0
      %s363 = smul.addr %s360, 3
      %s364 = sadd.s32 %s362, %s363
      %s365 = smul.addr %s364, 8
      %s366 = scalar_lea.vmem %s4, %s365
      // Predicated region
      $region37: #{_lambda_.17} parent=35 // pred_check
        %p367 = pneg %p138
      $region38: #{_lambda_.17} parent=35 // pred_check_branch
        %369 = sbr.rel (%p367) target = $region40
      $region39: #{_lambda_.17} parent=35 // pred_region
        _
      $region40: #{_lambda_.17} parent=35 // pred_fallthru
        _
    $region36: #{_lambda_.17} parent=5 // pred_fallthru
      _
    %p370 = scmp.le.s32.totalorder 2, %s10
    // Predicated region
    $region41: #{_lambda_.17} parent=5 // pred_check
      %p371 = pneg %p370
    $region42: #{_lambda_.17} parent=5 // pred_check_branch
      %373 = sbr.rel (%p371) target = $region44
    $region43: #{_lambda_.17} parent=5 // pred_region
      %s374 = ssub.s32 %s10, 2
      // Predicated region
      $region45: #{_lambda_.17} parent=43 // pred_check
        %p375 = pneg %p144
      $region46: #{_lambda_.17} parent=43 // pred_check_branch
        %377 = sbr.rel (%p375) target = $region48
      $region47: #{_lambda_.17} parent=43 // pred_region
        %p378 = scmp.lt.s32.totalorder %s21, 1
        %s379 = scalar_select %p378, %s21, 1
        %p380 = scmp.lt.s32.totalorder %s22, 0
        %s381 = scalar_select %p380, %s22, 0
        %s382 = smul.addr %s379, 3
        %s383 = sadd.s32 %s381, %s382
        %s384 = smul.addr %s383, 8
        %s385 = scalar_lea.vmem %s4, %s384
      $region48: #{_lambda_.17} parent=43 // pred_fallthru
        _
    $region44: #{_lambda_.17} parent=5 // pred_fallthru
      _
  $region6: #{_lambda_.17} parent=0 // loop_footer
    %s14 = sadd.s32 1, %s10
  $region7: #{_lambda_.17} parent=0 // loop_footer_branch
    %9 = sbr.rel target = $region3
  $region8: #{_lambda_.17} parent=0 // loop_exit
    _

// kernel: _lambda_.18
$region0: #{_lambda_.18}
  #allocation0 [shape = 'u32[]', space=smem, size = 0x4, offset = 0x4, fixed_abs, tag = 'smem constant byte address 0x4 - core index']
  #allocation1 [shape = 'u32[144,128]{1,0:T(1,128)}', space=vmem, size = 0x12000, scoped, tag = 'internal scratch']
  %s0 = inlined_call_operand.vmem [shape: f32[21,64], index: 0, kind: input, shape index: {}]
  %s1 = inlined_call_operand.vmem [shape: f32[21,1], index: 1, kind: input, shape index: {}]
  %s2 = inlined_call_operand.vmem [shape: f32[21,1], index: 2, kind: input, shape index: {}]
  %s3 = inlined_call_operand.vmem [shape: f32[2,21,64], index: 3, kind: input, shape index: {}]
  %s4 = inlined_call_operand.vmem [shape: f32[2,21,64], index: 4, kind: output, shape index: {}]
  %s5 = sld [smem:[#allocation0]]
  $region49: #{_lambda_.18} parent=0
    _
  %s7 = ssub.s32 1, %s5
  %s8 = scalar_select 0, %s7, %s5
  loop: start=0, step=1, limit=4
  $region2: #{_lambda_.18} parent=0 // loop_pre_header
    _
  $region3: #{_lambda_.18} parent=0 // loop_header
    %s10 = sphi 0, %s14
    %p11 = scmp.ge.s32.totalorder %s10, 4
    %s18 = sphi 0, %s18
    %s20 = sphi 0, %s18
    %s21 = sphi 0, %s20
    %s35 = sphi 0, %s21
    %s39 = sphi 0, %s39
    %s41 = sphi 0, %s39
    %s42 = sphi 0, %s41
    %s56 = sphi 0, %s42
    %s60 = sphi 0, %s60
    %s62 = sphi 0, %s60
    %s63 = sphi 0, %s62
    %s77 = sphi 0, %s63
    %s83 = sphi 0, %s85
    %s86 = sphi 0, %s83
    %s87 = sphi 0, %s86
    %s103 = sphi 0, %s87
    %s109 = sphi 0, %s111
    %s112 = sphi 0, %s109
    %s113 = sphi 0, %s112
    %s129 = sphi 0, %s113
  $region4: #{_lambda_.18} parent=0 // loop_header_branch
    %13 = sbr.rel (%p11) target = $region8
  $region5: #{_lambda_.18} parent=0 // loop_body
    %s15 = ssub.s32 %s10, 1
    %s16 = ssub.s32 %s10, 2
    %s17 = sadd.s32 %s10, 1
    %s19 = sadd.s32 %s18, 1
    %p22 = scmp.eq.s32.totalorder %s10, 1
    %p23 = scmp.ne.s32.totalorder %s18, %s20
    %p24 = scmp.eq.s32.totalorder %s10, 0
    %p25 = por %p23, %p24
    %p26 = scmp.ne.s32.totalorder %s18, %s20
    %p27 = scmp.eq.s32.totalorder %s15, 1
    %p28 = por %p26, %p27
    %p29 = scmp.ne.s32.totalorder %s20, %s21
    %p30 = scmp.eq.s32.totalorder %s15, 0
    %p31 = por %p29, %p30
    %p32 = scmp.ne.s32.totalorder %s20, %s21
    %p33 = scmp.eq.s32.totalorder %s16, 1
    %p34 = por %p32, %p33
    %p36 = scmp.ne.s32.totalorder %s21, %s35
    %p37 = scmp.eq.s32.totalorder %s16, 0
    %p38 = por %p36, %p37
    %s40 = sadd.s32 %s39, 1
    %p43 = scmp.eq.s32.totalorder %s10, 1
    %p44 = scmp.ne.s32.totalorder %s39, %s41
    %p45 = scmp.eq.s32.totalorder %s10, 0
    %p46 = por %p44, %p45
    %p47 = scmp.ne.s32.totalorder %s39, %s41
    %p48 = scmp.eq.s32.totalorder %s15, 1
    %p49 = por %p47, %p48
    %p50 = scmp.ne.s32.totalorder %s41, %s42
    %p51 = scmp.eq.s32.totalorder %s15, 0
    %p52 = por %p50, %p51
    %p53 = scmp.ne.s32.totalorder %s41, %s42
    %p54 = scmp.eq.s32.totalorder %s16, 1
    %p55 = por %p53, %p54
    %p57 = scmp.ne.s32.totalorder %s42, %s56
    %p58 = scmp.eq.s32.totalorder %s16, 0
    %p59 = por %p57, %p58
    %s61 = sadd.s32 %s60, 1
    %p64 = scmp.eq.s32.totalorder %s10, 1
    %p65 = scmp.ne.s32.totalorder %s60, %s62
    %p66 = scmp.eq.s32.totalorder %s10, 0
    %p67 = por %p65, %p66
    %p68 = scmp.ne.s32.totalorder %s60, %s62
    %p69 = scmp.eq.s32.totalorder %s15, 1
    %p70 = por %p68, %p69
    %p71 = scmp.ne.s32.totalorder %s62, %s63
    %p72 = scmp.eq.s32.totalorder %s15, 0
    %p73 = por %p71, %p72
    %p74 = scmp.ne.s32.totalorder %s62, %s63
    %p75 = scmp.eq.s32.totalorder %s16, 1
    %p76 = por %p74, %p75
    %p78 = scmp.ne.s32.totalorder %s63, %s77
    %p79 = scmp.eq.s32.totalorder %s16, 0
    %p80 = por %p78, %p79
    %s81 = ssub.s32 %s10, %s17
    %p82 = scmp.eq.s32.totalorder %s81, 0
    %s84 = sadd.s32 %s83, 1
    %s85 = scalar_select %p82, %s83, %s84
    %p88 = pneg %p82
    %p89 = scmp.eq.s32.totalorder %s10, 1
    %p90 = por %p88, %p89
    %p91 = scmp.ne.s32.totalorder %s83, %s86
    %p92 = scmp.eq.s32.totalorder %s10, 0
    %p93 = por %p91, %p92
    %p94 = scmp.ne.s32.totalorder %s83, %s86
    %p95 = scmp.eq.s32.totalorder %s15, 1
    %p96 = por %p94, %p95
    %p97 = scmp.ne.s32.totalorder %s86, %s87
    %p98 = scmp.eq.s32.totalorder %s15, 0
    %p99 = por %p97, %p98
    %p100 = scmp.ne.s32.totalorder %s86, %s87
    %p101 = scmp.eq.s32.totalorder %s16, 1
    %p102 = por %p100, %p101
    %p104 = scmp.ne.s32.totalorder %s87, %s103
    %p105 = scmp.eq.s32.totalorder %s16, 0
    %p106 = por %p104, %p105
    %s107 = ssub.s32 %s10, %s17
    %p108 = scmp.eq.s32.totalorder %s107, 0
    %s110 = sadd.s32 %s109, 1
    %s111 = scalar_select %p108, %s109, %s110
    %p114 = pneg %p108
    %p115 = scmp.eq.s32.totalorder %s10, 1
    %p116 = por %p114, %p115
    %p117 = scmp.ne.s32.totalorder %s109, %s112
    %p118 = scmp.eq.s32.totalorder %s10, 0
    %p119 = por %p117, %p118
    %p120 = scmp.ne.s32.totalorder %s109, %s112
    %p121 = scmp.eq.s32.totalorder %s15, 1
    %p122 = por %p120, %p121
    %p123 = scmp.ne.s32.totalorder %s112, %s113
    %p124 = scmp.eq.s32.totalorder %s15, 0
    %p125 = por %p123, %p124
    %p126 = scmp.ne.s32.totalorder %s112, %s113
    %p127 = scmp.eq.s32.totalorder %s16, 1
    %p128 = por %p126, %p127
    %p130 = scmp.ne.s32.totalorder %s113, %s129
    %p131 = scmp.eq.s32.totalorder %s16, 0
    %p132 = por %p130, %p131
    %p133 = scmp.le.s32.totalorder 1, %s10
    %p134 = scmp.lt.s32.totalorder %s10, 3
    %p135 = pnand %p133, %p134
    %p136 = pneg %p135
    // Predicated region
    $region9: #{_lambda_.18} parent=5 // pred_check
      _
    $region10: #{_lambda_.18} parent=5 // pred_check_branch
      %138 = sbr.rel (%p135) target = $region12
    $region11: #{_lambda_.18} parent=5 // pred_region
      %s139 = ssub.s32 %s10, 1
      // Predicated region
      $region13: #{_lambda_.18} parent=11 // pred_check
        %p140 = pneg %p31
      $region14: #{_lambda_.18} parent=11 // pred_check_branch
        %142 = sbr.rel (%p140) target = $region16
      $region15: #{_lambda_.18} parent=11 // pred_region
        _
      $region16: #{_lambda_.18} parent=11 // pred_fallthru
        _
      // Predicated region
      $region17: #{_lambda_.18} parent=11 // pred_check
        %p143 = pneg %p52
      $region18: #{_lambda_.18} parent=11 // pred_check_branch
        %145 = sbr.rel (%p143) target = $region20
      $region19: #{_lambda_.18} parent=11 // pred_region
        _
      $region20: #{_lambda_.18} parent=11 // pred_fallthru
        _
      // Predicated region
      $region21: #{_lambda_.18} parent=11 // pred_check
        %p146 = pneg %p73
      $region22: #{_lambda_.18} parent=11 // pred_check_branch
        %148 = sbr.rel (%p146) target = $region24
      $region23: #{_lambda_.18} parent=11 // pred_region
        _
      $region24: #{_lambda_.18} parent=11 // pred_fallthru
        _
    $region12: #{_lambda_.18} parent=5 // pred_fallthru
      _
    %p149 = scmp.lt.s32.totalorder %s10, 2
    // Predicated region
    $region25: #{_lambda_.18} parent=5 // pred_check
      %p150 = pneg %p149
    $region26: #{_lambda_.18} parent=5 // pred_check_branch
      %152 = sbr.rel (%p150) target = $region28
    $region27: #{_lambda_.18} parent=5 // pred_region
      // Predicated region
      $region29: #{_lambda_.18} parent=27 // pred_check
        %p153 = pneg %p93
      $region30: #{_lambda_.18} parent=27 // pred_check_branch
        %155 = sbr.rel (%p153) target = $region32
      $region31: #{_lambda_.18} parent=27 // pred_region
        %p156 = scmp.lt.s32.totalorder %s10, 1
        %s157 = scalar_select %p156, %s10, 1
        %s158 = smul.addr %s157, 3
        %s159 = smul.addr %s158, 8
        %s160 = scalar_lea.vmem %s3, %s159
      $region32: #{_lambda_.18} parent=27 // pred_fallthru
        _
    $region28: #{_lambda_.18} parent=5 // pred_fallthru
      _
    %p161 = scmp.le.s32.totalorder 1, %s10
    %p162 = scmp.lt.s32.totalorder %s10, 3
    %p163 = pnand %p161, %p162
    %p164 = pneg %p163
    // Predicated region
    $region33: #{_lambda_.18} parent=5 // pred_check
      _
    $region34: #{_lambda_.18} parent=5 // pred_check_branch
      %166 = sbr.rel (%p163) target = $region36
    $region35: #{_lambda_.18} parent=5 // pred_region
      %s167 = ssub.s32 %s10, 1
      %p168 = pneg %p31
      %p169 = pneg %p28
      %p170 = pneg %p52
      %p171 = pneg %p49
      %p172 = pneg %p73
      %p173 = pneg %p70
      %p174 = scmp.lt.s32.totalorder %s15, 1
      %s175 = scalar_select %p174, %s15, 1
      %s176 = smul.addr %s175, 3
      %s177 = smul.addr %s176, 8
      %s178 = scalar_lea.vmem %s3, %s177
      %p179 = pneg %p99
      %p180 = pneg %p96
      %p181 = pneg %p125
      %p182 = pneg %p122
      %p183 = scmp.lt.s32.totalorder %s15, 1
      %s184 = scalar_select %p183, %s15, 1
      %s185 = smul.addr %s184, 3
      %s186 = smul.addr %s185, 8
      %s187 = scalar_lea.vmem %s4, %s186
      %p188 = scmp.lt.s32.totalorder %s15, 1
      %s189 = scalar_select %p188, %s15, 1
      %s190 = smul.addr %s189, 3
      %s191 = smul.addr %s190, 8
      %s192 = scalar_lea.vmem %s3, %s191
      %p193 = scmp.lt.s32.totalorder %s15, 1
      %s194 = scalar_select %p193, %s15, 1
      %s195 = smul.addr %s194, 3
      %s196 = smul.addr %s195, 8
      %s197 = scalar_lea.vmem %s4, %s196
      %v198 = vld [vmem:[%s192] sm:$0xff]
      %v199 = vld [vmem:[%s192 + $0x8] sm:$0xff]
      %v200 = vld [vmem:[%s192 + $0x10] sm:$0x1f]
      %v201 = vld [vmem:[%s2] sm:$0xff]
      %v202 = vld [vmem:[%s2 + $0x8] sm:$0xff]
      %v203 = vld [vmem:[%s2 + $0x10] sm:$0x1f]
      %vm204 = vcmp.gt.f32.partialorder %v201, 0.5
      %vm205 = vcmp.gt.f32.partialorder %v202, 0.5
      %vm206 = vcmp.gt.f32.partialorder %v203, 0.5
      %v207 = vsub.f32 0.0, %v198
      %v208 = vsub.f32 0.0, %v199
      %v209 = vsub.f32 0.0, %v200
      %v210 = vmul.f32 %v207, 1.442695
      %v211 = vpow.pop %v210
      %v212 = vmul.f32 %v208, 1.442695
      %v213 = vpow.pop %v212
      %v214 = vmul.f32 %v209, 1.442695
      %v215 = vpow.pop %v214
      %v216 = vadd.f32 %v211, 1.0
      %v217 = vadd.f32 %v213, 1.0
      %v218 = vadd.f32 %v215, 1.0
      %v219 = vrcp.pop %v216
      %v220 = vmul.f32 1.0, %v219
      %v221 = vrcp.pop %v217
      %v222 = vmul.f32 1.0, %v221
      %v223 = vrcp.pop %v218
      %v224 = vmul.f32 1.0, %v223
      %v225 = vmin.f32 %v198, 80.0
      %v226 = vmin.f32 %v199, 80.0
      %v227 = vmin.f32 %v200, 80.0
      %v228 = vmul.f32 %v225, 1.442695
      %v229 = vpow.pop %v228
      %v230 = vmul.f32 %v226, 1.442695
      %v231 = vpow.pop %v230
      %v232 = vmul.f32 %v227, 1.442695
      %v233 = vpow.pop %v232
      %v234 = vld [vmem:[%s0] sm:$0xff]
      %v235 = vld [vmem:[%s0 + $0x8] sm:$0xff]
      %v236 = vld [vmem:[%s0 + $0x10] sm:$0x1f]
      %v237 = vadd.f32 %v220, %v234
      %v238 = vadd.f32 %v222, %v235
      %v239 = vadd.f32 %v224, %v236
      %v240 = vsel %vm204, 1, 0
      %v241 = vsel %vm205, 1, 0
      %v242 = vsel %vm206, 1, 0
      %243 = vset.pattern.permute.xlu0 0
      %244 = vperm.xlu0 %243, %v240
      %v245 = vpop.permute.xlu0 %244
      %246 = vset.pattern.permute.xlu0 0
      %247 = vperm.xlu0 %246, %v241
      %v248 = vpop.permute.xlu0 %247
      %249 = vset.pattern.permute.xlu0 0
      %250 = vperm.xlu0 %249, %v242
      %v251 = vpop.permute.xlu0 %250
      %vm252 = vcmp.eq.s32.totalorder %v245, 1
      %vm253 = vcmp.eq.s32.totalorder %v248, 1
      %vm254 = vcmp.eq.s32.totalorder %v251, 1
      %v255 = vsel %vm252, %v229, %v237
      %v256 = vsel %vm253, %v231, %v238
      %v257 = vsel %vm254, %v233, %v239
      %v258 = vld [vmem:[%s1] sm:$0xff]
      %v259 = vld [vmem:[%s1 + $0x8] sm:$0xff]
      %v260 = vld [vmem:[%s1 + $0x10] sm:$0x1f]
      %262 = vset.pattern.permute.xlu0 0
      %263 = vperm.xlu0 %262, %v258
      %v264 = vpop.permute.xlu0 %263
      %267 = vset.pattern.permute.xlu0 0
      %268 = vperm.xlu0 %267, %v259
      %v269 = vpop.permute.xlu0 %268
      %272 = vset.pattern.permute.xlu0 0
      %273 = vperm.xlu0 %272, %v260
      %v274 = vpop.permute.xlu0 %273
      %v276 = vmul.f32 %v255, %v264
      %v277 = vmul.f32 %v256, %v269
      %v278 = vmul.f32 %v257, %v274
      %vm279 = vcmask 523264
      %280 = vst.msk [vmem:[%s197] sm:$0xff] %vm279, %v276
      %281 = vst.msk [vmem:[%s197 + $0x8] sm:$0xff] %vm279, %v277
      %vm282 = vcmask 520192
      %283 = vst.msk [vmem:[%s197 + $0x10] sm:$0x1f] %vm282, %v278
      %p284 = scmp.lt.s32.totalorder %s15, 1
      %s285 = scalar_select %p284, %s15, 1
      %s286 = smul.addr %s285, 3
      %s287 = smul.addr %s286, 8
      %s288 = scalar_lea.vmem %s4, %s287
      // Predicated region
      $region37: #{_lambda_.18} parent=35 // pred_check
        %p289 = pneg %p122
      $region38: #{_lambda_.18} parent=35 // pred_check_branch
        %291 = sbr.rel (%p289) target = $region40
      $region39: #{_lambda_.18} parent=35 // pred_region
        _
      $region40: #{_lambda_.18} parent=35 // pred_fallthru
        _
    $region36: #{_lambda_.18} parent=5 // pred_fallthru
      _
    %p292 = scmp.le.s32.totalorder 2, %s10
    // Predicated region
    $region41: #{_lambda_.18} parent=5 // pred_check
      %p293 = pneg %p292
    $region42: #{_lambda_.18} parent=5 // pred_check_branch
      %295 = sbr.rel (%p293) target = $region44
    $region43: #{_lambda_.18} parent=5 // pred_region
      %s296 = ssub.s32 %s10, 2
      // Predicated region
      $region45: #{_lambda_.18} parent=43 // pred_check
        %p297 = pneg %p128
      $region46: #{_lambda_.18} parent=43 // pred_check_branch
        %299 = sbr.rel (%p297) target = $region48
      $region47: #{_lambda_.18} parent=43 // pred_region
        %p300 = scmp.lt.s32.totalorder %s16, 1
        %s301 = scalar_select %p300, %s16, 1
        %s302 = smul.addr %s301, 3
        %s303 = smul.addr %s302, 8
        %s304 = scalar_lea.vmem %s4, %s303
      $region48: #{_lambda_.18} parent=43 // pred_fallthru
        _
    $region44: #{_lambda_.18} parent=5 // pred_fallthru
      _
  $region6: #{_lambda_.18} parent=0 // loop_footer
    %s14 = sadd.s32 1, %s10
  $region7: #{_lambda_.18} parent=0 // loop_footer_branch
    %9 = sbr.rel target = $region3
  $region8: #{_lambda_.18} parent=0 // loop_exit
    _

</llo_original>
